<compile_context>
chip_gen: v7x
topology: tpu7x:2x2x1
jax: 0.10.0
libtpu: 0.0.40
codegen_flags: <defaults>
</compile_context>

<pallas_src>
import functools

import jax
import jax.numpy as jnp
from jax.experimental import pallas as pl
from jax.experimental.pallas import tpu as pltpu

# ----------------------------------------------------------------------------
# Small-model configuration (shapes consistent with VQVAE_251 / DiTRefiner,
# scaled down for a quick synthetic test).
# ----------------------------------------------------------------------------
CFG = dict(
    output_dim=32,        # motion feature dim (263 in the real model)
    width=64,             # conv width (512 in the real model)
    depth=2,              # resnet depth per down/up block (3 in real model)
    down_t=2,
    stride_t=2,
    dilation_growth_rate=3,
    code_dim=32,
    output_emb_width=32,
    nb_code=256,          # 8192 in the real model
    embed_dim=64,         # DiT embed dim (256 in real model)
    num_heads=4,
    mlp_ratio=4,
    dit_depth=2,
)

BF16 = jnp.bfloat16


def _apply_act(r, act):
    if act == "relu":
        return jnp.maximum(r, 0.0)
    if act == "silu":
        return r * jax.nn.sigmoid(r)
    if act == "gelu":
        # TODO(synk): torch nn.GELU default is exact erf; tanh approx used here
        # (EUP friendly, small numerical difference).
        return jax.nn.gelu(r, approximate=True)
    return r


def _row_block(m):
    """Only split the row axis when it is large enough to amortize the
    ~0.35us per-grid-step overhead (single-TC v5e/v6e) and to feed v7x's two
    TensorCores.  Tiny matmuls run as one grid step."""
    if m >= 256 and m % 16 == 0:
        return m // 2
    return m


def _nbytes(arrs):
    return sum(int(a.size) * a.dtype.itemsize for a in arrs)


# ----------------------------------------------------------------------------
# Pallas kernel 1: single-shot matmul + bias + fused activation (bf16 MXU)
# ----------------------------------------------------------------------------
def _matmul_kernel(x_ref, w_ref, b_ref, o_ref, *, act):
    r = jnp.dot(x_ref[...].astype(BF16), w_ref[...].astype(BF16),
                preferred_element_type=jnp.float32) + b_ref[...]
    o_ref[...] = _apply_act(r, act).astype(o_ref.dtype)


def matmul_bias_act(x, w, b=None, act="none"):
    """x: (M, K) @ w: (K, N) + b: (1, N) -> (M, N)."""
    M, K = x.shape
    K2, N = w.shape
    assert K == K2
    if b is None:
        b = jnp.zeros((1, N), jnp.float32)
    b = b.reshape(1, N)
    bm = _row_block(M)
    return pl.pallas_call(
        functools.partial(_matmul_kernel, act=act),
        out_shape=jax.ShapeDtypeStruct((M, N), jnp.float32),
        grid_spec=pltpu.PrefetchScalarGridSpec(
            num_scalar_prefetch=0,
            grid=(M // bm,),
            in_specs=[pl.BlockSpec((bm, K), lambda i: (i, 0)),
                      pl.BlockSpec((K, N), lambda i: (0, 0)),
                      pl.BlockSpec((1, N), lambda i: (0, 0))],
            out_specs=pl.BlockSpec((bm, N), lambda i: (i, 0)),
        ),
        compiler_params=pltpu.CompilerParams(
            dimension_semantics=("parallel",)),
    )(x, w, b)


# ----------------------------------------------------------------------------
# Pallas kernel 2: stride-1 Conv1d -- dilated taps concatenated in-kernel into
# one (T, K*Cin)@(K*Cin, Cout) bf16 matmul, fused pre-ReLU / bias / act /
# residual add.
# ----------------------------------------------------------------------------
def _conv_s1_kernel(x_ref, w_ref, b_ref, *rest,
                    taps, dilation, act, pre_relu, has_residual):
    if has_residual:
        res_ref, o_ref = rest
    else:
        (o_ref,) = rest
    t_out = o_ref.shape[1]

    xin = x_ref[0]                                      # (Tp, Cin) f32
    if pre_relu:
        xin = jnp.maximum(xin, 0.0)

    if taps == 1:
        patch = xin
    else:
        patch = jnp.concatenate(
            [xin[kk * dilation: kk * dilation + t_out, :] for kk in range(taps)],
            axis=-1)                                    # (t_out, K*Cin)
    r = jnp.dot(patch.astype(BF16), w_ref[...],
                preferred_element_type=jnp.float32) + b_ref[...]
    r = _apply_act(r, act)
    if has_residual:
        r = r + res_ref[0]
    o_ref[0] = r


def conv1d(x, w, b, stride=1, padding=0, dilation=1, act="none",
           pre_relu=False, residual=None):
    """Conv1d, channels-last x: (N, T, Cin); w: (K, Cin, Cout) bf16; b: (1, Cout)."""
    N, T, Cin = x.shape
    K, _, Cout = w.shape
    xp = jnp.pad(x, ((0, 0), (padding, padding), (0, 0))) if padding else x
    Tp = xp.shape[1]
    Tout = (Tp - dilation * (K - 1) - 1) // stride + 1
    w2d = w.reshape(K * Cin, Cout)

    if stride != 1:
        # TODO(synk): strided (downsample) convs keep XLA im2col + matmul;
        # only 2 tiny ones in the model.  Stride-1 convs use the fused kernel.
        cols = [xp[:, kk * dilation: kk * dilation + (Tout - 1) * stride + 1: stride, :]
                for kk in range(K)]
        patches = jnp.concatenate(cols, axis=-1).reshape(N * Tout, K * Cin)
        y = matmul_bias_act(patches, w2d, b, act=act)
        return y.reshape(N, Tout, Cout)

    in_specs = [pl.BlockSpec((1, Tp, Cin), lambda i: (i, 0, 0)),
                pl.BlockSpec((K * Cin, Cout), lambda i: (0, 0)),
                pl.BlockSpec((1, Cout), lambda i: (0, 0))]
    inputs = [xp, w2d, b]
    if residual is not None:
        in_specs.append(pl.BlockSpec((1, Tout, Cout), lambda i: (i, 0, 0)))
        inputs.append(residual)

    return pl.pallas_call(
        functools.partial(_conv_s1_kernel, taps=K, dilation=dilation, act=act,
                          pre_relu=pre_relu,
                          has_residual=residual is not None),
        out_shape=jax.ShapeDtypeStruct((N, Tout, Cout), jnp.float32),
        grid_spec=pltpu.PrefetchScalarGridSpec(
            num_scalar_prefetch=0,
            grid=(N,),
            in_specs=in_specs,
            out_specs=pl.BlockSpec((1, Tout, Cout), lambda i: (i, 0, 0)),
        ),
        compiler_params=pltpu.CompilerParams(
            dimension_semantics=("parallel",)),
    )(*inputs)


# ----------------------------------------------------------------------------
# Pallas kernel 3: VQ codebook search (codebook resident, bf16 distance matmul,
# commit loss + perplexity accumulated across grid steps)
# ----------------------------------------------------------------------------
def _vq_kernel(x_ref, cb_ref, cb2_ref, xd_ref, loss_ref, ppl_ref,
               cnt_ref, sse_ref, *, inv_md):
    i = pl.program_id(0)

    @pl.when(i == 0)
    def _():
        cnt_ref[...] = jnp.zeros_like(cnt_ref)
        sse_ref[...] = jnp.zeros_like(sse_ref)

    x = x_ref[...]                                     # (bm, D) f32
    cb = cb_ref[...]                                   # (C, D)  f32
    C = cb.shape[0]

    # argmin_c ||x - cb_c||^2 == argmin_c (||cb_c||^2 - 2 x.cb_c)
    cross = jax.lax.dot_general(x.astype(BF16), cb.astype(BF16),
                                (((1,), (1,)), ((), ())),
                                preferred_element_type=jnp.float32)   # (bm, C)
    dist = cb2_ref[...] - 2.0 * cross

    min_val = jnp.min(dist, axis=-1, keepdims=True)
    iota = jax.lax.broadcasted_iota(jnp.int32, dist.shape, 1)
    idx = jnp.min(jnp.where(dist <= min_val, iota, C), axis=-1, keepdims=True)
    onehot = (iota == idx).astype(jnp.float32)          # (bm, C)

    # TODO(synk): at real nb_code=8192 replace the 0/1 selection matmul with a
    # row gather from the VMEM-resident codebook and tile the C axis.
    xd = jnp.dot(onehot, cb, preferred_element_type=jnp.float32)      # (bm, D)
    xd_ref[...] = xd

    diff = x - xd
    row = jnp.sum(diff * diff, axis=-1, keepdims=True)                # (bm, 1)
    sse_ref[...] += jnp.sum(row, axis=0, keepdims=True)
    cnt_ref[...] += jnp.sum(onehot, axis=0, keepdims=True)            # (1, C)

    @pl.when(i == pl.num_programs(0) - 1)
    def _():
        loss_ref[...] = sse_ref[...] * inv_md
        total = jnp.sum(cnt_ref[...], axis=-1, keepdims=True)         # (1, 1)
        prob = cnt_ref[...] / total
        ent = jnp.sum(prob * jnp.log(prob + 1e-7), axis=-1, keepdims=True)
        ppl_ref[...] = jnp.exp(-ent)


def _vq_row_block(m):
    if m <= 256:
        return m
    for cand in (256, 128, 64, 32, 16, 8):
        if m % cand == 0:
            return cand
    return m


def vq_quantize(x_flat, codebook):
    M, D = x_flat.shape
    C = codebook.shape[0]
    cb2 = jnp.sum(codebook * codebook, axis=-1)[None, :]               # (1, C)
    bm = _vq_row_block(M)
    ce = pl.CostEstimate(
        flops=int(4 * M * C * D),
        transcendentals=int(C),
        bytes_accessed=_nbytes([x_flat, codebook, cb2]) + M * D * 4 + 8)
    xd, loss, ppl = pl.pallas_call(
        functools.partial(_vq_kernel, inv_md=1.0 / float(M * D)),
        out_shape=(jax.ShapeDtypeStruct((M, D), jnp.float32),
                   jax.ShapeDtypeStruct((1, 1), jnp.float32),
                   jax.ShapeDtypeStruct((1, 1), jnp.float32)),
        grid_spec=pltpu.PrefetchScalarGridSpec(
            num_scalar_prefetch=0,
            grid=(M // bm,),
            in_specs=[pl.BlockSpec((bm, D), lambda i: (i, 0)),
                      pl.BlockSpec((C, D), lambda i: (0, 0)),
                      pl.BlockSpec((1, C), lambda i: (0, 0))],
            out_specs=(pl.BlockSpec((bm, D), lambda i: (i, 0)),
                       pl.BlockSpec((1, 1), lambda i: (0, 0)),
                       pl.BlockSpec((1, 1), lambda i: (0, 0))),
            scratch_shapes=[pltpu.VMEM((1, C), jnp.float32),
                            pltpu.VMEM((1, 1), jnp.float32)],
        ),
        compiler_params=pltpu.CompilerParams(
            dimension_semantics=("arbitrary",)),
        cost_estimate=ce,
    )(x_flat, codebook, cb2)
    return xd, loss[0, 0], ppl[0, 0]


# ----------------------------------------------------------------------------
# Pallas kernel 4: fused conditioning (timestep MLP + SiLUs + all adaLN mods)
# ----------------------------------------------------------------------------
def _cond_kernel(temb_ref, w1_ref, b1_ref, w2_ref, b2_ref, wa_ref, ba_ref,
                 o_ref):
    h = jnp.dot(temb_ref[...].astype(BF16), w1_ref[...],
                preferred_element_type=jnp.float32) + b1_ref[...]
    h = h * jax.nn.sigmoid(h)                          # SiLU between t-MLP layers
    c = jnp.dot(h.astype(BF16), w2_ref[...],
                preferred_element_type=jnp.float32) + b2_ref[...]
    c = c * jax.nn.sigmoid(c)                          # adaLN's leading SiLU, folded
    o_ref[...] = jnp.dot(c.astype(BF16), wa_ref[...],
                         preferred_element_type=jnp.float32) + ba_ref[...]


def cond_forward(p, temb):
    B, E = temb.shape
    Nout = p["wa"].shape[1]
    return pl.pallas_call(
        _cond_kernel,
        out_shape=jax.ShapeDtypeStruct((B, Nout), jnp.float32),
        grid_spec=pltpu.PrefetchScalarGridSpec(
            num_scalar_prefetch=0,
            grid=(1,),
            in_specs=[pl.BlockSpec((B, E), lambda i: (0, 0)),
                      pl.BlockSpec((E, E), lambda i: (0, 0)),
                      pl.BlockSpec((1, E), lambda i: (0, 0)),
                      pl.BlockSpec((E, E), lambda i: (0, 0)),
                      pl.BlockSpec((1, E), lambda i: (0, 0)),
                      pl.BlockSpec((E, Nout), lambda i: (0, 0)),
                      pl.BlockSpec((1, Nout), lambda i: (0, 0))],
            out_specs=pl.BlockSpec((B, Nout), lambda i: (0, 0)),
        ),
    )(temb, p["t_w1"], p["t_b1"], p["t_w2"], p["t_b2"], p["wa"], p["ba"])


# ----------------------------------------------------------------------------
# Pallas kernel 5: the entire DiT trunk in ONE call, grid = (B, dit_depth).
#   d == 0     : x-embedding prologue (two weight halves, no host concat)
#   every d    : adaLN-LN, fused-QKV attention, gated residual, adaLN-LN, MLP,
#                gated residual (weights indexed by d, prefetched by BlockSpec)
#   d == last  : final adaLN-LN + linear epilogue
# ----------------------------------------------------------------------------
def _ln_modulate(v, shift, scale, eps):
    mu = jnp.mean(v, axis=-1, keepdims=True)
    vc = v - mu
    var = jnp.mean(vc * vc, axis=-1, keepdims=True)
    return (vc * jax.lax.rsqrt(var + eps)) * (1.0 + scale) + shift


def _dit_fused_kernel(xt_ref, vo_ref, mod_ref, fin_ref,
                      wemb1_ref, wemb2_ref, bemb_ref,
                      wqkv_ref, bqkv_ref, wproj_ref, bproj_ref,
                      wfc1_ref, bfc1_ref, wfc2_ref, bfc2_ref,
                      wfin_ref, bfin_ref, o_ref, x_sc,
                      *, num_heads, eps):
    d = pl.program_id(1)
    last = pl.num_programs(1) - 1

    @pl.when(d == 0)
    def _():
        x_sc[...] = (
            jnp.dot(xt_ref[0].astype(BF16), wemb1_ref[...],
                    preferred_element_type=jnp.float32)
            + jnp.dot(vo_ref[0].astype(BF16), wemb2_ref[...],
                      preferred_element_type=jnp.float32)
            + bemb_ref[...])

    x = x_sc[...]                                      # (T, E) f32 residual stream
    mod = mod_ref[0, 0]                                # (6, E)
    sh_a, sc_a, g_a = mod[0:1], mod[1:2], mod[2:3]
    sh_m, sc_m, g_m = mod[3:4], mod[4:5], mod[5:6]

    T, E = x.shape
    Dh = E // num_heads
    scale = Dh ** -0.5

    # ---- attention branch (fused QKV, per-head scores only) ----------------
    h = _ln_modulate(x, sh_a, sc_a, eps).astype(BF16)
    qkv = jnp.dot(h, wqkv_ref[0],
                  preferred_element_type=jnp.float32) + bqkv_ref[0]   # (T, 3E)
    q, k, v = qkv[:, :E], qkv[:, E:2 * E], qkv[:, 2 * E:]
    heads = []
    for hh in range(num_heads):                        # static, small H
        sl = slice(hh * Dh, (hh + 1) * Dh)
        qh = q[:, sl].astype(BF16)
        kh = k[:, sl].astype(BF16)
        vh = v[:, sl].astype(BF16)
        s = jax.lax.dot_general(qh, kh, (((1,), (1,)), ((), ())),
                                preferred_element_type=jnp.float32) * scale
        m = jnp.max(s, axis=-1, keepdims=True)
        pr = jnp.exp(s - m)
        pr = pr * pl.reciprocal(jnp.sum(pr, axis=-1, keepdims=True), approx=True)
        heads.append(jnp.dot(pr.astype(BF16), vh,
                             preferred_element_type=jnp.float32))     # (T, Dh)
    attn = jnp.concatenate(heads, axis=-1).astype(BF16)               # (T, E)
    attn = jnp.dot(attn, wproj_ref[0],
                   preferred_element_type=jnp.float32) + bproj_ref[0]
    x = x + g_a * attn

    # ---- MLP branch ---------------------------------------------------------
    h2 = _ln_modulate(x, sh_m, sc_m, eps).astype(BF16)
    m1 = jnp.dot(h2, wfc1_ref[0],
                 preferred_element_type=jnp.float32) + bfc1_ref[0]
    m1 = jax.nn.gelu(m1, approximate=True).astype(BF16)
    m2 = jnp.dot(m1, wfc2_ref[0],
                 preferred_element_type=jnp.float32) + bfc2_ref[0]
    x = x + g_m * m2
    x_sc[...] = x

    # ---- final layer epilogue ----------------------------------------------
    @pl.when(d == last)
    def _():
        fin = fin_ref[0]                               # (2, E)
        hf = _ln_modulate(x, fin[0:1], fin[1:2], eps).astype(BF16)
        o_ref[0] = (jnp.dot(hf, wfin_ref[...],
                            preferred_element_type=jnp.float32) + bfin_ref[...])


def dit_fused(p, x_t, vae_out, mod, fin, num_heads):
    B, T, Din = x_t.shape
    depth, E, _ = p["wqkv"].shape
    ME = p["wfc1"].shape[2]
    Dout = p["wfin"].shape[1]
    Dh = E // num_heads

    flops = int(B * (4 * T * Din * E
                     + depth * (2 * T * E * 3 * E
                                + 4 * num_heads * T * T * Dh
                                + 2 * T * E * E
                                + 4 * T * E * ME)
                     + 2 * T * E * Dout))
    transc = int(B * depth * (T * T + T * ME))
    inputs = (x_t, vae_out, mod, fin, p["wemb1"], p["wemb2"], p["bemb"],
              p["wqkv"], p["bqkv"], p["wproj"], p["bproj"],
              p["wfc1"], p["bfc1"], p["wfc2"], p["bfc2"], p["wfin"], p["bfin"])
    ce = pl.CostEstimate(flops=flops, transcendentals=transc,
                         bytes_accessed=_nbytes(inputs) + B * T * Dout * 4)

    return pl.pallas_call(
        functools.partial(_dit_fused_kernel, num_heads=num_heads, eps=1e-6),
        out_shape=jax.ShapeDtypeStruct((B, T, Dout), jnp.float32),
        grid_spec=pltpu.PrefetchScalarGridSpec(
            num_scalar_prefetch=0,
            grid=(B, depth),
            in_specs=[
                pl.BlockSpec((1, T, Din), lambda b, d: (b, 0, 0)),      # x_t
                pl.BlockSpec((1, T, Din), lambda b, d: (b, 0, 0)),      # vae_out
                pl.BlockSpec((1, 1, 6, E), lambda b, d: (b, d, 0, 0)),  # per-block mod
                pl.BlockSpec((1, 2, E), lambda b, d: (b, 0, 0)),        # final mod
                pl.BlockSpec((Din, E), lambda b, d: (0, 0)),            # wemb1
                pl.BlockSpec((Din, E), lambda b, d: (0, 0)),            # wemb2
                pl.BlockSpec((1, E), lambda b, d: (0, 0)),              # bemb
                pl.BlockSpec((1, E, 3 * E), lambda b, d: (d, 0, 0)),    # wqkv
                pl.BlockSpec((1, 1, 3 * E), lambda b, d: (d, 0, 0)),    # bqkv
                pl.BlockSpec((1, E, E), lambda b, d: (d, 0, 0)),        # wproj
                pl.BlockSpec((1, 1, E), lambda b, d: (d, 0, 0)),        # bproj
                pl.BlockSpec((1, E, ME), lambda b, d: (d, 0, 0)),       # wfc1
                pl.BlockSpec((1, 1, ME), lambda b, d: (d, 0, 0)),       # bfc1
                pl.BlockSpec((1, ME, E), lambda b, d: (d, 0, 0)),       # wfc2
                pl.BlockSpec((1, 1, E), lambda b, d: (d, 0, 0)),        # bfc2
                pl.BlockSpec((E, Dout), lambda b, d: (0, 0)),           # wfin
                pl.BlockSpec((1, Dout), lambda b, d: (0, 0)),           # bfin
            ],
            out_specs=pl.BlockSpec((1, T, Dout), lambda b, d: (b, 0, 0)),
            scratch_shapes=[pltpu.VMEM((T, E), jnp.float32)],
        ),
        compiler_params=pltpu.CompilerParams(
            dimension_semantics=("parallel", "arbitrary")),
        cost_estimate=ce,
    )(*inputs)


# ----------------------------------------------------------------------------
# Parameter initialization (deterministic, synthetic, kernel-friendly layouts)
# ----------------------------------------------------------------------------
class KeyGen:
    def __init__(self, key):
        self.key = key

    def __call__(self):
        self.key, k = jax.random.split(self.key)
        return k


def _normal(kg, shape, scale=0.02):
    return scale * jax.random.normal(kg(), shape, dtype=jnp.float32)


def init_params(key):
    kg = KeyGen(key)
    w = CFG["width"]
    dd = CFG["output_dim"]
    emb = CFG["output_emb_width"]

    def conv_p(cin, cout, k):
        return {"w": _normal(kg, (k, cin, cout)).astype(BF16),
                "b": jnp.zeros((1, cout), jnp.float32)}

    def res_p():
        return [{"conv1": conv_p(w, w, 3), "conv2": conv_p(w, w, 1)}
                for _ in range(CFG["depth"])]

    enc = {"conv_in": conv_p(dd, w, 3),
           "downs": [{"conv": conv_p(w, w, CFG["stride_t"] * 2), "res": res_p()}
                     for _ in range(CFG["down_t"])],
           "conv_out": conv_p(w, emb, 3)}
    dec = {"conv_in": conv_p(emb, w, 3),
           "ups": [{"res": res_p(), "conv": conv_p(w, w, 3)}
                   for _ in range(CFG["down_t"])],
           "conv_mid": conv_p(w, w, 3),
           "conv_out": conv_p(w, dd, 3)}
    codebook = _normal(kg, (CFG["nb_code"], CFG["code_dim"]), scale=1.0)

    E = CFG["embed_dim"]
    ME = CFG["mlp_ratio"] * E
    Dd = CFG["dit_depth"]
    dit = {
        # x-embedding: weight split so concat(x_t, vae_out) is never built
        "wemb1": _normal(kg, (dd, E)).astype(BF16),
        "wemb2": _normal(kg, (dd, E)).astype(BF16),
        "bemb": jnp.zeros((1, E), jnp.float32),
        # timestep MLP
        "t_w1": _normal(kg, (E, E)).astype(BF16),
        "t_b1": jnp.zeros((1, E), jnp.float32),
        "t_w2": _normal(kg, (E, E)).astype(BF16),
        "t_b2": jnp.zeros((1, E), jnp.float32),
        # all per-block adaLN modulations + final adaLN in ONE matmul
        "wa": _normal(kg, (E, (6 * Dd + 2) * E)).astype(BF16),
        "ba": jnp.zeros((1, (6 * Dd + 2) * E), jnp.float32),
        # stacked per-block weights (leading depth axis)
        "wqkv": _normal(kg, (Dd, E, 3 * E)).astype(BF16),
        "bqkv": jnp.zeros((Dd, 1, 3 * E), jnp.float32),
        "wproj": _normal(kg, (Dd, E, E)).astype(BF16),
        "bproj": jnp.zeros((Dd, 1, E), jnp.float32),
        "wfc1": _normal(kg, (Dd, E, ME)).astype(BF16),
        "bfc1": jnp.zeros((Dd, 1, ME), jnp.float32),
        "wfc2": _normal(kg, (Dd, ME, E)).astype(BF16),
        "bfc2": jnp.zeros((Dd, 1, E), jnp.float32),
        # final layer
        "wfin": _normal(kg, (E, dd)).astype(BF16),
        "bfin": jnp.zeros((1, dd), jnp.float32),
    }
    return {"enc": enc, "dec": dec, "codebook": codebook, "dit": dit}


# ----------------------------------------------------------------------------
# VQ-VAE (Encoder / Quantizer / Decoder) forward
# ----------------------------------------------------------------------------
def _dilations():
    return [CFG["dilation_growth_rate"] ** d for d in range(CFG["depth"])][::-1]


def resnet1d(p_list, x):
    for rb, dil in zip(p_list, _dilations()):
        # relu -> conv1(dilated) -> relu   (pre/post act fused into the kernel)
        h = conv1d(x, rb["conv1"]["w"], rb["conv1"]["b"],
                   padding=dil, dilation=dil, act="relu", pre_relu=True)
        # conv2(1x1) with fused residual add
        x = conv1d(h, rb["conv2"]["w"], rb["conv2"]["b"], residual=x)
    return x


def encoder_fwd(p, x):
    st = CFG["stride_t"]
    x = conv1d(x, p["conv_in"]["w"], p["conv_in"]["b"], padding=1, act="relu")
    for db in p["downs"]:
        x = conv1d(x, db["conv"]["w"], db["conv"]["b"],
                   stride=st, padding=st // 2)
        x = resnet1d(db["res"], x)
    return conv1d(x, p["conv_out"]["w"], p["conv_out"]["b"], padding=1)


def decoder_fwd(p, x):
    x = conv1d(x, p["conv_in"]["w"], p["conv_in"]["b"], padding=1, act="relu")
    for ub in p["ups"]:
        x = resnet1d(ub["res"], x)
        # TODO(synk): at real width=512 fuse this nearest-neighbor upsample into
        # the following conv kernel to avoid the HBM round-trip.
        x = jnp.repeat(x, CFG["stride_t"], axis=1)
        x = conv1d(x, ub["conv"]["w"], ub["conv"]["b"], padding=1)
    x = conv1d(x, p["conv_mid"]["w"], p["conv_mid"]["b"], padding=1, act="relu")
    return conv1d(x, p["conv_out"]["w"], p["conv_out"]["b"], padding=1)


def vqvae_fwd(p, x):
    z = encoder_fwd(p["enc"], x)                       # (N, Td, code_dim)
    N, Td, D = z.shape
    xd, loss, ppl = vq_quantize(z.reshape(N * Td, D), p["codebook"])
    xq = xd.reshape(N, Td, D)                          # straight-through == xd (eval)
    out = decoder_fwd(p["dec"], xq)                    # (N, T, output_dim)
    return out, loss, ppl


# ----------------------------------------------------------------------------
# DiT refiner forward
# ----------------------------------------------------------------------------
def timestep_embedding(t, dim, max_period=10000.0):
    half = dim // 2
    freqs = jnp.exp(-jnp.log(max_period) *
                    jnp.arange(half, dtype=jnp.float32) / half)
    args = t.astype(jnp.float32)[:, None] * freqs[None, :]
    return jnp.concatenate([jnp.cos(args), jnp.sin(args)], axis=-1)


def dit_forward(p, x_t, t, vae_out):
    E = CFG["embed_dim"]
    depth = CFG["dit_depth"]
    B = x_t.shape[0]

    temb = timestep_embedding(t, E)
    all_mod = cond_forward(p, temb)                    # (B, (6*depth+2)*E)
    mod = all_mod[:, :6 * depth * E].reshape(B, depth, 6, E)
    fin = all_mod[:, 6 * depth * E:].reshape(B, 2, E)
    return dit_fused(p, x_t, vae_out, mod, fin, CFG["num_heads"])


# ----------------------------------------------------------------------------
# MMM_DiT.forward(x_t, t, x_origin)
# ----------------------------------------------------------------------------
def mmm_dit_forward(params, x_t, t, x_origin):
    vae_out, loss, ppl = vqvae_fwd(params, x_origin)
    refiner_out = dit_forward(params["dit"], x_t, t, vae_out)
    return refiner_out, (loss, ppl, vae_out)


if __name__ == "__main__":
    params = init_params(jax.random.PRNGKey(1))

    key = jax.random.PRNGKey(0)
    kx, kt = jax.random.split(key)
    N, T, D = 2, 16, CFG["output_dim"]
    x_origin = jax.random.normal(kx, (N, T, D), dtype=jnp.float32)
    x_t = jax.random.normal(kt, (N, T, D), dtype=jnp.float32)
    t = jnp.array([3.0, 7.0], dtype=jnp.float32)

    fwd = jax.jit(mmm_dit_forward)
    refiner_out, (loss, ppl, vae_out) = fwd(params, x_t, t, x_origin)
    jax.block_until_ready((refiner_out, loss, ppl, vae_out))

    assert refiner_out.shape == (N, T, D)
    assert vae_out.shape == (N, T, D)
    assert loss.shape == () and ppl.shape == ()
    assert jnp.all(jnp.isfinite(refiner_out))
    assert jnp.all(jnp.isfinite(vae_out))
    assert jnp.isfinite(loss) and jnp.isfinite(ppl)
    print("KERNEL_OK")
</pallas_src>

<mosaic_0001>
module attributes {stable_mosaic.version = 11 : i64} {
  func.func @_conv_s1_kernel(%arg0: i32, %arg1: memref<1x18x32xf32, #tpu.memory_space<vmem>>, %arg2: memref<96x64xbf16, #tpu.memory_space<vmem>>, %arg3: memref<1x64xf32, #tpu.memory_space<vmem>>, %arg4: memref<1x16x64xf32, #tpu.memory_space<vmem>>) attributes {dimension_semantics = [#tpu.dimension_semantics<parallel>], iteration_bounds = array<i64: 2>, scalar_prefetch = 0 : i64, scratch_operands = 0 : i64, tpu.core_type = #tpu.core_type<tc>, window_params = [{transform_indices = @transform_0, window_bounds = array<i64: 1, 18, 32>}, {pipeline_mode = #tpu.pipeline_mode<synchronous>, transform_indices = @transform_1, window_bounds = array<i64: 96, 64>}, {pipeline_mode = #tpu.pipeline_mode<synchronous>, transform_indices = @transform_2, window_bounds = array<i64: 1, 64>}, {transform_indices = @transform_3, window_bounds = array<i64: 1, 16, 64>}]} {
    %c0 = arith.constant 0 : index
    %c0_0 = arith.constant 0 : index
    %c0_1 = arith.constant 0 : index
    %0 = vector.load %arg1[%c0, %c0_0, %c0_1] : memref<1x18x32xf32, #tpu.memory_space<vmem>>, vector<1x18x32xf32>
    %1 = vector.shape_cast %0 : vector<1x18x32xf32> to vector<18x32xf32>
    %2 = vector.extract_strided_slice %1 {offsets = [0, 0], sizes = [16, 32], strides = [1, 1]} : vector<18x32xf32> to vector<16x32xf32>
    %3 = vector.extract_strided_slice %1 {offsets = [1, 0], sizes = [16, 32], strides = [1, 1]} : vector<18x32xf32> to vector<16x32xf32>
    %4 = vector.extract_strided_slice %1 {offsets = [2, 0], sizes = [16, 32], strides = [1, 1]} : vector<18x32xf32> to vector<16x32xf32>
    %5 = tpu.concatenate %2, %3, %4 in 1 : vector<16x32xf32>, vector<16x32xf32>, vector<16x32xf32> -> vector<16x96xf32>
    %6 = arith.truncf %5 : vector<16x96xf32> to vector<16x96xbf16>
    %c0_2 = arith.constant 0 : index
    %c0_3 = arith.constant 0 : index
    %7 = vector.load %arg2[%c0_2, %c0_3] : memref<96x64xbf16, #tpu.memory_space<vmem>>, vector<96x64xbf16>
    %cst = arith.constant dense<0.000000e+00> : vector<16x64xf32>
    %8 = tpu.matmul %6, %7, %cst {dimension_numbers = #tpu.dot_dimension_numbers<[1], [0], [0], [1], [0, 0, 1, 1], [], []>} : vector<16x96xbf16>, vector<96x64xbf16>, vector<16x64xf32> -> vector<16x64xf32>
    %c0_4 = arith.constant 0 : index
    %c0_5 = arith.constant 0 : index
    %9 = vector.load %arg3[%c0_4, %c0_5] : memref<1x64xf32, #tpu.memory_space<vmem>>, vector<1x64xf32>
    %10 = vector.broadcast %9 : vector<1x64xf32> to vector<16x64xf32>
    %11 = arith.addf %8, %10 : vector<16x64xf32>
    %cst_6 = arith.constant 0.000000e+00 : f32
    %12 = vector.broadcast %cst_6 : f32 to vector<16x64xf32>
    %13 = arith.maximumf %11, %12 : vector<16x64xf32>
    %c0_7 = arith.constant 0 : index
    %c0_8 = arith.constant 0 : index
    %c0_9 = arith.constant 0 : index
    %14 = vector.load %arg4[%c0_7, %c0_8, %c0_9] : memref<1x16x64xf32, #tpu.memory_space<vmem>>, vector<1x16x64xf32>
    %15 = vector.shape_cast %14 : vector<1x16x64xf32> to vector<16x64xf32>
    %16 = vector.shape_cast %13 : vector<16x64xf32> to vector<1x16x64xf32>
    tpu.vector_store %arg4[%c0_7, %c0_8, %c0_9], %16 {strides = array<i32>} : memref<1x16x64xf32, #tpu.memory_space<vmem>>, vector<1x16x64xf32>,
    return
  }
  func.func @transform_0(%arg0: i32) -> (i32, i32, i32) {
    %c0_i32 = arith.constant 0 : i32
    %c0_i32_0 = arith.constant 0 : i32
    %c0_i32_1 = arith.constant 0 : i32
    return %arg0, %c0_i32, %c0_i32_0 : i32, i32, i32
  }
  func.func @transform_1(%arg0: i32) -> (i32, i32) {
    %c0_i32 = arith.constant 0 : i32
    %c0_i32_0 = arith.constant 0 : i32
    %c0_i32_1 = arith.constant 0 : i32
    return %c0_i32, %c0_i32_0 : i32, i32
  }
  func.func @transform_2(%arg0: i32) -> (i32, i32) {
    %c0_i32 = arith.constant 0 : i32
    %c0_i32_0 = arith.constant 0 : i32
    %c0_i32_1 = arith.constant 0 : i32
    return %c0_i32, %c0_i32_0 : i32, i32
  }
  func.func @transform_3(%arg0: i32) -> (i32, i32, i32) {
    %c0_i32 = arith.constant 0 : i32
    %c0_i32_0 = arith.constant 0 : i32
    %c0_i32_1 = arith.constant 0 : i32
    return %arg0, %c0_i32, %c0_i32_0 : i32, i32, i32
  }
}

module attributes {stable_mosaic.version = 11 : i64} {
  func.func @_matmul_kernel(%arg0: i32, %arg1: memref<16x256xf32, #tpu.memory_space<vmem>>, %arg2: memref<256x64xbf16, #tpu.memory_space<vmem>>, %arg3: memref<1x64xf32, #tpu.memory_space<vmem>>, %arg4: memref<16x64xf32, #tpu.memory_space<vmem>>) attributes {dimension_semantics = [#tpu.dimension_semantics<parallel>], iteration_bounds = array<i64: 1>, scalar_prefetch = 0 : i64, scratch_operands = 0 : i64, tpu.core_type = #tpu.core_type<tc>, window_params = [{transform_indices = @transform_0, window_bounds = array<i64: 16, 256>}, {pipeline_mode = #tpu.pipeline_mode<synchronous>, transform_indices = @transform_1, window_bounds = array<i64: 256, 64>}, {pipeline_mode = #tpu.pipeline_mode<synchronous>, transform_indices = @transform_2, window_bounds = array<i64: 1, 64>}, {transform_indices = @transform_3, window_bounds = array<i64: 16, 64>}]} {
    %c0 = arith.constant 0 : index
    %c0_0 = arith.constant 0 : index
    %0 = vector.load %arg1[%c0, %c0_0] : memref<16x256xf32, #tpu.memory_space<vmem>>, vector<16x256xf32>
    %1 = arith.truncf %0 : vector<16x256xf32> to vector<16x256xbf16>
    %c0_1 = arith.constant 0 : index
    %c0_2 = arith.constant 0 : index
    %2 = vector.load %arg2[%c0_1, %c0_2] : memref<256x64xbf16, #tpu.memory_space<vmem>>, vector<256x64xbf16>
    %cst = arith.constant dense<0.000000e+00> : vector<16x64xf32>
    %3 = tpu.matmul %1, %2, %cst {dimension_numbers = #tpu.dot_dimension_numbers<[1], [0], [0], [1], [0, 0, 1, 1], [], []>} : vector<16x256xbf16>, vector<256x64xbf16>, vector<16x64xf32> -> vector<16x64xf32>
    %c0_3 = arith.constant 0 : index
    %c0_4 = arith.constant 0 : index
    %4 = vector.load %arg3[%c0_3, %c0_4] : memref<1x64xf32, #tpu.memory_space<vmem>>, vector<1x64xf32>
    %5 = vector.broadcast %4 : vector<1x64xf32> to vector<16x64xf32>
    %6 = arith.addf %3, %5 : vector<16x64xf32>
    %c0_5 = arith.constant 0 : index
    %c0_6 = arith.constant 0 : index
    %7 = vector.load %arg4[%c0_5, %c0_6] : memref<16x64xf32, #tpu.memory_space<vmem>>, vector<16x64xf32>
    tpu.vector_store %arg4[%c0_5, %c0_6], %6 {strides = array<i32>} : memref<16x64xf32, #tpu.memory_space<vmem>>, vector<16x64xf32>,
    return
  }
  func.func @transform_0(%arg0: i32) -> (i32, i32) {
    %c0_i32 = arith.constant 0 : i32
    %c0_i32_0 = arith.constant 0 : i32
    return %arg0, %c0_i32 : i32, i32
  }
  func.func @transform_1(%arg0: i32) -> (i32, i32) {
    %c0_i32 = arith.constant 0 : i32
    %c0_i32_0 = arith.constant 0 : i32
    %c0_i32_1 = arith.constant 0 : i32
    return %c0_i32, %c0_i32_0 : i32, i32
  }
  func.func @transform_2(%arg0: i32) -> (i32, i32) {
    %c0_i32 = arith.constant 0 : i32
    %c0_i32_0 = arith.constant 0 : i32
    %c0_i32_1 = arith.constant 0 : i32
    return %c0_i32, %c0_i32_0 : i32, i32
  }
  func.func @transform_3(%arg0: i32) -> (i32, i32) {
    %c0_i32 = arith.constant 0 : i32
    %c0_i32_0 = arith.constant 0 : i32
    return %arg0, %c0_i32 : i32, i32
  }
}

module attributes {stable_mosaic.version = 11 : i64} {
  func.func @_conv_s1_kernel(%arg0: i32, %arg1: memref<1x14x64xf32, #tpu.memory_space<vmem>>, %arg2: memref<192x64xbf16, #tpu.memory_space<vmem>>, %arg3: memref<1x64xf32, #tpu.memory_space<vmem>>, %arg4: memref<1x8x64xf32, #tpu.memory_space<vmem>>) attributes {dimension_semantics = [#tpu.dimension_semantics<parallel>], iteration_bounds = array<i64: 2>, scalar_prefetch = 0 : i64, scratch_operands = 0 : i64, tpu.core_type = #tpu.core_type<tc>, window_params = [{transform_indices = @transform_0, window_bounds = array<i64: 1, 14, 64>}, {pipeline_mode = #tpu.pipeline_mode<synchronous>, transform_indices = @transform_1, window_bounds = array<i64: 192, 64>}, {pipeline_mode = #tpu.pipeline_mode<synchronous>, transform_indices = @transform_2, window_bounds = array<i64: 1, 64>}, {transform_indices = @transform_3, window_bounds = array<i64: 1, 8, 64>}]} {
    %c0 = arith.constant 0 : index
    %c0_0 = arith.constant 0 : index
    %c0_1 = arith.constant 0 : index
    %0 = vector.load %arg1[%c0, %c0_0, %c0_1] : memref<1x14x64xf32, #tpu.memory_space<vmem>>, vector<1x14x64xf32>
    %1 = vector.shape_cast %0 : vector<1x14x64xf32> to vector<14x64xf32>
    %cst = arith.constant 0.000000e+00 : f32
    %2 = vector.broadcast %cst : f32 to vector<14x64xf32>
    %3 = arith.maximumf %1, %2 : vector<14x64xf32>
    %4 = vector.extract_strided_slice %3 {offsets = [0, 0], sizes = [8, 64], strides = [1, 1]} : vector<14x64xf32> to vector<8x64xf32>
    %5 = vector.extract_strided_slice %3 {offsets = [3, 0], sizes = [8, 64], strides = [1, 1]} : vector<14x64xf32> to vector<8x64xf32>
    %6 = vector.extract_strided_slice %3 {offsets = [6, 0], sizes = [8, 64], strides = [1, 1]} : vector<14x64xf32> to vector<8x64xf32>
    %7 = tpu.concatenate %4, %5, %6 in 1 : vector<8x64xf32>, vector<8x64xf32>, vector<8x64xf32> -> vector<8x192xf32>
    %8 = arith.truncf %7 : vector<8x192xf32> to vector<8x192xbf16>
    %c0_2 = arith.constant 0 : index
    %c0_3 = arith.constant 0 : index
    %9 = vector.load %arg2[%c0_2, %c0_3] : memref<192x64xbf16, #tpu.memory_space<vmem>>, vector<192x64xbf16>
    %cst_4 = arith.constant dense<0.000000e+00> : vector<8x64xf32>
    %10 = tpu.matmul %8, %9, %cst_4 {dimension_numbers = #tpu.dot_dimension_numbers<[1], [0], [0], [1], [0, 0, 1, 1], [], []>} : vector<8x192xbf16>, vector<192x64xbf16>, vector<8x64xf32> -> vector<8x64xf32>
    %c0_5 = arith.constant 0 : index
    %c0_6 = arith.constant 0 : index
    %11 = vector.load %arg3[%c0_5, %c0_6] : memref<1x64xf32, #tpu.memory_space<vmem>>, vector<1x64xf32>
    %12 = vector.broadcast %11 : vector<1x64xf32> to vector<8x64xf32>
    %13 = arith.addf %10, %12 : vector<8x64xf32>
    %cst_7 = arith.constant 0.000000e+00 : f32
    %14 = vector.broadcast %cst_7 : f32 to vector<8x64xf32>
    %15 = arith.maximumf %13, %14 : vector<8x64xf32>
    %c0_8 = arith.constant 0 : index
    %c0_9 = arith.constant 0 : index
    %c0_10 = arith.constant 0 : index
    %16 = vector.load %arg4[%c0_8, %c0_9, %c0_10] : memref<1x8x64xf32, #tpu.memory_space<vmem>>, vector<1x8x64xf32>
    %17 = vector.shape_cast %16 : vector<1x8x64xf32> to vector<8x64xf32>
    %18 = vector.shape_cast %15 : vector<8x64xf32> to vector<1x8x64xf32>
    tpu.vector_store %arg4[%c0_8, %c0_9, %c0_10], %18 {strides = array<i32>} : memref<1x8x64xf32, #tpu.memory_space<vmem>>, vector<1x8x64xf32>,
    return
  }
  func.func @transform_0(%arg0: i32) -> (i32, i32, i32) {
    %c0_i32 = arith.constant 0 : i32
    %c0_i32_0 = arith.constant 0 : i32
    %c0_i32_1 = arith.constant 0 : i32
    return %arg0, %c0_i32, %c0_i32_0 : i32, i32, i32
  }
  func.func @transform_1(%arg0: i32) -> (i32, i32) {
    %c0_i32 = arith.constant 0 : i32
    %c0_i32_0 = arith.constant 0 : i32
    %c0_i32_1 = arith.constant 0 : i32
    return %c0_i32, %c0_i32_0 : i32, i32
  }
  func.func @transform_2(%arg0: i32) -> (i32, i32) {
    %c0_i32 = arith.constant 0 : i32
    %c0_i32_0 = arith.constant 0 : i32
    %c0_i32_1 = arith.constant 0 : i32
    return %c0_i32, %c0_i32_0 : i32, i32
  }
  func.func @transform_3(%arg0: i32) -> (i32, i32, i32) {
    %c0_i32 = arith.constant 0 : i32
    %c0_i32_0 = arith.constant 0 : i32
    %c0_i32_1 = arith.constant 0 : i32
    return %arg0, %c0_i32, %c0_i32_0 : i32, i32, i32
  }
}

module attributes {stable_mosaic.version = 11 : i64} {
  func.func @_conv_s1_kernel(%arg0: i32, %arg1: memref<1x8x64xf32, #tpu.memory_space<vmem>>, %arg2: memref<64x64xbf16, #tpu.memory_space<vmem>>, %arg3: memref<1x64xf32, #tpu.memory_space<vmem>>, %arg4: memref<1x8x64xf32, #tpu.memory_space<vmem>>, %arg5: memref<1x8x64xf32, #tpu.memory_space<vmem>>) attributes {dimension_semantics = [#tpu.dimension_semantics<parallel>], iteration_bounds = array<i64: 2>, scalar_prefetch = 0 : i64, scratch_operands = 0 : i64, tpu.core_type = #tpu.core_type<tc>, window_params = [{transform_indices = @transform_0, window_bounds = array<i64: 1, 8, 64>}, {pipeline_mode = #tpu.pipeline_mode<synchronous>, transform_indices = @transform_1, window_bounds = array<i64: 64, 64>}, {pipeline_mode = #tpu.pipeline_mode<synchronous>, transform_indices = @transform_2, window_bounds = array<i64: 1, 64>}, {transform_indices = @transform_3, window_bounds = array<i64: 1, 8, 64>}, {transform_indices = @transform_4, window_bounds = array<i64: 1, 8, 64>}]} {
    %c0 = arith.constant 0 : index
    %c0_0 = arith.constant 0 : index
    %c0_1 = arith.constant 0 : index
    %0 = vector.load %arg1[%c0, %c0_0, %c0_1] : memref<1x8x64xf32, #tpu.memory_space<vmem>>, vector<1x8x64xf32>
    %1 = vector.shape_cast %0 : vector<1x8x64xf32> to vector<8x64xf32>
    %2 = arith.truncf %1 : vector<8x64xf32> to vector<8x64xbf16>
    %c0_2 = arith.constant 0 : index
    %c0_3 = arith.constant 0 : index
    %3 = vector.load %arg2[%c0_2, %c0_3] : memref<64x64xbf16, #tpu.memory_space<vmem>>, vector<64x64xbf16>
    %cst = arith.constant dense<0.000000e+00> : vector<8x64xf32>
    %4 = tpu.matmul %2, %3, %cst {dimension_numbers = #tpu.dot_dimension_numbers<[1], [0], [0], [1], [0, 0, 1, 1], [], []>} : vector<8x64xbf16>, vector<64x64xbf16>, vector<8x64xf32> -> vector<8x64xf32>
    %c0_4 = arith.constant 0 : index
    %c0_5 = arith.constant 0 : index
    %5 = vector.load %arg3[%c0_4, %c0_5] : memref<1x64xf32, #tpu.memory_space<vmem>>, vector<1x64xf32>
    %6 = vector.broadcast %5 : vector<1x64xf32> to vector<8x64xf32>
    %7 = arith.addf %4, %6 : vector<8x64xf32>
    %c0_6 = arith.constant 0 : index
    %c0_7 = arith.constant 0 : index
    %c0_8 = arith.constant 0 : index
    %8 = vector.load %arg4[%c0_6, %c0_7, %c0_8] : memref<1x8x64xf32, #tpu.memory_space<vmem>>, vector<1x8x64xf32>
    %9 = vector.shape_cast %8 : vector<1x8x64xf32> to vector<8x64xf32>
    %10 = arith.addf %7, %9 : vector<8x64xf32>
    %c0_9 = arith.constant 0 : index
    %c0_10 = arith.constant 0 : index
    %c0_11 = arith.constant 0 : index
    %11 = vector.load %arg5[%c0_9, %c0_10, %c0_11] : memref<1x8x64xf32, #tpu.memory_space<vmem>>, vector<1x8x64xf32>
    %12 = vector.shape_cast %11 : vector<1x8x64xf32> to vector<8x64xf32>
    %13 = vector.shape_cast %10 : vector<8x64xf32> to vector<1x8x64xf32>
    tpu.vector_store %arg5[%c0_9, %c0_10, %c0_11], %13 {strides = array<i32>} : memref<1x8x64xf32, #tpu.memory_space<vmem>>, vector<1x8x64xf32>,
    return
  }
  func.func @transform_0(%arg0: i32) -> (i32, i32, i32) {
    %c0_i32 = arith.constant 0 : i32
    %c0_i32_0 = arith.constant 0 : i32
    %c0_i32_1 = arith.constant 0 : i32
    return %arg0, %c0_i32, %c0_i32_0 : i32, i32, i32
  }
  func.func @transform_1(%arg0: i32) -> (i32, i32) {
    %c0_i32 = arith.constant 0 : i32
    %c0_i32_0 = arith.constant 0 : i32
    %c0_i32_1 = arith.constant 0 : i32
    return %c0_i32, %c0_i32_0 : i32, i32
  }
  func.func @transform_2(%arg0: i32) -> (i32, i32) {
    %c0_i32 = arith.constant 0 : i32
    %c0_i32_0 = arith.constant 0 : i32
    %c0_i32_1 = arith.constant 0 : i32
    return %c0_i32, %c0_i32_0 : i32, i32
  }
  func.func @transform_3(%arg0: i32) -> (i32, i32, i32) {
    %c0_i32 = arith.constant 0 : i32
    %c0_i32_0 = arith.constant 0 : i32
    %c0_i32_1 = arith.constant 0 : i32
    return %arg0, %c0_i32, %c0_i32_0 : i32, i32, i32
  }
  func.func @transform_4(%arg0: i32) -> (i32, i32, i32) {
    %c0_i32 = arith.constant 0 : i32
    %c0_i32_0 = arith.constant 0 : i32
    %c0_i32_1 = arith.constant 0 : i32
    return %arg0, %c0_i32, %c0_i32_0 : i32, i32, i32
  }
}

module attributes {stable_mosaic.version = 11 : i64} {
  func.func @_conv_s1_kernel(%arg0: i32, %arg1: memref<1x10x64xf32, #tpu.memory_space<vmem>>, %arg2: memref<192x64xbf16, #tpu.memory_space<vmem>>, %arg3: memref<1x64xf32, #tpu.memory_space<vmem>>, %arg4: memref<1x8x64xf32, #tpu.memory_space<vmem>>) attributes {dimension_semantics = [#tpu.dimension_semantics<parallel>], iteration_bounds = array<i64: 2>, scalar_prefetch = 0 : i64, scratch_operands = 0 : i64, tpu.core_type = #tpu.core_type<tc>, window_params = [{transform_indices = @transform_0, window_bounds = array<i64: 1, 10, 64>}, {pipeline_mode = #tpu.pipeline_mode<synchronous>, transform_indices = @transform_1, window_bounds = array<i64: 192, 64>}, {pipeline_mode = #tpu.pipeline_mode<synchronous>, transform_indices = @transform_2, window_bounds = array<i64: 1, 64>}, {transform_indices = @transform_3, window_bounds = array<i64: 1, 8, 64>}]} {
    %c0 = arith.constant 0 : index
    %c0_0 = arith.constant 0 : index
    %c0_1 = arith.constant 0 : index
    %0 = vector.load %arg1[%c0, %c0_0, %c0_1] : memref<1x10x64xf32, #tpu.memory_space<vmem>>, vector<1x10x64xf32>
    %1 = vector.shape_cast %0 : vector<1x10x64xf32> to vector<10x64xf32>
    %cst = arith.constant 0.000000e+00 : f32
    %2 = vector.broadcast %cst : f32 to vector<10x64xf32>
    %3 = arith.maximumf %1, %2 : vector<10x64xf32>
    %4 = vector.extract_strided_slice %3 {offsets = [0, 0], sizes = [8, 64], strides = [1, 1]} : vector<10x64xf32> to vector<8x64xf32>
    %5 = vector.extract_strided_slice %3 {offsets = [1, 0], sizes = [8, 64], strides = [1, 1]} : vector<10x64xf32> to vector<8x64xf32>
    %6 = vector.extract_strided_slice %3 {offsets = [2, 0], sizes = [8, 64], strides = [1, 1]} : vector<10x64xf32> to vector<8x64xf32>
    %7 = tpu.concatenate %4, %5, %6 in 1 : vector<8x64xf32>, vector<8x64xf32>, vector<8x64xf32> -> vector<8x192xf32>
    %8 = arith.truncf %7 : vector<8x192xf32> to vector<8x192xbf16>
    %c0_2 = arith.constant 0 : index
    %c0_3 = arith.constant 0 : index
    %9 = vector.load %arg2[%c0_2, %c0_3] : memref<192x64xbf16, #tpu.memory_space<vmem>>, vector<192x64xbf16>
    %cst_4 = arith.constant dense<0.000000e+00> : vector<8x64xf32>
    %10 = tpu.matmul %8, %9, %cst_4 {dimension_numbers = #tpu.dot_dimension_numbers<[1], [0], [0], [1], [0, 0, 1, 1], [], []>} : vector<8x192xbf16>, vector<192x64xbf16>, vector<8x64xf32> -> vector<8x64xf32>
    %c0_5 = arith.constant 0 : index
    %c0_6 = arith.constant 0 : index
    %11 = vector.load %arg3[%c0_5, %c0_6] : memref<1x64xf32, #tpu.memory_space<vmem>>, vector<1x64xf32>
    %12 = vector.broadcast %11 : vector<1x64xf32> to vector<8x64xf32>
    %13 = arith.addf %10, %12 : vector<8x64xf32>
    %cst_7 = arith.constant 0.000000e+00 : f32
    %14 = vector.broadcast %cst_7 : f32 to vector<8x64xf32>
    %15 = arith.maximumf %13, %14 : vector<8x64xf32>
    %c0_8 = arith.constant 0 : index
    %c0_9 = arith.constant 0 : index
    %c0_10 = arith.constant 0 : index
    %16 = vector.load %arg4[%c0_8, %c0_9, %c0_10] : memref<1x8x64xf32, #tpu.memory_space<vmem>>, vector<1x8x64xf32>
    %17 = vector.shape_cast %16 : vector<1x8x64xf32> to vector<8x64xf32>
    %18 = vector.shape_cast %15 : vector<8x64xf32> to vector<1x8x64xf32>
    tpu.vector_store %arg4[%c0_8, %c0_9, %c0_10], %18 {strides = array<i32>} : memref<1x8x64xf32, #tpu.memory_space<vmem>>, vector<1x8x64xf32>,
    return
  }
  func.func @transform_0(%arg0: i32) -> (i32, i32, i32) {
    %c0_i32 = arith.constant 0 : i32
    %c0_i32_0 = arith.constant 0 : i32
    %c0_i32_1 = arith.constant 0 : i32
    return %arg0, %c0_i32, %c0_i32_0 : i32, i32, i32
  }
  func.func @transform_1(%arg0: i32) -> (i32, i32) {
    %c0_i32 = arith.constant 0 : i32
    %c0_i32_0 = arith.constant 0 : i32
    %c0_i32_1 = arith.constant 0 : i32
    return %c0_i32, %c0_i32_0 : i32, i32
  }
  func.func @transform_2(%arg0: i32) -> (i32, i32) {
    %c0_i32 = arith.constant 0 : i32
    %c0_i32_0 = arith.constant 0 : i32
    %c0_i32_1 = arith.constant 0 : i32
    return %c0_i32, %c0_i32_0 : i32, i32
  }
  func.func @transform_3(%arg0: i32) -> (i32, i32, i32) {
    %c0_i32 = arith.constant 0 : i32
    %c0_i32_0 = arith.constant 0 : i32
    %c0_i32_1 = arith.constant 0 : i32
    return %arg0, %c0_i32, %c0_i32_0 : i32, i32, i32
  }
}

module attributes {stable_mosaic.version = 11 : i64} {
  func.func @_matmul_kernel(%arg0: i32, %arg1: memref<8x256xf32, #tpu.memory_space<vmem>>, %arg2: memref<256x64xbf16, #tpu.memory_space<vmem>>, %arg3: memref<1x64xf32, #tpu.memory_space<vmem>>, %arg4: memref<8x64xf32, #tpu.memory_space<vmem>>) attributes {dimension_semantics = [#tpu.dimension_semantics<parallel>], iteration_bounds = array<i64: 1>, scalar_prefetch = 0 : i64, scratch_operands = 0 : i64, tpu.core_type = #tpu.core_type<tc>, window_params = [{transform_indices = @transform_0, window_bounds = array<i64: 8, 256>}, {pipeline_mode = #tpu.pipeline_mode<synchronous>, transform_indices = @transform_1, window_bounds = array<i64: 256, 64>}, {pipeline_mode = #tpu.pipeline_mode<synchronous>, transform_indices = @transform_2, window_bounds = array<i64: 1, 64>}, {transform_indices = @transform_3, window_bounds = array<i64: 8, 64>}]} {
    %c0 = arith.constant 0 : index
    %c0_0 = arith.constant 0 : index
    %0 = vector.load %arg1[%c0, %c0_0] : memref<8x256xf32, #tpu.memory_space<vmem>>, vector<8x256xf32>
    %1 = arith.truncf %0 : vector<8x256xf32> to vector<8x256xbf16>
    %c0_1 = arith.constant 0 : index
    %c0_2 = arith.constant 0 : index
    %2 = vector.load %arg2[%c0_1, %c0_2] : memref<256x64xbf16, #tpu.memory_space<vmem>>, vector<256x64xbf16>
    %cst = arith.constant dense<0.000000e+00> : vector<8x64xf32>
    %3 = tpu.matmul %1, %2, %cst {dimension_numbers = #tpu.dot_dimension_numbers<[1], [0], [0], [1], [0, 0, 1, 1], [], []>} : vector<8x256xbf16>, vector<256x64xbf16>, vector<8x64xf32> -> vector<8x64xf32>
    %c0_3 = arith.constant 0 : index
    %c0_4 = arith.constant 0 : index
    %4 = vector.load %arg3[%c0_3, %c0_4] : memref<1x64xf32, #tpu.memory_space<vmem>>, vector<1x64xf32>
    %5 = vector.broadcast %4 : vector<1x64xf32> to vector<8x64xf32>
    %6 = arith.addf %3, %5 : vector<8x64xf32>
    %c0_5 = arith.constant 0 : index
    %c0_6 = arith.constant 0 : index
    %7 = vector.load %arg4[%c0_5, %c0_6] : memref<8x64xf32, #tpu.memory_space<vmem>>, vector<8x64xf32>
    tpu.vector_store %arg4[%c0_5, %c0_6], %6 {strides = array<i32>} : memref<8x64xf32, #tpu.memory_space<vmem>>, vector<8x64xf32>,
    return
  }
  func.func @transform_0(%arg0: i32) -> (i32, i32) {
    %c0_i32 = arith.constant 0 : i32
    %c0_i32_0 = arith.constant 0 : i32
    return %arg0, %c0_i32 : i32, i32
  }
  func.func @transform_1(%arg0: i32) -> (i32, i32) {
    %c0_i32 = arith.constant 0 : i32
    %c0_i32_0 = arith.constant 0 : i32
    %c0_i32_1 = arith.constant 0 : i32
    return %c0_i32, %c0_i32_0 : i32, i32
  }
  func.func @transform_2(%arg0: i32) -> (i32, i32) {
    %c0_i32 = arith.constant 0 : i32
    %c0_i32_0 = arith.constant 0 : i32
    %c0_i32_1 = arith.constant 0 : i32
    return %c0_i32, %c0_i32_0 : i32, i32
  }
  func.func @transform_3(%arg0: i32) -> (i32, i32) {
    %c0_i32 = arith.constant 0 : i32
    %c0_i32_0 = arith.constant 0 : i32
    return %arg0, %c0_i32 : i32, i32
  }
}

module attributes {stable_mosaic.version = 11 : i64} {
  func.func @_conv_s1_kernel(%arg0: i32, %arg1: memref<1x10x64xf32, #tpu.memory_space<vmem>>, %arg2: memref<192x64xbf16, #tpu.memory_space<vmem>>, %arg3: memref<1x64xf32, #tpu.memory_space<vmem>>, %arg4: memref<1x4x64xf32, #tpu.memory_space<vmem>>) attributes {dimension_semantics = [#tpu.dimension_semantics<parallel>], iteration_bounds = array<i64: 2>, scalar_prefetch = 0 : i64, scratch_operands = 0 : i64, tpu.core_type = #tpu.core_type<tc>, window_params = [{transform_indices = @transform_0, window_bounds = array<i64: 1, 10, 64>}, {pipeline_mode = #tpu.pipeline_mode<synchronous>, transform_indices = @transform_1, window_bounds = array<i64: 192, 64>}, {pipeline_mode = #tpu.pipeline_mode<synchronous>, transform_indices = @transform_2, window_bounds = array<i64: 1, 64>}, {transform_indices = @transform_3, window_bounds = array<i64: 1, 4, 64>}]} {
    %c0 = arith.constant 0 : index
    %c0_0 = arith.constant 0 : index
    %c0_1 = arith.constant 0 : index
    %0 = vector.load %arg1[%c0, %c0_0, %c0_1] : memref<1x10x64xf32, #tpu.memory_space<vmem>>, vector<1x10x64xf32>
    %1 = vector.shape_cast %0 : vector<1x10x64xf32> to vector<10x64xf32>
    %cst = arith.constant 0.000000e+00 : f32
    %2 = vector.broadcast %cst : f32 to vector<10x64xf32>
    %3 = arith.maximumf %1, %2 : vector<10x64xf32>
    %4 = vector.extract_strided_slice %3 {offsets = [0, 0], sizes = [4, 64], strides = [1, 1]} : vector<10x64xf32> to vector<4x64xf32>
    %5 = vector.extract_strided_slice %3 {offsets = [3, 0], sizes = [4, 64], strides = [1, 1]} : vector<10x64xf32> to vector<4x64xf32>
    %6 = vector.extract_strided_slice %3 {offsets = [6, 0], sizes = [4, 64], strides = [1, 1]} : vector<10x64xf32> to vector<4x64xf32>
    %7 = tpu.concatenate %4, %5, %6 in 1 : vector<4x64xf32>, vector<4x64xf32>, vector<4x64xf32> -> vector<4x192xf32>
    %8 = arith.truncf %7 : vector<4x192xf32> to vector<4x192xbf16>
    %c0_2 = arith.constant 0 : index
    %c0_3 = arith.constant 0 : index
    %9 = vector.load %arg2[%c0_2, %c0_3] : memref<192x64xbf16, #tpu.memory_space<vmem>>, vector<192x64xbf16>
    %cst_4 = arith.constant dense<0.000000e+00> : vector<4x64xf32>
    %10 = tpu.matmul %8, %9, %cst_4 {dimension_numbers = #tpu.dot_dimension_numbers<[1], [0], [0], [1], [0, 0, 1, 1], [], []>} : vector<4x192xbf16>, vector<192x64xbf16>, vector<4x64xf32> -> vector<4x64xf32>
    %c0_5 = arith.constant 0 : index
    %c0_6 = arith.constant 0 : index
    %11 = vector.load %arg3[%c0_5, %c0_6] : memref<1x64xf32, #tpu.memory_space<vmem>>, vector<1x64xf32>
    %12 = vector.broadcast %11 : vector<1x64xf32> to vector<4x64xf32>
    %13 = arith.addf %10, %12 : vector<4x64xf32>
    %cst_7 = arith.constant 0.000000e+00 : f32
    %14 = vector.broadcast %cst_7 : f32 to vector<4x64xf32>
    %15 = arith.maximumf %13, %14 : vector<4x64xf32>
    %c0_8 = arith.constant 0 : index
    %c0_9 = arith.constant 0 : index
    %c0_10 = arith.constant 0 : index
    %16 = vector.load %arg4[%c0_8, %c0_9, %c0_10] : memref<1x4x64xf32, #tpu.memory_space<vmem>>, vector<1x4x64xf32>
    %17 = vector.shape_cast %16 : vector<1x4x64xf32> to vector<4x64xf32>
    %18 = vector.shape_cast %15 : vector<4x64xf32> to vector<1x4x64xf32>
    tpu.vector_store %arg4[%c0_8, %c0_9, %c0_10], %18 {strides = array<i32>} : memref<1x4x64xf32, #tpu.memory_space<vmem>>, vector<1x4x64xf32>,
    return
  }
  func.func @transform_0(%arg0: i32) -> (i32, i32, i32) {
    %c0_i32 = arith.constant 0 : i32
    %c0_i32_0 = arith.constant 0 : i32
    %c0_i32_1 = arith.constant 0 : i32
    return %arg0, %c0_i32, %c0_i32_0 : i32, i32, i32
  }
  func.func @transform_1(%arg0: i32) -> (i32, i32) {
    %c0_i32 = arith.constant 0 : i32
    %c0_i32_0 = arith.constant 0 : i32
    %c0_i32_1 = arith.constant 0 : i32
    return %c0_i32, %c0_i32_0 : i32, i32
  }
  func.func @transform_2(%arg0: i32) -> (i32, i32) {
    %c0_i32 = arith.constant 0 : i32
    %c0_i32_0 = arith.constant 0 : i32
    %c0_i32_1 = arith.constant 0 : i32
    return %c0_i32, %c0_i32_0 : i32, i32
  }
  func.func @transform_3(%arg0: i32) -> (i32, i32, i32) {
    %c0_i32 = arith.constant 0 : i32
    %c0_i32_0 = arith.constant 0 : i32
    %c0_i32_1 = arith.constant 0 : i32
    return %arg0, %c0_i32, %c0_i32_0 : i32, i32, i32
  }
}

module attributes {stable_mosaic.version = 11 : i64} {
  func.func @_conv_s1_kernel(%arg0: i32, %arg1: memref<1x4x64xf32, #tpu.memory_space<vmem>>, %arg2: memref<64x64xbf16, #tpu.memory_space<vmem>>, %arg3: memref<1x64xf32, #tpu.memory_space<vmem>>, %arg4: memref<1x4x64xf32, #tpu.memory_space<vmem>>, %arg5: memref<1x4x64xf32, #tpu.memory_space<vmem>>) attributes {dimension_semantics = [#tpu.dimension_semantics<parallel>], iteration_bounds = array<i64: 2>, scalar_prefetch = 0 : i64, scratch_operands = 0 : i64, tpu.core_type = #tpu.core_type<tc>, window_params = [{transform_indices = @transform_0, window_bounds = array<i64: 1, 4, 64>}, {pipeline_mode = #tpu.pipeline_mode<synchronous>, transform_indices = @transform_1, window_bounds = array<i64: 64, 64>}, {pipeline_mode = #tpu.pipeline_mode<synchronous>, transform_indices = @transform_2, window_bounds = array<i64: 1, 64>}, {transform_indices = @transform_3, window_bounds = array<i64: 1, 4, 64>}, {transform_indices = @transform_4, window_bounds = array<i64: 1, 4, 64>}]} {
    %c0 = arith.constant 0 : index
    %c0_0 = arith.constant 0 : index
    %c0_1 = arith.constant 0 : index
    %0 = vector.load %arg1[%c0, %c0_0, %c0_1] : memref<1x4x64xf32, #tpu.memory_space<vmem>>, vector<1x4x64xf32>
    %1 = vector.shape_cast %0 : vector<1x4x64xf32> to vector<4x64xf32>
    %2 = arith.truncf %1 : vector<4x64xf32> to vector<4x64xbf16>
    %c0_2 = arith.constant 0 : index
    %c0_3 = arith.constant 0 : index
    %3 = vector.load %arg2[%c0_2, %c0_3] : memref<64x64xbf16, #tpu.memory_space<vmem>>, vector<64x64xbf16>
    %cst = arith.constant dense<0.000000e+00> : vector<4x64xf32>
    %4 = tpu.matmul %2, %3, %cst {dimension_numbers = #tpu.dot_dimension_numbers<[1], [0], [0], [1], [0, 0, 1, 1], [], []>} : vector<4x64xbf16>, vector<64x64xbf16>, vector<4x64xf32> -> vector<4x64xf32>
    %c0_4 = arith.constant 0 : index
    %c0_5 = arith.constant 0 : index
    %5 = vector.load %arg3[%c0_4, %c0_5] : memref<1x64xf32, #tpu.memory_space<vmem>>, vector<1x64xf32>
    %6 = vector.broadcast %5 : vector<1x64xf32> to vector<4x64xf32>
    %7 = arith.addf %4, %6 : vector<4x64xf32>
    %c0_6 = arith.constant 0 : index
    %c0_7 = arith.constant 0 : index
    %c0_8 = arith.constant 0 : index
    %8 = vector.load %arg4[%c0_6, %c0_7, %c0_8] : memref<1x4x64xf32, #tpu.memory_space<vmem>>, vector<1x4x64xf32>
    %9 = vector.shape_cast %8 : vector<1x4x64xf32> to vector<4x64xf32>
    %10 = arith.addf %7, %9 : vector<4x64xf32>
    %c0_9 = arith.constant 0 : index
    %c0_10 = arith.constant 0 : index
    %c0_11 = arith.constant 0 : index
    %11 = vector.load %arg5[%c0_9, %c0_10, %c0_11] : memref<1x4x64xf32, #tpu.memory_space<vmem>>, vector<1x4x64xf32>
    %12 = vector.shape_cast %11 : vector<1x4x64xf32> to vector<4x64xf32>
    %13 = vector.shape_cast %10 : vector<4x64xf32> to vector<1x4x64xf32>
    tpu.vector_store %arg5[%c0_9, %c0_10, %c0_11], %13 {strides = array<i32>} : memref<1x4x64xf32, #tpu.memory_space<vmem>>, vector<1x4x64xf32>,
    return
  }
  func.func @transform_0(%arg0: i32) -> (i32, i32, i32) {
    %c0_i32 = arith.constant 0 : i32
    %c0_i32_0 = arith.constant 0 : i32
    %c0_i32_1 = arith.constant 0 : i32
    return %arg0, %c0_i32, %c0_i32_0 : i32, i32, i32
  }
  func.func @transform_1(%arg0: i32) -> (i32, i32) {
    %c0_i32 = arith.constant 0 : i32
    %c0_i32_0 = arith.constant 0 : i32
    %c0_i32_1 = arith.constant 0 : i32
    return %c0_i32, %c0_i32_0 : i32, i32
  }
  func.func @transform_2(%arg0: i32) -> (i32, i32) {
    %c0_i32 = arith.constant 0 : i32
    %c0_i32_0 = arith.constant 0 : i32
    %c0_i32_1 = arith.constant 0 : i32
    return %c0_i32, %c0_i32_0 : i32, i32
  }
  func.func @transform_3(%arg0: i32) -> (i32, i32, i32) {
    %c0_i32 = arith.constant 0 : i32
    %c0_i32_0 = arith.constant 0 : i32
    %c0_i32_1 = arith.constant 0 : i32
    return %arg0, %c0_i32, %c0_i32_0 : i32, i32, i32
  }
  func.func @transform_4(%arg0: i32) -> (i32, i32, i32) {
    %c0_i32 = arith.constant 0 : i32
    %c0_i32_0 = arith.constant 0 : i32
    %c0_i32_1 = arith.constant 0 : i32
    return %arg0, %c0_i32, %c0_i32_0 : i32, i32, i32
  }
}

module attributes {stable_mosaic.version = 11 : i64} {
  func.func @_conv_s1_kernel(%arg0: i32, %arg1: memref<1x6x64xf32, #tpu.memory_space<vmem>>, %arg2: memref<192x64xbf16, #tpu.memory_space<vmem>>, %arg3: memref<1x64xf32, #tpu.memory_space<vmem>>, %arg4: memref<1x4x64xf32, #tpu.memory_space<vmem>>) attributes {dimension_semantics = [#tpu.dimension_semantics<parallel>], iteration_bounds = array<i64: 2>, scalar_prefetch = 0 : i64, scratch_operands = 0 : i64, tpu.core_type = #tpu.core_type<tc>, window_params = [{transform_indices = @transform_0, window_bounds = array<i64: 1, 6, 64>}, {pipeline_mode = #tpu.pipeline_mode<synchronous>, transform_indices = @transform_1, window_bounds = array<i64: 192, 64>}, {pipeline_mode = #tpu.pipeline_mode<synchronous>, transform_indices = @transform_2, window_bounds = array<i64: 1, 64>}, {transform_indices = @transform_3, window_bounds = array<i64: 1, 4, 64>}]} {
    %c0 = arith.constant 0 : index
    %c0_0 = arith.constant 0 : index
    %c0_1 = arith.constant 0 : index
    %0 = vector.load %arg1[%c0, %c0_0, %c0_1] : memref<1x6x64xf32, #tpu.memory_space<vmem>>, vector<1x6x64xf32>
    %1 = vector.shape_cast %0 : vector<1x6x64xf32> to vector<6x64xf32>
    %cst = arith.constant 0.000000e+00 : f32
    %2 = vector.broadcast %cst : f32 to vector<6x64xf32>
    %3 = arith.maximumf %1, %2 : vector<6x64xf32>
    %4 = vector.extract_strided_slice %3 {offsets = [0, 0], sizes = [4, 64], strides = [1, 1]} : vector<6x64xf32> to vector<4x64xf32>
    %5 = vector.extract_strided_slice %3 {offsets = [1, 0], sizes = [4, 64], strides = [1, 1]} : vector<6x64xf32> to vector<4x64xf32>
    %6 = vector.extract_strided_slice %3 {offsets = [2, 0], sizes = [4, 64], strides = [1, 1]} : vector<6x64xf32> to vector<4x64xf32>
    %7 = tpu.concatenate %4, %5, %6 in 1 : vector<4x64xf32>, vector<4x64xf32>, vector<4x64xf32> -> vector<4x192xf32>
    %8 = arith.truncf %7 : vector<4x192xf32> to vector<4x192xbf16>
    %c0_2 = arith.constant 0 : index
    %c0_3 = arith.constant 0 : index
    %9 = vector.load %arg2[%c0_2, %c0_3] : memref<192x64xbf16, #tpu.memory_space<vmem>>, vector<192x64xbf16>
    %cst_4 = arith.constant dense<0.000000e+00> : vector<4x64xf32>
    %10 = tpu.matmul %8, %9, %cst_4 {dimension_numbers = #tpu.dot_dimension_numbers<[1], [0], [0], [1], [0, 0, 1, 1], [], []>} : vector<4x192xbf16>, vector<192x64xbf16>, vector<4x64xf32> -> vector<4x64xf32>
    %c0_5 = arith.constant 0 : index
    %c0_6 = arith.constant 0 : index
    %11 = vector.load %arg3[%c0_5, %c0_6] : memref<1x64xf32, #tpu.memory_space<vmem>>, vector<1x64xf32>
    %12 = vector.broadcast %11 : vector<1x64xf32> to vector<4x64xf32>
    %13 = arith.addf %10, %12 : vector<4x64xf32>
    %cst_7 = arith.constant 0.000000e+00 : f32
    %14 = vector.broadcast %cst_7 : f32 to vector<4x64xf32>
    %15 = arith.maximumf %13, %14 : vector<4x64xf32>
    %c0_8 = arith.constant 0 : index
    %c0_9 = arith.constant 0 : index
    %c0_10 = arith.constant 0 : index
    %16 = vector.load %arg4[%c0_8, %c0_9, %c0_10] : memref<1x4x64xf32, #tpu.memory_space<vmem>>, vector<1x4x64xf32>
    %17 = vector.shape_cast %16 : vector<1x4x64xf32> to vector<4x64xf32>
    %18 = vector.shape_cast %15 : vector<4x64xf32> to vector<1x4x64xf32>
    tpu.vector_store %arg4[%c0_8, %c0_9, %c0_10], %18 {strides = array<i32>} : memref<1x4x64xf32, #tpu.memory_space<vmem>>, vector<1x4x64xf32>,
    return
  }
  func.func @transform_0(%arg0: i32) -> (i32, i32, i32) {
    %c0_i32 = arith.constant 0 : i32
    %c0_i32_0 = arith.constant 0 : i32
    %c0_i32_1 = arith.constant 0 : i32
    return %arg0, %c0_i32, %c0_i32_0 : i32, i32, i32
  }
  func.func @transform_1(%arg0: i32) -> (i32, i32) {
    %c0_i32 = arith.constant 0 : i32
    %c0_i32_0 = arith.constant 0 : i32
    %c0_i32_1 = arith.constant 0 : i32
    return %c0_i32, %c0_i32_0 : i32, i32
  }
  func.func @transform_2(%arg0: i32) -> (i32, i32) {
    %c0_i32 = arith.constant 0 : i32
    %c0_i32_0 = arith.constant 0 : i32
    %c0_i32_1 = arith.constant 0 : i32
    return %c0_i32, %c0_i32_0 : i32, i32
  }
  func.func @transform_3(%arg0: i32) -> (i32, i32, i32) {
    %c0_i32 = arith.constant 0 : i32
    %c0_i32_0 = arith.constant 0 : i32
    %c0_i32_1 = arith.constant 0 : i32
    return %arg0, %c0_i32, %c0_i32_0 : i32, i32, i32
  }
}

module attributes {stable_mosaic.version = 11 : i64} {
  func.func @_conv_s1_kernel(%arg0: i32, %arg1: memref<1x6x64xf32, #tpu.memory_space<vmem>>, %arg2: memref<192x32xbf16, #tpu.memory_space<vmem>>, %arg3: memref<1x32xf32, #tpu.memory_space<vmem>>, %arg4: memref<1x4x32xf32, #tpu.memory_space<vmem>>) attributes {dimension_semantics = [#tpu.dimension_semantics<parallel>], iteration_bounds = array<i64: 2>, scalar_prefetch = 0 : i64, scratch_operands = 0 : i64, tpu.core_type = #tpu.core_type<tc>, window_params = [{transform_indices = @transform_0, window_bounds = array<i64: 1, 6, 64>}, {pipeline_mode = #tpu.pipeline_mode<synchronous>, transform_indices = @transform_1, window_bounds = array<i64: 192, 32>}, {pipeline_mode = #tpu.pipeline_mode<synchronous>, transform_indices = @transform_2, window_bounds = array<i64: 1, 32>}, {transform_indices = @transform_3, window_bounds = array<i64: 1, 4, 32>}]} {
    %c0 = arith.constant 0 : index
    %c0_0 = arith.constant 0 : index
    %c0_1 = arith.constant 0 : index
    %0 = vector.load %arg1[%c0, %c0_0, %c0_1] : memref<1x6x64xf32, #tpu.memory_space<vmem>>, vector<1x6x64xf32>
    %1 = vector.shape_cast %0 : vector<1x6x64xf32> to vector<6x64xf32>
    %2 = vector.extract_strided_slice %1 {offsets = [0, 0], sizes = [4, 64], strides = [1, 1]} : vector<6x64xf32> to vector<4x64xf32>
    %3 = vector.extract_strided_slice %1 {offsets = [1, 0], sizes = [4, 64], strides = [1, 1]} : vector<6x64xf32> to vector<4x64xf32>
    %4 = vector.extract_strided_slice %1 {offsets = [2, 0], sizes = [4, 64], strides = [1, 1]} : vector<6x64xf32> to vector<4x64xf32>
    %5 = tpu.concatenate %2, %3, %4 in 1 : vector<4x64xf32>, vector<4x64xf32>, vector<4x64xf32> -> vector<4x192xf32>
    %6 = arith.truncf %5 : vector<4x192xf32> to vector<4x192xbf16>
    %c0_2 = arith.constant 0 : index
    %c0_3 = arith.constant 0 : index
    %7 = vector.load %arg2[%c0_2, %c0_3] : memref<192x32xbf16, #tpu.memory_space<vmem>>, vector<192x32xbf16>
    %cst = arith.constant dense<0.000000e+00> : vector<4x32xf32>
    %8 = tpu.matmul %6, %7, %cst {dimension_numbers = #tpu.dot_dimension_numbers<[1], [0], [0], [1], [0, 0, 1, 1], [], []>} : vector<4x192xbf16>, vector<192x32xbf16>, vector<4x32xf32> -> vector<4x32xf32>
    %c0_4 = arith.constant 0 : index
    %c0_5 = arith.constant 0 : index
    %9 = vector.load %arg3[%c0_4, %c0_5] : memref<1x32xf32, #tpu.memory_space<vmem>>, vector<1x32xf32>
    %10 = vector.broadcast %9 : vector<1x32xf32> to vector<4x32xf32>
    %11 = arith.addf %8, %10 : vector<4x32xf32>
    %c0_6 = arith.constant 0 : index
    %c0_7 = arith.constant 0 : index
    %c0_8 = arith.constant 0 : index
    %12 = vector.load %arg4[%c0_6, %c0_7, %c0_8] : memref<1x4x32xf32, #tpu.memory_space<vmem>>, vector<1x4x32xf32>
    %13 = vector.shape_cast %12 : vector<1x4x32xf32> to vector<4x32xf32>
    %14 = vector.shape_cast %11 : vector<4x32xf32> to vector<1x4x32xf32>
    tpu.vector_store %arg4[%c0_6, %c0_7, %c0_8], %14 {strides = array<i32>} : memref<1x4x32xf32, #tpu.memory_space<vmem>>, vector<1x4x32xf32>,
    return
  }
  func.func @transform_0(%arg0: i32) -> (i32, i32, i32) {
    %c0_i32 = arith.constant 0 : i32
    %c0_i32_0 = arith.constant 0 : i32
    %c0_i32_1 = arith.constant 0 : i32
    return %arg0, %c0_i32, %c0_i32_0 : i32, i32, i32
  }
  func.func @transform_1(%arg0: i32) -> (i32, i32) {
    %c0_i32 = arith.constant 0 : i32
    %c0_i32_0 = arith.constant 0 : i32
    %c0_i32_1 = arith.constant 0 : i32
    return %c0_i32, %c0_i32_0 : i32, i32
  }
  func.func @transform_2(%arg0: i32) -> (i32, i32) {
    %c0_i32 = arith.constant 0 : i32
    %c0_i32_0 = arith.constant 0 : i32
    %c0_i32_1 = arith.constant 0 : i32
    return %c0_i32, %c0_i32_0 : i32, i32
  }
  func.func @transform_3(%arg0: i32) -> (i32, i32, i32) {
    %c0_i32 = arith.constant 0 : i32
    %c0_i32_0 = arith.constant 0 : i32
    %c0_i32_1 = arith.constant 0 : i32
    return %arg0, %c0_i32, %c0_i32_0 : i32, i32, i32
  }
}

module attributes {stable_mosaic.version = 11 : i64} {
  func.func @_conv_s1_kernel(%arg0: i32, %arg1: memref<1x6x32xf32, #tpu.memory_space<vmem>>, %arg2: memref<96x64xbf16, #tpu.memory_space<vmem>>, %arg3: memref<1x64xf32, #tpu.memory_space<vmem>>, %arg4: memref<1x4x64xf32, #tpu.memory_space<vmem>>) attributes {dimension_semantics = [#tpu.dimension_semantics<parallel>], iteration_bounds = array<i64: 2>, scalar_prefetch = 0 : i64, scratch_operands = 0 : i64, tpu.core_type = #tpu.core_type<tc>, window_params = [{transform_indices = @transform_0, window_bounds = array<i64: 1, 6, 32>}, {pipeline_mode = #tpu.pipeline_mode<synchronous>, transform_indices = @transform_1, window_bounds = array<i64: 96, 64>}, {pipeline_mode = #tpu.pipeline_mode<synchronous>, transform_indices = @transform_2, window_bounds = array<i64: 1, 64>}, {transform_indices = @transform_3, window_bounds = array<i64: 1, 4, 64>}]} {
    %c0 = arith.constant 0 : index
    %c0_0 = arith.constant 0 : index
    %c0_1 = arith.constant 0 : index
    %0 = vector.load %arg1[%c0, %c0_0, %c0_1] : memref<1x6x32xf32, #tpu.memory_space<vmem>>, vector<1x6x32xf32>
    %1 = vector.shape_cast %0 : vector<1x6x32xf32> to vector<6x32xf32>
    %2 = vector.extract_strided_slice %1 {offsets = [0, 0], sizes = [4, 32], strides = [1, 1]} : vector<6x32xf32> to vector<4x32xf32>
    %3 = vector.extract_strided_slice %1 {offsets = [1, 0], sizes = [4, 32], strides = [1, 1]} : vector<6x32xf32> to vector<4x32xf32>
    %4 = vector.extract_strided_slice %1 {offsets = [2, 0], sizes = [4, 32], strides = [1, 1]} : vector<6x32xf32> to vector<4x32xf32>
    %5 = tpu.concatenate %2, %3, %4 in 1 : vector<4x32xf32>, vector<4x32xf32>, vector<4x32xf32> -> vector<4x96xf32>
    %6 = arith.truncf %5 : vector<4x96xf32> to vector<4x96xbf16>
    %c0_2 = arith.constant 0 : index
    %c0_3 = arith.constant 0 : index
    %7 = vector.load %arg2[%c0_2, %c0_3] : memref<96x64xbf16, #tpu.memory_space<vmem>>, vector<96x64xbf16>
    %cst = arith.constant dense<0.000000e+00> : vector<4x64xf32>
    %8 = tpu.matmul %6, %7, %cst {dimension_numbers = #tpu.dot_dimension_numbers<[1], [0], [0], [1], [0, 0, 1, 1], [], []>} : vector<4x96xbf16>, vector<96x64xbf16>, vector<4x64xf32> -> vector<4x64xf32>
    %c0_4 = arith.constant 0 : index
    %c0_5 = arith.constant 0 : index
    %9 = vector.load %arg3[%c0_4, %c0_5] : memref<1x64xf32, #tpu.memory_space<vmem>>, vector<1x64xf32>
    %10 = vector.broadcast %9 : vector<1x64xf32> to vector<4x64xf32>
    %11 = arith.addf %8, %10 : vector<4x64xf32>
    %cst_6 = arith.constant 0.000000e+00 : f32
    %12 = vector.broadcast %cst_6 : f32 to vector<4x64xf32>
    %13 = arith.maximumf %11, %12 : vector<4x64xf32>
    %c0_7 = arith.constant 0 : index
    %c0_8 = arith.constant 0 : index
    %c0_9 = arith.constant 0 : index
    %14 = vector.load %arg4[%c0_7, %c0_8, %c0_9] : memref<1x4x64xf32, #tpu.memory_space<vmem>>, vector<1x4x64xf32>
    %15 = vector.shape_cast %14 : vector<1x4x64xf32> to vector<4x64xf32>
    %16 = vector.shape_cast %13 : vector<4x64xf32> to vector<1x4x64xf32>
    tpu.vector_store %arg4[%c0_7, %c0_8, %c0_9], %16 {strides = array<i32>} : memref<1x4x64xf32, #tpu.memory_space<vmem>>, vector<1x4x64xf32>,
    return
  }
  func.func @transform_0(%arg0: i32) -> (i32, i32, i32) {
    %c0_i32 = arith.constant 0 : i32
    %c0_i32_0 = arith.constant 0 : i32
    %c0_i32_1 = arith.constant 0 : i32
    return %arg0, %c0_i32, %c0_i32_0 : i32, i32, i32
  }
  func.func @transform_1(%arg0: i32) -> (i32, i32) {
    %c0_i32 = arith.constant 0 : i32
    %c0_i32_0 = arith.constant 0 : i32
    %c0_i32_1 = arith.constant 0 : i32
    return %c0_i32, %c0_i32_0 : i32, i32
  }
  func.func @transform_2(%arg0: i32) -> (i32, i32) {
    %c0_i32 = arith.constant 0 : i32
    %c0_i32_0 = arith.constant 0 : i32
    %c0_i32_1 = arith.constant 0 : i32
    return %c0_i32, %c0_i32_0 : i32, i32
  }
  func.func @transform_3(%arg0: i32) -> (i32, i32, i32) {
    %c0_i32 = arith.constant 0 : i32
    %c0_i32_0 = arith.constant 0 : i32
    %c0_i32_1 = arith.constant 0 : i32
    return %arg0, %c0_i32, %c0_i32_0 : i32, i32, i32
  }
}

module attributes {stable_mosaic.version = 11 : i64} {
  func.func @_vq_kernel(%arg0: i32, %arg1: memref<8x32xf32, #tpu.memory_space<vmem>>, %arg2: memref<256x32xf32, #tpu.memory_space<vmem>>, %arg3: memref<1x256xf32, #tpu.memory_space<vmem>>, %arg4: memref<8x32xf32, #tpu.memory_space<vmem>>, %arg5: memref<1x1xf32, #tpu.memory_space<vmem>>, %arg6: memref<1x1xf32, #tpu.memory_space<vmem>>, %arg7: memref<1x256xf32, #tpu.memory_space<vmem>>, %arg8: memref<1x1xf32, #tpu.memory_space<vmem>>) attributes {dimension_semantics = [#tpu.dimension_semantics<arbitrary>], iteration_bounds = array<i64: 1>, scalar_prefetch = 0 : i64, scratch_operands = 2 : i64, tpu.core_type = #tpu.core_type<tc>, window_params = [{transform_indices = @transform_0, window_bounds = array<i64: 8, 32>}, {pipeline_mode = #tpu.pipeline_mode<synchronous>, transform_indices = @transform_1, window_bounds = array<i64: 256, 32>}, {pipeline_mode = #tpu.pipeline_mode<synchronous>, transform_indices = @transform_2, window_bounds = array<i64: 1, 256>}, {transform_indices = @transform_3, window_bounds = array<i64: 8, 32>}, {pipeline_mode = #tpu.pipeline_mode<synchronous>, transform_indices = @transform_4, window_bounds = array<i64: 1, 1>}, {pipeline_mode = #tpu.pipeline_mode<synchronous>, transform_indices = @transform_5, window_bounds = array<i64: 1, 1>}]} {
    %c0_i32 = arith.constant 0 : i32
    %0 = arith.cmpi eq, %arg0, %c0_i32 : i32
    %1 = arith.extui %0 : i1 to i32
    %c0_i32_0 = arith.constant 0 : i32
    %2 = arith.cmpi ne, %1, %c0_i32_0 : i32
    scf.if %2 {
      %cst_25 = arith.constant 0.000000e+00 : f32
      %45 = vector.broadcast %cst_25 : f32 to vector<1x256xf32>
      %c0_26 = arith.constant 0 : index
      %c0_27 = arith.constant 0 : index
      %46 = vector.load %arg7[%c0_26, %c0_27] : memref<1x256xf32, #tpu.memory_space<vmem>>, vector<1x256xf32>
      tpu.vector_store %arg7[%c0_26, %c0_27], %45 {strides = array<i32>} : memref<1x256xf32, #tpu.memory_space<vmem>>, vector<1x256xf32>,
      %cst_28 = arith.constant 0.000000e+00 : f32
      %47 = vector.broadcast %cst_28 : f32 to vector<1x1xf32>
      %c0_29 = arith.constant 0 : index
      %c0_30 = arith.constant 0 : index
      %48 = vector.load %arg8[%c0_29, %c0_30] : memref<1x1xf32, #tpu.memory_space<vmem>>, vector<1x1xf32>
      tpu.vector_store %arg8[%c0_29, %c0_30], %47 {strides = array<i32>} : memref<1x1xf32, #tpu.memory_space<vmem>>, vector<1x1xf32>,
    } else {
    }
    %c0 = arith.constant 0 : index
    %c0_1 = arith.constant 0 : index
    %3 = vector.load %arg1[%c0, %c0_1] : memref<8x32xf32, #tpu.memory_space<vmem>>, vector<8x32xf32>
    %c0_2 = arith.constant 0 : index
    %c0_3 = arith.constant 0 : index
    %4 = vector.load %arg2[%c0_2, %c0_3] : memref<256x32xf32, #tpu.memory_space<vmem>>, vector<256x32xf32>
    %5 = arith.truncf %3 : vector<8x32xf32> to vector<8x32xbf16>
    %6 = arith.truncf %4 : vector<256x32xf32> to vector<256x32xbf16>
    %cst = arith.constant dense<0.000000e+00> : vector<8x256xf32>
    %7 = tpu.matmul %5, %6, %cst {dimension_numbers = #tpu.dot_dimension_numbers<[1], [1], [0], [0], [0, 0, 1, 0], [], []>} : vector<8x32xbf16>, vector<256x32xbf16>, vector<8x256xf32> -> vector<8x256xf32>
    %c0_4 = arith.constant 0 : index
    %c0_5 = arith.constant 0 : index
    %8 = vector.load %arg3[%c0_4, %c0_5] : memref<1x256xf32, #tpu.memory_space<vmem>>, vector<1x256xf32>
    %cst_6 = arith.constant 2.000000e+00 : f32
    %9 = vector.broadcast %cst_6 : f32 to vector<8x256xf32>
    %10 = arith.mulf %9, %7 : vector<8x256xf32>
    %11 = vector.broadcast %8 : vector<1x256xf32> to vector<8x256xf32>
    %12 = arith.subf %11, %10 : vector<8x256xf32>
    %cst_7 = arith.constant dense<0x7F800000> : vector<8xf32>
    %13 = vector.multi_reduction <minimumf>, %12, %cst_7 [1] : vector<8x256xf32> to vector<8xf32>
    %14 = vector.shape_cast %13 : vector<8xf32> to vector<8x1xf32>
    %15 = tpu.iota {dimensions = array<i32: 1>} : vector<8x256xi32>
    %16 = vector.broadcast %14 : vector<8x1xf32> to vector<8x256xf32>
    %17 = arith.cmpf ole, %12, %16 : vector<8x256xf32>
    %c256_i32 = arith.constant 256 : i32
    %18 = vector.broadcast %c256_i32 : i32 to vector<8x256xi32>
    %19 = arith.select %17, %15, %18 : vector<8x256xi1>, vector<8x256xi32>
    %cst_8 = arith.constant dense<2147483647> : vector<8xi32>
    %20 = vector.multi_reduction <minsi>, %19, %cst_8 [1] : vector<8x256xi32> to vector<8xi32>
    %21 = vector.shape_cast %20 : vector<8xi32> to vector<8x1xi32>
    %22 = vector.broadcast %21 : vector<8x1xi32> to vector<8x256xi32>
    %23 = arith.cmpi eq, %15, %22 : vector<8x256xi32>
    %24 = arith.extui %23 : vector<8x256xi1> to vector<8x256xi32>
    %25 = arith.sitofp %24 : vector<8x256xi32> to vector<8x256xf32>
    %cst_9 = arith.constant dense<0.000000e+00> : vector<8x32xf32>
    %26 = tpu.matmul %25, %4, %cst_9 {dimension_numbers = #tpu.dot_dimension_numbers<[1], [0], [0], [1], [0, 0, 1, 1], [], []>} : vector<8x256xf32>, vector<256x32xf32>, vector<8x32xf32> -> vector<8x32xf32>
    %c0_10 = arith.constant 0 : index
    %c0_11 = arith.constant 0 : index
    %27 = vector.load %arg4[%c0_10, %c0_11] : memref<8x32xf32, #tpu.memory_space<vmem>>, vector<8x32xf32>
    tpu.vector_store %arg4[%c0_10, %c0_11], %26 {strides = array<i32>} : memref<8x32xf32, #tpu.memory_space<vmem>>, vector<8x32xf32>,
    %28 = arith.subf %3, %26 : vector<8x32xf32>
    %29 = arith.mulf %28, %28 : vector<8x32xf32>
    %cst_12 = arith.constant dense<0.000000e+00> : vector<8xf32>
    %30 = vector.multi_reduction <add>, %29, %cst_12 [1] : vector<8x32xf32> to vector<8xf32>
    %31 = vector.shape_cast %30 : vector<8xf32> to vector<8x1xf32>
    %c0_13 = arith.constant 0 : index
    %c0_14 = arith.constant 0 : index
    %32 = vector.load %arg8[%c0_13, %c0_14] : memref<1x1xf32, #tpu.memory_space<vmem>>, vector<1x1xf32>
    %cst_15 = arith.constant dense<0.000000e+00> : vector<1xf32>
    %33 = vector.multi_reduction <add>, %31, %cst_15 [0] : vector<8x1xf32> to vector<1xf32>
    %34 = vector.shape_cast %33 : vector<1xf32> to vector<1x1xf32>
    %35 = arith.addf %32, %34 : vector<1x1xf32>
    %c0_16 = arith.constant 0 : index
    %c0_17 = arith.constant 0 : index
    %36 = vector.load %arg8[%c0_16, %c0_17] : memref<1x1xf32, #tpu.memory_space<vmem>>, vector<1x1xf32>
    tpu.vector_store %arg8[%c0_16, %c0_17], %35 {strides = array<i32>} : memref<1x1xf32, #tpu.memory_space<vmem>>, vector<1x1xf32>,
    %c0_18 = arith.constant 0 : index
    %c0_19 = arith.constant 0 : index
    %37 = vector.load %arg7[%c0_18, %c0_19] : memref<1x256xf32, #tpu.memory_space<vmem>>, vector<1x256xf32>
    %cst_20 = arith.constant dense<0.000000e+00> : vector<256xf32>
    %38 = vector.multi_reduction <add>, %25, %cst_20 [0] : vector<8x256xf32> to vector<256xf32>
    %39 = vector.shape_cast %38 : vector<256xf32> to vector<1x256xf32>
    %40 = arith.addf %37, %39 : vector<1x256xf32>
    %c0_21 = arith.constant 0 : index
    %c0_22 = arith.constant 0 : index
    %41 = vector.load %arg7[%c0_21, %c0_22] : memref<1x256xf32, #tpu.memory_space<vmem>>, vector<1x256xf32>
    tpu.vector_store %arg7[%c0_21, %c0_22], %40 {strides = array<i32>} : memref<1x256xf32, #tpu.memory_space<vmem>>, vector<1x256xf32>,
    %c0_i32_23 = arith.constant 0 : i32
    %42 = arith.cmpi eq, %arg0, %c0_i32_23 : i32
    %43 = arith.extui %42 : i1 to i32
    %c0_i32_24 = arith.constant 0 : i32
    %44 = arith.cmpi ne, %43, %c0_i32_24 : i32
    scf.if %44 {
      %c0_25 = arith.constant 0 : index
      %c0_26 = arith.constant 0 : index
      %45 = vector.load %arg8[%c0_25, %c0_26] : memref<1x1xf32, #tpu.memory_space<vmem>>, vector<1x1xf32>
      %cst_27 = arith.constant 3.906250e-03 : f32
      %46 = vector.broadcast %cst_27 : f32 to vector<1x1xf32>
      %47 = arith.mulf %45, %46 : vector<1x1xf32>
      %c0_28 = arith.constant 0 : index
      %c0_29 = arith.constant 0 : index
      %48 = vector.load %arg5[%c0_28, %c0_29] : memref<1x1xf32, #tpu.memory_space<vmem>>, vector<1x1xf32>
      tpu.vector_store %arg5[%c0_28, %c0_29], %47 {strides = array<i32>} : memref<1x1xf32, #tpu.memory_space<vmem>>, vector<1x1xf32>,
      %c0_30 = arith.constant 0 : index
      %c0_31 = arith.constant 0 : index
      %49 = vector.load %arg7[%c0_30, %c0_31] : memref<1x256xf32, #tpu.memory_space<vmem>>, vector<1x256xf32>
      %cst_32 = arith.constant dense<0.000000e+00> : vector<1xf32>
      %50 = vector.multi_reduction <add>, %49, %cst_32 [1] : vector<1x256xf32> to vector<1xf32>
      %51 = vector.shape_cast %50 : vector<1xf32> to vector<1x1xf32>
      %c0_33 = arith.constant 0 : index
      %c0_34 = arith.constant 0 : index
      %52 = vector.load %arg7[%c0_33, %c0_34] : memref<1x256xf32, #tpu.memory_space<vmem>>, vector<1x256xf32>
      %53 = vector.broadcast %51 : vector<1x1xf32> to vector<1x256xf32>
      %54 = arith.divf %52, %53 : vector<1x256xf32>
      %cst_35 = arith.constant 1.000000e-07 : f32
      %55 = vector.broadcast %cst_35 : f32 to vector<1x256xf32>
      %56 = arith.addf %54, %55 : vector<1x256xf32>
      %57 = math.log %56 : vector<1x256xf32>
      %58 = arith.mulf %54, %57 : vector<1x256xf32>
      %cst_36 = arith.constant dense<0.000000e+00> : vector<1xf32>
      %59 = vector.multi_reduction <add>, %58, %cst_36 [1] : vector<1x256xf32> to vector<1xf32>
      %60 = vector.shape_cast %59 : vector<1xf32> to vector<1x1xf32>
      %cst_37 = arith.constant 0.000000e+00 : f32
      %61 = vector.broadcast %cst_37 : f32 to vector<1x1xf32>
      %62 = arith.subf %61, %60 : vector<1x1xf32>
      %63 = math.exp %62 : vector<1x1xf32>
      %c0_38 = arith.constant 0 : index
      %c0_39 = arith.constant 0 : index
      %64 = vector.load %arg6[%c0_38, %c0_39] : memref<1x1xf32, #tpu.memory_space<vmem>>, vector<1x1xf32>
      tpu.vector_store %arg6[%c0_38, %c0_39], %63 {strides = array<i32>} : memref<1x1xf32, #tpu.memory_space<vmem>>, vector<1x1xf32>,
    } else {
    }
    return
  }
  func.func @transform_0(%arg0: i32) -> (i32, i32) {
    %c0_i32 = arith.constant 0 : i32
    %c0_i32_0 = arith.constant 0 : i32
    return %arg0, %c0_i32 : i32, i32
  }
  func.func @transform_1(%arg0: i32) -> (i32, i32) {
    %c0_i32 = arith.constant 0 : i32
    %c0_i32_0 = arith.constant 0 : i32
    %c0_i32_1 = arith.constant 0 : i32
    return %c0_i32, %c0_i32_0 : i32, i32
  }
  func.func @transform_2(%arg0: i32) -> (i32, i32) {
    %c0_i32 = arith.constant 0 : i32
    %c0_i32_0 = arith.constant 0 : i32
    %c0_i32_1 = arith.constant 0 : i32
    return %c0_i32, %c0_i32_0 : i32, i32
  }
  func.func @transform_3(%arg0: i32) -> (i32, i32) {
    %c0_i32 = arith.constant 0 : i32
    %c0_i32_0 = arith.constant 0 : i32
    return %arg0, %c0_i32 : i32, i32
  }
  func.func @transform_4(%arg0: i32) -> (i32, i32) {
    %c0_i32 = arith.constant 0 : i32
    %c0_i32_0 = arith.constant 0 : i32
    %c0_i32_1 = arith.constant 0 : i32
    return %c0_i32, %c0_i32_0 : i32, i32
  }
  func.func @transform_5(%arg0: i32) -> (i32, i32) {
    %c0_i32 = arith.constant 0 : i32
    %c0_i32_0 = arith.constant 0 : i32
    %c0_i32_1 = arith.constant 0 : i32
    return %c0_i32, %c0_i32_0 : i32, i32
  }
}

module attributes {stable_mosaic.version = 11 : i64} {
  func.func @_conv_s1_kernel(%arg0: i32, %arg1: memref<1x10x64xf32, #tpu.memory_space<vmem>>, %arg2: memref<192x64xbf16, #tpu.memory_space<vmem>>, %arg3: memref<1x64xf32, #tpu.memory_space<vmem>>, %arg4: memref<1x8x64xf32, #tpu.memory_space<vmem>>) attributes {dimension_semantics = [#tpu.dimension_semantics<parallel>], iteration_bounds = array<i64: 2>, scalar_prefetch = 0 : i64, scratch_operands = 0 : i64, tpu.core_type = #tpu.core_type<tc>, window_params = [{transform_indices = @transform_0, window_bounds = array<i64: 1, 10, 64>}, {pipeline_mode = #tpu.pipeline_mode<synchronous>, transform_indices = @transform_1, window_bounds = array<i64: 192, 64>}, {pipeline_mode = #tpu.pipeline_mode<synchronous>, transform_indices = @transform_2, window_bounds = array<i64: 1, 64>}, {transform_indices = @transform_3, window_bounds = array<i64: 1, 8, 64>}]} {
    %c0 = arith.constant 0 : index
    %c0_0 = arith.constant 0 : index
    %c0_1 = arith.constant 0 : index
    %0 = vector.load %arg1[%c0, %c0_0, %c0_1] : memref<1x10x64xf32, #tpu.memory_space<vmem>>, vector<1x10x64xf32>
    %1 = vector.shape_cast %0 : vector<1x10x64xf32> to vector<10x64xf32>
    %2 = vector.extract_strided_slice %1 {offsets = [0, 0], sizes = [8, 64], strides = [1, 1]} : vector<10x64xf32> to vector<8x64xf32>
    %3 = vector.extract_strided_slice %1 {offsets = [1, 0], sizes = [8, 64], strides = [1, 1]} : vector<10x64xf32> to vector<8x64xf32>
    %4 = vector.extract_strided_slice %1 {offsets = [2, 0], sizes = [8, 64], strides = [1, 1]} : vector<10x64xf32> to vector<8x64xf32>
    %5 = tpu.concatenate %2, %3, %4 in 1 : vector<8x64xf32>, vector<8x64xf32>, vector<8x64xf32> -> vector<8x192xf32>
    %6 = arith.truncf %5 : vector<8x192xf32> to vector<8x192xbf16>
    %c0_2 = arith.constant 0 : index
    %c0_3 = arith.constant 0 : index
    %7 = vector.load %arg2[%c0_2, %c0_3] : memref<192x64xbf16, #tpu.memory_space<vmem>>, vector<192x64xbf16>
    %cst = arith.constant dense<0.000000e+00> : vector<8x64xf32>
    %8 = tpu.matmul %6, %7, %cst {dimension_numbers = #tpu.dot_dimension_numbers<[1], [0], [0], [1], [0, 0, 1, 1], [], []>} : vector<8x192xbf16>, vector<192x64xbf16>, vector<8x64xf32> -> vector<8x64xf32>
    %c0_4 = arith.constant 0 : index
    %c0_5 = arith.constant 0 : index
    %9 = vector.load %arg3[%c0_4, %c0_5] : memref<1x64xf32, #tpu.memory_space<vmem>>, vector<1x64xf32>
    %10 = vector.broadcast %9 : vector<1x64xf32> to vector<8x64xf32>
    %11 = arith.addf %8, %10 : vector<8x64xf32>
    %c0_6 = arith.constant 0 : index
    %c0_7 = arith.constant 0 : index
    %c0_8 = arith.constant 0 : index
    %12 = vector.load %arg4[%c0_6, %c0_7, %c0_8] : memref<1x8x64xf32, #tpu.memory_space<vmem>>, vector<1x8x64xf32>
    %13 = vector.shape_cast %12 : vector<1x8x64xf32> to vector<8x64xf32>
    %14 = vector.shape_cast %11 : vector<8x64xf32> to vector<1x8x64xf32>
    tpu.vector_store %arg4[%c0_6, %c0_7, %c0_8], %14 {strides = array<i32>} : memref<1x8x64xf32, #tpu.memory_space<vmem>>, vector<1x8x64xf32>,
    return
  }
  func.func @transform_0(%arg0: i32) -> (i32, i32, i32) {
    %c0_i32 = arith.constant 0 : i32
    %c0_i32_0 = arith.constant 0 : i32
    %c0_i32_1 = arith.constant 0 : i32
    return %arg0, %c0_i32, %c0_i32_0 : i32, i32, i32
  }
  func.func @transform_1(%arg0: i32) -> (i32, i32) {
    %c0_i32 = arith.constant 0 : i32
    %c0_i32_0 = arith.constant 0 : i32
    %c0_i32_1 = arith.constant 0 : i32
    return %c0_i32, %c0_i32_0 : i32, i32
  }
  func.func @transform_2(%arg0: i32) -> (i32, i32) {
    %c0_i32 = arith.constant 0 : i32
    %c0_i32_0 = arith.constant 0 : i32
    %c0_i32_1 = arith.constant 0 : i32
    return %c0_i32, %c0_i32_0 : i32, i32
  }
  func.func @transform_3(%arg0: i32) -> (i32, i32, i32) {
    %c0_i32 = arith.constant 0 : i32
    %c0_i32_0 = arith.constant 0 : i32
    %c0_i32_1 = arith.constant 0 : i32
    return %arg0, %c0_i32, %c0_i32_0 : i32, i32, i32
  }
}

module attributes {stable_mosaic.version = 11 : i64} {
  func.func @_conv_s1_kernel(%arg0: i32, %arg1: memref<1x18x64xf32, #tpu.memory_space<vmem>>, %arg2: memref<192x64xbf16, #tpu.memory_space<vmem>>, %arg3: memref<1x64xf32, #tpu.memory_space<vmem>>, %arg4: memref<1x16x64xf32, #tpu.memory_space<vmem>>) attributes {dimension_semantics = [#tpu.dimension_semantics<parallel>], iteration_bounds = array<i64: 2>, scalar_prefetch = 0 : i64, scratch_operands = 0 : i64, tpu.core_type = #tpu.core_type<tc>, window_params = [{transform_indices = @transform_0, window_bounds = array<i64: 1, 18, 64>}, {pipeline_mode = #tpu.pipeline_mode<synchronous>, transform_indices = @transform_1, window_bounds = array<i64: 192, 64>}, {pipeline_mode = #tpu.pipeline_mode<synchronous>, transform_indices = @transform_2, window_bounds = array<i64: 1, 64>}, {transform_indices = @transform_3, window_bounds = array<i64: 1, 16, 64>}]} {
    %c0 = arith.constant 0 : index
    %c0_0 = arith.constant 0 : index
    %c0_1 = arith.constant 0 : index
    %0 = vector.load %arg1[%c0, %c0_0, %c0_1] : memref<1x18x64xf32, #tpu.memory_space<vmem>>, vector<1x18x64xf32>
    %1 = vector.shape_cast %0 : vector<1x18x64xf32> to vector<18x64xf32>
    %2 = vector.extract_strided_slice %1 {offsets = [0, 0], sizes = [16, 64], strides = [1, 1]} : vector<18x64xf32> to vector<16x64xf32>
    %3 = vector.extract_strided_slice %1 {offsets = [1, 0], sizes = [16, 64], strides = [1, 1]} : vector<18x64xf32> to vector<16x64xf32>
    %4 = vector.extract_strided_slice %1 {offsets = [2, 0], sizes = [16, 64], strides = [1, 1]} : vector<18x64xf32> to vector<16x64xf32>
    %5 = tpu.concatenate %2, %3, %4 in 1 : vector<16x64xf32>, vector<16x64xf32>, vector<16x64xf32> -> vector<16x192xf32>
    %6 = arith.truncf %5 : vector<16x192xf32> to vector<16x192xbf16>
    %c0_2 = arith.constant 0 : index
    %c0_3 = arith.constant 0 : index
    %7 = vector.load %arg2[%c0_2, %c0_3] : memref<192x64xbf16, #tpu.memory_space<vmem>>, vector<192x64xbf16>
    %cst = arith.constant dense<0.000000e+00> : vector<16x64xf32>
    %8 = tpu.matmul %6, %7, %cst {dimension_numbers = #tpu.dot_dimension_numbers<[1], [0], [0], [1], [0, 0, 1, 1], [], []>} : vector<16x192xbf16>, vector<192x64xbf16>, vector<16x64xf32> -> vector<16x64xf32>
    %c0_4 = arith.constant 0 : index
    %c0_5 = arith.constant 0 : index
    %9 = vector.load %arg3[%c0_4, %c0_5] : memref<1x64xf32, #tpu.memory_space<vmem>>, vector<1x64xf32>
    %10 = vector.broadcast %9 : vector<1x64xf32> to vector<16x64xf32>
    %11 = arith.addf %8, %10 : vector<16x64xf32>
    %c0_6 = arith.constant 0 : index
    %c0_7 = arith.constant 0 : index
    %c0_8 = arith.constant 0 : index
    %12 = vector.load %arg4[%c0_6, %c0_7, %c0_8] : memref<1x16x64xf32, #tpu.memory_space<vmem>>, vector<1x16x64xf32>
    %13 = vector.shape_cast %12 : vector<1x16x64xf32> to vector<16x64xf32>
    %14 = vector.shape_cast %11 : vector<16x64xf32> to vector<1x16x64xf32>
    tpu.vector_store %arg4[%c0_6, %c0_7, %c0_8], %14 {strides = array<i32>} : memref<1x16x64xf32, #tpu.memory_space<vmem>>, vector<1x16x64xf32>,
    return
  }
  func.func @transform_0(%arg0: i32) -> (i32, i32, i32) {
    %c0_i32 = arith.constant 0 : i32
    %c0_i32_0 = arith.constant 0 : i32
    %c0_i32_1 = arith.constant 0 : i32
    return %arg0, %c0_i32, %c0_i32_0 : i32, i32, i32
  }
  func.func @transform_1(%arg0: i32) -> (i32, i32) {
    %c0_i32 = arith.constant 0 : i32
    %c0_i32_0 = arith.constant 0 : i32
    %c0_i32_1 = arith.constant 0 : i32
    return %c0_i32, %c0_i32_0 : i32, i32
  }
  func.func @transform_2(%arg0: i32) -> (i32, i32) {
    %c0_i32 = arith.constant 0 : i32
    %c0_i32_0 = arith.constant 0 : i32
    %c0_i32_1 = arith.constant 0 : i32
    return %c0_i32, %c0_i32_0 : i32, i32
  }
  func.func @transform_3(%arg0: i32) -> (i32, i32, i32) {
    %c0_i32 = arith.constant 0 : i32
    %c0_i32_0 = arith.constant 0 : i32
    %c0_i32_1 = arith.constant 0 : i32
    return %arg0, %c0_i32, %c0_i32_0 : i32, i32, i32
  }
}

module attributes {stable_mosaic.version = 11 : i64} {
  func.func @_conv_s1_kernel(%arg0: i32, %arg1: memref<1x18x64xf32, #tpu.memory_space<vmem>>, %arg2: memref<192x64xbf16, #tpu.memory_space<vmem>>, %arg3: memref<1x64xf32, #tpu.memory_space<vmem>>, %arg4: memref<1x16x64xf32, #tpu.memory_space<vmem>>) attributes {dimension_semantics = [#tpu.dimension_semantics<parallel>], iteration_bounds = array<i64: 2>, scalar_prefetch = 0 : i64, scratch_operands = 0 : i64, tpu.core_type = #tpu.core_type<tc>, window_params = [{transform_indices = @transform_0, window_bounds = array<i64: 1, 18, 64>}, {pipeline_mode = #tpu.pipeline_mode<synchronous>, transform_indices = @transform_1, window_bounds = array<i64: 192, 64>}, {pipeline_mode = #tpu.pipeline_mode<synchronous>, transform_indices = @transform_2, window_bounds = array<i64: 1, 64>}, {transform_indices = @transform_3, window_bounds = array<i64: 1, 16, 64>}]} {
    %c0 = arith.constant 0 : index
    %c0_0 = arith.constant 0 : index
    %c0_1 = arith.constant 0 : index
    %0 = vector.load %arg1[%c0, %c0_0, %c0_1] : memref<1x18x64xf32, #tpu.memory_space<vmem>>, vector<1x18x64xf32>
    %1 = vector.shape_cast %0 : vector<1x18x64xf32> to vector<18x64xf32>
    %2 = vector.extract_strided_slice %1 {offsets = [0, 0], sizes = [16, 64], strides = [1, 1]} : vector<18x64xf32> to vector<16x64xf32>
    %3 = vector.extract_strided_slice %1 {offsets = [1, 0], sizes = [16, 64], strides = [1, 1]} : vector<18x64xf32> to vector<16x64xf32>
    %4 = vector.extract_strided_slice %1 {offsets = [2, 0], sizes = [16, 64], strides = [1, 1]} : vector<18x64xf32> to vector<16x64xf32>
    %5 = tpu.concatenate %2, %3, %4 in 1 : vector<16x64xf32>, vector<16x64xf32>, vector<16x64xf32> -> vector<16x192xf32>
    %6 = arith.truncf %5 : vector<16x192xf32> to vector<16x192xbf16>
    %c0_2 = arith.constant 0 : index
    %c0_3 = arith.constant 0 : index
    %7 = vector.load %arg2[%c0_2, %c0_3] : memref<192x64xbf16, #tpu.memory_space<vmem>>, vector<192x64xbf16>
    %cst = arith.constant dense<0.000000e+00> : vector<16x64xf32>
    %8 = tpu.matmul %6, %7, %cst {dimension_numbers = #tpu.dot_dimension_numbers<[1], [0], [0], [1], [0, 0, 1, 1], [], []>} : vector<16x192xbf16>, vector<192x64xbf16>, vector<16x64xf32> -> vector<16x64xf32>
    %c0_4 = arith.constant 0 : index
    %c0_5 = arith.constant 0 : index
    %9 = vector.load %arg3[%c0_4, %c0_5] : memref<1x64xf32, #tpu.memory_space<vmem>>, vector<1x64xf32>
    %10 = vector.broadcast %9 : vector<1x64xf32> to vector<16x64xf32>
    %11 = arith.addf %8, %10 : vector<16x64xf32>
    %cst_6 = arith.constant 0.000000e+00 : f32
    %12 = vector.broadcast %cst_6 : f32 to vector<16x64xf32>
    %13 = arith.maximumf %11, %12 : vector<16x64xf32>
    %c0_7 = arith.constant 0 : index
    %c0_8 = arith.constant 0 : index
    %c0_9 = arith.constant 0 : index
    %14 = vector.load %arg4[%c0_7, %c0_8, %c0_9] : memref<1x16x64xf32, #tpu.memory_space<vmem>>, vector<1x16x64xf32>
    %15 = vector.shape_cast %14 : vector<1x16x64xf32> to vector<16x64xf32>
    %16 = vector.shape_cast %13 : vector<16x64xf32> to vector<1x16x64xf32>
    tpu.vector_store %arg4[%c0_7, %c0_8, %c0_9], %16 {strides = array<i32>} : memref<1x16x64xf32, #tpu.memory_space<vmem>>, vector<1x16x64xf32>,
    return
  }
  func.func @transform_0(%arg0: i32) -> (i32, i32, i32) {
    %c0_i32 = arith.constant 0 : i32
    %c0_i32_0 = arith.constant 0 : i32
    %c0_i32_1 = arith.constant 0 : i32
    return %arg0, %c0_i32, %c0_i32_0 : i32, i32, i32
  }
  func.func @transform_1(%arg0: i32) -> (i32, i32) {
    %c0_i32 = arith.constant 0 : i32
    %c0_i32_0 = arith.constant 0 : i32
    %c0_i32_1 = arith.constant 0 : i32
    return %c0_i32, %c0_i32_0 : i32, i32
  }
  func.func @transform_2(%arg0: i32) -> (i32, i32) {
    %c0_i32 = arith.constant 0 : i32
    %c0_i32_0 = arith.constant 0 : i32
    %c0_i32_1 = arith.constant 0 : i32
    return %c0_i32, %c0_i32_0 : i32, i32
  }
  func.func @transform_3(%arg0: i32) -> (i32, i32, i32) {
    %c0_i32 = arith.constant 0 : i32
    %c0_i32_0 = arith.constant 0 : i32
    %c0_i32_1 = arith.constant 0 : i32
    return %arg0, %c0_i32, %c0_i32_0 : i32, i32, i32
  }
}

module attributes {stable_mosaic.version = 11 : i64} {
  func.func @_conv_s1_kernel(%arg0: i32, %arg1: memref<1x18x64xf32, #tpu.memory_space<vmem>>, %arg2: memref<192x32xbf16, #tpu.memory_space<vmem>>, %arg3: memref<1x32xf32, #tpu.memory_space<vmem>>, %arg4: memref<1x16x32xf32, #tpu.memory_space<vmem>>) attributes {dimension_semantics = [#tpu.dimension_semantics<parallel>], iteration_bounds = array<i64: 2>, scalar_prefetch = 0 : i64, scratch_operands = 0 : i64, tpu.core_type = #tpu.core_type<tc>, window_params = [{transform_indices = @transform_0, window_bounds = array<i64: 1, 18, 64>}, {pipeline_mode = #tpu.pipeline_mode<synchronous>, transform_indices = @transform_1, window_bounds = array<i64: 192, 32>}, {pipeline_mode = #tpu.pipeline_mode<synchronous>, transform_indices = @transform_2, window_bounds = array<i64: 1, 32>}, {transform_indices = @transform_3, window_bounds = array<i64: 1, 16, 32>}]} {
    %c0 = arith.constant 0 : index
    %c0_0 = arith.constant 0 : index
    %c0_1 = arith.constant 0 : index
    %0 = vector.load %arg1[%c0, %c0_0, %c0_1] : memref<1x18x64xf32, #tpu.memory_space<vmem>>, vector<1x18x64xf32>
    %1 = vector.shape_cast %0 : vector<1x18x64xf32> to vector<18x64xf32>
    %2 = vector.extract_strided_slice %1 {offsets = [0, 0], sizes = [16, 64], strides = [1, 1]} : vector<18x64xf32> to vector<16x64xf32>
    %3 = vector.extract_strided_slice %1 {offsets = [1, 0], sizes = [16, 64], strides = [1, 1]} : vector<18x64xf32> to vector<16x64xf32>
    %4 = vector.extract_strided_slice %1 {offsets = [2, 0], sizes = [16, 64], strides = [1, 1]} : vector<18x64xf32> to vector<16x64xf32>
    %5 = tpu.concatenate %2, %3, %4 in 1 : vector<16x64xf32>, vector<16x64xf32>, vector<16x64xf32> -> vector<16x192xf32>
    %6 = arith.truncf %5 : vector<16x192xf32> to vector<16x192xbf16>
    %c0_2 = arith.constant 0 : index
    %c0_3 = arith.constant 0 : index
    %7 = vector.load %arg2[%c0_2, %c0_3] : memref<192x32xbf16, #tpu.memory_space<vmem>>, vector<192x32xbf16>
    %cst = arith.constant dense<0.000000e+00> : vector<16x32xf32>
    %8 = tpu.matmul %6, %7, %cst {dimension_numbers = #tpu.dot_dimension_numbers<[1], [0], [0], [1], [0, 0, 1, 1], [], []>} : vector<16x192xbf16>, vector<192x32xbf16>, vector<16x32xf32> -> vector<16x32xf32>
    %c0_4 = arith.constant 0 : index
    %c0_5 = arith.constant 0 : index
    %9 = vector.load %arg3[%c0_4, %c0_5] : memref<1x32xf32, #tpu.memory_space<vmem>>, vector<1x32xf32>
    %10 = vector.broadcast %9 : vector<1x32xf32> to vector<16x32xf32>
    %11 = arith.addf %8, %10 : vector<16x32xf32>
    %c0_6 = arith.constant 0 : index
    %c0_7 = arith.constant 0 : index
    %c0_8 = arith.constant 0 : index
    %12 = vector.load %arg4[%c0_6, %c0_7, %c0_8] : memref<1x16x32xf32, #tpu.memory_space<vmem>>, vector<1x16x32xf32>
    %13 = vector.shape_cast %12 : vector<1x16x32xf32> to vector<16x32xf32>
    %14 = vector.shape_cast %11 : vector<16x32xf32> to vector<1x16x32xf32>
    tpu.vector_store %arg4[%c0_6, %c0_7, %c0_8], %14 {strides = array<i32>} : memref<1x16x32xf32, #tpu.memory_space<vmem>>, vector<1x16x32xf32>,
    return
  }
  func.func @transform_0(%arg0: i32) -> (i32, i32, i32) {
    %c0_i32 = arith.constant 0 : i32
    %c0_i32_0 = arith.constant 0 : i32
    %c0_i32_1 = arith.constant 0 : i32
    return %arg0, %c0_i32, %c0_i32_0 : i32, i32, i32
  }
  func.func @transform_1(%arg0: i32) -> (i32, i32) {
    %c0_i32 = arith.constant 0 : i32
    %c0_i32_0 = arith.constant 0 : i32
    %c0_i32_1 = arith.constant 0 : i32
    return %c0_i32, %c0_i32_0 : i32, i32
  }
  func.func @transform_2(%arg0: i32) -> (i32, i32) {
    %c0_i32 = arith.constant 0 : i32
    %c0_i32_0 = arith.constant 0 : i32
    %c0_i32_1 = arith.constant 0 : i32
    return %c0_i32, %c0_i32_0 : i32, i32
  }
  func.func @transform_3(%arg0: i32) -> (i32, i32, i32) {
    %c0_i32 = arith.constant 0 : i32
    %c0_i32_0 = arith.constant 0 : i32
    %c0_i32_1 = arith.constant 0 : i32
    return %arg0, %c0_i32, %c0_i32_0 : i32, i32, i32
  }
}

module attributes {stable_mosaic.version = 11 : i64} {
  func.func @_cond_kernel(%arg0: i32, %arg1: memref<2x64xf32, #tpu.memory_space<vmem>>, %arg2: memref<64x64xbf16, #tpu.memory_space<vmem>>, %arg3: memref<1x64xf32, #tpu.memory_space<vmem>>, %arg4: memref<64x64xbf16, #tpu.memory_space<vmem>>, %arg5: memref<1x64xf32, #tpu.memory_space<vmem>>, %arg6: memref<64x896xbf16, #tpu.memory_space<vmem>>, %arg7: memref<1x896xf32, #tpu.memory_space<vmem>>, %arg8: memref<2x896xf32, #tpu.memory_space<vmem>>) attributes {dimension_semantics = [#tpu.dimension_semantics<arbitrary>], iteration_bounds = array<i64: 1>, scalar_prefetch = 0 : i64, scratch_operands = 0 : i64, tpu.core_type = #tpu.core_type<tc>, window_params = [{pipeline_mode = #tpu.pipeline_mode<synchronous>, transform_indices = @transform_0, window_bounds = array<i64: 2, 64>}, {pipeline_mode = #tpu.pipeline_mode<synchronous>, transform_indices = @transform_1, window_bounds = array<i64: 64, 64>}, {pipeline_mode = #tpu.pipeline_mode<synchronous>, transform_indices = @transform_2, window_bounds = array<i64: 1, 64>}, {pipeline_mode = #tpu.pipeline_mode<synchronous>, transform_indices = @transform_3, window_bounds = array<i64: 64, 64>}, {pipeline_mode = #tpu.pipeline_mode<synchronous>, transform_indices = @transform_4, window_bounds = array<i64: 1, 64>}, {pipeline_mode = #tpu.pipeline_mode<synchronous>, transform_indices = @transform_5, window_bounds = array<i64: 64, 896>}, {pipeline_mode = #tpu.pipeline_mode<synchronous>, transform_indices = @transform_6, window_bounds = array<i64: 1, 896>}, {pipeline_mode = #tpu.pipeline_mode<synchronous>, transform_indices = @transform_7, window_bounds = array<i64: 2, 896>}]} {
    %c0 = arith.constant 0 : index
    %c0_0 = arith.constant 0 : index
    %0 = vector.load %arg1[%c0, %c0_0] : memref<2x64xf32, #tpu.memory_space<vmem>>, vector<2x64xf32>
    %1 = arith.truncf %0 : vector<2x64xf32> to vector<2x64xbf16>
    %c0_1 = arith.constant 0 : index
    %c0_2 = arith.constant 0 : index
    %2 = vector.load %arg2[%c0_1, %c0_2] : memref<64x64xbf16, #tpu.memory_space<vmem>>, vector<64x64xbf16>
    %cst = arith.constant dense<0.000000e+00> : vector<2x64xf32>
    %3 = tpu.matmul %1, %2, %cst {dimension_numbers = #tpu.dot_dimension_numbers<[1], [0], [0], [1], [0, 0, 1, 1], [], []>} : vector<2x64xbf16>, vector<64x64xbf16>, vector<2x64xf32> -> vector<2x64xf32>
    %c0_3 = arith.constant 0 : index
    %c0_4 = arith.constant 0 : index
    %4 = vector.load %arg3[%c0_3, %c0_4] : memref<1x64xf32, #tpu.memory_space<vmem>>, vector<1x64xf32>
    %5 = vector.broadcast %4 : vector<1x64xf32> to vector<2x64xf32>
    %6 = arith.addf %3, %5 : vector<2x64xf32>
    %7 = arith.negf %6 : vector<2x64xf32>
    %8 = math.exp %7 : vector<2x64xf32>
    %cst_5 = arith.constant 1.000000e+00 : f32
    %9 = vector.broadcast %cst_5 : f32 to vector<2x64xf32>
    %10 = arith.addf %9, %8 : vector<2x64xf32>
    %11 = arith.divf %9, %10 : vector<2x64xf32>
    %12 = arith.mulf %6, %11 : vector<2x64xf32>
    %13 = arith.truncf %12 : vector<2x64xf32> to vector<2x64xbf16>
    %c0_6 = arith.constant 0 : index
    %c0_7 = arith.constant 0 : index
    %14 = vector.load %arg4[%c0_6, %c0_7] : memref<64x64xbf16, #tpu.memory_space<vmem>>, vector<64x64xbf16>
    %cst_8 = arith.constant dense<0.000000e+00> : vector<2x64xf32>
    %15 = tpu.matmul %13, %14, %cst_8 {dimension_numbers = #tpu.dot_dimension_numbers<[1], [0], [0], [1], [0, 0, 1, 1], [], []>} : vector<2x64xbf16>, vector<64x64xbf16>, vector<2x64xf32> -> vector<2x64xf32>
    %c0_9 = arith.constant 0 : index
    %c0_10 = arith.constant 0 : index
    %16 = vector.load %arg5[%c0_9, %c0_10] : memref<1x64xf32, #tpu.memory_space<vmem>>, vector<1x64xf32>
    %17 = vector.broadcast %16 : vector<1x64xf32> to vector<2x64xf32>
    %18 = arith.addf %15, %17 : vector<2x64xf32>
    %19 = arith.negf %18 : vector<2x64xf32>
    %20 = math.exp %19 : vector<2x64xf32>
    %cst_11 = arith.constant 1.000000e+00 : f32
    %21 = vector.broadcast %cst_11 : f32 to vector<2x64xf32>
    %22 = arith.addf %21, %20 : vector<2x64xf32>
    %23 = arith.divf %21, %22 : vector<2x64xf32>
    %24 = arith.mulf %18, %23 : vector<2x64xf32>
    %25 = arith.truncf %24 : vector<2x64xf32> to vector<2x64xbf16>
    %c0_12 = arith.constant 0 : index
    %c0_13 = arith.constant 0 : index
    %26 = vector.load %arg6[%c0_12, %c0_13] : memref<64x896xbf16, #tpu.memory_space<vmem>>, vector<64x896xbf16>
    %cst_14 = arith.constant dense<0.000000e+00> : vector<2x896xf32>
    %27 = tpu.matmul %25, %26, %cst_14 {dimension_numbers = #tpu.dot_dimension_numbers<[1], [0], [0], [1], [0, 0, 1, 1], [], []>} : vector<2x64xbf16>, vector<64x896xbf16>, vector<2x896xf32> -> vector<2x896xf32>
    %c0_15 = arith.constant 0 : index
    %c0_16 = arith.constant 0 : index
    %28 = vector.load %arg7[%c0_15, %c0_16] : memref<1x896xf32, #tpu.memory_space<vmem>>, vector<1x896xf32>
    %29 = vector.broadcast %28 : vector<1x896xf32> to vector<2x896xf32>
    %30 = arith.addf %27, %29 : vector<2x896xf32>
    %c0_17 = arith.constant 0 : index
    %c0_18 = arith.constant 0 : index
    %31 = vector.load %arg8[%c0_17, %c0_18] : memref<2x896xf32, #tpu.memory_space<vmem>>, vector<2x896xf32>
    tpu.vector_store %arg8[%c0_17, %c0_18], %30 {strides = array<i32>} : memref<2x896xf32, #tpu.memory_space<vmem>>, vector<2x896xf32>,
    return
  }
  func.func @transform_0(%arg0: i32) -> (i32, i32) {
    %c0_i32 = arith.constant 0 : i32
    %c0_i32_0 = arith.constant 0 : i32
    %c0_i32_1 = arith.constant 0 : i32
    return %c0_i32, %c0_i32_0 : i32, i32
  }
  func.func @transform_1(%arg0: i32) -> (i32, i32) {
    %c0_i32 = arith.constant 0 : i32
    %c0_i32_0 = arith.constant 0 : i32
    %c0_i32_1 = arith.constant 0 : i32
    return %c0_i32, %c0_i32_0 : i32, i32
  }
  func.func @transform_2(%arg0: i32) -> (i32, i32) {
    %c0_i32 = arith.constant 0 : i32
    %c0_i32_0 = arith.constant 0 : i32
    %c0_i32_1 = arith.constant 0 : i32
    return %c0_i32, %c0_i32_0 : i32, i32
  }
  func.func @transform_3(%arg0: i32) -> (i32, i32) {
    %c0_i32 = arith.constant 0 : i32
    %c0_i32_0 = arith.constant 0 : i32
    %c0_i32_1 = arith.constant 0 : i32
    return %c0_i32, %c0_i32_0 : i32, i32
  }
  func.func @transform_4(%arg0: i32) -> (i32, i32) {
    %c0_i32 = arith.constant 0 : i32
    %c0_i32_0 = arith.constant 0 : i32
    %c0_i32_1 = arith.constant 0 : i32
    return %c0_i32, %c0_i32_0 : i32, i32
  }
  func.func @transform_5(%arg0: i32) -> (i32, i32) {
    %c0_i32 = arith.constant 0 : i32
    %c0_i32_0 = arith.constant 0 : i32
    %c0_i32_1 = arith.constant 0 : i32
    return %c0_i32, %c0_i32_0 : i32, i32
  }
  func.func @transform_6(%arg0: i32) -> (i32, i32) {
    %c0_i32 = arith.constant 0 : i32
    %c0_i32_0 = arith.constant 0 : i32
    %c0_i32_1 = arith.constant 0 : i32
    return %c0_i32, %c0_i32_0 : i32, i32
  }
  func.func @transform_7(%arg0: i32) -> (i32, i32) {
    %c0_i32 = arith.constant 0 : i32
    %c0_i32_0 = arith.constant 0 : i32
    %c0_i32_1 = arith.constant 0 : i32
    return %c0_i32, %c0_i32_0 : i32, i32
  }
}

module attributes {stable_mosaic.version = 11 : i64} {
  func.func @_dit_fused_kernel(%arg0: i32, %arg1: i32, %arg2: memref<1x16x32xf32, #tpu.memory_space<vmem>>, %arg3: memref<1x16x32xf32, #tpu.memory_space<vmem>>, %arg4: memref<1x1x6x64xf32, #tpu.memory_space<vmem>>, %arg5: memref<1x2x64xf32, #tpu.memory_space<vmem>>, %arg6: memref<32x64xbf16, #tpu.memory_space<vmem>>, %arg7: memref<32x64xbf16, #tpu.memory_space<vmem>>, %arg8: memref<1x64xf32, #tpu.memory_space<vmem>>, %arg9: memref<1x64x192xbf16, #tpu.memory_space<vmem>>, %arg10: memref<1x1x192xf32, #tpu.memory_space<vmem>>, %arg11: memref<1x64x64xbf16, #tpu.memory_space<vmem>>, %arg12: memref<1x1x64xf32, #tpu.memory_space<vmem>>, %arg13: memref<1x64x256xbf16, #tpu.memory_space<vmem>>, %arg14: memref<1x1x256xf32, #tpu.memory_space<vmem>>, %arg15: memref<1x256x64xbf16, #tpu.memory_space<vmem>>, %arg16: memref<1x1x64xf32, #tpu.memory_space<vmem>>, %arg17: memref<64x32xbf16, #tpu.memory_space<vmem>>, %arg18: memref<1x32xf32, #tpu.memory_space<vmem>>, %arg19: memref<1x16x32xf32, #tpu.memory_space<vmem>>, %arg20: memref<16x64xf32, #tpu.memory_space<vmem>>) attributes {dimension_semantics = [#tpu.dimension_semantics<parallel>, #tpu.dimension_semantics<arbitrary>], iteration_bounds = array<i64: 2, 2>, scalar_prefetch = 0 : i64, scratch_operands = 1 : i64, tpu.core_type = #tpu.core_type<tc>, window_params = [{transform_indices = @transform_0, window_bounds = array<i64: 1, 16, 32>}, {transform_indices = @transform_1, window_bounds = array<i64: 1, 16, 32>}, {transform_indices = @transform_2, window_bounds = array<i64: 1, 1, 6, 64>}, {transform_indices = @transform_3, window_bounds = array<i64: 1, 2, 64>}, {pipeline_mode = #tpu.pipeline_mode<synchronous>, transform_indices = @transform_4, window_bounds = array<i64: 32, 64>}, {pipeline_mode = #tpu.pipeline_mode<synchronous>, transform_indices = @transform_5, window_bounds = array<i64: 32, 64>}, {pipeline_mode = #tpu.pipeline_mode<synchronous>, transform_indices = @transform_6, window_bounds = array<i64: 1, 64>}, {transform_indices = @transform_7, window_bounds = array<i64: 1, 64, 192>}, {transform_indices = @transform_8, window_bounds = array<i64: 1, 1, 192>}, {transform_indices = @transform_9, window_bounds = array<i64: 1, 64, 64>}, {transform_indices = @transform_10, window_bounds = array<i64: 1, 1, 64>}, {transform_indices = @transform_11, window_bounds = array<i64: 1, 64, 256>}, {transform_indices = @transform_12, window_bounds = array<i64: 1, 1, 256>}, {transform_indices = @transform_13, window_bounds = array<i64: 1, 256, 64>}, {transform_indices = @transform_14, window_bounds = array<i64: 1, 1, 64>}, {pipeline_mode = #tpu.pipeline_mode<synchronous>, transform_indices = @transform_15, window_bounds = array<i64: 64, 32>}, {pipeline_mode = #tpu.pipeline_mode<synchronous>, transform_indices = @transform_16, window_bounds = array<i64: 1, 32>}, {transform_indices = @transform_17, window_bounds = array<i64: 1, 16, 32>}]} {
    %c0_i32 = arith.constant 0 : i32
    %0 = arith.cmpi eq, %arg1, %c0_i32 : i32
    %1 = arith.extui %0 : i1 to i32
    %c0_i32_0 = arith.constant 0 : i32
    %2 = arith.cmpi ne, %1, %c0_i32_0 : i32
    scf.if %2 {
      %c0_72 = arith.constant 0 : index
      %c0_73 = arith.constant 0 : index
      %c0_74 = arith.constant 0 : index
      %199 = vector.load %arg2[%c0_72, %c0_73, %c0_74] : memref<1x16x32xf32, #tpu.memory_space<vmem>>, vector<1x16x32xf32>
      %200 = vector.shape_cast %199 : vector<1x16x32xf32> to vector<16x32xf32>
      %201 = arith.truncf %200 : vector<16x32xf32> to vector<16x32xbf16>
      %c0_75 = arith.constant 0 : index
      %c0_76 = arith.constant 0 : index
      %202 = vector.load %arg6[%c0_75, %c0_76] : memref<32x64xbf16, #tpu.memory_space<vmem>>, vector<32x64xbf16>
      %cst_77 = arith.constant dense<0.000000e+00> : vector<16x64xf32>
      %203 = tpu.matmul %201, %202, %cst_77 {dimension_numbers = #tpu.dot_dimension_numbers<[1], [0], [0], [1], [0, 0, 1, 1], [], []>} : vector<16x32xbf16>, vector<32x64xbf16>, vector<16x64xf32> -> vector<16x64xf32>
      %c0_78 = arith.constant 0 : index
      %c0_79 = arith.constant 0 : index
      %c0_80 = arith.constant 0 : index
      %204 = vector.load %arg3[%c0_78, %c0_79, %c0_80] : memref<1x16x32xf32, #tpu.memory_space<vmem>>, vector<1x16x32xf32>
      %205 = vector.shape_cast %204 : vector<1x16x32xf32> to vector<16x32xf32>
      %206 = arith.truncf %205 : vector<16x32xf32> to vector<16x32xbf16>
      %c0_81 = arith.constant 0 : index
      %c0_82 = arith.constant 0 : index
      %207 = vector.load %arg7[%c0_81, %c0_82] : memref<32x64xbf16, #tpu.memory_space<vmem>>, vector<32x64xbf16>
      %cst_83 = arith.constant dense<0.000000e+00> : vector<16x64xf32>
      %208 = tpu.matmul %206, %207, %cst_83 {dimension_numbers = #tpu.dot_dimension_numbers<[1], [0], [0], [1], [0, 0, 1, 1], [], []>} : vector<16x32xbf16>, vector<32x64xbf16>, vector<16x64xf32> -> vector<16x64xf32>
      %209 = arith.addf %203, %208 : vector<16x64xf32>
      %c0_84 = arith.constant 0 : index
      %c0_85 = arith.constant 0 : index
      %210 = vector.load %arg8[%c0_84, %c0_85] : memref<1x64xf32, #tpu.memory_space<vmem>>, vector<1x64xf32>
      %211 = vector.broadcast %210 : vector<1x64xf32> to vector<16x64xf32>
      %212 = arith.addf %209, %211 : vector<16x64xf32>
      %c0_86 = arith.constant 0 : index
      %c0_87 = arith.constant 0 : index
      %213 = vector.load %arg20[%c0_86, %c0_87] : memref<16x64xf32, #tpu.memory_space<vmem>>, vector<16x64xf32>
      tpu.vector_store %arg20[%c0_86, %c0_87], %212 {strides = array<i32>} : memref<16x64xf32, #tpu.memory_space<vmem>>, vector<16x64xf32>,
    } else {
    }
    %c0 = arith.constant 0 : index
    %c0_1 = arith.constant 0 : index
    %3 = vector.load %arg20[%c0, %c0_1] : memref<16x64xf32, #tpu.memory_space<vmem>>, vector<16x64xf32>
    %c0_2 = arith.constant 0 : index
    %c0_3 = arith.constant 0 : index
    %c0_4 = arith.constant 0 : index
    %c0_5 = arith.constant 0 : index
    %4 = vector.load %arg4[%c0_2, %c0_3, %c0_4, %c0_5] : memref<1x1x6x64xf32, #tpu.memory_space<vmem>>, vector<1x1x6x64xf32>
    %5 = vector.shape_cast %4 : vector<1x1x6x64xf32> to vector<6x64xf32>
    %6 = vector.extract_strided_slice %5 {offsets = [0, 0], sizes = [1, 64], strides = [1, 1]} : vector<6x64xf32> to vector<1x64xf32>
    %7 = vector.extract_strided_slice %5 {offsets = [1, 0], sizes = [1, 64], strides = [1, 1]} : vector<6x64xf32> to vector<1x64xf32>
    %8 = vector.extract_strided_slice %5 {offsets = [2, 0], sizes = [1, 64], strides = [1, 1]} : vector<6x64xf32> to vector<1x64xf32>
    %9 = vector.extract_strided_slice %5 {offsets = [3, 0], sizes = [1, 64], strides = [1, 1]} : vector<6x64xf32> to vector<1x64xf32>
    %10 = vector.extract_strided_slice %5 {offsets = [4, 0], sizes = [1, 64], strides = [1, 1]} : vector<6x64xf32> to vector<1x64xf32>
    %11 = vector.extract_strided_slice %5 {offsets = [5, 0], sizes = [1, 64], strides = [1, 1]} : vector<6x64xf32> to vector<1x64xf32>
    %cst = arith.constant dense<0.000000e+00> : vector<16xf32>
    %12 = vector.multi_reduction <add>, %3, %cst [1] : vector<16x64xf32> to vector<16xf32>
    %13 = vector.shape_cast %12 : vector<16xf32> to vector<16x1xf32>
    %cst_6 = arith.constant 6.400000e+01 : f32
    %14 = vector.broadcast %cst_6 : f32 to vector<16x1xf32>
    %15 = arith.divf %13, %14 : vector<16x1xf32>
    %16 = vector.broadcast %15 : vector<16x1xf32> to vector<16x64xf32>
    %17 = arith.subf %3, %16 : vector<16x64xf32>
    %18 = arith.mulf %17, %17 : vector<16x64xf32>
    %cst_7 = arith.constant dense<0.000000e+00> : vector<16xf32>
    %19 = vector.multi_reduction <add>, %18, %cst_7 [1] : vector<16x64xf32> to vector<16xf32>
    %20 = vector.shape_cast %19 : vector<16xf32> to vector<16x1xf32>
    %cst_8 = arith.constant 6.400000e+01 : f32
    %21 = vector.broadcast %cst_8 : f32 to vector<16x1xf32>
    %22 = arith.divf %20, %21 : vector<16x1xf32>
    %cst_9 = arith.constant 9.99999997E-7 : f32
    %23 = vector.broadcast %cst_9 : f32 to vector<16x1xf32>
    %24 = arith.addf %22, %23 : vector<16x1xf32>
    %25 = math.rsqrt %24 : vector<16x1xf32>
    %26 = vector.broadcast %25 : vector<16x1xf32> to vector<16x64xf32>
    %27 = arith.mulf %17, %26 : vector<16x64xf32>
    %cst_10 = arith.constant 1.000000e+00 : f32
    %28 = vector.broadcast %cst_10 : f32 to vector<1x64xf32>
    %29 = arith.addf %28, %7 : vector<1x64xf32>
    %30 = vector.broadcast %29 : vector<1x64xf32> to vector<16x64xf32>
    %31 = arith.mulf %27, %30 : vector<16x64xf32>
    %32 = vector.broadcast %6 : vector<1x64xf32> to vector<16x64xf32>
    %33 = arith.addf %31, %32 : vector<16x64xf32>
    %34 = arith.truncf %33 : vector<16x64xf32> to vector<16x64xbf16>
    %c0_11 = arith.constant 0 : index
    %c0_12 = arith.constant 0 : index
    %c0_13 = arith.constant 0 : index
    %35 = vector.load %arg9[%c0_11, %c0_12, %c0_13] : memref<1x64x192xbf16, #tpu.memory_space<vmem>>, vector<1x64x192xbf16>
    %36 = vector.shape_cast %35 : vector<1x64x192xbf16> to vector<64x192xbf16>
    %cst_14 = arith.constant dense<0.000000e+00> : vector<16x192xf32>
    %37 = tpu.matmul %34, %36, %cst_14 {dimension_numbers = #tpu.dot_dimension_numbers<[1], [0], [0], [1], [0, 0, 1, 1], [], []>} : vector<16x64xbf16>, vector<64x192xbf16>, vector<16x192xf32> -> vector<16x192xf32>
    %c0_15 = arith.constant 0 : index
    %c0_16 = arith.constant 0 : index
    %c0_17 = arith.constant 0 : index
    %38 = vector.load %arg10[%c0_15, %c0_16, %c0_17] : memref<1x1x192xf32, #tpu.memory_space<vmem>>, vector<1x1x192xf32>
    %39 = vector.shape_cast %38 : vector<1x1x192xf32> to vector<1x192xf32>
    %40 = vector.broadcast %39 : vector<1x192xf32> to vector<16x192xf32>
    %41 = arith.addf %37, %40 : vector<16x192xf32>
    %42 = vector.extract_strided_slice %41 {offsets = [0, 0], sizes = [16, 64], strides = [1, 1]} : vector<16x192xf32> to vector<16x64xf32>
    %43 = vector.extract_strided_slice %41 {offsets = [0, 64], sizes = [16, 64], strides = [1, 1]} : vector<16x192xf32> to vector<16x64xf32>
    %44 = vector.extract_strided_slice %41 {offsets = [0, 128], sizes = [16, 64], strides = [1, 1]} : vector<16x192xf32> to vector<16x64xf32>
    %45 = vector.extract_strided_slice %42 {offsets = [0, 0], sizes = [16, 16], strides = [1, 1]} : vector<16x64xf32> to vector<16x16xf32>
    %46 = arith.truncf %45 : vector<16x16xf32> to vector<16x16xbf16>
    %47 = vector.extract_strided_slice %43 {offsets = [0, 0], sizes = [16, 16], strides = [1, 1]} : vector<16x64xf32> to vector<16x16xf32>
    %48 = arith.truncf %47 : vector<16x16xf32> to vector<16x16xbf16>
    %49 = vector.extract_strided_slice %44 {offsets = [0, 0], sizes = [16, 16], strides = [1, 1]} : vector<16x64xf32> to vector<16x16xf32>
    %50 = arith.truncf %49 : vector<16x16xf32> to vector<16x16xbf16>
    %cst_18 = arith.constant dense<0.000000e+00> : vector<16x16xf32>
    %51 = tpu.matmul %46, %48, %cst_18 {dimension_numbers = #tpu.dot_dimension_numbers<[1], [1], [0], [0], [0, 0, 1, 0], [], []>} : vector<16x16xbf16>, vector<16x16xbf16>, vector<16x16xf32> -> vector<16x16xf32>
    %cst_19 = arith.constant 2.500000e-01 : f32
    %52 = vector.broadcast %cst_19 : f32 to vector<16x16xf32>
    %53 = arith.mulf %51, %52 : vector<16x16xf32>
    %cst_20 = arith.constant dense<0xFF800000> : vector<16xf32>
    %54 = vector.multi_reduction <maximumf>, %53, %cst_20 [1] : vector<16x16xf32> to vector<16xf32>
    %55 = vector.shape_cast %54 : vector<16xf32> to vector<16x1xf32>
    %56 = vector.broadcast %55 : vector<16x1xf32> to vector<16x16xf32>
    %57 = arith.subf %53, %56 : vector<16x16xf32>
    %58 = math.exp %57 : vector<16x16xf32>
    %cst_21 = arith.constant dense<0.000000e+00> : vector<16xf32>
    %59 = vector.multi_reduction <add>, %58, %cst_21 [1] : vector<16x16xf32> to vector<16xf32>
    %60 = vector.shape_cast %59 : vector<16xf32> to vector<16x1xf32>
    %61 = tpu.reciprocal %60 {approx = true} : vector<16x1xf32> -> vector<16x1xf32>
    %62 = vector.broadcast %61 : vector<16x1xf32> to vector<16x16xf32>
    %63 = arith.mulf %58, %62 : vector<16x16xf32>
    %64 = arith.truncf %63 : vector<16x16xf32> to vector<16x16xbf16>
    %cst_22 = arith.constant dense<0.000000e+00> : vector<16x16xf32>
    %65 = tpu.matmul %64, %50, %cst_22 {dimension_numbers = #tpu.dot_dimension_numbers<[1], [0], [0], [1], [0, 0, 1, 1], [], []>} : vector<16x16xbf16>, vector<16x16xbf16>, vector<16x16xf32> -> vector<16x16xf32>
    %66 = vector.extract_strided_slice %42 {offsets = [0, 16], sizes = [16, 16], strides = [1, 1]} : vector<16x64xf32> to vector<16x16xf32>
    %67 = arith.truncf %66 : vector<16x16xf32> to vector<16x16xbf16>
    %68 = vector.extract_strided_slice %43 {offsets = [0, 16], sizes = [16, 16], strides = [1, 1]} : vector<16x64xf32> to vector<16x16xf32>
    %69 = arith.truncf %68 : vector<16x16xf32> to vector<16x16xbf16>
    %70 = vector.extract_strided_slice %44 {offsets = [0, 16], sizes = [16, 16], strides = [1, 1]} : vector<16x64xf32> to vector<16x16xf32>
    %71 = arith.truncf %70 : vector<16x16xf32> to vector<16x16xbf16>
    %cst_23 = arith.constant dense<0.000000e+00> : vector<16x16xf32>
    %72 = tpu.matmul %67, %69, %cst_23 {dimension_numbers = #tpu.dot_dimension_numbers<[1], [1], [0], [0], [0, 0, 1, 0], [], []>} : vector<16x16xbf16>, vector<16x16xbf16>, vector<16x16xf32> -> vector<16x16xf32>
    %cst_24 = arith.constant 2.500000e-01 : f32
    %73 = vector.broadcast %cst_24 : f32 to vector<16x16xf32>
    %74 = arith.mulf %72, %73 : vector<16x16xf32>
    %cst_25 = arith.constant dense<0xFF800000> : vector<16xf32>
    %75 = vector.multi_reduction <maximumf>, %74, %cst_25 [1] : vector<16x16xf32> to vector<16xf32>
    %76 = vector.shape_cast %75 : vector<16xf32> to vector<16x1xf32>
    %77 = vector.broadcast %76 : vector<16x1xf32> to vector<16x16xf32>
    %78 = arith.subf %74, %77 : vector<16x16xf32>
    %79 = math.exp %78 : vector<16x16xf32>
    %cst_26 = arith.constant dense<0.000000e+00> : vector<16xf32>
    %80 = vector.multi_reduction <add>, %79, %cst_26 [1] : vector<16x16xf32> to vector<16xf32>
    %81 = vector.shape_cast %80 : vector<16xf32> to vector<16x1xf32>
    %82 = tpu.reciprocal %81 {approx = true} : vector<16x1xf32> -> vector<16x1xf32>
    %83 = vector.broadcast %82 : vector<16x1xf32> to vector<16x16xf32>
    %84 = arith.mulf %79, %83 : vector<16x16xf32>
    %85 = arith.truncf %84 : vector<16x16xf32> to vector<16x16xbf16>
    %cst_27 = arith.constant dense<0.000000e+00> : vector<16x16xf32>
    %86 = tpu.matmul %85, %71, %cst_27 {dimension_numbers = #tpu.dot_dimension_numbers<[1], [0], [0], [1], [0, 0, 1, 1], [], []>} : vector<16x16xbf16>, vector<16x16xbf16>, vector<16x16xf32> -> vector<16x16xf32>
    %87 = vector.extract_strided_slice %42 {offsets = [0, 32], sizes = [16, 16], strides = [1, 1]} : vector<16x64xf32> to vector<16x16xf32>
    %88 = arith.truncf %87 : vector<16x16xf32> to vector<16x16xbf16>
    %89 = vector.extract_strided_slice %43 {offsets = [0, 32], sizes = [16, 16], strides = [1, 1]} : vector<16x64xf32> to vector<16x16xf32>
    %90 = arith.truncf %89 : vector<16x16xf32> to vector<16x16xbf16>
    %91 = vector.extract_strided_slice %44 {offsets = [0, 32], sizes = [16, 16], strides = [1, 1]} : vector<16x64xf32> to vector<16x16xf32>
    %92 = arith.truncf %91 : vector<16x16xf32> to vector<16x16xbf16>
    %cst_28 = arith.constant dense<0.000000e+00> : vector<16x16xf32>
    %93 = tpu.matmul %88, %90, %cst_28 {dimension_numbers = #tpu.dot_dimension_numbers<[1], [1], [0], [0], [0, 0, 1, 0], [], []>} : vector<16x16xbf16>, vector<16x16xbf16>, vector<16x16xf32> -> vector<16x16xf32>
    %cst_29 = arith.constant 2.500000e-01 : f32
    %94 = vector.broadcast %cst_29 : f32 to vector<16x16xf32>
    %95 = arith.mulf %93, %94 : vector<16x16xf32>
    %cst_30 = arith.constant dense<0xFF800000> : vector<16xf32>
    %96 = vector.multi_reduction <maximumf>, %95, %cst_30 [1] : vector<16x16xf32> to vector<16xf32>
    %97 = vector.shape_cast %96 : vector<16xf32> to vector<16x1xf32>
    %98 = vector.broadcast %97 : vector<16x1xf32> to vector<16x16xf32>
    %99 = arith.subf %95, %98 : vector<16x16xf32>
    %100 = math.exp %99 : vector<16x16xf32>
    %cst_31 = arith.constant dense<0.000000e+00> : vector<16xf32>
    %101 = vector.multi_reduction <add>, %100, %cst_31 [1] : vector<16x16xf32> to vector<16xf32>
    %102 = vector.shape_cast %101 : vector<16xf32> to vector<16x1xf32>
    %103 = tpu.reciprocal %102 {approx = true} : vector<16x1xf32> -> vector<16x1xf32>
    %104 = vector.broadcast %103 : vector<16x1xf32> to vector<16x16xf32>
    %105 = arith.mulf %100, %104 : vector<16x16xf32>
    %106 = arith.truncf %105 : vector<16x16xf32> to vector<16x16xbf16>
    %cst_32 = arith.constant dense<0.000000e+00> : vector<16x16xf32>
    %107 = tpu.matmul %106, %92, %cst_32 {dimension_numbers = #tpu.dot_dimension_numbers<[1], [0], [0], [1], [0, 0, 1, 1], [], []>} : vector<16x16xbf16>, vector<16x16xbf16>, vector<16x16xf32> -> vector<16x16xf32>
    %108 = vector.extract_strided_slice %42 {offsets = [0, 48], sizes = [16, 16], strides = [1, 1]} : vector<16x64xf32> to vector<16x16xf32>
    %109 = arith.truncf %108 : vector<16x16xf32> to vector<16x16xbf16>
    %110 = vector.extract_strided_slice %43 {offsets = [0, 48], sizes = [16, 16], strides = [1, 1]} : vector<16x64xf32> to vector<16x16xf32>
    %111 = arith.truncf %110 : vector<16x16xf32> to vector<16x16xbf16>
    %112 = vector.extract_strided_slice %44 {offsets = [0, 48], sizes = [16, 16], strides = [1, 1]} : vector<16x64xf32> to vector<16x16xf32>
    %113 = arith.truncf %112 : vector<16x16xf32> to vector<16x16xbf16>
    %cst_33 = arith.constant dense<0.000000e+00> : vector<16x16xf32>
    %114 = tpu.matmul %109, %111, %cst_33 {dimension_numbers = #tpu.dot_dimension_numbers<[1], [1], [0], [0], [0, 0, 1, 0], [], []>} : vector<16x16xbf16>, vector<16x16xbf16>, vector<16x16xf32> -> vector<16x16xf32>
    %cst_34 = arith.constant 2.500000e-01 : f32
    %115 = vector.broadcast %cst_34 : f32 to vector<16x16xf32>
    %116 = arith.mulf %114, %115 : vector<16x16xf32>
    %cst_35 = arith.constant dense<0xFF800000> : vector<16xf32>
    %117 = vector.multi_reduction <maximumf>, %116, %cst_35 [1] : vector<16x16xf32> to vector<16xf32>
    %118 = vector.shape_cast %117 : vector<16xf32> to vector<16x1xf32>
    %119 = vector.broadcast %118 : vector<16x1xf32> to vector<16x16xf32>
    %120 = arith.subf %116, %119 : vector<16x16xf32>
    %121 = math.exp %120 : vector<16x16xf32>
    %cst_36 = arith.constant dense<0.000000e+00> : vector<16xf32>
    %122 = vector.multi_reduction <add>, %121, %cst_36 [1] : vector<16x16xf32> to vector<16xf32>
    %123 = vector.shape_cast %122 : vector<16xf32> to vector<16x1xf32>
    %124 = tpu.reciprocal %123 {approx = true} : vector<16x1xf32> -> vector<16x1xf32>
    %125 = vector.broadcast %124 : vector<16x1xf32> to vector<16x16xf32>
    %126 = arith.mulf %121, %125 : vector<16x16xf32>
    %127 = arith.truncf %126 : vector<16x16xf32> to vector<16x16xbf16>
    %cst_37 = arith.constant dense<0.000000e+00> : vector<16x16xf32>
    %128 = tpu.matmul %127, %113, %cst_37 {dimension_numbers = #tpu.dot_dimension_numbers<[1], [0], [0], [1], [0, 0, 1, 1], [], []>} : vector<16x16xbf16>, vector<16x16xbf16>, vector<16x16xf32> -> vector<16x16xf32>
    %129 = tpu.concatenate %65, %86, %107, %128 in 1 : vector<16x16xf32>, vector<16x16xf32>, vector<16x16xf32>, vector<16x16xf32> -> vector<16x64xf32>
    %130 = arith.truncf %129 : vector<16x64xf32> to vector<16x64xbf16>
    %c0_38 = arith.constant 0 : index
    %c0_39 = arith.constant 0 : index
    %c0_40 = arith.constant 0 : index
    %131 = vector.load %arg11[%c0_38, %c0_39, %c0_40] : memref<1x64x64xbf16, #tpu.memory_space<vmem>>, vector<1x64x64xbf16>
    %132 = vector.shape_cast %131 : vector<1x64x64xbf16> to vector<64x64xbf16>
    %cst_41 = arith.constant dense<0.000000e+00> : vector<16x64xf32>
    %133 = tpu.matmul %130, %132, %cst_41 {dimension_numbers = #tpu.dot_dimension_numbers<[1], [0], [0], [1], [0, 0, 1, 1], [], []>} : vector<16x64xbf16>, vector<64x64xbf16>, vector<16x64xf32> -> vector<16x64xf32>
    %c0_42 = arith.constant 0 : index
    %c0_43 = arith.constant 0 : index
    %c0_44 = arith.constant 0 : index
    %134 = vector.load %arg12[%c0_42, %c0_43, %c0_44] : memref<1x1x64xf32, #tpu.memory_space<vmem>>, vector<1x1x64xf32>
    %135 = vector.shape_cast %134 : vector<1x1x64xf32> to vector<1x64xf32>
    %136 = vector.broadcast %135 : vector<1x64xf32> to vector<16x64xf32>
    %137 = arith.addf %133, %136 : vector<16x64xf32>
    %138 = vector.broadcast %8 : vector<1x64xf32> to vector<16x64xf32>
    %139 = arith.mulf %138, %137 : vector<16x64xf32>
    %140 = arith.addf %3, %139 : vector<16x64xf32>
    %cst_45 = arith.constant dense<0.000000e+00> : vector<16xf32>
    %141 = vector.multi_reduction <add>, %140, %cst_45 [1] : vector<16x64xf32> to vector<16xf32>
    %142 = vector.shape_cast %141 : vector<16xf32> to vector<16x1xf32>
    %cst_46 = arith.constant 6.400000e+01 : f32
    %143 = vector.broadcast %cst_46 : f32 to vector<16x1xf32>
    %144 = arith.divf %142, %143 : vector<16x1xf32>
    %145 = vector.broadcast %144 : vector<16x1xf32> to vector<16x64xf32>
    %146 = arith.subf %140, %145 : vector<16x64xf32>
    %147 = arith.mulf %146, %146 : vector<16x64xf32>
    %cst_47 = arith.constant dense<0.000000e+00> : vector<16xf32>
    %148 = vector.multi_reduction <add>, %147, %cst_47 [1] : vector<16x64xf32> to vector<16xf32>
    %149 = vector.shape_cast %148 : vector<16xf32> to vector<16x1xf32>
    %cst_48 = arith.constant 6.400000e+01 : f32
    %150 = vector.broadcast %cst_48 : f32 to vector<16x1xf32>
    %151 = arith.divf %149, %150 : vector<16x1xf32>
    %cst_49 = arith.constant 9.99999997E-7 : f32
    %152 = vector.broadcast %cst_49 : f32 to vector<16x1xf32>
    %153 = arith.addf %151, %152 : vector<16x1xf32>
    %154 = math.rsqrt %153 : vector<16x1xf32>
    %155 = vector.broadcast %154 : vector<16x1xf32> to vector<16x64xf32>
    %156 = arith.mulf %146, %155 : vector<16x64xf32>
    %cst_50 = arith.constant 1.000000e+00 : f32
    %157 = vector.broadcast %cst_50 : f32 to vector<1x64xf32>
    %158 = arith.addf %157, %10 : vector<1x64xf32>
    %159 = vector.broadcast %158 : vector<1x64xf32> to vector<16x64xf32>
    %160 = arith.mulf %156, %159 : vector<16x64xf32>
    %161 = vector.broadcast %9 : vector<1x64xf32> to vector<16x64xf32>
    %162 = arith.addf %160, %161 : vector<16x64xf32>
    %163 = arith.truncf %162 : vector<16x64xf32> to vector<16x64xbf16>
    %c0_51 = arith.constant 0 : index
    %c0_52 = arith.constant 0 : index
    %c0_53 = arith.constant 0 : index
    %164 = vector.load %arg13[%c0_51, %c0_52, %c0_53] : memref<1x64x256xbf16, #tpu.memory_space<vmem>>, vector<1x64x256xbf16>
    %165 = vector.shape_cast %164 : vector<1x64x256xbf16> to vector<64x256xbf16>
    %cst_54 = arith.constant dense<0.000000e+00> : vector<16x256xf32>
    %166 = tpu.matmul %163, %165, %cst_54 {dimension_numbers = #tpu.dot_dimension_numbers<[1], [0], [0], [1], [0, 0, 1, 1], [], []>} : vector<16x64xbf16>, vector<64x256xbf16>, vector<16x256xf32> -> vector<16x256xf32>
    %c0_55 = arith.constant 0 : index
    %c0_56 = arith.constant 0 : index
    %c0_57 = arith.constant 0 : index
    %167 = vector.load %arg14[%c0_55, %c0_56, %c0_57] : memref<1x1x256xf32, #tpu.memory_space<vmem>>, vector<1x1x256xf32>
    %168 = vector.shape_cast %167 : vector<1x1x256xf32> to vector<1x256xf32>
    %169 = vector.broadcast %168 : vector<1x256xf32> to vector<16x256xf32>
    %170 = arith.addf %166, %169 : vector<16x256xf32>
    %171 = arith.mulf %170, %170 : vector<16x256xf32>
    %172 = arith.mulf %170, %171 : vector<16x256xf32>
    %cst_58 = arith.constant 4.471500e-02 : f32
    %173 = vector.broadcast %cst_58 : f32 to vector<16x256xf32>
    %174 = arith.mulf %173, %172 : vector<16x256xf32>
    %175 = arith.addf %170, %174 : vector<16x256xf32>
    %cst_59 = arith.constant 0.797884583 : f32
    %176 = vector.broadcast %cst_59 : f32 to vector<16x256xf32>
    %177 = arith.mulf %176, %175 : vector<16x256xf32>
    %178 = math.tanh %177 : vector<16x256xf32>
    %cst_60 = arith.constant 1.000000e+00 : f32
    %179 = vector.broadcast %cst_60 : f32 to vector<16x256xf32>
    %180 = arith.addf %179, %178 : vector<16x256xf32>
    %cst_61 = arith.constant 5.000000e-01 : f32
    %181 = vector.broadcast %cst_61 : f32 to vector<16x256xf32>
    %182 = arith.mulf %181, %180 : vector<16x256xf32>
    %183 = arith.mulf %170, %182 : vector<16x256xf32>
    %184 = arith.truncf %183 : vector<16x256xf32> to vector<16x256xbf16>
    %c0_62 = arith.constant 0 : index
    %c0_63 = arith.constant 0 : index
    %c0_64 = arith.constant 0 : index
    %185 = vector.load %arg15[%c0_62, %c0_63, %c0_64] : memref<1x256x64xbf16, #tpu.memory_space<vmem>>, vector<1x256x64xbf16>
    %186 = vector.shape_cast %185 : vector<1x256x64xbf16> to vector<256x64xbf16>
    %cst_65 = arith.constant dense<0.000000e+00> : vector<16x64xf32>
    %187 = tpu.matmul %184, %186, %cst_65 {dimension_numbers = #tpu.dot_dimension_numbers<[1], [0], [0], [1], [0, 0, 1, 1], [], []>} : vector<16x256xbf16>, vector<256x64xbf16>, vector<16x64xf32> -> vector<16x64xf32>
    %c0_66 = arith.constant 0 : index
    %c0_67 = arith.constant 0 : index
    %c0_68 = arith.constant 0 : index
    %188 = vector.load %arg16[%c0_66, %c0_67, %c0_68] : memref<1x1x64xf32, #tpu.memory_space<vmem>>, vector<1x1x64xf32>
    %189 = vector.shape_cast %188 : vector<1x1x64xf32> to vector<1x64xf32>
    %190 = vector.broadcast %189 : vector<1x64xf32> to vector<16x64xf32>
    %191 = arith.addf %187, %190 : vector<16x64xf32>
    %192 = vector.broadcast %11 : vector<1x64xf32> to vector<16x64xf32>
    %193 = arith.mulf %192, %191 : vector<16x64xf32>
    %194 = arith.addf %140, %193 : vector<16x64xf32>
    %c0_69 = arith.constant 0 : index
    %c0_70 = arith.constant 0 : index
    %195 = vector.load %arg20[%c0_69, %c0_70] : memref<16x64xf32, #tpu.memory_space<vmem>>, vector<16x64xf32>
    tpu.vector_store %arg20[%c0_69, %c0_70], %194 {strides = array<i32>} : memref<16x64xf32, #tpu.memory_space<vmem>>, vector<16x64xf32>,
    %c1_i32 = arith.constant 1 : i32
    %196 = arith.cmpi eq, %arg1, %c1_i32 : i32
    %197 = arith.extui %196 : i1 to i32
    %c0_i32_71 = arith.constant 0 : i32
    %198 = arith.cmpi ne, %197, %c0_i32_71 : i32
    scf.if %198 {
      %c0_72 = arith.constant 0 : index
      %c0_73 = arith.constant 0 : index
      %c0_74 = arith.constant 0 : index
      %199 = vector.load %arg5[%c0_72, %c0_73, %c0_74] : memref<1x2x64xf32, #tpu.memory_space<vmem>>, vector<1x2x64xf32>
      %200 = vector.shape_cast %199 : vector<1x2x64xf32> to vector<2x64xf32>
      %201 = vector.extract_strided_slice %200 {offsets = [0, 0], sizes = [1, 64], strides = [1, 1]} : vector<2x64xf32> to vector<1x64xf32>
      %202 = vector.extract_strided_slice %200 {offsets = [1, 0], sizes = [1, 64], strides = [1, 1]} : vector<2x64xf32> to vector<1x64xf32>
      %cst_75 = arith.constant dense<0.000000e+00> : vector<16xf32>
      %203 = vector.multi_reduction <add>, %194, %cst_75 [1] : vector<16x64xf32> to vector<16xf32>
      %204 = vector.shape_cast %203 : vector<16xf32> to vector<16x1xf32>
      %cst_76 = arith.constant 6.400000e+01 : f32
      %205 = vector.broadcast %cst_76 : f32 to vector<16x1xf32>
      %206 = arith.divf %204, %205 : vector<16x1xf32>
      %207 = vector.broadcast %206 : vector<16x1xf32> to vector<16x64xf32>
      %208 = arith.subf %194, %207 : vector<16x64xf32>
      %209 = arith.mulf %208, %208 : vector<16x64xf32>
      %cst_77 = arith.constant dense<0.000000e+00> : vector<16xf32>
      %210 = vector.multi_reduction <add>, %209, %cst_77 [1] : vector<16x64xf32> to vector<16xf32>
      %211 = vector.shape_cast %210 : vector<16xf32> to vector<16x1xf32>
      %cst_78 = arith.constant 6.400000e+01 : f32
      %212 = vector.broadcast %cst_78 : f32 to vector<16x1xf32>
      %213 = arith.divf %211, %212 : vector<16x1xf32>
      %cst_79 = arith.constant 9.99999997E-7 : f32
      %214 = vector.broadcast %cst_79 : f32 to vector<16x1xf32>
      %215 = arith.addf %213, %214 : vector<16x1xf32>
      %216 = math.rsqrt %215 : vector<16x1xf32>
      %217 = vector.broadcast %216 : vector<16x1xf32> to vector<16x64xf32>
      %218 = arith.mulf %208, %217 : vector<16x64xf32>
      %cst_80 = arith.constant 1.000000e+00 : f32
      %219 = vector.broadcast %cst_80 : f32 to vector<1x64xf32>
      %220 = arith.addf %219, %202 : vector<1x64xf32>
      %221 = vector.broadcast %220 : vector<1x64xf32> to vector<16x64xf32>
      %222 = arith.mulf %218, %221 : vector<16x64xf32>
      %223 = vector.broadcast %201 : vector<1x64xf32> to vector<16x64xf32>
      %224 = arith.addf %222, %223 : vector<16x64xf32>
      %225 = arith.truncf %224 : vector<16x64xf32> to vector<16x64xbf16>
      %c0_81 = arith.constant 0 : index
      %c0_82 = arith.constant 0 : index
      %226 = vector.load %arg17[%c0_81, %c0_82] : memref<64x32xbf16, #tpu.memory_space<vmem>>, vector<64x32xbf16>
      %cst_83 = arith.constant dense<0.000000e+00> : vector<16x32xf32>
      %227 = tpu.matmul %225, %226, %cst_83 {dimension_numbers = #tpu.dot_dimension_numbers<[1], [0], [0], [1], [0, 0, 1, 1], [], []>} : vector<16x64xbf16>, vector<64x32xbf16>, vector<16x32xf32> -> vector<16x32xf32>
      %c0_84 = arith.constant 0 : index
      %c0_85 = arith.constant 0 : index
      %228 = vector.load %arg18[%c0_84, %c0_85] : memref<1x32xf32, #tpu.memory_space<vmem>>, vector<1x32xf32>
      %229 = vector.broadcast %228 : vector<1x32xf32> to vector<16x32xf32>
      %230 = arith.addf %227, %229 : vector<16x32xf32>
      %c0_86 = arith.constant 0 : index
      %c0_87 = arith.constant 0 : index
      %c0_88 = arith.constant 0 : index
      %231 = vector.load %arg19[%c0_86, %c0_87, %c0_88] : memref<1x16x32xf32, #tpu.memory_space<vmem>>, vector<1x16x32xf32>
      %232 = vector.shape_cast %231 : vector<1x16x32xf32> to vector<16x32xf32>
      %233 = vector.shape_cast %230 : vector<16x32xf32> to vector<1x16x32xf32>
      tpu.vector_store %arg19[%c0_86, %c0_87, %c0_88], %233 {strides = array<i32>} : memref<1x16x32xf32, #tpu.memory_space<vmem>>, vector<1x16x32xf32>,
    } else {
    }
    return
  }
  func.func @transform_0(%arg0: i32, %arg1: i32) -> (i32, i32, i32) {
    %c0_i32 = arith.constant 0 : i32
    %c0_i32_0 = arith.constant 0 : i32
    %c0_i32_1 = arith.constant 0 : i32
    return %arg0, %c0_i32, %c0_i32_0 : i32, i32, i32
  }
  func.func @transform_1(%arg0: i32, %arg1: i32) -> (i32, i32, i32) {
    %c0_i32 = arith.constant 0 : i32
    %c0_i32_0 = arith.constant 0 : i32
    %c0_i32_1 = arith.constant 0 : i32
    return %arg0, %c0_i32, %c0_i32_0 : i32, i32, i32
  }
  func.func @transform_2(%arg0: i32, %arg1: i32) -> (i32, i32, i32, i32) {
    %c0_i32 = arith.constant 0 : i32
    %c0_i32_0 = arith.constant 0 : i32
    %c0_i32_1 = arith.constant 0 : i32
    return %arg0, %arg1, %c0_i32, %c0_i32_0 : i32, i32, i32, i32
  }
  func.func @transform_3(%arg0: i32, %arg1: i32) -> (i32, i32, i32) {
    %c0_i32 = arith.constant 0 : i32
    %c0_i32_0 = arith.constant 0 : i32
    %c0_i32_1 = arith.constant 0 : i32
    return %arg0, %c0_i32, %c0_i32_0 : i32, i32, i32
  }
  func.func @transform_4(%arg0: i32, %arg1: i32) -> (i32, i32) {
    %c0_i32 = arith.constant 0 : i32
    %c0_i32_0 = arith.constant 0 : i32
    %c0_i32_1 = arith.constant 0 : i32
    return %c0_i32, %c0_i32_0 : i32, i32
  }
  func.func @transform_5(%arg0: i32, %arg1: i32) -> (i32, i32) {
    %c0_i32 = arith.constant 0 : i32
    %c0_i32_0 = arith.constant 0 : i32
    %c0_i32_1 = arith.constant 0 : i32
    return %c0_i32, %c0_i32_0 : i32, i32
  }
  func.func @transform_6(%arg0: i32, %arg1: i32) -> (i32, i32) {
    %c0_i32 = arith.constant 0 : i32
    %c0_i32_0 = arith.constant 0 : i32
    %c0_i32_1 = arith.constant 0 : i32
    return %c0_i32, %c0_i32_0 : i32, i32
  }
  func.func @transform_7(%arg0: i32, %arg1: i32) -> (i32, i32, i32) {
    %c0_i32 = arith.constant 0 : i32
    %c0_i32_0 = arith.constant 0 : i32
    %c0_i32_1 = arith.constant 0 : i32
    return %arg1, %c0_i32, %c0_i32_0 : i32, i32, i32
  }
  func.func @transform_8(%arg0: i32, %arg1: i32) -> (i32, i32, i32) {
    %c0_i32 = arith.constant 0 : i32
    %c0_i32_0 = arith.constant 0 : i32
    %c0_i32_1 = arith.constant 0 : i32
    return %arg1, %c0_i32, %c0_i32_0 : i32, i32, i32
  }
  func.func @transform_9(%arg0: i32, %arg1: i32) -> (i32, i32, i32) {
    %c0_i32 = arith.constant 0 : i32
    %c0_i32_0 = arith.constant 0 : i32
    %c0_i32_1 = arith.constant 0 : i32
    return %arg1, %c0_i32, %c0_i32_0 : i32, i32, i32
  }
  func.func @transform_10(%arg0: i32, %arg1: i32) -> (i32, i32, i32) {
    %c0_i32 = arith.constant 0 : i32
    %c0_i32_0 = arith.constant 0 : i32
    %c0_i32_1 = arith.constant 0 : i32
    return %arg1, %c0_i32, %c0_i32_0 : i32, i32, i32
  }
  func.func @transform_11(%arg0: i32, %arg1: i32) -> (i32, i32, i32) {
    %c0_i32 = arith.constant 0 : i32
    %c0_i32_0 = arith.constant 0 : i32
    %c0_i32_1 = arith.constant 0 : i32
    return %arg1, %c0_i32, %c0_i32_0 : i32, i32, i32
  }
  func.func @transform_12(%arg0: i32, %arg1: i32) -> (i32, i32, i32) {
    %c0_i32 = arith.constant 0 : i32
    %c0_i32_0 = arith.constant 0 : i32
    %c0_i32_1 = arith.constant 0 : i32
    return %arg1, %c0_i32, %c0_i32_0 : i32, i32, i32
  }
  func.func @transform_13(%arg0: i32, %arg1: i32) -> (i32, i32, i32) {
    %c0_i32 = arith.constant 0 : i32
    %c0_i32_0 = arith.constant 0 : i32
    %c0_i32_1 = arith.constant 0 : i32
    return %arg1, %c0_i32, %c0_i32_0 : i32, i32, i32
  }
  func.func @transform_14(%arg0: i32, %arg1: i32) -> (i32, i32, i32) {
    %c0_i32 = arith.constant 0 : i32
    %c0_i32_0 = arith.constant 0 : i32
    %c0_i32_1 = arith.constant 0 : i32
    return %arg1, %c0_i32, %c0_i32_0 : i32, i32, i32
  }
  func.func @transform_15(%arg0: i32, %arg1: i32) -> (i32, i32) {
    %c0_i32 = arith.constant 0 : i32
    %c0_i32_0 = arith.constant 0 : i32
    %c0_i32_1 = arith.constant 0 : i32
    return %c0_i32, %c0_i32_0 : i32, i32
  }
  func.func @transform_16(%arg0: i32, %arg1: i32) -> (i32, i32) {
    %c0_i32 = arith.constant 0 : i32
    %c0_i32_0 = arith.constant 0 : i32
    %c0_i32_1 = arith.constant 0 : i32
    return %c0_i32, %c0_i32_0 : i32, i32
  }
  func.func @transform_17(%arg0: i32, %arg1: i32) -> (i32, i32, i32) {
    %c0_i32 = arith.constant 0 : i32
    %c0_i32_0 = arith.constant 0 : i32
    %c0_i32_1 = arith.constant 0 : i32
    return %arg0, %c0_i32, %c0_i32_0 : i32, i32, i32
  }
}

</mosaic_0001>

<llo_original>
// kernel: mmm_dit_forward.29
$region0: #{mmm_dit_forward.29}
  #allocation0 [shape = 'u32[]', space=smem, size = 0x4, offset = 0x4, fixed_abs, tag = 'smem constant byte address 0x4 - core index']
  #allocation1 [shape = 'u32[144,128]{1,0:T(1,128)}', space=vmem, size = 0x12000, scoped, tag = 'internal scratch']
  %s0 = inlined_call_operand.vmem [shape: f32[16,256], index: 0, kind: input, shape index: {}]
  %s1 = inlined_call_operand.vmem [shape: bf16[256,64], index: 1, kind: input, shape index: {}]
  %s2 = inlined_call_operand.vmem [shape: f32[1,64], index: 2, kind: input, shape index: {}]
  %s3 = inlined_call_operand.vmem [shape: f32[16,64], index: 3, kind: output, shape index: {}]
  %s4 = sld [smem:[#allocation0]]
  $region22: #{mmm_dit_forward.29} parent=0
    _
  %s6 = ssub.s32 1, %s4
  %s7 = scalar_select 0, %s6, %s4
  // Predicated region
  $region2: #{mmm_dit_forward.29} parent=0 // pred_check
    _
  $region3: #{mmm_dit_forward.29} parent=0 // pred_check_branch
    %9 = sbr.rel (0) target = $region5
  $region4: #{mmm_dit_forward.29} parent=0 // pred_region
    _
  $region5: #{mmm_dit_forward.29} parent=0 // pred_fallthru
    _
  // Predicated region
  $region6: #{mmm_dit_forward.29} parent=0 // pred_check
    _
  $region7: #{mmm_dit_forward.29} parent=0 // pred_check_branch
    %11 = sbr.rel (0) target = $region9
  $region8: #{mmm_dit_forward.29} parent=0 // pred_region
    _
  $region9: #{mmm_dit_forward.29} parent=0 // pred_fallthru
    _
  // Predicated region
  $region10: #{mmm_dit_forward.29} parent=0 // pred_check
    _
  $region11: #{mmm_dit_forward.29} parent=0 // pred_check_branch
    %13 = sbr.rel (0) target = $region13
  $region12: #{mmm_dit_forward.29} parent=0 // pred_region
    _
  $region13: #{mmm_dit_forward.29} parent=0 // pred_fallthru
    _
  %v15 = vld [vmem:[%s0] sm:$0xff]
  %v16 = vld [vmem:[%s0 + $0x8] sm:$0xff]
  %v17 = vld [vmem:[%s0 + $0x10] sm:$0xff]
  %v18 = vld [vmem:[%s0 + $0x18] sm:$0xff]
  %v19 = vpack.c.bf16 %v17, %v15
  %v20 = vpack.c.bf16 %v18, %v16
  %v21 = vld [vmem:[%s1] sm:$0xf]
  %v22 = vld [vmem:[%s1 + $0x4] sm:$0xf]
  %v23 = vld [vmem:[%s1 + $0x8] sm:$0xf]
  %v24 = vld [vmem:[%s1 + $0xc] sm:$0xf]
  %v25 = vld [vmem:[%s1 + $0x10] sm:$0xf]
  %v26 = vld [vmem:[%s1 + $0x14] sm:$0xf]
  %v27 = vld [vmem:[%s1 + $0x18] sm:$0xf]
  %v28 = vld [vmem:[%s1 + $0x1c] sm:$0xf]
  %v29 = vld [vmem:[%s1 + $0x20] sm:$0xf]
  %v30 = vld [vmem:[%s1 + $0x24] sm:$0xf]
  %v31 = vld [vmem:[%s1 + $0x28] sm:$0xf]
  %v32 = vld [vmem:[%s1 + $0x2c] sm:$0xf]
  %v33 = vld [vmem:[%s1 + $0x30] sm:$0xf]
  %v34 = vld [vmem:[%s1 + $0x34] sm:$0xf]
  %v35 = vld [vmem:[%s1 + $0x38] sm:$0xf]
  %v36 = vld [vmem:[%s1 + $0x3c] sm:$0xf]
  %v37 = vld [vmem:[%s1 + $0x40] sm:$0xf]
  %v38 = vld [vmem:[%s1 + $0x44] sm:$0xf]
  %v39 = vld [vmem:[%s1 + $0x48] sm:$0xf]
  %v40 = vld [vmem:[%s1 + $0x4c] sm:$0xf]
  %v41 = vld [vmem:[%s1 + $0x50] sm:$0xf]
  %v42 = vld [vmem:[%s1 + $0x54] sm:$0xf]
  %v43 = vld [vmem:[%s1 + $0x58] sm:$0xf]
  %v44 = vld [vmem:[%s1 + $0x5c] sm:$0xf]
  %v45 = vld [vmem:[%s1 + $0x60] sm:$0xf]
  %v46 = vld [vmem:[%s1 + $0x64] sm:$0xf]
  %v47 = vld [vmem:[%s1 + $0x68] sm:$0xf]
  %v48 = vld [vmem:[%s1 + $0x6c] sm:$0xf]
  %v49 = vld [vmem:[%s1 + $0x70] sm:$0xf]
  %v50 = vld [vmem:[%s1 + $0x74] sm:$0xf]
  %v51 = vld [vmem:[%s1 + $0x78] sm:$0xf]
  %v52 = vld [vmem:[%s1 + $0x7c] sm:$0xf]
  %v53 = vld [vmem:[%s2] sm:$0x1]
  %v55 = vlaneseq
  %v56 = vshrl.u32 %v55, 7
  %v57 = vsub.s32 0, %v56
  %v58 = vrot.slane %v53, %v57
  %v92 = vunpack.c.l.b16 %v21
  %v93 = vunpack.c.l.b16 %v22
  %v94 = vunpack.c.l.b16 %v23
  %v95 = vunpack.c.l.b16 %v24
  %v96 = vunpack.c.l.b16 %v25
  %v97 = vunpack.c.l.b16 %v26
  %v98 = vunpack.c.l.b16 %v27
  %v99 = vunpack.c.l.b16 %v28
  %v100 = vunpack.c.l.b16 %v29
  %v101 = vunpack.c.l.b16 %v30
  %v102 = vunpack.c.l.b16 %v31
  %v103 = vunpack.c.l.b16 %v32
  %v104 = vunpack.c.l.b16 %v33
  %v105 = vunpack.c.l.b16 %v34
  %v106 = vunpack.c.l.b16 %v35
  %v107 = vunpack.c.l.b16 %v36
  %v108 = vunpack.c.l.b16 %v37
  %v109 = vunpack.c.l.b16 %v38
  %v110 = vunpack.c.l.b16 %v39
  %v111 = vunpack.c.l.b16 %v40
  %v112 = vunpack.c.l.b16 %v41
  %v113 = vunpack.c.l.b16 %v42
  %v114 = vunpack.c.l.b16 %v43
  %v115 = vunpack.c.l.b16 %v44
  %v116 = vunpack.c.l.b16 %v45
  %v117 = vunpack.c.l.b16 %v46
  %v118 = vunpack.c.l.b16 %v47
  %v119 = vunpack.c.l.b16 %v48
  %v120 = vunpack.c.l.b16 %v49
  %v121 = vunpack.c.l.b16 %v50
  %v122 = vunpack.c.l.b16 %v51
  %v123 = vunpack.c.l.b16 %v52
  %v124 = vpack.c.b16 %v93, %v92
  %v125 = vpack.c.b16 %v95, %v94
  %v126 = vpack.c.b16 %v97, %v96
  %v127 = vpack.c.b16 %v99, %v98
  %v128 = vpack.c.b16 %v101, %v100
  %v129 = vpack.c.b16 %v103, %v102
  %v130 = vpack.c.b16 %v105, %v104
  %v131 = vpack.c.b16 %v107, %v106
  %v132 = vpack.c.b16 %v109, %v108
  %v133 = vpack.c.b16 %v111, %v110
  %v134 = vpack.c.b16 %v113, %v112
  %v135 = vpack.c.b16 %v115, %v114
  %v136 = vpack.c.b16 %v117, %v116
  %v137 = vpack.c.b16 %v119, %v118
  %v138 = vpack.c.b16 %v121, %v120
  %v139 = vpack.c.b16 %v123, %v122
  %156 = vmatprep.subr.bf16.mxu0 0
  %157 = vmatpush1.bf16.msra.mxu0 %v124
  %158 = vmatprep.subr.bf16.mxu0 0
  %159 = vmatpush1.bf16.msra.mxu0 %v125
  %160 = vmatprep.subr.bf16.mxu0 0
  %161 = vmatpush1.bf16.msra.mxu0 %v126
  %162 = vmatprep.subr.bf16.mxu0 0
  %163 = vmatpush1.bf16.msra.mxu0 %v127
  %164 = vmatprep.subr.bf16.mxu0 0
  %165 = vmatpush1.bf16.msra.mxu0 %v128
  %166 = vmatprep.subr.bf16.mxu0 0
  %167 = vmatpush1.bf16.msra.mxu0 %v129
  %168 = vmatprep.subr.bf16.mxu0 0
  %169 = vmatpush1.bf16.msra.mxu0 %v130
  %170 = vmatprep.subr.bf16.mxu0 0
  %171 = vmatpush1.bf16.msra.mxu0 %v131
  %172 = vmatprep.subr.bf16.mxu0 0
  %173 = vmatpush1.bf16.msra.mxu0 %v132
  %174 = vmatprep.subr.bf16.mxu0 0
  %175 = vmatpush1.bf16.msra.mxu0 %v133
  %176 = vmatprep.subr.bf16.mxu0 0
  %177 = vmatpush1.bf16.msra.mxu0 %v134
  %178 = vmatprep.subr.bf16.mxu0 0
  %179 = vmatpush1.bf16.msra.mxu0 %v135
  %180 = vmatprep.subr.bf16.mxu0 0
  %181 = vmatpush1.bf16.msra.mxu0 %v136
  %182 = vmatprep.subr.bf16.mxu0 0
  %183 = vmatpush1.bf16.msra.mxu0 %v137
  %184 = vmatprep.subr.bf16.mxu0 0
  %185 = vmatpush1.bf16.msra.mxu0 %v138
  %186 = vmatprep.subr.bf16.mxu0 0
  %187 = vmatpush1.bf16.msra.mxu0 %v139
  %188 = vmatprep.mubr.bf16.mxu0 %v20
  %189 = vmatmul.mubr.bf16.gmra.mrb[0].mxu0 %v19
  %v190 = vpop.f32.mrb[0].mxu0
  %v191 = vadd.f32 %v58, %v190
  %v192 = vpop.f32.mrb[0].mxu0
  %v193 = vpop.f32.mrb[0].mxu0
  %v194 = vadd.f32 %v58, %v193
  %v195 = vpop.f32.mrb[0].mxu0
  %196 = vdwg.mxu0
  %vm197 = vcmask 523264
  %198 = vst.msk [vmem:[%s3] sm:$0xff] %vm197, %v191
  %199 = vst.msk [vmem:[%s3 + $0x8] sm:$0xff] %vm197, %v194
  // Predicated region
  $region14: #{mmm_dit_forward.29} parent=0 // pred_check
    _
  $region15: #{mmm_dit_forward.29} parent=0 // pred_check_branch
    %201 = sbr.rel (0) target = $region17
  $region16: #{mmm_dit_forward.29} parent=0 // pred_region
    _
  $region17: #{mmm_dit_forward.29} parent=0 // pred_fallthru
    _
  // Predicated region
  $region18: #{mmm_dit_forward.29} parent=0 // pred_check
    _
  $region19: #{mmm_dit_forward.29} parent=0 // pred_check_branch
    %203 = sbr.rel (0) target = $region21
  $region20: #{mmm_dit_forward.29} parent=0 // pred_region
    _
  $region21: #{mmm_dit_forward.29} parent=0 // pred_fallthru
    _

// kernel: mmm_dit_forward.30
$region0: #{mmm_dit_forward.30}
  #allocation0 [shape = 'u32[]', space=smem, size = 0x4, offset = 0x4, fixed_abs, tag = 'smem constant byte address 0x4 - core index']
  #allocation1 [shape = 'u32[144,128]{1,0:T(1,128)}', space=vmem, size = 0x12000, scoped, tag = 'internal scratch']
  %s0 = inlined_call_operand.vmem [shape: f32[2,14,64], index: 0, kind: input, shape index: {}]
  %s1 = inlined_call_operand.vmem [shape: bf16[192,64], index: 1, kind: input, shape index: {}]
  %s2 = inlined_call_operand.vmem [shape: f32[1,64], index: 2, kind: input, shape index: {}]
  %s3 = inlined_call_operand.vmem [shape: f32[2,8,64], index: 3, kind: output, shape index: {}]
  %s4 = sld [smem:[#allocation0]]
  $region45: #{mmm_dit_forward.30} parent=0
    _
  %s6 = ssub.s32 1, %s4
  %s7 = scalar_select 0, %s6, %s4
  loop: start=0, step=1, limit=4
  $region2: #{mmm_dit_forward.30} parent=0 // loop_pre_header
    _
  $region3: #{mmm_dit_forward.30} parent=0 // loop_header
    %s9 = sphi 0, %s13
    %p10 = scmp.ge.s32.totalorder %s9, 4
    %s19 = sphi 0, %s21
    %s22 = sphi 0, %s19
    %s23 = sphi 0, %s22
    %s39 = sphi 0, %s23
    %s43 = sphi 0, %s43
    %s45 = sphi 0, %s43
    %s46 = sphi 0, %s45
    %s60 = sphi 0, %s46
    %s64 = sphi 0, %s64
    %s66 = sphi 0, %s64
    %s67 = sphi 0, %s66
    %s81 = sphi 0, %s67
    %s87 = sphi 0, %s89
    %s90 = sphi 0, %s87
    %s91 = sphi 0, %s90
    %s107 = sphi 0, %s91
  $region4: #{mmm_dit_forward.30} parent=0 // loop_header_branch
    %12 = sbr.rel (%p10) target = $region8
  $region5: #{mmm_dit_forward.30} parent=0 // loop_body
    %s14 = ssub.s32 %s9, 1
    %s15 = ssub.s32 %s9, 2
    %s16 = sadd.s32 %s9, 1
    %s17 = ssub.s32 %s9, %s16
    %p18 = scmp.eq.s32.totalorder %s17, 0
    %s20 = sadd.s32 %s19, 1
    %s21 = scalar_select %p18, %s19, %s20
    %p24 = pneg %p18
    %p25 = scmp.eq.s32.totalorder %s9, 1
    %p26 = por %p24, %p25
    %p27 = scmp.ne.s32.totalorder %s19, %s22
    %p28 = scmp.eq.s32.totalorder %s9, 0
    %p29 = por %p27, %p28
    %p30 = scmp.ne.s32.totalorder %s19, %s22
    %p31 = scmp.eq.s32.totalorder %s14, 1
    %p32 = por %p30, %p31
    %p33 = scmp.ne.s32.totalorder %s22, %s23
    %p34 = scmp.eq.s32.totalorder %s14, 0
    %p35 = por %p33, %p34
    %p36 = scmp.ne.s32.totalorder %s22, %s23
    %p37 = scmp.eq.s32.totalorder %s15, 1
    %p38 = por %p36, %p37
    %p40 = scmp.ne.s32.totalorder %s23, %s39
    %p41 = scmp.eq.s32.totalorder %s15, 0
    %p42 = por %p40, %p41
    %s44 = sadd.s32 %s43, 1
    %p47 = scmp.eq.s32.totalorder %s9, 1
    %p48 = scmp.ne.s32.totalorder %s43, %s45
    %p49 = scmp.eq.s32.totalorder %s9, 0
    %p50 = por %p48, %p49
    %p51 = scmp.ne.s32.totalorder %s43, %s45
    %p52 = scmp.eq.s32.totalorder %s14, 1
    %p53 = por %p51, %p52
    %p54 = scmp.ne.s32.totalorder %s45, %s46
    %p55 = scmp.eq.s32.totalorder %s14, 0
    %p56 = por %p54, %p55
    %p57 = scmp.ne.s32.totalorder %s45, %s46
    %p58 = scmp.eq.s32.totalorder %s15, 1
    %p59 = por %p57, %p58
    %p61 = scmp.ne.s32.totalorder %s46, %s60
    %p62 = scmp.eq.s32.totalorder %s15, 0
    %p63 = por %p61, %p62
    %s65 = sadd.s32 %s64, 1
    %p68 = scmp.eq.s32.totalorder %s9, 1
    %p69 = scmp.ne.s32.totalorder %s64, %s66
    %p70 = scmp.eq.s32.totalorder %s9, 0
    %p71 = por %p69, %p70
    %p72 = scmp.ne.s32.totalorder %s64, %s66
    %p73 = scmp.eq.s32.totalorder %s14, 1
    %p74 = por %p72, %p73
    %p75 = scmp.ne.s32.totalorder %s66, %s67
    %p76 = scmp.eq.s32.totalorder %s14, 0
    %p77 = por %p75, %p76
    %p78 = scmp.ne.s32.totalorder %s66, %s67
    %p79 = scmp.eq.s32.totalorder %s15, 1
    %p80 = por %p78, %p79
    %p82 = scmp.ne.s32.totalorder %s67, %s81
    %p83 = scmp.eq.s32.totalorder %s15, 0
    %p84 = por %p82, %p83
    %s85 = ssub.s32 %s9, %s16
    %p86 = scmp.eq.s32.totalorder %s85, 0
    %s88 = sadd.s32 %s87, 1
    %s89 = scalar_select %p86, %s87, %s88
    %p92 = pneg %p86
    %p93 = scmp.eq.s32.totalorder %s9, 1
    %p94 = por %p92, %p93
    %p95 = scmp.ne.s32.totalorder %s87, %s90
    %p96 = scmp.eq.s32.totalorder %s9, 0
    %p97 = por %p95, %p96
    %p98 = scmp.ne.s32.totalorder %s87, %s90
    %p99 = scmp.eq.s32.totalorder %s14, 1
    %p100 = por %p98, %p99
    %p101 = scmp.ne.s32.totalorder %s90, %s91
    %p102 = scmp.eq.s32.totalorder %s14, 0
    %p103 = por %p101, %p102
    %p104 = scmp.ne.s32.totalorder %s90, %s91
    %p105 = scmp.eq.s32.totalorder %s15, 1
    %p106 = por %p104, %p105
    %p108 = scmp.ne.s32.totalorder %s91, %s107
    %p109 = scmp.eq.s32.totalorder %s15, 0
    %p110 = por %p108, %p109
    %p111 = scmp.le.s32.totalorder 1, %s9
    %p112 = scmp.lt.s32.totalorder %s9, 3
    %p113 = pnand %p111, %p112
    %p114 = pneg %p113
    // Predicated region
    $region9: #{mmm_dit_forward.30} parent=5 // pred_check
      _
    $region10: #{mmm_dit_forward.30} parent=5 // pred_check_branch
      %116 = sbr.rel (%p113) target = $region12
    $region11: #{mmm_dit_forward.30} parent=5 // pred_region
      %s117 = ssub.s32 %s9, 1
      // Predicated region
      $region13: #{mmm_dit_forward.30} parent=11 // pred_check
        %p118 = pneg %p56
      $region14: #{mmm_dit_forward.30} parent=11 // pred_check_branch
        %120 = sbr.rel (%p118) target = $region16
      $region15: #{mmm_dit_forward.30} parent=11 // pred_region
        _
      $region16: #{mmm_dit_forward.30} parent=11 // pred_fallthru
        _
      // Predicated region
      $region17: #{mmm_dit_forward.30} parent=11 // pred_check
        %p121 = pneg %p77
      $region18: #{mmm_dit_forward.30} parent=11 // pred_check_branch
        %123 = sbr.rel (%p121) target = $region20
      $region19: #{mmm_dit_forward.30} parent=11 // pred_region
        _
      $region20: #{mmm_dit_forward.30} parent=11 // pred_fallthru
        _
    $region12: #{mmm_dit_forward.30} parent=5 // pred_fallthru
      _
    %p124 = scmp.lt.s32.totalorder %s9, 2
    // Predicated region
    $region21: #{mmm_dit_forward.30} parent=5 // pred_check
      %p125 = pneg %p124
    $region22: #{mmm_dit_forward.30} parent=5 // pred_check_branch
      %127 = sbr.rel (%p125) target = $region24
    $region23: #{mmm_dit_forward.30} parent=5 // pred_region
      // Predicated region
      $region25: #{mmm_dit_forward.30} parent=23 // pred_check
        %p128 = pneg %p29
      $region26: #{mmm_dit_forward.30} parent=23 // pred_check_branch
        %130 = sbr.rel (%p128) target = $region28
      $region27: #{mmm_dit_forward.30} parent=23 // pred_region
        %p131 = scmp.lt.s32.totalorder %s9, 1
        %s132 = scalar_select %p131, %s9, 1
        %s133 = smul.addr %s132, 2
        %s134 = smul.addr %s133, 8
        %s135 = scalar_lea.vmem %s0, %s134
      $region28: #{mmm_dit_forward.30} parent=23 // pred_fallthru
        _
    $region24: #{mmm_dit_forward.30} parent=5 // pred_fallthru
      _
    %p136 = scmp.le.s32.totalorder 1, %s9
    %p137 = scmp.lt.s32.totalorder %s9, 3
    %p138 = pnand %p136, %p137
    %p139 = pneg %p138
    // Predicated region
    $region29: #{mmm_dit_forward.30} parent=5 // pred_check
      _
    $region30: #{mmm_dit_forward.30} parent=5 // pred_check_branch
      %141 = sbr.rel (%p138) target = $region32
    $region31: #{mmm_dit_forward.30} parent=5 // pred_region
      %s142 = ssub.s32 %s9, 1
      %p143 = scmp.lt.s32.totalorder %s14, 1
      %s144 = scalar_select %p143, %s14, 1
      %s145 = smul.addr %s144, 2
      %s146 = smul.addr %s145, 8
      %s147 = scalar_lea.vmem %s0, %s146
      %p148 = pneg %p35
      %p149 = pneg %p32
      %p150 = pneg %p56
      %p151 = pneg %p53
      %p152 = pneg %p77
      %p153 = pneg %p74
      %p154 = pneg %p103
      %p155 = pneg %p100
      %p156 = scmp.lt.s32.totalorder %s14, 1
      %s157 = scalar_select %p156, %s14, 1
      %s158 = smul.addr %s157, 8
      %s159 = scalar_lea.vmem %s3, %s158
      %p160 = scmp.lt.s32.totalorder %s14, 1
      %s161 = scalar_select %p160, %s14, 1
      %s162 = smul.addr %s161, 2
      %s163 = smul.addr %s162, 8
      %s164 = scalar_lea.vmem %s0, %s163
      %p165 = scmp.lt.s32.totalorder %s14, 1
      %s166 = scalar_select %p165, %s14, 1
      %s167 = smul.addr %s166, 8
      %s168 = scalar_lea.vmem %s3, %s167
      %v170 = vld [vmem:[%s164] sm:$0xff]
      %v171 = vld [vmem:[%s164 + $0x8] sm:$0x3f]
      %v172 = vmax.f32 %v170, 0.0
      %v173 = vmax.f32 %v171, 0.0
      %vm176 = vcmask 1044480
      %v177 = vrot.slane %v172, 3
      %v178 = vrot.slane %v173, 3
      %v179 = vsel %vm176, %v177, %v178
      %180 = vrot.lane.b32.xlu0 %v179, 64
      %v181 = vpop.permute.xlu0 %180
      %vm183 = vcmask 1041408
      %v184 = vrot.slane %v172, 6
      %v185 = vrot.slane %v173, 6
      %v186 = vsel %vm183, %v184, %v185
      %vm188 = vcmask 523264
      %v189 = vsel %vm188, %v172, %v181
      %v190 = vpack.c.bf16 %v189, %v189
      %v191 = vpack.c.bf16 %v186, %v186
      %v192 = vld [vmem:[%s1] sm:$0xf]
      %v193 = vld [vmem:[%s1 + $0x4] sm:$0xf]
      %v194 = vld [vmem:[%s1 + $0x8] sm:$0xf]
      %v195 = vld [vmem:[%s1 + $0xc] sm:$0xf]
      %v196 = vld [vmem:[%s1 + $0x10] sm:$0xf]
      %v197 = vld [vmem:[%s1 + $0x14] sm:$0xf]
      %v198 = vld [vmem:[%s1 + $0x18] sm:$0xf]
      %v199 = vld [vmem:[%s1 + $0x1c] sm:$0xf]
      %v200 = vld [vmem:[%s1 + $0x20] sm:$0xf]
      %v201 = vld [vmem:[%s1 + $0x24] sm:$0xf]
      %v202 = vld [vmem:[%s1 + $0x28] sm:$0xf]
      %v203 = vld [vmem:[%s1 + $0x2c] sm:$0xf]
      %v204 = vld [vmem:[%s1 + $0x30] sm:$0xf]
      %v205 = vld [vmem:[%s1 + $0x34] sm:$0xf]
      %v206 = vld [vmem:[%s1 + $0x38] sm:$0xf]
      %v207 = vld [vmem:[%s1 + $0x3c] sm:$0xf]
      %v208 = vld [vmem:[%s1 + $0x40] sm:$0xf]
      %v209 = vld [vmem:[%s1 + $0x44] sm:$0xf]
      %v210 = vld [vmem:[%s1 + $0x48] sm:$0xf]
      %v211 = vld [vmem:[%s1 + $0x4c] sm:$0xf]
      %v212 = vld [vmem:[%s1 + $0x50] sm:$0xf]
      %v213 = vld [vmem:[%s1 + $0x54] sm:$0xf]
      %v214 = vld [vmem:[%s1 + $0x58] sm:$0xf]
      %v215 = vld [vmem:[%s1 + $0x5c] sm:$0xf]
      %v216 = vld [vmem:[%s2] sm:$0x1]
      %v218 = vlaneseq
      %v219 = vshrl.u32 %v218, 7
      %v220 = vsub.s32 0, %v219
      %v221 = vrot.slane %v216, %v220
      %v247 = vunpack.c.l.b16 %v192
      %v248 = vunpack.c.l.b16 %v193
      %v249 = vunpack.c.l.b16 %v194
      %v250 = vunpack.c.l.b16 %v195
      %v251 = vunpack.c.l.b16 %v196
      %v252 = vunpack.c.l.b16 %v197
      %v253 = vunpack.c.l.b16 %v198
      %v254 = vunpack.c.l.b16 %v199
      %v255 = vunpack.c.l.b16 %v200
      %v256 = vunpack.c.l.b16 %v201
      %v257 = vunpack.c.l.b16 %v202
      %v258 = vunpack.c.l.b16 %v203
      %v259 = vunpack.c.l.b16 %v204
      %v260 = vunpack.c.l.b16 %v205
      %v261 = vunpack.c.l.b16 %v206
      %v262 = vunpack.c.l.b16 %v207
      %v263 = vunpack.c.l.b16 %v208
      %v264 = vunpack.c.l.b16 %v209
      %v265 = vunpack.c.l.b16 %v210
      %v266 = vunpack.c.l.b16 %v211
      %v267 = vunpack.c.l.b16 %v212
      %v268 = vunpack.c.l.b16 %v213
      %v269 = vunpack.c.l.b16 %v214
      %v270 = vunpack.c.l.b16 %v215
      %v271 = vpack.c.b16 %v248, %v247
      %v272 = vpack.c.b16 %v250, %v249
      %v273 = vpack.c.b16 %v252, %v251
      %v274 = vpack.c.b16 %v254, %v253
      %v275 = vpack.c.b16 %v256, %v255
      %v276 = vpack.c.b16 %v258, %v257
      %v277 = vpack.c.b16 %v260, %v259
      %v278 = vpack.c.b16 %v262, %v261
      %v279 = vpack.c.b16 %v264, %v263
      %v280 = vpack.c.b16 %v266, %v265
      %v281 = vpack.c.b16 %v268, %v267
      %v282 = vpack.c.b16 %v270, %v269
      %v296 = vsel %vm188, %v191, 0
      %298 = vmatprep.subr.bf16.mxu0 0
      %299 = vmatpush1.bf16.msra.mxu0 %v271
      %300 = vmatprep.subr.bf16.mxu0 0
      %301 = vmatpush1.bf16.msra.mxu0 %v272
      %302 = vmatprep.subr.bf16.mxu0 0
      %303 = vmatpush1.bf16.msra.mxu0 %v273
      %304 = vmatprep.subr.bf16.mxu0 0
      %305 = vmatpush1.bf16.msra.mxu0 %v274
      %306 = vmatprep.subr.bf16.mxu0 0
      %307 = vmatpush1.bf16.msra.mxu0 %v275
      %308 = vmatprep.subr.bf16.mxu0 0
      %309 = vmatpush1.bf16.msra.mxu0 %v276
      %310 = vmatprep.subr.bf16.mxu0 0
      %311 = vmatpush1.bf16.msra.mxu0 %v277
      %312 = vmatprep.subr.bf16.mxu0 0
      %313 = vmatpush1.bf16.msra.mxu0 %v278
      %314 = vmatprep.subr.bf16.mxu0 0
      %315 = vmatpush1.bf16.msra.mxu0 %v279
      %316 = vmatprep.subr.bf16.mxu0 0
      %317 = vmatpush1.bf16.msra.mxu0 %v280
      %318 = vmatprep.subr.bf16.mxu0 0
      %319 = vmatpush1.bf16.msra.mxu0 %v281
      %320 = vmatprep.subr.bf16.mxu0 0
      %321 = vmatpush1.bf16.msra.mxu0 %v282
      %322 = vmatprep.subr.bf16.mxu0 0
      %323 = vmatpush1.bf16.msra.mxu0 0
      %324 = vmatprep.subr.bf16.mxu0 0
      %325 = vmatpush1.bf16.msra.mxu0 0
      %326 = vmatprep.subr.bf16.mxu0 0
      %327 = vmatpush1.bf16.msra.mxu0 0
      %328 = vmatprep.subr.bf16.mxu0 0
      %329 = vmatpush1.bf16.msra.mxu0 0
      %330 = vmatprep.mubr.bf16.mxu0 %v296
      %331 = vmatmul.mubr.bf16.gmra.mrb[0].mxu0 %v190
      %v332 = vpop.f32.mrb[0].mxu0
      %v333 = vadd.f32 %v221, %v332
      %v334 = vpop.f32.mrb[0].mxu0
      %v335 = vpop.f32.mrb[0].mxu0
      %v336 = vpop.f32.mrb[0].mxu0
      %337 = vdwg.mxu0
      %v338 = vmax.f32 %v333, 0.0
      %339 = vst.msk [vmem:[%s168] sm:$0xff] %vm188, %v338
      %p340 = scmp.lt.s32.totalorder %s14, 1
      %s341 = scalar_select %p340, %s14, 1
      %s342 = smul.addr %s341, 8
      %s343 = scalar_lea.vmem %s3, %s342
      // Predicated region
      $region33: #{mmm_dit_forward.30} parent=31 // pred_check
        %p344 = pneg %p100
      $region34: #{mmm_dit_forward.30} parent=31 // pred_check_branch
        %346 = sbr.rel (%p344) target = $region36
      $region35: #{mmm_dit_forward.30} parent=31 // pred_region
        _
      $region36: #{mmm_dit_forward.30} parent=31 // pred_fallthru
        _
    $region32: #{mmm_dit_forward.30} parent=5 // pred_fallthru
      _
    %p347 = scmp.le.s32.totalorder 2, %s9
    // Predicated region
    $region37: #{mmm_dit_forward.30} parent=5 // pred_check
      %p348 = pneg %p347
    $region38: #{mmm_dit_forward.30} parent=5 // pred_check_branch
      %350 = sbr.rel (%p348) target = $region40
    $region39: #{mmm_dit_forward.30} parent=5 // pred_region
      %s351 = ssub.s32 %s9, 2
      // Predicated region
      $region41: #{mmm_dit_forward.30} parent=39 // pred_check
        %p352 = pneg %p106
      $region42: #{mmm_dit_forward.30} parent=39 // pred_check_branch
        %354 = sbr.rel (%p352) target = $region44
      $region43: #{mmm_dit_forward.30} parent=39 // pred_region
        %p355 = scmp.lt.s32.totalorder %s15, 1
        %s356 = scalar_select %p355, %s15, 1
        %s357 = smul.addr %s356, 8
        %s358 = scalar_lea.vmem %s3, %s357
      $region44: #{mmm_dit_forward.30} parent=39 // pred_fallthru
        _
    $region40: #{mmm_dit_forward.30} parent=5 // pred_fallthru
      _
  $region6: #{mmm_dit_forward.30} parent=0 // loop_footer
    %s13 = sadd.s32 1, %s9
  $region7: #{mmm_dit_forward.30} parent=0 // loop_footer_branch
    %8 = sbr.rel target = $region3
  $region8: #{mmm_dit_forward.30} parent=0 // loop_exit
    _

// kernel: mmm_dit_forward.28
$region0: #{mmm_dit_forward.28}
  #allocation0 [shape = 'u32[]', space=smem, size = 0x4, offset = 0x4, fixed_abs, tag = 'smem constant byte address 0x4 - core index']
  #allocation1 [shape = 'u32[144,128]{1,0:T(1,128)}', space=vmem, size = 0x12000, scoped, tag = 'internal scratch']
  %s0 = inlined_call_operand.vmem [shape: f32[2,18,32], index: 0, kind: input, shape index: {}]
  %s1 = inlined_call_operand.vmem [shape: bf16[96,64], index: 1, kind: input, shape index: {}]
  %s2 = inlined_call_operand.vmem [shape: f32[1,64], index: 2, kind: input, shape index: {}]
  %s3 = inlined_call_operand.vmem [shape: f32[2,16,64], index: 3, kind: output, shape index: {}]
  %s4 = sld [smem:[#allocation0]]
  $region45: #{mmm_dit_forward.28} parent=0
    _
  %s6 = ssub.s32 1, %s4
  %s7 = scalar_select 0, %s6, %s4
  loop: start=0, step=1, limit=4
  $region2: #{mmm_dit_forward.28} parent=0 // loop_pre_header
    _
  $region3: #{mmm_dit_forward.28} parent=0 // loop_header
    %s9 = sphi 0, %s13
    %p10 = scmp.ge.s32.totalorder %s9, 4
    %s19 = sphi 0, %s21
    %s22 = sphi 0, %s19
    %s23 = sphi 0, %s22
    %s39 = sphi 0, %s23
    %s43 = sphi 0, %s43
    %s45 = sphi 0, %s43
    %s46 = sphi 0, %s45
    %s60 = sphi 0, %s46
    %s64 = sphi 0, %s64
    %s66 = sphi 0, %s64
    %s67 = sphi 0, %s66
    %s81 = sphi 0, %s67
    %s87 = sphi 0, %s89
    %s90 = sphi 0, %s87
    %s91 = sphi 0, %s90
    %s107 = sphi 0, %s91
  $region4: #{mmm_dit_forward.28} parent=0 // loop_header_branch
    %12 = sbr.rel (%p10) target = $region8
  $region5: #{mmm_dit_forward.28} parent=0 // loop_body
    %s14 = ssub.s32 %s9, 1
    %s15 = ssub.s32 %s9, 2
    %s16 = sadd.s32 %s9, 1
    %s17 = ssub.s32 %s9, %s16
    %p18 = scmp.eq.s32.totalorder %s17, 0
    %s20 = sadd.s32 %s19, 1
    %s21 = scalar_select %p18, %s19, %s20
    %p24 = pneg %p18
    %p25 = scmp.eq.s32.totalorder %s9, 1
    %p26 = por %p24, %p25
    %p27 = scmp.ne.s32.totalorder %s19, %s22
    %p28 = scmp.eq.s32.totalorder %s9, 0
    %p29 = por %p27, %p28
    %p30 = scmp.ne.s32.totalorder %s19, %s22
    %p31 = scmp.eq.s32.totalorder %s14, 1
    %p32 = por %p30, %p31
    %p33 = scmp.ne.s32.totalorder %s22, %s23
    %p34 = scmp.eq.s32.totalorder %s14, 0
    %p35 = por %p33, %p34
    %p36 = scmp.ne.s32.totalorder %s22, %s23
    %p37 = scmp.eq.s32.totalorder %s15, 1
    %p38 = por %p36, %p37
    %p40 = scmp.ne.s32.totalorder %s23, %s39
    %p41 = scmp.eq.s32.totalorder %s15, 0
    %p42 = por %p40, %p41
    %s44 = sadd.s32 %s43, 1
    %p47 = scmp.eq.s32.totalorder %s9, 1
    %p48 = scmp.ne.s32.totalorder %s43, %s45
    %p49 = scmp.eq.s32.totalorder %s9, 0
    %p50 = por %p48, %p49
    %p51 = scmp.ne.s32.totalorder %s43, %s45
    %p52 = scmp.eq.s32.totalorder %s14, 1
    %p53 = por %p51, %p52
    %p54 = scmp.ne.s32.totalorder %s45, %s46
    %p55 = scmp.eq.s32.totalorder %s14, 0
    %p56 = por %p54, %p55
    %p57 = scmp.ne.s32.totalorder %s45, %s46
    %p58 = scmp.eq.s32.totalorder %s15, 1
    %p59 = por %p57, %p58
    %p61 = scmp.ne.s32.totalorder %s46, %s60
    %p62 = scmp.eq.s32.totalorder %s15, 0
    %p63 = por %p61, %p62
    %s65 = sadd.s32 %s64, 1
    %p68 = scmp.eq.s32.totalorder %s9, 1
    %p69 = scmp.ne.s32.totalorder %s64, %s66
    %p70 = scmp.eq.s32.totalorder %s9, 0
    %p71 = por %p69, %p70
    %p72 = scmp.ne.s32.totalorder %s64, %s66
    %p73 = scmp.eq.s32.totalorder %s14, 1
    %p74 = por %p72, %p73
    %p75 = scmp.ne.s32.totalorder %s66, %s67
    %p76 = scmp.eq.s32.totalorder %s14, 0
    %p77 = por %p75, %p76
    %p78 = scmp.ne.s32.totalorder %s66, %s67
    %p79 = scmp.eq.s32.totalorder %s15, 1
    %p80 = por %p78, %p79
    %p82 = scmp.ne.s32.totalorder %s67, %s81
    %p83 = scmp.eq.s32.totalorder %s15, 0
    %p84 = por %p82, %p83
    %s85 = ssub.s32 %s9, %s16
    %p86 = scmp.eq.s32.totalorder %s85, 0
    %s88 = sadd.s32 %s87, 1
    %s89 = scalar_select %p86, %s87, %s88
    %p92 = pneg %p86
    %p93 = scmp.eq.s32.totalorder %s9, 1
    %p94 = por %p92, %p93
    %p95 = scmp.ne.s32.totalorder %s87, %s90
    %p96 = scmp.eq.s32.totalorder %s9, 0
    %p97 = por %p95, %p96
    %p98 = scmp.ne.s32.totalorder %s87, %s90
    %p99 = scmp.eq.s32.totalorder %s14, 1
    %p100 = por %p98, %p99
    %p101 = scmp.ne.s32.totalorder %s90, %s91
    %p102 = scmp.eq.s32.totalorder %s14, 0
    %p103 = por %p101, %p102
    %p104 = scmp.ne.s32.totalorder %s90, %s91
    %p105 = scmp.eq.s32.totalorder %s15, 1
    %p106 = por %p104, %p105
    %p108 = scmp.ne.s32.totalorder %s91, %s107
    %p109 = scmp.eq.s32.totalorder %s15, 0
    %p110 = por %p108, %p109
    %p111 = scmp.le.s32.totalorder 1, %s9
    %p112 = scmp.lt.s32.totalorder %s9, 3
    %p113 = pnand %p111, %p112
    %p114 = pneg %p113
    // Predicated region
    $region9: #{mmm_dit_forward.28} parent=5 // pred_check
      _
    $region10: #{mmm_dit_forward.28} parent=5 // pred_check_branch
      %116 = sbr.rel (%p113) target = $region12
    $region11: #{mmm_dit_forward.28} parent=5 // pred_region
      %s117 = ssub.s32 %s9, 1
      // Predicated region
      $region13: #{mmm_dit_forward.28} parent=11 // pred_check
        %p118 = pneg %p56
      $region14: #{mmm_dit_forward.28} parent=11 // pred_check_branch
        %120 = sbr.rel (%p118) target = $region16
      $region15: #{mmm_dit_forward.28} parent=11 // pred_region
        _
      $region16: #{mmm_dit_forward.28} parent=11 // pred_fallthru
        _
      // Predicated region
      $region17: #{mmm_dit_forward.28} parent=11 // pred_check
        %p121 = pneg %p77
      $region18: #{mmm_dit_forward.28} parent=11 // pred_check_branch
        %123 = sbr.rel (%p121) target = $region20
      $region19: #{mmm_dit_forward.28} parent=11 // pred_region
        _
      $region20: #{mmm_dit_forward.28} parent=11 // pred_fallthru
        _
    $region12: #{mmm_dit_forward.28} parent=5 // pred_fallthru
      _
    %p124 = scmp.lt.s32.totalorder %s9, 2
    // Predicated region
    $region21: #{mmm_dit_forward.28} parent=5 // pred_check
      %p125 = pneg %p124
    $region22: #{mmm_dit_forward.28} parent=5 // pred_check_branch
      %127 = sbr.rel (%p125) target = $region24
    $region23: #{mmm_dit_forward.28} parent=5 // pred_region
      // Predicated region
      $region25: #{mmm_dit_forward.28} parent=23 // pred_check
        %p128 = pneg %p29
      $region26: #{mmm_dit_forward.28} parent=23 // pred_check_branch
        %130 = sbr.rel (%p128) target = $region28
      $region27: #{mmm_dit_forward.28} parent=23 // pred_region
        %p131 = scmp.lt.s32.totalorder %s9, 1
        %s132 = scalar_select %p131, %s9, 1
        %s133 = smul.addr %s132, 3
        %s134 = smul.addr %s133, 8
        %s135 = scalar_lea.vmem %s0, %s134
      $region28: #{mmm_dit_forward.28} parent=23 // pred_fallthru
        _
    $region24: #{mmm_dit_forward.28} parent=5 // pred_fallthru
      _
    %p136 = scmp.le.s32.totalorder 1, %s9
    %p137 = scmp.lt.s32.totalorder %s9, 3
    %p138 = pnand %p136, %p137
    %p139 = pneg %p138
    // Predicated region
    $region29: #{mmm_dit_forward.28} parent=5 // pred_check
      _
    $region30: #{mmm_dit_forward.28} parent=5 // pred_check_branch
      %141 = sbr.rel (%p138) target = $region32
    $region31: #{mmm_dit_forward.28} parent=5 // pred_region
      %s142 = ssub.s32 %s9, 1
      %p143 = scmp.lt.s32.totalorder %s14, 1
      %s144 = scalar_select %p143, %s14, 1
      %s145 = smul.addr %s144, 3
      %s146 = smul.addr %s145, 8
      %s147 = scalar_lea.vmem %s0, %s146
      %p148 = pneg %p35
      %p149 = pneg %p32
      %p150 = pneg %p56
      %p151 = pneg %p53
      %p152 = pneg %p77
      %p153 = pneg %p74
      %p154 = pneg %p103
      %p155 = pneg %p100
      %p156 = scmp.lt.s32.totalorder %s14, 1
      %s157 = scalar_select %p156, %s14, 1
      %s158 = smul.addr %s157, 2
      %s159 = smul.addr %s158, 8
      %s160 = scalar_lea.vmem %s3, %s159
      %p161 = scmp.lt.s32.totalorder %s14, 1
      %s162 = scalar_select %p161, %s14, 1
      %s163 = smul.addr %s162, 3
      %s164 = smul.addr %s163, 8
      %s165 = scalar_lea.vmem %s0, %s164
      %p166 = scmp.lt.s32.totalorder %s14, 1
      %s167 = scalar_select %p166, %s14, 1
      %s168 = smul.addr %s167, 2
      %s169 = smul.addr %s168, 8
      %s170 = scalar_lea.vmem %s3, %s169
      %v172 = vld [vmem:[%s165] sm:$0xff]
      %v173 = vld [vmem:[%s165 + $0x8] sm:$0xff]
      %v174 = vld [vmem:[%s165 + $0x10] sm:$0x3]
      %vm178 = vcmask 1046528
      %v179 = vrot.slane %v172, 1
      %v180 = vrot.slane %v173, 1
      %v181 = vsel %vm178, %v179, %v180
      %v182 = vrot.slane %v174, 1
      %v183 = vsel %vm178, %v180, %v182
      %184 = vrot.lane.b32.xlu0 %v181, 32
      %v185 = vpop.permute.xlu0 %184
      %186 = vrot.lane.b32.xlu0 %v183, 32
      %v187 = vpop.permute.xlu0 %186
      %vm190 = vcmask 1045504
      %v191 = vrot.slane %v172, 2
      %v192 = vrot.slane %v173, 2
      %v193 = vsel %vm190, %v191, %v192
      %v194 = vrot.slane %v174, 2
      %v195 = vsel %vm190, %v192, %v194
      %196 = vrot.lane.b32.xlu0 %v193, 64
      %v197 = vpop.permute.xlu0 %196
      %198 = vrot.lane.b32.xlu0 %v195, 64
      %v199 = vpop.permute.xlu0 %198
      %vm202 = vcmask 261120
      %v203 = vsel %vm202, %v172, %v185
      %v204 = vsel %vm202, %v173, %v187
      %vm205 = vcmask 523264
      %v206 = vsel %vm205, %v203, %v197
      %v207 = vsel %vm205, %v204, %v199
      %v208 = vpack.c.bf16 %v207, %v206
      %v209 = vld [vmem:[%s1] sm:$0xf]
      %v210 = vld [vmem:[%s1 + $0x4] sm:$0xf]
      %v211 = vld [vmem:[%s1 + $0x8] sm:$0xf]
      %v212 = vld [vmem:[%s1 + $0xc] sm:$0xf]
      %v213 = vld [vmem:[%s1 + $0x10] sm:$0xf]
      %v214 = vld [vmem:[%s1 + $0x14] sm:$0xf]
      %v215 = vld [vmem:[%s1 + $0x18] sm:$0xf]
      %v216 = vld [vmem:[%s1 + $0x1c] sm:$0xf]
      %v217 = vld [vmem:[%s1 + $0x20] sm:$0xf]
      %v218 = vld [vmem:[%s1 + $0x24] sm:$0xf]
      %v219 = vld [vmem:[%s1 + $0x28] sm:$0xf]
      %v220 = vld [vmem:[%s1 + $0x2c] sm:$0xf]
      %v221 = vld [vmem:[%s2] sm:$0x1]
      %v223 = vlaneseq
      %v224 = vshrl.u32 %v223, 7
      %v225 = vsub.s32 0, %v224
      %v226 = vrot.slane %v221, %v225
      %v240 = vunpack.c.l.b16 %v209
      %v241 = vunpack.c.l.b16 %v210
      %v242 = vunpack.c.l.b16 %v211
      %v243 = vunpack.c.l.b16 %v212
      %v244 = vunpack.c.l.b16 %v213
      %v245 = vunpack.c.l.b16 %v214
      %v246 = vunpack.c.l.b16 %v215
      %v247 = vunpack.c.l.b16 %v216
      %v248 = vunpack.c.l.b16 %v217
      %v249 = vunpack.c.l.b16 %v218
      %v250 = vunpack.c.l.b16 %v219
      %v251 = vunpack.c.l.b16 %v220
      %v252 = vpack.c.b16 %v241, %v240
      %v253 = vpack.c.b16 %v243, %v242
      %v254 = vpack.c.b16 %v245, %v244
      %v255 = vpack.c.b16 %v247, %v246
      %v256 = vpack.c.b16 %v249, %v248
      %v257 = vpack.c.b16 %v251, %v250
      %vm264 = vcmask 785408
      %v266 = vsel %vm264, %v208, 0
      %268 = vmatprep.subr.bf16.mxu0 0
      %269 = vmatpush1.bf16.msra.mxu0 %v252
      %270 = vmatprep.subr.bf16.mxu0 0
      %271 = vmatpush1.bf16.msra.mxu0 %v253
      %272 = vmatprep.subr.bf16.mxu0 0
      %273 = vmatpush1.bf16.msra.mxu0 %v254
      %274 = vmatprep.subr.bf16.mxu0 0
      %275 = vmatpush1.bf16.msra.mxu0 %v255
      %276 = vmatprep.subr.bf16.mxu0 0
      %277 = vmatpush1.bf16.msra.mxu0 %v256
      %278 = vmatprep.subr.bf16.mxu0 0
      %279 = vmatpush1.bf16.msra.mxu0 %v257
      %280 = vmatprep.subr.bf16.mxu0 0
      %281 = vmatpush1.bf16.msra.mxu0 0
      %282 = vmatprep.subr.bf16.mxu0 0
      %283 = vmatpush1.bf16.msra.mxu0 0
      %284 = vmatprep.subr.bf16.mxu0 0
      %285 = vmatpush1.bf16.msra.mxu0 0
      %286 = vmatprep.subr.bf16.mxu0 0
      %287 = vmatpush1.bf16.msra.mxu0 0
      %288 = vmatprep.subr.bf16.mxu0 0
      %289 = vmatpush1.bf16.msra.mxu0 0
      %290 = vmatprep.subr.bf16.mxu0 0
      %291 = vmatpush1.bf16.msra.mxu0 0
      %292 = vmatprep.subr.bf16.mxu0 0
      %293 = vmatpush1.bf16.msra.mxu0 0
      %294 = vmatprep.subr.bf16.mxu0 0
      %295 = vmatpush1.bf16.msra.mxu0 0
      %296 = vmatprep.subr.bf16.mxu0 0
      %297 = vmatpush1.bf16.msra.mxu0 0
      %298 = vmatprep.subr.bf16.mxu0 0
      %299 = vmatpush1.bf16.msra.mxu0 0
      %300 = vmatprep.mubr.bf16.mxu0 0
      %301 = vmatmul.mubr.bf16.gmra.mrb[0].mxu0 %v266
      %v302 = vpop.f32.mrb[0].mxu0
      %v303 = vadd.f32 %v226, %v302
      %v304 = vpop.f32.mrb[0].mxu0
      %v305 = vpop.f32.mrb[0].mxu0
      %v306 = vadd.f32 %v226, %v305
      %v307 = vpop.f32.mrb[0].mxu0
      %308 = vdwg.mxu0
      %v309 = vmax.f32 %v303, 0.0
      %v310 = vmax.f32 %v306, 0.0
      %311 = vst.msk [vmem:[%s170] sm:$0xff] %vm205, %v309
      %312 = vst.msk [vmem:[%s170 + $0x8] sm:$0xff] %vm205, %v310
      %p313 = scmp.lt.s32.totalorder %s14, 1
      %s314 = scalar_select %p313, %s14, 1
      %s315 = smul.addr %s314, 2
      %s316 = smul.addr %s315, 8
      %s317 = scalar_lea.vmem %s3, %s316
      // Predicated region
      $region33: #{mmm_dit_forward.28} parent=31 // pred_check
        %p318 = pneg %p100
      $region34: #{mmm_dit_forward.28} parent=31 // pred_check_branch
        %320 = sbr.rel (%p318) target = $region36
      $region35: #{mmm_dit_forward.28} parent=31 // pred_region
        _
      $region36: #{mmm_dit_forward.28} parent=31 // pred_fallthru
        _
    $region32: #{mmm_dit_forward.28} parent=5 // pred_fallthru
      _
    %p321 = scmp.le.s32.totalorder 2, %s9
    // Predicated region
    $region37: #{mmm_dit_forward.28} parent=5 // pred_check
      %p322 = pneg %p321
    $region38: #{mmm_dit_forward.28} parent=5 // pred_check_branch
      %324 = sbr.rel (%p322) target = $region40
    $region39: #{mmm_dit_forward.28} parent=5 // pred_region
      %s325 = ssub.s32 %s9, 2
      // Predicated region
      $region41: #{mmm_dit_forward.28} parent=39 // pred_check
        %p326 = pneg %p106
      $region42: #{mmm_dit_forward.28} parent=39 // pred_check_branch
        %328 = sbr.rel (%p326) target = $region44
      $region43: #{mmm_dit_forward.28} parent=39 // pred_region
        %p329 = scmp.lt.s32.totalorder %s15, 1
        %s330 = scalar_select %p329, %s15, 1
        %s331 = smul.addr %s330, 2
        %s332 = smul.addr %s331, 8
        %s333 = scalar_lea.vmem %s3, %s332
      $region44: #{mmm_dit_forward.28} parent=39 // pred_fallthru
        _
    $region40: #{mmm_dit_forward.28} parent=5 // pred_fallthru
      _
  $region6: #{mmm_dit_forward.28} parent=0 // loop_footer
    %s13 = sadd.s32 1, %s9
  $region7: #{mmm_dit_forward.28} parent=0 // loop_footer_branch
    %8 = sbr.rel target = $region3
  $region8: #{mmm_dit_forward.28} parent=0 // loop_exit
    _

// kernel: mmm_dit_forward.31
$region0: #{mmm_dit_forward.31}
  #allocation0 [shape = 'u32[]', space=smem, size = 0x4, offset = 0x4, fixed_abs, tag = 'smem constant byte address 0x4 - core index']
  #allocation1 [shape = 'u32[144,128]{1,0:T(1,128)}', space=vmem, size = 0x12000, scoped, tag = 'internal scratch']
  %s0 = inlined_call_operand.vmem [shape: f32[2,8,64], index: 0, kind: input, shape index: {}]
  %s1 = inlined_call_operand.vmem [shape: bf16[64,64], index: 1, kind: input, shape index: {}]
  %s2 = inlined_call_operand.vmem [shape: f32[1,64], index: 2, kind: input, shape index: {}]
  %s3 = inlined_call_operand.vmem [shape: f32[2,8,64], index: 3, kind: input, shape index: {}]
  %s4 = inlined_call_operand.vmem [shape: f32[2,8,64], index: 4, kind: output, shape index: {}]
  %s5 = sld [smem:[#allocation0]]
  $region49: #{mmm_dit_forward.31} parent=0
    _
  %s7 = ssub.s32 1, %s5
  %s8 = scalar_select 0, %s7, %s5
  loop: start=0, step=1, limit=4
  $region2: #{mmm_dit_forward.31} parent=0 // loop_pre_header
    _
  $region3: #{mmm_dit_forward.31} parent=0 // loop_header
    %s10 = sphi 0, %s14
    %p11 = scmp.ge.s32.totalorder %s10, 4
    %s20 = sphi 0, %s22
    %s23 = sphi 0, %s20
    %s24 = sphi 0, %s23
    %s40 = sphi 0, %s24
    %s44 = sphi 0, %s44
    %s46 = sphi 0, %s44
    %s47 = sphi 0, %s46
    %s61 = sphi 0, %s47
    %s65 = sphi 0, %s65
    %s67 = sphi 0, %s65
    %s68 = sphi 0, %s67
    %s82 = sphi 0, %s68
    %s88 = sphi 0, %s90
    %s91 = sphi 0, %s88
    %s92 = sphi 0, %s91
    %s108 = sphi 0, %s92
    %s114 = sphi 0, %s116
    %s117 = sphi 0, %s114
    %s118 = sphi 0, %s117
    %s134 = sphi 0, %s118
  $region4: #{mmm_dit_forward.31} parent=0 // loop_header_branch
    %13 = sbr.rel (%p11) target = $region8
  $region5: #{mmm_dit_forward.31} parent=0 // loop_body
    %s15 = ssub.s32 %s10, 1
    %s16 = ssub.s32 %s10, 2
    %s17 = sadd.s32 %s10, 1
    %s18 = ssub.s32 %s10, %s17
    %p19 = scmp.eq.s32.totalorder %s18, 0
    %s21 = sadd.s32 %s20, 1
    %s22 = scalar_select %p19, %s20, %s21
    %p25 = pneg %p19
    %p26 = scmp.eq.s32.totalorder %s10, 1
    %p27 = por %p25, %p26
    %p28 = scmp.ne.s32.totalorder %s20, %s23
    %p29 = scmp.eq.s32.totalorder %s10, 0
    %p30 = por %p28, %p29
    %p31 = scmp.ne.s32.totalorder %s20, %s23
    %p32 = scmp.eq.s32.totalorder %s15, 1
    %p33 = por %p31, %p32
    %p34 = scmp.ne.s32.totalorder %s23, %s24
    %p35 = scmp.eq.s32.totalorder %s15, 0
    %p36 = por %p34, %p35
    %p37 = scmp.ne.s32.totalorder %s23, %s24
    %p38 = scmp.eq.s32.totalorder %s16, 1
    %p39 = por %p37, %p38
    %p41 = scmp.ne.s32.totalorder %s24, %s40
    %p42 = scmp.eq.s32.totalorder %s16, 0
    %p43 = por %p41, %p42
    %s45 = sadd.s32 %s44, 1
    %p48 = scmp.eq.s32.totalorder %s10, 1
    %p49 = scmp.ne.s32.totalorder %s44, %s46
    %p50 = scmp.eq.s32.totalorder %s10, 0
    %p51 = por %p49, %p50
    %p52 = scmp.ne.s32.totalorder %s44, %s46
    %p53 = scmp.eq.s32.totalorder %s15, 1
    %p54 = por %p52, %p53
    %p55 = scmp.ne.s32.totalorder %s46, %s47
    %p56 = scmp.eq.s32.totalorder %s15, 0
    %p57 = por %p55, %p56
    %p58 = scmp.ne.s32.totalorder %s46, %s47
    %p59 = scmp.eq.s32.totalorder %s16, 1
    %p60 = por %p58, %p59
    %p62 = scmp.ne.s32.totalorder %s47, %s61
    %p63 = scmp.eq.s32.totalorder %s16, 0
    %p64 = por %p62, %p63
    %s66 = sadd.s32 %s65, 1
    %p69 = scmp.eq.s32.totalorder %s10, 1
    %p70 = scmp.ne.s32.totalorder %s65, %s67
    %p71 = scmp.eq.s32.totalorder %s10, 0
    %p72 = por %p70, %p71
    %p73 = scmp.ne.s32.totalorder %s65, %s67
    %p74 = scmp.eq.s32.totalorder %s15, 1
    %p75 = por %p73, %p74
    %p76 = scmp.ne.s32.totalorder %s67, %s68
    %p77 = scmp.eq.s32.totalorder %s15, 0
    %p78 = por %p76, %p77
    %p79 = scmp.ne.s32.totalorder %s67, %s68
    %p80 = scmp.eq.s32.totalorder %s16, 1
    %p81 = por %p79, %p80
    %p83 = scmp.ne.s32.totalorder %s68, %s82
    %p84 = scmp.eq.s32.totalorder %s16, 0
    %p85 = por %p83, %p84
    %s86 = ssub.s32 %s10, %s17
    %p87 = scmp.eq.s32.totalorder %s86, 0
    %s89 = sadd.s32 %s88, 1
    %s90 = scalar_select %p87, %s88, %s89
    %p93 = pneg %p87
    %p94 = scmp.eq.s32.totalorder %s10, 1
    %p95 = por %p93, %p94
    %p96 = scmp.ne.s32.totalorder %s88, %s91
    %p97 = scmp.eq.s32.totalorder %s10, 0
    %p98 = por %p96, %p97
    %p99 = scmp.ne.s32.totalorder %s88, %s91
    %p100 = scmp.eq.s32.totalorder %s15, 1
    %p101 = por %p99, %p100
    %p102 = scmp.ne.s32.totalorder %s91, %s92
    %p103 = scmp.eq.s32.totalorder %s15, 0
    %p104 = por %p102, %p103
    %p105 = scmp.ne.s32.totalorder %s91, %s92
    %p106 = scmp.eq.s32.totalorder %s16, 1
    %p107 = por %p105, %p106
    %p109 = scmp.ne.s32.totalorder %s92, %s108
    %p110 = scmp.eq.s32.totalorder %s16, 0
    %p111 = por %p109, %p110
    %s112 = ssub.s32 %s10, %s17
    %p113 = scmp.eq.s32.totalorder %s112, 0
    %s115 = sadd.s32 %s114, 1
    %s116 = scalar_select %p113, %s114, %s115
    %p119 = pneg %p113
    %p120 = scmp.eq.s32.totalorder %s10, 1
    %p121 = por %p119, %p120
    %p122 = scmp.ne.s32.totalorder %s114, %s117
    %p123 = scmp.eq.s32.totalorder %s10, 0
    %p124 = por %p122, %p123
    %p125 = scmp.ne.s32.totalorder %s114, %s117
    %p126 = scmp.eq.s32.totalorder %s15, 1
    %p127 = por %p125, %p126
    %p128 = scmp.ne.s32.totalorder %s117, %s118
    %p129 = scmp.eq.s32.totalorder %s15, 0
    %p130 = por %p128, %p129
    %p131 = scmp.ne.s32.totalorder %s117, %s118
    %p132 = scmp.eq.s32.totalorder %s16, 1
    %p133 = por %p131, %p132
    %p135 = scmp.ne.s32.totalorder %s118, %s134
    %p136 = scmp.eq.s32.totalorder %s16, 0
    %p137 = por %p135, %p136
    %p138 = scmp.le.s32.totalorder 1, %s10
    %p139 = scmp.lt.s32.totalorder %s10, 3
    %p140 = pnand %p138, %p139
    %p141 = pneg %p140
    // Predicated region
    $region9: #{mmm_dit_forward.31} parent=5 // pred_check
      _
    $region10: #{mmm_dit_forward.31} parent=5 // pred_check_branch
      %143 = sbr.rel (%p140) target = $region12
    $region11: #{mmm_dit_forward.31} parent=5 // pred_region
      %s144 = ssub.s32 %s10, 1
      // Predicated region
      $region13: #{mmm_dit_forward.31} parent=11 // pred_check
        %p145 = pneg %p57
      $region14: #{mmm_dit_forward.31} parent=11 // pred_check_branch
        %147 = sbr.rel (%p145) target = $region16
      $region15: #{mmm_dit_forward.31} parent=11 // pred_region
        _
      $region16: #{mmm_dit_forward.31} parent=11 // pred_fallthru
        _
      // Predicated region
      $region17: #{mmm_dit_forward.31} parent=11 // pred_check
        %p148 = pneg %p78
      $region18: #{mmm_dit_forward.31} parent=11 // pred_check_branch
        %150 = sbr.rel (%p148) target = $region20
      $region19: #{mmm_dit_forward.31} parent=11 // pred_region
        _
      $region20: #{mmm_dit_forward.31} parent=11 // pred_fallthru
        _
    $region12: #{mmm_dit_forward.31} parent=5 // pred_fallthru
      _
    %p151 = scmp.lt.s32.totalorder %s10, 2
    // Predicated region
    $region21: #{mmm_dit_forward.31} parent=5 // pred_check
      %p152 = pneg %p151
    $region22: #{mmm_dit_forward.31} parent=5 // pred_check_branch
      %154 = sbr.rel (%p152) target = $region24
    $region23: #{mmm_dit_forward.31} parent=5 // pred_region
      // Predicated region
      $region25: #{mmm_dit_forward.31} parent=23 // pred_check
        %p155 = pneg %p30
      $region26: #{mmm_dit_forward.31} parent=23 // pred_check_branch
        %157 = sbr.rel (%p155) target = $region28
      $region27: #{mmm_dit_forward.31} parent=23 // pred_region
        %p158 = scmp.lt.s32.totalorder %s10, 1
        %s159 = scalar_select %p158, %s10, 1
        %s160 = smul.addr %s159, 8
        %s161 = scalar_lea.vmem %s0, %s160
      $region28: #{mmm_dit_forward.31} parent=23 // pred_fallthru
        _
      // Predicated region
      $region29: #{mmm_dit_forward.31} parent=23 // pred_check
        %p162 = pneg %p98
      $region30: #{mmm_dit_forward.31} parent=23 // pred_check_branch
        %164 = sbr.rel (%p162) target = $region32
      $region31: #{mmm_dit_forward.31} parent=23 // pred_region
        %p165 = scmp.lt.s32.totalorder %s10, 1
        %s166 = scalar_select %p165, %s10, 1
        %s167 = smul.addr %s166, 8
        %s168 = scalar_lea.vmem %s3, %s167
      $region32: #{mmm_dit_forward.31} parent=23 // pred_fallthru
        _
    $region24: #{mmm_dit_forward.31} parent=5 // pred_fallthru
      _
    %p169 = scmp.le.s32.totalorder 1, %s10
    %p170 = scmp.lt.s32.totalorder %s10, 3
    %p171 = pnand %p169, %p170
    %p172 = pneg %p171
    // Predicated region
    $region33: #{mmm_dit_forward.31} parent=5 // pred_check
      _
    $region34: #{mmm_dit_forward.31} parent=5 // pred_check_branch
      %174 = sbr.rel (%p171) target = $region36
    $region35: #{mmm_dit_forward.31} parent=5 // pred_region
      %s175 = ssub.s32 %s10, 1
      %p176 = scmp.lt.s32.totalorder %s15, 1
      %s177 = scalar_select %p176, %s15, 1
      %s178 = smul.addr %s177, 8
      %s179 = scalar_lea.vmem %s0, %s178
      %p180 = pneg %p36
      %p181 = pneg %p33
      %p182 = pneg %p57
      %p183 = pneg %p54
      %p184 = pneg %p78
      %p185 = pneg %p75
      %p186 = scmp.lt.s32.totalorder %s15, 1
      %s187 = scalar_select %p186, %s15, 1
      %s188 = smul.addr %s187, 8
      %s189 = scalar_lea.vmem %s3, %s188
      %p190 = pneg %p104
      %p191 = pneg %p101
      %p192 = pneg %p130
      %p193 = pneg %p127
      %p194 = scmp.lt.s32.totalorder %s15, 1
      %s195 = scalar_select %p194, %s15, 1
      %s196 = smul.addr %s195, 8
      %s197 = scalar_lea.vmem %s4, %s196
      %p198 = scmp.lt.s32.totalorder %s15, 1
      %s199 = scalar_select %p198, %s15, 1
      %s200 = smul.addr %s199, 8
      %s201 = scalar_lea.vmem %s0, %s200
      %p202 = scmp.lt.s32.totalorder %s15, 1
      %s203 = scalar_select %p202, %s15, 1
      %s204 = smul.addr %s203, 8
      %s205 = scalar_lea.vmem %s3, %s204
      %p206 = scmp.lt.s32.totalorder %s15, 1
      %s207 = scalar_select %p206, %s15, 1
      %s208 = smul.addr %s207, 8
      %s209 = scalar_lea.vmem %s4, %s208
      %v211 = vld [vmem:[%s201] sm:$0xff]
      %v212 = vpack.c.bf16 %v211, %v211
      %v213 = vld [vmem:[%s1] sm:$0xf]
      %v214 = vld [vmem:[%s1 + $0x4] sm:$0xf]
      %v215 = vld [vmem:[%s1 + $0x8] sm:$0xf]
      %v216 = vld [vmem:[%s1 + $0xc] sm:$0xf]
      %v217 = vld [vmem:[%s1 + $0x10] sm:$0xf]
      %v218 = vld [vmem:[%s1 + $0x14] sm:$0xf]
      %v219 = vld [vmem:[%s1 + $0x18] sm:$0xf]
      %v220 = vld [vmem:[%s1 + $0x1c] sm:$0xf]
      %v221 = vld [vmem:[%s2] sm:$0x1]
      %v223 = vlaneseq
      %v224 = vshrl.u32 %v223, 7
      %v225 = vsub.s32 0, %v224
      %v226 = vrot.slane %v221, %v225
      %v236 = vunpack.c.l.b16 %v213
      %v237 = vunpack.c.l.b16 %v214
      %v238 = vunpack.c.l.b16 %v215
      %v239 = vunpack.c.l.b16 %v216
      %v240 = vunpack.c.l.b16 %v217
      %v241 = vunpack.c.l.b16 %v218
      %v242 = vunpack.c.l.b16 %v219
      %v243 = vunpack.c.l.b16 %v220
      %v244 = vpack.c.b16 %v237, %v236
      %v245 = vpack.c.b16 %v239, %v238
      %v246 = vpack.c.b16 %v241, %v240
      %v247 = vpack.c.b16 %v243, %v242
      %vm252 = vcmask 523264
      %v254 = vsel %vm252, %v212, 0
      %256 = vmatprep.subr.bf16.mxu0 0
      %257 = vmatpush1.bf16.msra.mxu0 %v244
      %258 = vmatprep.subr.bf16.mxu0 0
      %259 = vmatpush1.bf16.msra.mxu0 %v245
      %260 = vmatprep.subr.bf16.mxu0 0
      %261 = vmatpush1.bf16.msra.mxu0 %v246
      %262 = vmatprep.subr.bf16.mxu0 0
      %263 = vmatpush1.bf16.msra.mxu0 %v247
      %264 = vmatprep.subr.bf16.mxu0 0
      %265 = vmatpush1.bf16.msra.mxu0 0
      %266 = vmatprep.subr.bf16.mxu0 0
      %267 = vmatpush1.bf16.msra.mxu0 0
      %268 = vmatprep.subr.bf16.mxu0 0
      %269 = vmatpush1.bf16.msra.mxu0 0
      %270 = vmatprep.subr.bf16.mxu0 0
      %271 = vmatpush1.bf16.msra.mxu0 0
      %272 = vmatprep.subr.bf16.mxu0 0
      %273 = vmatpush1.bf16.msra.mxu0 0
      %274 = vmatprep.subr.bf16.mxu0 0
      %275 = vmatpush1.bf16.msra.mxu0 0
      %276 = vmatprep.subr.bf16.mxu0 0
      %277 = vmatpush1.bf16.msra.mxu0 0
      %278 = vmatprep.subr.bf16.mxu0 0
      %279 = vmatpush1.bf16.msra.mxu0 0
      %280 = vmatprep.subr.bf16.mxu0 0
      %281 = vmatpush1.bf16.msra.mxu0 0
      %282 = vmatprep.subr.bf16.mxu0 0
      %283 = vmatpush1.bf16.msra.mxu0 0
      %284 = vmatprep.subr.bf16.mxu0 0
      %285 = vmatpush1.bf16.msra.mxu0 0
      %286 = vmatprep.subr.bf16.mxu0 0
      %287 = vmatpush1.bf16.msra.mxu0 0
      %288 = vmatprep.mubr.bf16.mxu0 0
      %289 = vmatmul.mubr.bf16.gmra.mrb[0].mxu0 %v254
      %v290 = vpop.f32.mrb[0].mxu0
      %v291 = vadd.f32 %v226, %v290
      %v292 = vpop.f32.mrb[0].mxu0
      %v293 = vpop.f32.mrb[0].mxu0
      %v294 = vpop.f32.mrb[0].mxu0
      %295 = vdwg.mxu0
      %v296 = vld [vmem:[%s205] sm:$0xff]
      %v297 = vadd.f32 %v291, %v296
      %298 = vst.msk [vmem:[%s209] sm:$0xff] %vm252, %v297
      %p299 = scmp.lt.s32.totalorder %s15, 1
      %s300 = scalar_select %p299, %s15, 1
      %s301 = smul.addr %s300, 8
      %s302 = scalar_lea.vmem %s4, %s301
      // Predicated region
      $region37: #{mmm_dit_forward.31} parent=35 // pred_check
        %p303 = pneg %p127
      $region38: #{mmm_dit_forward.31} parent=35 // pred_check_branch
        %305 = sbr.rel (%p303) target = $region40
      $region39: #{mmm_dit_forward.31} parent=35 // pred_region
        _
      $region40: #{mmm_dit_forward.31} parent=35 // pred_fallthru
        _
    $region36: #{mmm_dit_forward.31} parent=5 // pred_fallthru
      _
    %p306 = scmp.le.s32.totalorder 2, %s10
    // Predicated region
    $region41: #{mmm_dit_forward.31} parent=5 // pred_check
      %p307 = pneg %p306
    $region42: #{mmm_dit_forward.31} parent=5 // pred_check_branch
      %309 = sbr.rel (%p307) target = $region44
    $region43: #{mmm_dit_forward.31} parent=5 // pred_region
      %s310 = ssub.s32 %s10, 2
      // Predicated region
      $region45: #{mmm_dit_forward.31} parent=43 // pred_check
        %p311 = pneg %p133
      $region46: #{mmm_dit_forward.31} parent=43 // pred_check_branch
        %313 = sbr.rel (%p311) target = $region48
      $region47: #{mmm_dit_forward.31} parent=43 // pred_region
        %p314 = scmp.lt.s32.totalorder %s16, 1
        %s315 = scalar_select %p314, %s16, 1
        %s316 = smul.addr %s315, 8
        %s317 = scalar_lea.vmem %s4, %s316
      $region48: #{mmm_dit_forward.31} parent=43 // pred_fallthru
        _
    $region44: #{mmm_dit_forward.31} parent=5 // pred_fallthru
      _
  $region6: #{mmm_dit_forward.31} parent=0 // loop_footer
    %s14 = sadd.s32 1, %s10
  $region7: #{mmm_dit_forward.31} parent=0 // loop_footer_branch
    %9 = sbr.rel target = $region3
  $region8: #{mmm_dit_forward.31} parent=0 // loop_exit
    _

// kernel: mmm_dit_forward.32
$region0: #{mmm_dit_forward.32}
  #allocation0 [shape = 'u32[]', space=smem, size = 0x4, offset = 0x4, fixed_abs, tag = 'smem constant byte address 0x4 - core index']
  #allocation1 [shape = 'u32[144,128]{1,0:T(1,128)}', space=vmem, size = 0x12000, scoped, tag = 'internal scratch']
  %s0 = inlined_call_operand.vmem [shape: f32[2,10,64], index: 0, kind: input, shape index: {}]
  %s1 = inlined_call_operand.vmem [shape: bf16[192,64], index: 1, kind: input, shape index: {}]
  %s2 = inlined_call_operand.vmem [shape: f32[1,64], index: 2, kind: input, shape index: {}]
  %s3 = inlined_call_operand.vmem [shape: f32[2,8,64], index: 3, kind: output, shape index: {}]
  %s4 = sld [smem:[#allocation0]]
  $region45: #{mmm_dit_forward.32} parent=0
    _
  %s6 = ssub.s32 1, %s4
  %s7 = scalar_select 0, %s6, %s4
  loop: start=0, step=1, limit=4
  $region2: #{mmm_dit_forward.32} parent=0 // loop_pre_header
    _
  $region3: #{mmm_dit_forward.32} parent=0 // loop_header
    %s9 = sphi 0, %s13
    %p10 = scmp.ge.s32.totalorder %s9, 4
    %s19 = sphi 0, %s21
    %s22 = sphi 0, %s19
    %s23 = sphi 0, %s22
    %s39 = sphi 0, %s23
    %s43 = sphi 0, %s43
    %s45 = sphi 0, %s43
    %s46 = sphi 0, %s45
    %s60 = sphi 0, %s46
    %s64 = sphi 0, %s64
    %s66 = sphi 0, %s64
    %s67 = sphi 0, %s66
    %s81 = sphi 0, %s67
    %s87 = sphi 0, %s89
    %s90 = sphi 0, %s87
    %s91 = sphi 0, %s90
    %s107 = sphi 0, %s91
  $region4: #{mmm_dit_forward.32} parent=0 // loop_header_branch
    %12 = sbr.rel (%p10) target = $region8
  $region5: #{mmm_dit_forward.32} parent=0 // loop_body
    %s14 = ssub.s32 %s9, 1
    %s15 = ssub.s32 %s9, 2
    %s16 = sadd.s32 %s9, 1
    %s17 = ssub.s32 %s9, %s16
    %p18 = scmp.eq.s32.totalorder %s17, 0
    %s20 = sadd.s32 %s19, 1
    %s21 = scalar_select %p18, %s19, %s20
    %p24 = pneg %p18
    %p25 = scmp.eq.s32.totalorder %s9, 1
    %p26 = por %p24, %p25
    %p27 = scmp.ne.s32.totalorder %s19, %s22
    %p28 = scmp.eq.s32.totalorder %s9, 0
    %p29 = por %p27, %p28
    %p30 = scmp.ne.s32.totalorder %s19, %s22
    %p31 = scmp.eq.s32.totalorder %s14, 1
    %p32 = por %p30, %p31
    %p33 = scmp.ne.s32.totalorder %s22, %s23
    %p34 = scmp.eq.s32.totalorder %s14, 0
    %p35 = por %p33, %p34
    %p36 = scmp.ne.s32.totalorder %s22, %s23
    %p37 = scmp.eq.s32.totalorder %s15, 1
    %p38 = por %p36, %p37
    %p40 = scmp.ne.s32.totalorder %s23, %s39
    %p41 = scmp.eq.s32.totalorder %s15, 0
    %p42 = por %p40, %p41
    %s44 = sadd.s32 %s43, 1
    %p47 = scmp.eq.s32.totalorder %s9, 1
    %p48 = scmp.ne.s32.totalorder %s43, %s45
    %p49 = scmp.eq.s32.totalorder %s9, 0
    %p50 = por %p48, %p49
    %p51 = scmp.ne.s32.totalorder %s43, %s45
    %p52 = scmp.eq.s32.totalorder %s14, 1
    %p53 = por %p51, %p52
    %p54 = scmp.ne.s32.totalorder %s45, %s46
    %p55 = scmp.eq.s32.totalorder %s14, 0
    %p56 = por %p54, %p55
    %p57 = scmp.ne.s32.totalorder %s45, %s46
    %p58 = scmp.eq.s32.totalorder %s15, 1
    %p59 = por %p57, %p58
    %p61 = scmp.ne.s32.totalorder %s46, %s60
    %p62 = scmp.eq.s32.totalorder %s15, 0
    %p63 = por %p61, %p62
    %s65 = sadd.s32 %s64, 1
    %p68 = scmp.eq.s32.totalorder %s9, 1
    %p69 = scmp.ne.s32.totalorder %s64, %s66
    %p70 = scmp.eq.s32.totalorder %s9, 0
    %p71 = por %p69, %p70
    %p72 = scmp.ne.s32.totalorder %s64, %s66
    %p73 = scmp.eq.s32.totalorder %s14, 1
    %p74 = por %p72, %p73
    %p75 = scmp.ne.s32.totalorder %s66, %s67
    %p76 = scmp.eq.s32.totalorder %s14, 0
    %p77 = por %p75, %p76
    %p78 = scmp.ne.s32.totalorder %s66, %s67
    %p79 = scmp.eq.s32.totalorder %s15, 1
    %p80 = por %p78, %p79
    %p82 = scmp.ne.s32.totalorder %s67, %s81
    %p83 = scmp.eq.s32.totalorder %s15, 0
    %p84 = por %p82, %p83
    %s85 = ssub.s32 %s9, %s16
    %p86 = scmp.eq.s32.totalorder %s85, 0
    %s88 = sadd.s32 %s87, 1
    %s89 = scalar_select %p86, %s87, %s88
    %p92 = pneg %p86
    %p93 = scmp.eq.s32.totalorder %s9, 1
    %p94 = por %p92, %p93
    %p95 = scmp.ne.s32.totalorder %s87, %s90
    %p96 = scmp.eq.s32.totalorder %s9, 0
    %p97 = por %p95, %p96
    %p98 = scmp.ne.s32.totalorder %s87, %s90
    %p99 = scmp.eq.s32.totalorder %s14, 1
    %p100 = por %p98, %p99
    %p101 = scmp.ne.s32.totalorder %s90, %s91
    %p102 = scmp.eq.s32.totalorder %s14, 0
    %p103 = por %p101, %p102
    %p104 = scmp.ne.s32.totalorder %s90, %s91
    %p105 = scmp.eq.s32.totalorder %s15, 1
    %p106 = por %p104, %p105
    %p108 = scmp.ne.s32.totalorder %s91, %s107
    %p109 = scmp.eq.s32.totalorder %s15, 0
    %p110 = por %p108, %p109
    %p111 = scmp.le.s32.totalorder 1, %s9
    %p112 = scmp.lt.s32.totalorder %s9, 3
    %p113 = pnand %p111, %p112
    %p114 = pneg %p113
    // Predicated region
    $region9: #{mmm_dit_forward.32} parent=5 // pred_check
      _
    $region10: #{mmm_dit_forward.32} parent=5 // pred_check_branch
      %116 = sbr.rel (%p113) target = $region12
    $region11: #{mmm_dit_forward.32} parent=5 // pred_region
      %s117 = ssub.s32 %s9, 1
      // Predicated region
      $region13: #{mmm_dit_forward.32} parent=11 // pred_check
        %p118 = pneg %p56
      $region14: #{mmm_dit_forward.32} parent=11 // pred_check_branch
        %120 = sbr.rel (%p118) target = $region16
      $region15: #{mmm_dit_forward.32} parent=11 // pred_region
        _
      $region16: #{mmm_dit_forward.32} parent=11 // pred_fallthru
        _
      // Predicated region
      $region17: #{mmm_dit_forward.32} parent=11 // pred_check
        %p121 = pneg %p77
      $region18: #{mmm_dit_forward.32} parent=11 // pred_check_branch
        %123 = sbr.rel (%p121) target = $region20
      $region19: #{mmm_dit_forward.32} parent=11 // pred_region
        _
      $region20: #{mmm_dit_forward.32} parent=11 // pred_fallthru
        _
    $region12: #{mmm_dit_forward.32} parent=5 // pred_fallthru
      _
    %p124 = scmp.lt.s32.totalorder %s9, 2
    // Predicated region
    $region21: #{mmm_dit_forward.32} parent=5 // pred_check
      %p125 = pneg %p124
    $region22: #{mmm_dit_forward.32} parent=5 // pred_check_branch
      %127 = sbr.rel (%p125) target = $region24
    $region23: #{mmm_dit_forward.32} parent=5 // pred_region
      // Predicated region
      $region25: #{mmm_dit_forward.32} parent=23 // pred_check
        %p128 = pneg %p29
      $region26: #{mmm_dit_forward.32} parent=23 // pred_check_branch
        %130 = sbr.rel (%p128) target = $region28
      $region27: #{mmm_dit_forward.32} parent=23 // pred_region
        %p131 = scmp.lt.s32.totalorder %s9, 1
        %s132 = scalar_select %p131, %s9, 1
        %s133 = smul.addr %s132, 2
        %s134 = smul.addr %s133, 8
        %s135 = scalar_lea.vmem %s0, %s134
      $region28: #{mmm_dit_forward.32} parent=23 // pred_fallthru
        _
    $region24: #{mmm_dit_forward.32} parent=5 // pred_fallthru
      _
    %p136 = scmp.le.s32.totalorder 1, %s9
    %p137 = scmp.lt.s32.totalorder %s9, 3
    %p138 = pnand %p136, %p137
    %p139 = pneg %p138
    // Predicated region
    $region29: #{mmm_dit_forward.32} parent=5 // pred_check
      _
    $region30: #{mmm_dit_forward.32} parent=5 // pred_check_branch
      %141 = sbr.rel (%p138) target = $region32
    $region31: #{mmm_dit_forward.32} parent=5 // pred_region
      %s142 = ssub.s32 %s9, 1
      %p143 = scmp.lt.s32.totalorder %s14, 1
      %s144 = scalar_select %p143, %s14, 1
      %s145 = smul.addr %s144, 2
      %s146 = smul.addr %s145, 8
      %s147 = scalar_lea.vmem %s0, %s146
      %p148 = pneg %p35
      %p149 = pneg %p32
      %p150 = pneg %p56
      %p151 = pneg %p53
      %p152 = pneg %p77
      %p153 = pneg %p74
      %p154 = pneg %p103
      %p155 = pneg %p100
      %p156 = scmp.lt.s32.totalorder %s14, 1
      %s157 = scalar_select %p156, %s14, 1
      %s158 = smul.addr %s157, 8
      %s159 = scalar_lea.vmem %s3, %s158
      %p160 = scmp.lt.s32.totalorder %s14, 1
      %s161 = scalar_select %p160, %s14, 1
      %s162 = smul.addr %s161, 2
      %s163 = smul.addr %s162, 8
      %s164 = scalar_lea.vmem %s0, %s163
      %p165 = scmp.lt.s32.totalorder %s14, 1
      %s166 = scalar_select %p165, %s14, 1
      %s167 = smul.addr %s166, 8
      %s168 = scalar_lea.vmem %s3, %s167
      %v170 = vld [vmem:[%s164] sm:$0xff]
      %v171 = vld [vmem:[%s164 + $0x8] sm:$0x3]
      %v172 = vmax.f32 %v170, 0.0
      %v173 = vmax.f32 %v171, 0.0
      %vm176 = vcmask 1046528
      %v177 = vrot.slane %v172, 1
      %v178 = vrot.slane %v173, 1
      %v179 = vsel %vm176, %v177, %v178
      %180 = vrot.lane.b32.xlu0 %v179, 64
      %v181 = vpop.permute.xlu0 %180
      %vm183 = vcmask 1045504
      %v184 = vrot.slane %v172, 2
      %v185 = vrot.slane %v173, 2
      %v186 = vsel %vm183, %v184, %v185
      %vm188 = vcmask 523264
      %v189 = vsel %vm188, %v172, %v181
      %v190 = vpack.c.bf16 %v189, %v189
      %v191 = vpack.c.bf16 %v186, %v186
      %v192 = vld [vmem:[%s1] sm:$0xf]
      %v193 = vld [vmem:[%s1 + $0x4] sm:$0xf]
      %v194 = vld [vmem:[%s1 + $0x8] sm:$0xf]
      %v195 = vld [vmem:[%s1 + $0xc] sm:$0xf]
      %v196 = vld [vmem:[%s1 + $0x10] sm:$0xf]
      %v197 = vld [vmem:[%s1 + $0x14] sm:$0xf]
      %v198 = vld [vmem:[%s1 + $0x18] sm:$0xf]
      %v199 = vld [vmem:[%s1 + $0x1c] sm:$0xf]
      %v200 = vld [vmem:[%s1 + $0x20] sm:$0xf]
      %v201 = vld [vmem:[%s1 + $0x24] sm:$0xf]
      %v202 = vld [vmem:[%s1 + $0x28] sm:$0xf]
      %v203 = vld [vmem:[%s1 + $0x2c] sm:$0xf]
      %v204 = vld [vmem:[%s1 + $0x30] sm:$0xf]
      %v205 = vld [vmem:[%s1 + $0x34] sm:$0xf]
      %v206 = vld [vmem:[%s1 + $0x38] sm:$0xf]
      %v207 = vld [vmem:[%s1 + $0x3c] sm:$0xf]
      %v208 = vld [vmem:[%s1 + $0x40] sm:$0xf]
      %v209 = vld [vmem:[%s1 + $0x44] sm:$0xf]
      %v210 = vld [vmem:[%s1 + $0x48] sm:$0xf]
      %v211 = vld [vmem:[%s1 + $0x4c] sm:$0xf]
      %v212 = vld [vmem:[%s1 + $0x50] sm:$0xf]
      %v213 = vld [vmem:[%s1 + $0x54] sm:$0xf]
      %v214 = vld [vmem:[%s1 + $0x58] sm:$0xf]
      %v215 = vld [vmem:[%s1 + $0x5c] sm:$0xf]
      %v216 = vld [vmem:[%s2] sm:$0x1]
      %v218 = vlaneseq
      %v219 = vshrl.u32 %v218, 7
      %v220 = vsub.s32 0, %v219
      %v221 = vrot.slane %v216, %v220
      %v247 = vunpack.c.l.b16 %v192
      %v248 = vunpack.c.l.b16 %v193
      %v249 = vunpack.c.l.b16 %v194
      %v250 = vunpack.c.l.b16 %v195
      %v251 = vunpack.c.l.b16 %v196
      %v252 = vunpack.c.l.b16 %v197
      %v253 = vunpack.c.l.b16 %v198
      %v254 = vunpack.c.l.b16 %v199
      %v255 = vunpack.c.l.b16 %v200
      %v256 = vunpack.c.l.b16 %v201
      %v257 = vunpack.c.l.b16 %v202
      %v258 = vunpack.c.l.b16 %v203
      %v259 = vunpack.c.l.b16 %v204
      %v260 = vunpack.c.l.b16 %v205
      %v261 = vunpack.c.l.b16 %v206
      %v262 = vunpack.c.l.b16 %v207
      %v263 = vunpack.c.l.b16 %v208
      %v264 = vunpack.c.l.b16 %v209
      %v265 = vunpack.c.l.b16 %v210
      %v266 = vunpack.c.l.b16 %v211
      %v267 = vunpack.c.l.b16 %v212
      %v268 = vunpack.c.l.b16 %v213
      %v269 = vunpack.c.l.b16 %v214
      %v270 = vunpack.c.l.b16 %v215
      %v271 = vpack.c.b16 %v248, %v247
      %v272 = vpack.c.b16 %v250, %v249
      %v273 = vpack.c.b16 %v252, %v251
      %v274 = vpack.c.b16 %v254, %v253
      %v275 = vpack.c.b16 %v256, %v255
      %v276 = vpack.c.b16 %v258, %v257
      %v277 = vpack.c.b16 %v260, %v259
      %v278 = vpack.c.b16 %v262, %v261
      %v279 = vpack.c.b16 %v264, %v263
      %v280 = vpack.c.b16 %v266, %v265
      %v281 = vpack.c.b16 %v268, %v267
      %v282 = vpack.c.b16 %v270, %v269
      %v296 = vsel %vm188, %v191, 0
      %298 = vmatprep.subr.bf16.mxu0 0
      %299 = vmatpush1.bf16.msra.mxu0 %v271
      %300 = vmatprep.subr.bf16.mxu0 0
      %301 = vmatpush1.bf16.msra.mxu0 %v272
      %302 = vmatprep.subr.bf16.mxu0 0
      %303 = vmatpush1.bf16.msra.mxu0 %v273
      %304 = vmatprep.subr.bf16.mxu0 0
      %305 = vmatpush1.bf16.msra.mxu0 %v274
      %306 = vmatprep.subr.bf16.mxu0 0
      %307 = vmatpush1.bf16.msra.mxu0 %v275
      %308 = vmatprep.subr.bf16.mxu0 0
      %309 = vmatpush1.bf16.msra.mxu0 %v276
      %310 = vmatprep.subr.bf16.mxu0 0
      %311 = vmatpush1.bf16.msra.mxu0 %v277
      %312 = vmatprep.subr.bf16.mxu0 0
      %313 = vmatpush1.bf16.msra.mxu0 %v278
      %314 = vmatprep.subr.bf16.mxu0 0
      %315 = vmatpush1.bf16.msra.mxu0 %v279
      %316 = vmatprep.subr.bf16.mxu0 0
      %317 = vmatpush1.bf16.msra.mxu0 %v280
      %318 = vmatprep.subr.bf16.mxu0 0
      %319 = vmatpush1.bf16.msra.mxu0 %v281
      %320 = vmatprep.subr.bf16.mxu0 0
      %321 = vmatpush1.bf16.msra.mxu0 %v282
      %322 = vmatprep.subr.bf16.mxu0 0
      %323 = vmatpush1.bf16.msra.mxu0 0
      %324 = vmatprep.subr.bf16.mxu0 0
      %325 = vmatpush1.bf16.msra.mxu0 0
      %326 = vmatprep.subr.bf16.mxu0 0
      %327 = vmatpush1.bf16.msra.mxu0 0
      %328 = vmatprep.subr.bf16.mxu0 0
      %329 = vmatpush1.bf16.msra.mxu0 0
      %330 = vmatprep.mubr.bf16.mxu0 %v296
      %331 = vmatmul.mubr.bf16.gmra.mrb[0].mxu0 %v190
      %v332 = vpop.f32.mrb[0].mxu0
      %v333 = vadd.f32 %v221, %v332
      %v334 = vpop.f32.mrb[0].mxu0
      %v335 = vpop.f32.mrb[0].mxu0
      %v336 = vpop.f32.mrb[0].mxu0
      %337 = vdwg.mxu0
      %v338 = vmax.f32 %v333, 0.0
      %339 = vst.msk [vmem:[%s168] sm:$0xff] %vm188, %v338
      %p340 = scmp.lt.s32.totalorder %s14, 1
      %s341 = scalar_select %p340, %s14, 1
      %s342 = smul.addr %s341, 8
      %s343 = scalar_lea.vmem %s3, %s342
      // Predicated region
      $region33: #{mmm_dit_forward.32} parent=31 // pred_check
        %p344 = pneg %p100
      $region34: #{mmm_dit_forward.32} parent=31 // pred_check_branch
        %346 = sbr.rel (%p344) target = $region36
      $region35: #{mmm_dit_forward.32} parent=31 // pred_region
        _
      $region36: #{mmm_dit_forward.32} parent=31 // pred_fallthru
        _
    $region32: #{mmm_dit_forward.32} parent=5 // pred_fallthru
      _
    %p347 = scmp.le.s32.totalorder 2, %s9
    // Predicated region
    $region37: #{mmm_dit_forward.32} parent=5 // pred_check
      %p348 = pneg %p347
    $region38: #{mmm_dit_forward.32} parent=5 // pred_check_branch
      %350 = sbr.rel (%p348) target = $region40
    $region39: #{mmm_dit_forward.32} parent=5 // pred_region
      %s351 = ssub.s32 %s9, 2
      // Predicated region
      $region41: #{mmm_dit_forward.32} parent=39 // pred_check
        %p352 = pneg %p106
      $region42: #{mmm_dit_forward.32} parent=39 // pred_check_branch
        %354 = sbr.rel (%p352) target = $region44
      $region43: #{mmm_dit_forward.32} parent=39 // pred_region
        %p355 = scmp.lt.s32.totalorder %s15, 1
        %s356 = scalar_select %p355, %s15, 1
        %s357 = smul.addr %s356, 8
        %s358 = scalar_lea.vmem %s3, %s357
      $region44: #{mmm_dit_forward.32} parent=39 // pred_fallthru
        _
    $region40: #{mmm_dit_forward.32} parent=5 // pred_fallthru
      _
  $region6: #{mmm_dit_forward.32} parent=0 // loop_footer
    %s13 = sadd.s32 1, %s9
  $region7: #{mmm_dit_forward.32} parent=0 // loop_footer_branch
    %8 = sbr.rel target = $region3
  $region8: #{mmm_dit_forward.32} parent=0 // loop_exit
    _

// kernel: mmm_dit_forward.34
$region0: #{mmm_dit_forward.34}
  #allocation0 [shape = 'u32[]', space=smem, size = 0x4, offset = 0x4, fixed_abs, tag = 'smem constant byte address 0x4 - core index']
  #allocation1 [shape = 'u32[144,128]{1,0:T(1,128)}', space=vmem, size = 0x12000, scoped, tag = 'internal scratch']
  %s0 = inlined_call_operand.vmem [shape: f32[8,256], index: 0, kind: input, shape index: {}]
  %s1 = inlined_call_operand.vmem [shape: bf16[256,64], index: 1, kind: input, shape index: {}]
  %s2 = inlined_call_operand.vmem [shape: f32[1,64], index: 2, kind: input, shape index: {}]
  %s3 = inlined_call_operand.vmem [shape: f32[8,64], index: 3, kind: output, shape index: {}]
  %s4 = sld [smem:[#allocation0]]
  $region22: #{mmm_dit_forward.34} parent=0
    _
  %s6 = ssub.s32 1, %s4
  %s7 = scalar_select 0, %s6, %s4
  // Predicated region
  $region2: #{mmm_dit_forward.34} parent=0 // pred_check
    _
  $region3: #{mmm_dit_forward.34} parent=0 // pred_check_branch
    %9 = sbr.rel (0) target = $region5
  $region4: #{mmm_dit_forward.34} parent=0 // pred_region
    _
  $region5: #{mmm_dit_forward.34} parent=0 // pred_fallthru
    _
  // Predicated region
  $region6: #{mmm_dit_forward.34} parent=0 // pred_check
    _
  $region7: #{mmm_dit_forward.34} parent=0 // pred_check_branch
    %11 = sbr.rel (0) target = $region9
  $region8: #{mmm_dit_forward.34} parent=0 // pred_region
    _
  $region9: #{mmm_dit_forward.34} parent=0 // pred_fallthru
    _
  // Predicated region
  $region10: #{mmm_dit_forward.34} parent=0 // pred_check
    _
  $region11: #{mmm_dit_forward.34} parent=0 // pred_check_branch
    %13 = sbr.rel (0) target = $region13
  $region12: #{mmm_dit_forward.34} parent=0 // pred_region
    _
  $region13: #{mmm_dit_forward.34} parent=0 // pred_fallthru
    _
  %v15 = vld [vmem:[%s0] sm:$0xff]
  %v16 = vld [vmem:[%s0 + $0x8] sm:$0xff]
  %v17 = vpack.c.bf16 %v15, %v15
  %v18 = vpack.c.bf16 %v16, %v16
  %v19 = vld [vmem:[%s1] sm:$0xf]
  %v20 = vld [vmem:[%s1 + $0x4] sm:$0xf]
  %v21 = vld [vmem:[%s1 + $0x8] sm:$0xf]
  %v22 = vld [vmem:[%s1 + $0xc] sm:$0xf]
  %v23 = vld [vmem:[%s1 + $0x10] sm:$0xf]
  %v24 = vld [vmem:[%s1 + $0x14] sm:$0xf]
  %v25 = vld [vmem:[%s1 + $0x18] sm:$0xf]
  %v26 = vld [vmem:[%s1 + $0x1c] sm:$0xf]
  %v27 = vld [vmem:[%s1 + $0x20] sm:$0xf]
  %v28 = vld [vmem:[%s1 + $0x24] sm:$0xf]
  %v29 = vld [vmem:[%s1 + $0x28] sm:$0xf]
  %v30 = vld [vmem:[%s1 + $0x2c] sm:$0xf]
  %v31 = vld [vmem:[%s1 + $0x30] sm:$0xf]
  %v32 = vld [vmem:[%s1 + $0x34] sm:$0xf]
  %v33 = vld [vmem:[%s1 + $0x38] sm:$0xf]
  %v34 = vld [vmem:[%s1 + $0x3c] sm:$0xf]
  %v35 = vld [vmem:[%s1 + $0x40] sm:$0xf]
  %v36 = vld [vmem:[%s1 + $0x44] sm:$0xf]
  %v37 = vld [vmem:[%s1 + $0x48] sm:$0xf]
  %v38 = vld [vmem:[%s1 + $0x4c] sm:$0xf]
  %v39 = vld [vmem:[%s1 + $0x50] sm:$0xf]
  %v40 = vld [vmem:[%s1 + $0x54] sm:$0xf]
  %v41 = vld [vmem:[%s1 + $0x58] sm:$0xf]
  %v42 = vld [vmem:[%s1 + $0x5c] sm:$0xf]
  %v43 = vld [vmem:[%s1 + $0x60] sm:$0xf]
  %v44 = vld [vmem:[%s1 + $0x64] sm:$0xf]
  %v45 = vld [vmem:[%s1 + $0x68] sm:$0xf]
  %v46 = vld [vmem:[%s1 + $0x6c] sm:$0xf]
  %v47 = vld [vmem:[%s1 + $0x70] sm:$0xf]
  %v48 = vld [vmem:[%s1 + $0x74] sm:$0xf]
  %v49 = vld [vmem:[%s1 + $0x78] sm:$0xf]
  %v50 = vld [vmem:[%s1 + $0x7c] sm:$0xf]
  %v51 = vld [vmem:[%s2] sm:$0x1]
  %v53 = vlaneseq
  %v54 = vshrl.u32 %v53, 7
  %v55 = vsub.s32 0, %v54
  %v56 = vrot.slane %v51, %v55
  %v90 = vunpack.c.l.b16 %v19
  %v91 = vunpack.c.l.b16 %v20
  %v92 = vunpack.c.l.b16 %v21
  %v93 = vunpack.c.l.b16 %v22
  %v94 = vunpack.c.l.b16 %v23
  %v95 = vunpack.c.l.b16 %v24
  %v96 = vunpack.c.l.b16 %v25
  %v97 = vunpack.c.l.b16 %v26
  %v98 = vunpack.c.l.b16 %v27
  %v99 = vunpack.c.l.b16 %v28
  %v100 = vunpack.c.l.b16 %v29
  %v101 = vunpack.c.l.b16 %v30
  %v102 = vunpack.c.l.b16 %v31
  %v103 = vunpack.c.l.b16 %v32
  %v104 = vunpack.c.l.b16 %v33
  %v105 = vunpack.c.l.b16 %v34
  %v106 = vunpack.c.l.b16 %v35
  %v107 = vunpack.c.l.b16 %v36
  %v108 = vunpack.c.l.b16 %v37
  %v109 = vunpack.c.l.b16 %v38
  %v110 = vunpack.c.l.b16 %v39
  %v111 = vunpack.c.l.b16 %v40
  %v112 = vunpack.c.l.b16 %v41
  %v113 = vunpack.c.l.b16 %v42
  %v114 = vunpack.c.l.b16 %v43
  %v115 = vunpack.c.l.b16 %v44
  %v116 = vunpack.c.l.b16 %v45
  %v117 = vunpack.c.l.b16 %v46
  %v118 = vunpack.c.l.b16 %v47
  %v119 = vunpack.c.l.b16 %v48
  %v120 = vunpack.c.l.b16 %v49
  %v121 = vunpack.c.l.b16 %v50
  %v122 = vpack.c.b16 %v91, %v90
  %v123 = vpack.c.b16 %v93, %v92
  %v124 = vpack.c.b16 %v95, %v94
  %v125 = vpack.c.b16 %v97, %v96
  %v126 = vpack.c.b16 %v99, %v98
  %v127 = vpack.c.b16 %v101, %v100
  %v128 = vpack.c.b16 %v103, %v102
  %v129 = vpack.c.b16 %v105, %v104
  %v130 = vpack.c.b16 %v107, %v106
  %v131 = vpack.c.b16 %v109, %v108
  %v132 = vpack.c.b16 %v111, %v110
  %v133 = vpack.c.b16 %v113, %v112
  %v134 = vpack.c.b16 %v115, %v114
  %v135 = vpack.c.b16 %v117, %v116
  %v136 = vpack.c.b16 %v119, %v118
  %v137 = vpack.c.b16 %v121, %v120
  %154 = vmatprep.subr.bf16.mxu0 0
  %155 = vmatpush1.bf16.msra.mxu0 %v122
  %156 = vmatprep.subr.bf16.mxu0 0
  %157 = vmatpush1.bf16.msra.mxu0 %v123
  %158 = vmatprep.subr.bf16.mxu0 0
  %159 = vmatpush1.bf16.msra.mxu0 %v124
  %160 = vmatprep.subr.bf16.mxu0 0
  %161 = vmatpush1.bf16.msra.mxu0 %v125
  %162 = vmatprep.subr.bf16.mxu0 0
  %163 = vmatpush1.bf16.msra.mxu0 %v126
  %164 = vmatprep.subr.bf16.mxu0 0
  %165 = vmatpush1.bf16.msra.mxu0 %v127
  %166 = vmatprep.subr.bf16.mxu0 0
  %167 = vmatpush1.bf16.msra.mxu0 %v128
  %168 = vmatprep.subr.bf16.mxu0 0
  %169 = vmatpush1.bf16.msra.mxu0 %v129
  %170 = vmatprep.subr.bf16.mxu0 0
  %171 = vmatpush1.bf16.msra.mxu0 %v130
  %172 = vmatprep.subr.bf16.mxu0 0
  %173 = vmatpush1.bf16.msra.mxu0 %v131
  %174 = vmatprep.subr.bf16.mxu0 0
  %175 = vmatpush1.bf16.msra.mxu0 %v132
  %176 = vmatprep.subr.bf16.mxu0 0
  %177 = vmatpush1.bf16.msra.mxu0 %v133
  %178 = vmatprep.subr.bf16.mxu0 0
  %179 = vmatpush1.bf16.msra.mxu0 %v134
  %180 = vmatprep.subr.bf16.mxu0 0
  %181 = vmatpush1.bf16.msra.mxu0 %v135
  %182 = vmatprep.subr.bf16.mxu0 0
  %183 = vmatpush1.bf16.msra.mxu0 %v136
  %184 = vmatprep.subr.bf16.mxu0 0
  %185 = vmatpush1.bf16.msra.mxu0 %v137
  %186 = vmatprep.mubr.bf16.mxu0 %v18
  %187 = vmatmul.mubr.bf16.gmra.mrb[0].mxu0 %v17
  %v188 = vpop.f32.mrb[0].mxu0
  %v189 = vadd.f32 %v56, %v188
  %v190 = vpop.f32.mrb[0].mxu0
  %v191 = vpop.f32.mrb[0].mxu0
  %v192 = vpop.f32.mrb[0].mxu0
  %193 = vdwg.mxu0
  %vm194 = vcmask 523264
  %195 = vst.msk [vmem:[%s3] sm:$0xff] %vm194, %v189
  // Predicated region
  $region14: #{mmm_dit_forward.34} parent=0 // pred_check
    _
  $region15: #{mmm_dit_forward.34} parent=0 // pred_check_branch
    %197 = sbr.rel (0) target = $region17
  $region16: #{mmm_dit_forward.34} parent=0 // pred_region
    _
  $region17: #{mmm_dit_forward.34} parent=0 // pred_fallthru
    _
  // Predicated region
  $region18: #{mmm_dit_forward.34} parent=0 // pred_check
    _
  $region19: #{mmm_dit_forward.34} parent=0 // pred_check_branch
    %199 = sbr.rel (0) target = $region21
  $region20: #{mmm_dit_forward.34} parent=0 // pred_region
    _
  $region21: #{mmm_dit_forward.34} parent=0 // pred_fallthru
    _

// kernel: mmm_dit_forward.36
$region0: #{mmm_dit_forward.36}
  #allocation0 [shape = 'u32[]', space=smem, size = 0x4, offset = 0x4, fixed_abs, tag = 'smem constant byte address 0x4 - core index']
  #allocation1 [shape = 'u32[144,128]{1,0:T(1,128)}', space=vmem, size = 0x12000, scoped, tag = 'internal scratch']
  %s0 = inlined_call_operand.vmem [shape: f32[2,4,64], index: 0, kind: input, shape index: {}]
  %s1 = inlined_call_operand.vmem [shape: bf16[64,64], index: 1, kind: input, shape index: {}]
  %s2 = inlined_call_operand.vmem [shape: f32[1,64], index: 2, kind: input, shape index: {}]
  %s3 = inlined_call_operand.vmem [shape: f32[2,4,64], index: 3, kind: input, shape index: {}]
  %s4 = inlined_call_operand.vmem [shape: f32[2,4,64], index: 4, kind: output, shape index: {}]
  %s5 = sld [smem:[#allocation0]]
  $region49: #{mmm_dit_forward.36} parent=0
    _
  %s7 = ssub.s32 1, %s5
  %s8 = scalar_select 0, %s7, %s5
  loop: start=0, step=1, limit=4
  $region2: #{mmm_dit_forward.36} parent=0 // loop_pre_header
    _
  $region3: #{mmm_dit_forward.36} parent=0 // loop_header
    %s10 = sphi 0, %s14
    %p11 = scmp.ge.s32.totalorder %s10, 4
    %s20 = sphi 0, %s22
    %s23 = sphi 0, %s20
    %s24 = sphi 0, %s23
    %s40 = sphi 0, %s24
    %s44 = sphi 0, %s44
    %s46 = sphi 0, %s44
    %s47 = sphi 0, %s46
    %s61 = sphi 0, %s47
    %s65 = sphi 0, %s65
    %s67 = sphi 0, %s65
    %s68 = sphi 0, %s67
    %s82 = sphi 0, %s68
    %s88 = sphi 0, %s90
    %s91 = sphi 0, %s88
    %s92 = sphi 0, %s91
    %s108 = sphi 0, %s92
    %s114 = sphi 0, %s116
    %s117 = sphi 0, %s114
    %s118 = sphi 0, %s117
    %s134 = sphi 0, %s118
  $region4: #{mmm_dit_forward.36} parent=0 // loop_header_branch
    %13 = sbr.rel (%p11) target = $region8
  $region5: #{mmm_dit_forward.36} parent=0 // loop_body
    %s15 = ssub.s32 %s10, 1
    %s16 = ssub.s32 %s10, 2
    %s17 = sadd.s32 %s10, 1
    %s18 = ssub.s32 %s10, %s17
    %p19 = scmp.eq.s32.totalorder %s18, 0
    %s21 = sadd.s32 %s20, 1
    %s22 = scalar_select %p19, %s20, %s21
    %p25 = pneg %p19
    %p26 = scmp.eq.s32.totalorder %s10, 1
    %p27 = por %p25, %p26
    %p28 = scmp.ne.s32.totalorder %s20, %s23
    %p29 = scmp.eq.s32.totalorder %s10, 0
    %p30 = por %p28, %p29
    %p31 = scmp.ne.s32.totalorder %s20, %s23
    %p32 = scmp.eq.s32.totalorder %s15, 1
    %p33 = por %p31, %p32
    %p34 = scmp.ne.s32.totalorder %s23, %s24
    %p35 = scmp.eq.s32.totalorder %s15, 0
    %p36 = por %p34, %p35
    %p37 = scmp.ne.s32.totalorder %s23, %s24
    %p38 = scmp.eq.s32.totalorder %s16, 1
    %p39 = por %p37, %p38
    %p41 = scmp.ne.s32.totalorder %s24, %s40
    %p42 = scmp.eq.s32.totalorder %s16, 0
    %p43 = por %p41, %p42
    %s45 = sadd.s32 %s44, 1
    %p48 = scmp.eq.s32.totalorder %s10, 1
    %p49 = scmp.ne.s32.totalorder %s44, %s46
    %p50 = scmp.eq.s32.totalorder %s10, 0
    %p51 = por %p49, %p50
    %p52 = scmp.ne.s32.totalorder %s44, %s46
    %p53 = scmp.eq.s32.totalorder %s15, 1
    %p54 = por %p52, %p53
    %p55 = scmp.ne.s32.totalorder %s46, %s47
    %p56 = scmp.eq.s32.totalorder %s15, 0
    %p57 = por %p55, %p56
    %p58 = scmp.ne.s32.totalorder %s46, %s47
    %p59 = scmp.eq.s32.totalorder %s16, 1
    %p60 = por %p58, %p59
    %p62 = scmp.ne.s32.totalorder %s47, %s61
    %p63 = scmp.eq.s32.totalorder %s16, 0
    %p64 = por %p62, %p63
    %s66 = sadd.s32 %s65, 1
    %p69 = scmp.eq.s32.totalorder %s10, 1
    %p70 = scmp.ne.s32.totalorder %s65, %s67
    %p71 = scmp.eq.s32.totalorder %s10, 0
    %p72 = por %p70, %p71
    %p73 = scmp.ne.s32.totalorder %s65, %s67
    %p74 = scmp.eq.s32.totalorder %s15, 1
    %p75 = por %p73, %p74
    %p76 = scmp.ne.s32.totalorder %s67, %s68
    %p77 = scmp.eq.s32.totalorder %s15, 0
    %p78 = por %p76, %p77
    %p79 = scmp.ne.s32.totalorder %s67, %s68
    %p80 = scmp.eq.s32.totalorder %s16, 1
    %p81 = por %p79, %p80
    %p83 = scmp.ne.s32.totalorder %s68, %s82
    %p84 = scmp.eq.s32.totalorder %s16, 0
    %p85 = por %p83, %p84
    %s86 = ssub.s32 %s10, %s17
    %p87 = scmp.eq.s32.totalorder %s86, 0
    %s89 = sadd.s32 %s88, 1
    %s90 = scalar_select %p87, %s88, %s89
    %p93 = pneg %p87
    %p94 = scmp.eq.s32.totalorder %s10, 1
    %p95 = por %p93, %p94
    %p96 = scmp.ne.s32.totalorder %s88, %s91
    %p97 = scmp.eq.s32.totalorder %s10, 0
    %p98 = por %p96, %p97
    %p99 = scmp.ne.s32.totalorder %s88, %s91
    %p100 = scmp.eq.s32.totalorder %s15, 1
    %p101 = por %p99, %p100
    %p102 = scmp.ne.s32.totalorder %s91, %s92
    %p103 = scmp.eq.s32.totalorder %s15, 0
    %p104 = por %p102, %p103
    %p105 = scmp.ne.s32.totalorder %s91, %s92
    %p106 = scmp.eq.s32.totalorder %s16, 1
    %p107 = por %p105, %p106
    %p109 = scmp.ne.s32.totalorder %s92, %s108
    %p110 = scmp.eq.s32.totalorder %s16, 0
    %p111 = por %p109, %p110
    %s112 = ssub.s32 %s10, %s17
    %p113 = scmp.eq.s32.totalorder %s112, 0
    %s115 = sadd.s32 %s114, 1
    %s116 = scalar_select %p113, %s114, %s115
    %p119 = pneg %p113
    %p120 = scmp.eq.s32.totalorder %s10, 1
    %p121 = por %p119, %p120
    %p122 = scmp.ne.s32.totalorder %s114, %s117
    %p123 = scmp.eq.s32.totalorder %s10, 0
    %p124 = por %p122, %p123
    %p125 = scmp.ne.s32.totalorder %s114, %s117
    %p126 = scmp.eq.s32.totalorder %s15, 1
    %p127 = por %p125, %p126
    %p128 = scmp.ne.s32.totalorder %s117, %s118
    %p129 = scmp.eq.s32.totalorder %s15, 0
    %p130 = por %p128, %p129
    %p131 = scmp.ne.s32.totalorder %s117, %s118
    %p132 = scmp.eq.s32.totalorder %s16, 1
    %p133 = por %p131, %p132
    %p135 = scmp.ne.s32.totalorder %s118, %s134
    %p136 = scmp.eq.s32.totalorder %s16, 0
    %p137 = por %p135, %p136
    %p138 = scmp.le.s32.totalorder 1, %s10
    %p139 = scmp.lt.s32.totalorder %s10, 3
    %p140 = pnand %p138, %p139
    %p141 = pneg %p140
    // Predicated region
    $region9: #{mmm_dit_forward.36} parent=5 // pred_check
      _
    $region10: #{mmm_dit_forward.36} parent=5 // pred_check_branch
      %143 = sbr.rel (%p140) target = $region12
    $region11: #{mmm_dit_forward.36} parent=5 // pred_region
      %s144 = ssub.s32 %s10, 1
      // Predicated region
      $region13: #{mmm_dit_forward.36} parent=11 // pred_check
        %p145 = pneg %p57
      $region14: #{mmm_dit_forward.36} parent=11 // pred_check_branch
        %147 = sbr.rel (%p145) target = $region16
      $region15: #{mmm_dit_forward.36} parent=11 // pred_region
        _
      $region16: #{mmm_dit_forward.36} parent=11 // pred_fallthru
        _
      // Predicated region
      $region17: #{mmm_dit_forward.36} parent=11 // pred_check
        %p148 = pneg %p78
      $region18: #{mmm_dit_forward.36} parent=11 // pred_check_branch
        %150 = sbr.rel (%p148) target = $region20
      $region19: #{mmm_dit_forward.36} parent=11 // pred_region
        _
      $region20: #{mmm_dit_forward.36} parent=11 // pred_fallthru
        _
    $region12: #{mmm_dit_forward.36} parent=5 // pred_fallthru
      _
    %p151 = scmp.lt.s32.totalorder %s10, 2
    // Predicated region
    $region21: #{mmm_dit_forward.36} parent=5 // pred_check
      %p152 = pneg %p151
    $region22: #{mmm_dit_forward.36} parent=5 // pred_check_branch
      %154 = sbr.rel (%p152) target = $region24
    $region23: #{mmm_dit_forward.36} parent=5 // pred_region
      // Predicated region
      $region25: #{mmm_dit_forward.36} parent=23 // pred_check
        %p155 = pneg %p30
      $region26: #{mmm_dit_forward.36} parent=23 // pred_check_branch
        %157 = sbr.rel (%p155) target = $region28
      $region27: #{mmm_dit_forward.36} parent=23 // pred_region
        %p158 = scmp.lt.s32.totalorder %s10, 1
        %s159 = scalar_select %p158, %s10, 1
        %s160 = smul.addr %s159, 4
        %s161 = scalar_lea.vmem %s0, %s160
      $region28: #{mmm_dit_forward.36} parent=23 // pred_fallthru
        _
      // Predicated region
      $region29: #{mmm_dit_forward.36} parent=23 // pred_check
        %p162 = pneg %p98
      $region30: #{mmm_dit_forward.36} parent=23 // pred_check_branch
        %164 = sbr.rel (%p162) target = $region32
      $region31: #{mmm_dit_forward.36} parent=23 // pred_region
        %p165 = scmp.lt.s32.totalorder %s10, 1
        %s166 = scalar_select %p165, %s10, 1
        %s167 = smul.addr %s166, 4
        %s168 = scalar_lea.vmem %s3, %s167
      $region32: #{mmm_dit_forward.36} parent=23 // pred_fallthru
        _
    $region24: #{mmm_dit_forward.36} parent=5 // pred_fallthru
      _
    %p169 = scmp.le.s32.totalorder 1, %s10
    %p170 = scmp.lt.s32.totalorder %s10, 3
    %p171 = pnand %p169, %p170
    %p172 = pneg %p171
    // Predicated region
    $region33: #{mmm_dit_forward.36} parent=5 // pred_check
      _
    $region34: #{mmm_dit_forward.36} parent=5 // pred_check_branch
      %174 = sbr.rel (%p171) target = $region36
    $region35: #{mmm_dit_forward.36} parent=5 // pred_region
      %s175 = ssub.s32 %s10, 1
      %p176 = scmp.lt.s32.totalorder %s15, 1
      %s177 = scalar_select %p176, %s15, 1
      %s178 = smul.addr %s177, 4
      %s179 = scalar_lea.vmem %s0, %s178
      %p180 = pneg %p36
      %p181 = pneg %p33
      %p182 = pneg %p57
      %p183 = pneg %p54
      %p184 = pneg %p78
      %p185 = pneg %p75
      %p186 = scmp.lt.s32.totalorder %s15, 1
      %s187 = scalar_select %p186, %s15, 1
      %s188 = smul.addr %s187, 4
      %s189 = scalar_lea.vmem %s3, %s188
      %p190 = pneg %p104
      %p191 = pneg %p101
      %p192 = pneg %p130
      %p193 = pneg %p127
      %p194 = scmp.lt.s32.totalorder %s15, 1
      %s195 = scalar_select %p194, %s15, 1
      %s196 = smul.addr %s195, 4
      %s197 = scalar_lea.vmem %s4, %s196
      %p198 = scmp.lt.s32.totalorder %s15, 1
      %s199 = scalar_select %p198, %s15, 1
      %s200 = smul.addr %s199, 4
      %s201 = scalar_lea.vmem %s0, %s200
      %p202 = scmp.lt.s32.totalorder %s15, 1
      %s203 = scalar_select %p202, %s15, 1
      %s204 = smul.addr %s203, 4
      %s205 = scalar_lea.vmem %s3, %s204
      %p206 = scmp.lt.s32.totalorder %s15, 1
      %s207 = scalar_select %p206, %s15, 1
      %s208 = smul.addr %s207, 4
      %s209 = scalar_lea.vmem %s4, %s208
      %v211 = vld [vmem:[%s201] sm:$0xf]
      %v212 = vpack.c.bf16 %v211, %v211
      %v213 = vld [vmem:[%s1] sm:$0xf]
      %v214 = vld [vmem:[%s1 + $0x4] sm:$0xf]
      %v215 = vld [vmem:[%s1 + $0x8] sm:$0xf]
      %v216 = vld [vmem:[%s1 + $0xc] sm:$0xf]
      %v217 = vld [vmem:[%s1 + $0x10] sm:$0xf]
      %v218 = vld [vmem:[%s1 + $0x14] sm:$0xf]
      %v219 = vld [vmem:[%s1 + $0x18] sm:$0xf]
      %v220 = vld [vmem:[%s1 + $0x1c] sm:$0xf]
      %v221 = vld [vmem:[%s2] sm:$0x1]
      %v223 = vlaneseq
      %v224 = vshrl.u32 %v223, 7
      %v225 = vsub.s32 0, %v224
      %v226 = vrot.slane %v221, %v225
      %v236 = vunpack.c.l.b16 %v213
      %v237 = vunpack.c.l.b16 %v214
      %v238 = vunpack.c.l.b16 %v215
      %v239 = vunpack.c.l.b16 %v216
      %v240 = vunpack.c.l.b16 %v217
      %v241 = vunpack.c.l.b16 %v218
      %v242 = vunpack.c.l.b16 %v219
      %v243 = vunpack.c.l.b16 %v220
      %v244 = vpack.c.b16 %v237, %v236
      %v245 = vpack.c.b16 %v239, %v238
      %v246 = vpack.c.b16 %v241, %v240
      %v247 = vpack.c.b16 %v243, %v242
      %vm252 = vcmask 523264
      %v254 = vsel %vm252, %v212, 0
      %256 = vmatprep.subr.bf16.mxu0 0
      %257 = vmatpush1.bf16.msra.mxu0 %v244
      %258 = vmatprep.subr.bf16.mxu0 0
      %259 = vmatpush1.bf16.msra.mxu0 %v245
      %260 = vmatprep.subr.bf16.mxu0 0
      %261 = vmatpush1.bf16.msra.mxu0 %v246
      %262 = vmatprep.subr.bf16.mxu0 0
      %263 = vmatpush1.bf16.msra.mxu0 %v247
      %264 = vmatprep.subr.bf16.mxu0 0
      %265 = vmatpush1.bf16.msra.mxu0 0
      %266 = vmatprep.subr.bf16.mxu0 0
      %267 = vmatpush1.bf16.msra.mxu0 0
      %268 = vmatprep.subr.bf16.mxu0 0
      %269 = vmatpush1.bf16.msra.mxu0 0
      %270 = vmatprep.subr.bf16.mxu0 0
      %271 = vmatpush1.bf16.msra.mxu0 0
      %272 = vmatprep.subr.bf16.mxu0 0
      %273 = vmatpush1.bf16.msra.mxu0 0
      %274 = vmatprep.subr.bf16.mxu0 0
      %275 = vmatpush1.bf16.msra.mxu0 0
      %276 = vmatprep.subr.bf16.mxu0 0
      %277 = vmatpush1.bf16.msra.mxu0 0
      %278 = vmatprep.subr.bf16.mxu0 0
      %279 = vmatpush1.bf16.msra.mxu0 0
      %280 = vmatprep.subr.bf16.mxu0 0
      %281 = vmatpush1.bf16.msra.mxu0 0
      %282 = vmatprep.subr.bf16.mxu0 0
      %283 = vmatpush1.bf16.msra.mxu0 0
      %284 = vmatprep.subr.bf16.mxu0 0
      %285 = vmatpush1.bf16.msra.mxu0 0
      %286 = vmatprep.subr.bf16.mxu0 0
      %287 = vmatpush1.bf16.msra.mxu0 0
      %288 = vmatprep.mubr.bf16.mxu0 0
      %289 = vmatmul.mubr.bf16.gmra.mrb[0].mxu0 %v254
      %v290 = vpop.f32.mrb[0].mxu0
      %v291 = vadd.f32 %v226, %v290
      %v292 = vpop.f32.mrb[0].mxu0
      %v293 = vpop.f32.mrb[0].mxu0
      %v294 = vpop.f32.mrb[0].mxu0
      %295 = vdwg.mxu0
      %v296 = vld [vmem:[%s205] sm:$0xf]
      %v297 = vadd.f32 %v291, %v296
      %vm298 = vcmask 519168
      %299 = vst.msk [vmem:[%s209] sm:$0xf] %vm298, %v297
      %p300 = scmp.lt.s32.totalorder %s15, 1
      %s301 = scalar_select %p300, %s15, 1
      %s302 = smul.addr %s301, 4
      %s303 = scalar_lea.vmem %s4, %s302
      // Predicated region
      $region37: #{mmm_dit_forward.36} parent=35 // pred_check
        %p304 = pneg %p127
      $region38: #{mmm_dit_forward.36} parent=35 // pred_check_branch
        %306 = sbr.rel (%p304) target = $region40
      $region39: #{mmm_dit_forward.36} parent=35 // pred_region
        _
      $region40: #{mmm_dit_forward.36} parent=35 // pred_fallthru
        _
    $region36: #{mmm_dit_forward.36} parent=5 // pred_fallthru
      _
    %p307 = scmp.le.s32.totalorder 2, %s10
    // Predicated region
    $region41: #{mmm_dit_forward.36} parent=5 // pred_check
      %p308 = pneg %p307
    $region42: #{mmm_dit_forward.36} parent=5 // pred_check_branch
      %310 = sbr.rel (%p308) target = $region44
    $region43: #{mmm_dit_forward.36} parent=5 // pred_region
      %s311 = ssub.s32 %s10, 2
      // Predicated region
      $region45: #{mmm_dit_forward.36} parent=43 // pred_check
        %p312 = pneg %p133
      $region46: #{mmm_dit_forward.36} parent=43 // pred_check_branch
        %314 = sbr.rel (%p312) target = $region48
      $region47: #{mmm_dit_forward.36} parent=43 // pred_region
        %p315 = scmp.lt.s32.totalorder %s16, 1
        %s316 = scalar_select %p315, %s16, 1
        %s317 = smul.addr %s316, 4
        %s318 = scalar_lea.vmem %s4, %s317
      $region48: #{mmm_dit_forward.36} parent=43 // pred_fallthru
        _
    $region44: #{mmm_dit_forward.36} parent=5 // pred_fallthru
      _
  $region6: #{mmm_dit_forward.36} parent=0 // loop_footer
    %s14 = sadd.s32 1, %s10
  $region7: #{mmm_dit_forward.36} parent=0 // loop_footer_branch
    %9 = sbr.rel target = $region3
  $region8: #{mmm_dit_forward.36} parent=0 // loop_exit
    _

// kernel: mmm_dit_forward.35
$region0: #{mmm_dit_forward.35}
  #allocation0 [shape = 'u32[]', space=smem, size = 0x4, offset = 0x4, fixed_abs, tag = 'smem constant byte address 0x4 - core index']
  #allocation1 [shape = 'u32[144,128]{1,0:T(1,128)}', space=vmem, size = 0x12000, scoped, tag = 'internal scratch']
  %s0 = inlined_call_operand.vmem [shape: f32[2,10,64], index: 0, kind: input, shape index: {}]
  %s1 = inlined_call_operand.vmem [shape: bf16[192,64], index: 1, kind: input, shape index: {}]
  %s2 = inlined_call_operand.vmem [shape: f32[1,64], index: 2, kind: input, shape index: {}]
  %s3 = inlined_call_operand.vmem [shape: f32[2,4,64], index: 3, kind: output, shape index: {}]
  %s4 = sld [smem:[#allocation0]]
  $region45: #{mmm_dit_forward.35} parent=0
    _
  %s6 = ssub.s32 1, %s4
  %s7 = scalar_select 0, %s6, %s4
  loop: start=0, step=1, limit=4
  $region2: #{mmm_dit_forward.35} parent=0 // loop_pre_header
    _
  $region3: #{mmm_dit_forward.35} parent=0 // loop_header
    %s9 = sphi 0, %s13
    %p10 = scmp.ge.s32.totalorder %s9, 4
    %s19 = sphi 0, %s21
    %s22 = sphi 0, %s19
    %s23 = sphi 0, %s22
    %s39 = sphi 0, %s23
    %s43 = sphi 0, %s43
    %s45 = sphi 0, %s43
    %s46 = sphi 0, %s45
    %s60 = sphi 0, %s46
    %s64 = sphi 0, %s64
    %s66 = sphi 0, %s64
    %s67 = sphi 0, %s66
    %s81 = sphi 0, %s67
    %s87 = sphi 0, %s89
    %s90 = sphi 0, %s87
    %s91 = sphi 0, %s90
    %s107 = sphi 0, %s91
  $region4: #{mmm_dit_forward.35} parent=0 // loop_header_branch
    %12 = sbr.rel (%p10) target = $region8
  $region5: #{mmm_dit_forward.35} parent=0 // loop_body
    %s14 = ssub.s32 %s9, 1
    %s15 = ssub.s32 %s9, 2
    %s16 = sadd.s32 %s9, 1
    %s17 = ssub.s32 %s9, %s16
    %p18 = scmp.eq.s32.totalorder %s17, 0
    %s20 = sadd.s32 %s19, 1
    %s21 = scalar_select %p18, %s19, %s20
    %p24 = pneg %p18
    %p25 = scmp.eq.s32.totalorder %s9, 1
    %p26 = por %p24, %p25
    %p27 = scmp.ne.s32.totalorder %s19, %s22
    %p28 = scmp.eq.s32.totalorder %s9, 0
    %p29 = por %p27, %p28
    %p30 = scmp.ne.s32.totalorder %s19, %s22
    %p31 = scmp.eq.s32.totalorder %s14, 1
    %p32 = por %p30, %p31
    %p33 = scmp.ne.s32.totalorder %s22, %s23
    %p34 = scmp.eq.s32.totalorder %s14, 0
    %p35 = por %p33, %p34
    %p36 = scmp.ne.s32.totalorder %s22, %s23
    %p37 = scmp.eq.s32.totalorder %s15, 1
    %p38 = por %p36, %p37
    %p40 = scmp.ne.s32.totalorder %s23, %s39
    %p41 = scmp.eq.s32.totalorder %s15, 0
    %p42 = por %p40, %p41
    %s44 = sadd.s32 %s43, 1
    %p47 = scmp.eq.s32.totalorder %s9, 1
    %p48 = scmp.ne.s32.totalorder %s43, %s45
    %p49 = scmp.eq.s32.totalorder %s9, 0
    %p50 = por %p48, %p49
    %p51 = scmp.ne.s32.totalorder %s43, %s45
    %p52 = scmp.eq.s32.totalorder %s14, 1
    %p53 = por %p51, %p52
    %p54 = scmp.ne.s32.totalorder %s45, %s46
    %p55 = scmp.eq.s32.totalorder %s14, 0
    %p56 = por %p54, %p55
    %p57 = scmp.ne.s32.totalorder %s45, %s46
    %p58 = scmp.eq.s32.totalorder %s15, 1
    %p59 = por %p57, %p58
    %p61 = scmp.ne.s32.totalorder %s46, %s60
    %p62 = scmp.eq.s32.totalorder %s15, 0
    %p63 = por %p61, %p62
    %s65 = sadd.s32 %s64, 1
    %p68 = scmp.eq.s32.totalorder %s9, 1
    %p69 = scmp.ne.s32.totalorder %s64, %s66
    %p70 = scmp.eq.s32.totalorder %s9, 0
    %p71 = por %p69, %p70
    %p72 = scmp.ne.s32.totalorder %s64, %s66
    %p73 = scmp.eq.s32.totalorder %s14, 1
    %p74 = por %p72, %p73
    %p75 = scmp.ne.s32.totalorder %s66, %s67
    %p76 = scmp.eq.s32.totalorder %s14, 0
    %p77 = por %p75, %p76
    %p78 = scmp.ne.s32.totalorder %s66, %s67
    %p79 = scmp.eq.s32.totalorder %s15, 1
    %p80 = por %p78, %p79
    %p82 = scmp.ne.s32.totalorder %s67, %s81
    %p83 = scmp.eq.s32.totalorder %s15, 0
    %p84 = por %p82, %p83
    %s85 = ssub.s32 %s9, %s16
    %p86 = scmp.eq.s32.totalorder %s85, 0
    %s88 = sadd.s32 %s87, 1
    %s89 = scalar_select %p86, %s87, %s88
    %p92 = pneg %p86
    %p93 = scmp.eq.s32.totalorder %s9, 1
    %p94 = por %p92, %p93
    %p95 = scmp.ne.s32.totalorder %s87, %s90
    %p96 = scmp.eq.s32.totalorder %s9, 0
    %p97 = por %p95, %p96
    %p98 = scmp.ne.s32.totalorder %s87, %s90
    %p99 = scmp.eq.s32.totalorder %s14, 1
    %p100 = por %p98, %p99
    %p101 = scmp.ne.s32.totalorder %s90, %s91
    %p102 = scmp.eq.s32.totalorder %s14, 0
    %p103 = por %p101, %p102
    %p104 = scmp.ne.s32.totalorder %s90, %s91
    %p105 = scmp.eq.s32.totalorder %s15, 1
    %p106 = por %p104, %p105
    %p108 = scmp.ne.s32.totalorder %s91, %s107
    %p109 = scmp.eq.s32.totalorder %s15, 0
    %p110 = por %p108, %p109
    %p111 = scmp.le.s32.totalorder 1, %s9
    %p112 = scmp.lt.s32.totalorder %s9, 3
    %p113 = pnand %p111, %p112
    %p114 = pneg %p113
    // Predicated region
    $region9: #{mmm_dit_forward.35} parent=5 // pred_check
      _
    $region10: #{mmm_dit_forward.35} parent=5 // pred_check_branch
      %116 = sbr.rel (%p113) target = $region12
    $region11: #{mmm_dit_forward.35} parent=5 // pred_region
      %s117 = ssub.s32 %s9, 1
      // Predicated region
      $region13: #{mmm_dit_forward.35} parent=11 // pred_check
        %p118 = pneg %p56
      $region14: #{mmm_dit_forward.35} parent=11 // pred_check_branch
        %120 = sbr.rel (%p118) target = $region16
      $region15: #{mmm_dit_forward.35} parent=11 // pred_region
        _
      $region16: #{mmm_dit_forward.35} parent=11 // pred_fallthru
        _
      // Predicated region
      $region17: #{mmm_dit_forward.35} parent=11 // pred_check
        %p121 = pneg %p77
      $region18: #{mmm_dit_forward.35} parent=11 // pred_check_branch
        %123 = sbr.rel (%p121) target = $region20
      $region19: #{mmm_dit_forward.35} parent=11 // pred_region
        _
      $region20: #{mmm_dit_forward.35} parent=11 // pred_fallthru
        _
    $region12: #{mmm_dit_forward.35} parent=5 // pred_fallthru
      _
    %p124 = scmp.lt.s32.totalorder %s9, 2
    // Predicated region
    $region21: #{mmm_dit_forward.35} parent=5 // pred_check
      %p125 = pneg %p124
    $region22: #{mmm_dit_forward.35} parent=5 // pred_check_branch
      %127 = sbr.rel (%p125) target = $region24
    $region23: #{mmm_dit_forward.35} parent=5 // pred_region
      // Predicated region
      $region25: #{mmm_dit_forward.35} parent=23 // pred_check
        %p128 = pneg %p29
      $region26: #{mmm_dit_forward.35} parent=23 // pred_check_branch
        %130 = sbr.rel (%p128) target = $region28
      $region27: #{mmm_dit_forward.35} parent=23 // pred_region
        %p131 = scmp.lt.s32.totalorder %s9, 1
        %s132 = scalar_select %p131, %s9, 1
        %s133 = smul.addr %s132, 2
        %s134 = smul.addr %s133, 8
        %s135 = scalar_lea.vmem %s0, %s134
      $region28: #{mmm_dit_forward.35} parent=23 // pred_fallthru
        _
    $region24: #{mmm_dit_forward.35} parent=5 // pred_fallthru
      _
    %p136 = scmp.le.s32.totalorder 1, %s9
    %p137 = scmp.lt.s32.totalorder %s9, 3
    %p138 = pnand %p136, %p137
    %p139 = pneg %p138
    // Predicated region
    $region29: #{mmm_dit_forward.35} parent=5 // pred_check
      _
    $region30: #{mmm_dit_forward.35} parent=5 // pred_check_branch
      %141 = sbr.rel (%p138) target = $region32
    $region31: #{mmm_dit_forward.35} parent=5 // pred_region
      %s142 = ssub.s32 %s9, 1
      %p143 = scmp.lt.s32.totalorder %s14, 1
      %s144 = scalar_select %p143, %s14, 1
      %s145 = smul.addr %s144, 2
      %s146 = smul.addr %s145, 8
      %s147 = scalar_lea.vmem %s0, %s146
      %p148 = pneg %p35
      %p149 = pneg %p32
      %p150 = pneg %p56
      %p151 = pneg %p53
      %p152 = pneg %p77
      %p153 = pneg %p74
      %p154 = pneg %p103
      %p155 = pneg %p100
      %p156 = scmp.lt.s32.totalorder %s14, 1
      %s157 = scalar_select %p156, %s14, 1
      %s158 = smul.addr %s157, 4
      %s159 = scalar_lea.vmem %s3, %s158
      %p160 = scmp.lt.s32.totalorder %s14, 1
      %s161 = scalar_select %p160, %s14, 1
      %s162 = smul.addr %s161, 2
      %s163 = smul.addr %s162, 8
      %s164 = scalar_lea.vmem %s0, %s163
      %p165 = scmp.lt.s32.totalorder %s14, 1
      %s166 = scalar_select %p165, %s14, 1
      %s167 = smul.addr %s166, 4
      %s168 = scalar_lea.vmem %s3, %s167
      %v170 = vld [vmem:[%s164] sm:$0xff]
      %v171 = vld [vmem:[%s164 + $0x8] sm:$0x3]
      %v172 = vmax.f32 %v170, 0.0
      %v173 = vmax.f32 %v171, 0.0
      %v175 = vrot.slane %v172, 3
      %176 = vrot.lane.b32.xlu0 %v175, 64
      %v177 = vpop.permute.xlu0 %176
      %vm180 = vcmask 1041408
      %v181 = vrot.slane %v172, 6
      %v182 = vrot.slane %v173, 6
      %v183 = vsel %vm180, %v181, %v182
      %vm185 = vcmask 523264
      %v186 = vsel %vm185, %v172, %v177
      %v187 = vpack.c.bf16 %v186, %v186
      %v188 = vpack.c.bf16 %v183, %v183
      %v189 = vld [vmem:[%s1] sm:$0xf]
      %v190 = vld [vmem:[%s1 + $0x4] sm:$0xf]
      %v191 = vld [vmem:[%s1 + $0x8] sm:$0xf]
      %v192 = vld [vmem:[%s1 + $0xc] sm:$0xf]
      %v193 = vld [vmem:[%s1 + $0x10] sm:$0xf]
      %v194 = vld [vmem:[%s1 + $0x14] sm:$0xf]
      %v195 = vld [vmem:[%s1 + $0x18] sm:$0xf]
      %v196 = vld [vmem:[%s1 + $0x1c] sm:$0xf]
      %v197 = vld [vmem:[%s1 + $0x20] sm:$0xf]
      %v198 = vld [vmem:[%s1 + $0x24] sm:$0xf]
      %v199 = vld [vmem:[%s1 + $0x28] sm:$0xf]
      %v200 = vld [vmem:[%s1 + $0x2c] sm:$0xf]
      %v201 = vld [vmem:[%s1 + $0x30] sm:$0xf]
      %v202 = vld [vmem:[%s1 + $0x34] sm:$0xf]
      %v203 = vld [vmem:[%s1 + $0x38] sm:$0xf]
      %v204 = vld [vmem:[%s1 + $0x3c] sm:$0xf]
      %v205 = vld [vmem:[%s1 + $0x40] sm:$0xf]
      %v206 = vld [vmem:[%s1 + $0x44] sm:$0xf]
      %v207 = vld [vmem:[%s1 + $0x48] sm:$0xf]
      %v208 = vld [vmem:[%s1 + $0x4c] sm:$0xf]
      %v209 = vld [vmem:[%s1 + $0x50] sm:$0xf]
      %v210 = vld [vmem:[%s1 + $0x54] sm:$0xf]
      %v211 = vld [vmem:[%s1 + $0x58] sm:$0xf]
      %v212 = vld [vmem:[%s1 + $0x5c] sm:$0xf]
      %v213 = vld [vmem:[%s2] sm:$0x1]
      %v215 = vlaneseq
      %v216 = vshrl.u32 %v215, 7
      %v217 = vsub.s32 0, %v216
      %v218 = vrot.slane %v213, %v217
      %v244 = vunpack.c.l.b16 %v189
      %v245 = vunpack.c.l.b16 %v190
      %v246 = vunpack.c.l.b16 %v191
      %v247 = vunpack.c.l.b16 %v192
      %v248 = vunpack.c.l.b16 %v193
      %v249 = vunpack.c.l.b16 %v194
      %v250 = vunpack.c.l.b16 %v195
      %v251 = vunpack.c.l.b16 %v196
      %v252 = vunpack.c.l.b16 %v197
      %v253 = vunpack.c.l.b16 %v198
      %v254 = vunpack.c.l.b16 %v199
      %v255 = vunpack.c.l.b16 %v200
      %v256 = vunpack.c.l.b16 %v201
      %v257 = vunpack.c.l.b16 %v202
      %v258 = vunpack.c.l.b16 %v203
      %v259 = vunpack.c.l.b16 %v204
      %v260 = vunpack.c.l.b16 %v205
      %v261 = vunpack.c.l.b16 %v206
      %v262 = vunpack.c.l.b16 %v207
      %v263 = vunpack.c.l.b16 %v208
      %v264 = vunpack.c.l.b16 %v209
      %v265 = vunpack.c.l.b16 %v210
      %v266 = vunpack.c.l.b16 %v211
      %v267 = vunpack.c.l.b16 %v212
      %v268 = vpack.c.b16 %v245, %v244
      %v269 = vpack.c.b16 %v247, %v246
      %v270 = vpack.c.b16 %v249, %v248
      %v271 = vpack.c.b16 %v251, %v250
      %v272 = vpack.c.b16 %v253, %v252
      %v273 = vpack.c.b16 %v255, %v254
      %v274 = vpack.c.b16 %v257, %v256
      %v275 = vpack.c.b16 %v259, %v258
      %v276 = vpack.c.b16 %v261, %v260
      %v277 = vpack.c.b16 %v263, %v262
      %v278 = vpack.c.b16 %v265, %v264
      %v279 = vpack.c.b16 %v267, %v266
      %v293 = vsel %vm185, %v188, 0
      %295 = vmatprep.subr.bf16.mxu0 0
      %296 = vmatpush1.bf16.msra.mxu0 %v268
      %297 = vmatprep.subr.bf16.mxu0 0
      %298 = vmatpush1.bf16.msra.mxu0 %v269
      %299 = vmatprep.subr.bf16.mxu0 0
      %300 = vmatpush1.bf16.msra.mxu0 %v270
      %301 = vmatprep.subr.bf16.mxu0 0
      %302 = vmatpush1.bf16.msra.mxu0 %v271
      %303 = vmatprep.subr.bf16.mxu0 0
      %304 = vmatpush1.bf16.msra.mxu0 %v272
      %305 = vmatprep.subr.bf16.mxu0 0
      %306 = vmatpush1.bf16.msra.mxu0 %v273
      %307 = vmatprep.subr.bf16.mxu0 0
      %308 = vmatpush1.bf16.msra.mxu0 %v274
      %309 = vmatprep.subr.bf16.mxu0 0
      %310 = vmatpush1.bf16.msra.mxu0 %v275
      %311 = vmatprep.subr.bf16.mxu0 0
      %312 = vmatpush1.bf16.msra.mxu0 %v276
      %313 = vmatprep.subr.bf16.mxu0 0
      %314 = vmatpush1.bf16.msra.mxu0 %v277
      %315 = vmatprep.subr.bf16.mxu0 0
      %316 = vmatpush1.bf16.msra.mxu0 %v278
      %317 = vmatprep.subr.bf16.mxu0 0
      %318 = vmatpush1.bf16.msra.mxu0 %v279
      %319 = vmatprep.subr.bf16.mxu0 0
      %320 = vmatpush1.bf16.msra.mxu0 0
      %321 = vmatprep.subr.bf16.mxu0 0
      %322 = vmatpush1.bf16.msra.mxu0 0
      %323 = vmatprep.subr.bf16.mxu0 0
      %324 = vmatpush1.bf16.msra.mxu0 0
      %325 = vmatprep.subr.bf16.mxu0 0
      %326 = vmatpush1.bf16.msra.mxu0 0
      %327 = vmatprep.mubr.bf16.mxu0 %v293
      %328 = vmatmul.mubr.bf16.gmra.mrb[0].mxu0 %v187
      %v329 = vpop.f32.mrb[0].mxu0
      %v330 = vadd.f32 %v218, %v329
      %v331 = vpop.f32.mrb[0].mxu0
      %v332 = vpop.f32.mrb[0].mxu0
      %v333 = vpop.f32.mrb[0].mxu0
      %334 = vdwg.mxu0
      %v335 = vmax.f32 %v330, 0.0
      %vm336 = vcmask 519168
      %337 = vst.msk [vmem:[%s168] sm:$0xf] %vm336, %v335
      %p338 = scmp.lt.s32.totalorder %s14, 1
      %s339 = scalar_select %p338, %s14, 1
      %s340 = smul.addr %s339, 4
      %s341 = scalar_lea.vmem %s3, %s340
      // Predicated region
      $region33: #{mmm_dit_forward.35} parent=31 // pred_check
        %p342 = pneg %p100
      $region34: #{mmm_dit_forward.35} parent=31 // pred_check_branch
        %344 = sbr.rel (%p342) target = $region36
      $region35: #{mmm_dit_forward.35} parent=31 // pred_region
        _
      $region36: #{mmm_dit_forward.35} parent=31 // pred_fallthru
        _
    $region32: #{mmm_dit_forward.35} parent=5 // pred_fallthru
      _
    %p345 = scmp.le.s32.totalorder 2, %s9
    // Predicated region
    $region37: #{mmm_dit_forward.35} parent=5 // pred_check
      %p346 = pneg %p345
    $region38: #{mmm_dit_forward.35} parent=5 // pred_check_branch
      %348 = sbr.rel (%p346) target = $region40
    $region39: #{mmm_dit_forward.35} parent=5 // pred_region
      %s349 = ssub.s32 %s9, 2
      // Predicated region
      $region41: #{mmm_dit_forward.35} parent=39 // pred_check
        %p350 = pneg %p106
      $region42: #{mmm_dit_forward.35} parent=39 // pred_check_branch
        %352 = sbr.rel (%p350) target = $region44
      $region43: #{mmm_dit_forward.35} parent=39 // pred_region
        %p353 = scmp.lt.s32.totalorder %s15, 1
        %s354 = scalar_select %p353, %s15, 1
        %s355 = smul.addr %s354, 4
        %s356 = scalar_lea.vmem %s3, %s355
      $region44: #{mmm_dit_forward.35} parent=39 // pred_fallthru
        _
    $region40: #{mmm_dit_forward.35} parent=5 // pred_fallthru
      _
  $region6: #{mmm_dit_forward.35} parent=0 // loop_footer
    %s13 = sadd.s32 1, %s9
  $region7: #{mmm_dit_forward.35} parent=0 // loop_footer_branch
    %8 = sbr.rel target = $region3
  $region8: #{mmm_dit_forward.35} parent=0 // loop_exit
    _

// kernel: mmm_dit_forward.37
$region0: #{mmm_dit_forward.37}
  #allocation0 [shape = 'u32[]', space=smem, size = 0x4, offset = 0x4, fixed_abs, tag = 'smem constant byte address 0x4 - core index']
  #allocation1 [shape = 'u32[144,128]{1,0:T(1,128)}', space=vmem, size = 0x12000, scoped, tag = 'internal scratch']
  %s0 = inlined_call_operand.vmem [shape: f32[2,6,64], index: 0, kind: input, shape index: {}]
  %s1 = inlined_call_operand.vmem [shape: bf16[192,64], index: 1, kind: input, shape index: {}]
  %s2 = inlined_call_operand.vmem [shape: f32[1,64], index: 2, kind: input, shape index: {}]
  %s3 = inlined_call_operand.vmem [shape: f32[2,4,64], index: 3, kind: output, shape index: {}]
  %s4 = sld [smem:[#allocation0]]
  $region45: #{mmm_dit_forward.37} parent=0
    _
  %s6 = ssub.s32 1, %s4
  %s7 = scalar_select 0, %s6, %s4
  loop: start=0, step=1, limit=4
  $region2: #{mmm_dit_forward.37} parent=0 // loop_pre_header
    _
  $region3: #{mmm_dit_forward.37} parent=0 // loop_header
    %s9 = sphi 0, %s13
    %p10 = scmp.ge.s32.totalorder %s9, 4
    %s19 = sphi 0, %s21
    %s22 = sphi 0, %s19
    %s23 = sphi 0, %s22
    %s39 = sphi 0, %s23
    %s43 = sphi 0, %s43
    %s45 = sphi 0, %s43
    %s46 = sphi 0, %s45
    %s60 = sphi 0, %s46
    %s64 = sphi 0, %s64
    %s66 = sphi 0, %s64
    %s67 = sphi 0, %s66
    %s81 = sphi 0, %s67
    %s87 = sphi 0, %s89
    %s90 = sphi 0, %s87
    %s91 = sphi 0, %s90
    %s107 = sphi 0, %s91
  $region4: #{mmm_dit_forward.37} parent=0 // loop_header_branch
    %12 = sbr.rel (%p10) target = $region8
  $region5: #{mmm_dit_forward.37} parent=0 // loop_body
    %s14 = ssub.s32 %s9, 1
    %s15 = ssub.s32 %s9, 2
    %s16 = sadd.s32 %s9, 1
    %s17 = ssub.s32 %s9, %s16
    %p18 = scmp.eq.s32.totalorder %s17, 0
    %s20 = sadd.s32 %s19, 1
    %s21 = scalar_select %p18, %s19, %s20
    %p24 = pneg %p18
    %p25 = scmp.eq.s32.totalorder %s9, 1
    %p26 = por %p24, %p25
    %p27 = scmp.ne.s32.totalorder %s19, %s22
    %p28 = scmp.eq.s32.totalorder %s9, 0
    %p29 = por %p27, %p28
    %p30 = scmp.ne.s32.totalorder %s19, %s22
    %p31 = scmp.eq.s32.totalorder %s14, 1
    %p32 = por %p30, %p31
    %p33 = scmp.ne.s32.totalorder %s22, %s23
    %p34 = scmp.eq.s32.totalorder %s14, 0
    %p35 = por %p33, %p34
    %p36 = scmp.ne.s32.totalorder %s22, %s23
    %p37 = scmp.eq.s32.totalorder %s15, 1
    %p38 = por %p36, %p37
    %p40 = scmp.ne.s32.totalorder %s23, %s39
    %p41 = scmp.eq.s32.totalorder %s15, 0
    %p42 = por %p40, %p41
    %s44 = sadd.s32 %s43, 1
    %p47 = scmp.eq.s32.totalorder %s9, 1
    %p48 = scmp.ne.s32.totalorder %s43, %s45
    %p49 = scmp.eq.s32.totalorder %s9, 0
    %p50 = por %p48, %p49
    %p51 = scmp.ne.s32.totalorder %s43, %s45
    %p52 = scmp.eq.s32.totalorder %s14, 1
    %p53 = por %p51, %p52
    %p54 = scmp.ne.s32.totalorder %s45, %s46
    %p55 = scmp.eq.s32.totalorder %s14, 0
    %p56 = por %p54, %p55
    %p57 = scmp.ne.s32.totalorder %s45, %s46
    %p58 = scmp.eq.s32.totalorder %s15, 1
    %p59 = por %p57, %p58
    %p61 = scmp.ne.s32.totalorder %s46, %s60
    %p62 = scmp.eq.s32.totalorder %s15, 0
    %p63 = por %p61, %p62
    %s65 = sadd.s32 %s64, 1
    %p68 = scmp.eq.s32.totalorder %s9, 1
    %p69 = scmp.ne.s32.totalorder %s64, %s66
    %p70 = scmp.eq.s32.totalorder %s9, 0
    %p71 = por %p69, %p70
    %p72 = scmp.ne.s32.totalorder %s64, %s66
    %p73 = scmp.eq.s32.totalorder %s14, 1
    %p74 = por %p72, %p73
    %p75 = scmp.ne.s32.totalorder %s66, %s67
    %p76 = scmp.eq.s32.totalorder %s14, 0
    %p77 = por %p75, %p76
    %p78 = scmp.ne.s32.totalorder %s66, %s67
    %p79 = scmp.eq.s32.totalorder %s15, 1
    %p80 = por %p78, %p79
    %p82 = scmp.ne.s32.totalorder %s67, %s81
    %p83 = scmp.eq.s32.totalorder %s15, 0
    %p84 = por %p82, %p83
    %s85 = ssub.s32 %s9, %s16
    %p86 = scmp.eq.s32.totalorder %s85, 0
    %s88 = sadd.s32 %s87, 1
    %s89 = scalar_select %p86, %s87, %s88
    %p92 = pneg %p86
    %p93 = scmp.eq.s32.totalorder %s9, 1
    %p94 = por %p92, %p93
    %p95 = scmp.ne.s32.totalorder %s87, %s90
    %p96 = scmp.eq.s32.totalorder %s9, 0
    %p97 = por %p95, %p96
    %p98 = scmp.ne.s32.totalorder %s87, %s90
    %p99 = scmp.eq.s32.totalorder %s14, 1
    %p100 = por %p98, %p99
    %p101 = scmp.ne.s32.totalorder %s90, %s91
    %p102 = scmp.eq.s32.totalorder %s14, 0
    %p103 = por %p101, %p102
    %p104 = scmp.ne.s32.totalorder %s90, %s91
    %p105 = scmp.eq.s32.totalorder %s15, 1
    %p106 = por %p104, %p105
    %p108 = scmp.ne.s32.totalorder %s91, %s107
    %p109 = scmp.eq.s32.totalorder %s15, 0
    %p110 = por %p108, %p109
    %p111 = scmp.le.s32.totalorder 1, %s9
    %p112 = scmp.lt.s32.totalorder %s9, 3
    %p113 = pnand %p111, %p112
    %p114 = pneg %p113
    // Predicated region
    $region9: #{mmm_dit_forward.37} parent=5 // pred_check
      _
    $region10: #{mmm_dit_forward.37} parent=5 // pred_check_branch
      %116 = sbr.rel (%p113) target = $region12
    $region11: #{mmm_dit_forward.37} parent=5 // pred_region
      %s117 = ssub.s32 %s9, 1
      // Predicated region
      $region13: #{mmm_dit_forward.37} parent=11 // pred_check
        %p118 = pneg %p56
      $region14: #{mmm_dit_forward.37} parent=11 // pred_check_branch
        %120 = sbr.rel (%p118) target = $region16
      $region15: #{mmm_dit_forward.37} parent=11 // pred_region
        _
      $region16: #{mmm_dit_forward.37} parent=11 // pred_fallthru
        _
      // Predicated region
      $region17: #{mmm_dit_forward.37} parent=11 // pred_check
        %p121 = pneg %p77
      $region18: #{mmm_dit_forward.37} parent=11 // pred_check_branch
        %123 = sbr.rel (%p121) target = $region20
      $region19: #{mmm_dit_forward.37} parent=11 // pred_region
        _
      $region20: #{mmm_dit_forward.37} parent=11 // pred_fallthru
        _
    $region12: #{mmm_dit_forward.37} parent=5 // pred_fallthru
      _
    %p124 = scmp.lt.s32.totalorder %s9, 2
    // Predicated region
    $region21: #{mmm_dit_forward.37} parent=5 // pred_check
      %p125 = pneg %p124
    $region22: #{mmm_dit_forward.37} parent=5 // pred_check_branch
      %127 = sbr.rel (%p125) target = $region24
    $region23: #{mmm_dit_forward.37} parent=5 // pred_region
      // Predicated region
      $region25: #{mmm_dit_forward.37} parent=23 // pred_check
        %p128 = pneg %p29
      $region26: #{mmm_dit_forward.37} parent=23 // pred_check_branch
        %130 = sbr.rel (%p128) target = $region28
      $region27: #{mmm_dit_forward.37} parent=23 // pred_region
        %p131 = scmp.lt.s32.totalorder %s9, 1
        %s132 = scalar_select %p131, %s9, 1
        %s133 = smul.addr %s132, 8
        %s134 = scalar_lea.vmem %s0, %s133
      $region28: #{mmm_dit_forward.37} parent=23 // pred_fallthru
        _
    $region24: #{mmm_dit_forward.37} parent=5 // pred_fallthru
      _
    %p135 = scmp.le.s32.totalorder 1, %s9
    %p136 = scmp.lt.s32.totalorder %s9, 3
    %p137 = pnand %p135, %p136
    %p138 = pneg %p137
    // Predicated region
    $region29: #{mmm_dit_forward.37} parent=5 // pred_check
      _
    $region30: #{mmm_dit_forward.37} parent=5 // pred_check_branch
      %140 = sbr.rel (%p137) target = $region32
    $region31: #{mmm_dit_forward.37} parent=5 // pred_region
      %s141 = ssub.s32 %s9, 1
      %p142 = scmp.lt.s32.totalorder %s14, 1
      %s143 = scalar_select %p142, %s14, 1
      %s144 = smul.addr %s143, 8
      %s145 = scalar_lea.vmem %s0, %s144
      %p146 = pneg %p35
      %p147 = pneg %p32
      %p148 = pneg %p56
      %p149 = pneg %p53
      %p150 = pneg %p77
      %p151 = pneg %p74
      %p152 = pneg %p103
      %p153 = pneg %p100
      %p154 = scmp.lt.s32.totalorder %s14, 1
      %s155 = scalar_select %p154, %s14, 1
      %s156 = smul.addr %s155, 4
      %s157 = scalar_lea.vmem %s3, %s156
      %p158 = scmp.lt.s32.totalorder %s14, 1
      %s159 = scalar_select %p158, %s14, 1
      %s160 = smul.addr %s159, 8
      %s161 = scalar_lea.vmem %s0, %s160
      %p162 = scmp.lt.s32.totalorder %s14, 1
      %s163 = scalar_select %p162, %s14, 1
      %s164 = smul.addr %s163, 4
      %s165 = scalar_lea.vmem %s3, %s164
      %v167 = vld [vmem:[%s161] sm:$0x3f]
      %v168 = vmax.f32 %v167, 0.0
      %v170 = vrot.slane %v168, 1
      %171 = vrot.lane.b32.xlu0 %v170, 64
      %v172 = vpop.permute.xlu0 %171
      %v174 = vrot.slane %v168, 2
      %vm176 = vcmask 523264
      %v177 = vsel %vm176, %v168, %v172
      %v178 = vpack.c.bf16 %v177, %v177
      %v179 = vpack.c.bf16 %v174, %v174
      %v180 = vld [vmem:[%s1] sm:$0xf]
      %v181 = vld [vmem:[%s1 + $0x4] sm:$0xf]
      %v182 = vld [vmem:[%s1 + $0x8] sm:$0xf]
      %v183 = vld [vmem:[%s1 + $0xc] sm:$0xf]
      %v184 = vld [vmem:[%s1 + $0x10] sm:$0xf]
      %v185 = vld [vmem:[%s1 + $0x14] sm:$0xf]
      %v186 = vld [vmem:[%s1 + $0x18] sm:$0xf]
      %v187 = vld [vmem:[%s1 + $0x1c] sm:$0xf]
      %v188 = vld [vmem:[%s1 + $0x20] sm:$0xf]
      %v189 = vld [vmem:[%s1 + $0x24] sm:$0xf]
      %v190 = vld [vmem:[%s1 + $0x28] sm:$0xf]
      %v191 = vld [vmem:[%s1 + $0x2c] sm:$0xf]
      %v192 = vld [vmem:[%s1 + $0x30] sm:$0xf]
      %v193 = vld [vmem:[%s1 + $0x34] sm:$0xf]
      %v194 = vld [vmem:[%s1 + $0x38] sm:$0xf]
      %v195 = vld [vmem:[%s1 + $0x3c] sm:$0xf]
      %v196 = vld [vmem:[%s1 + $0x40] sm:$0xf]
      %v197 = vld [vmem:[%s1 + $0x44] sm:$0xf]
      %v198 = vld [vmem:[%s1 + $0x48] sm:$0xf]
      %v199 = vld [vmem:[%s1 + $0x4c] sm:$0xf]
      %v200 = vld [vmem:[%s1 + $0x50] sm:$0xf]
      %v201 = vld [vmem:[%s1 + $0x54] sm:$0xf]
      %v202 = vld [vmem:[%s1 + $0x58] sm:$0xf]
      %v203 = vld [vmem:[%s1 + $0x5c] sm:$0xf]
      %v204 = vld [vmem:[%s2] sm:$0x1]
      %v206 = vlaneseq
      %v207 = vshrl.u32 %v206, 7
      %v208 = vsub.s32 0, %v207
      %v209 = vrot.slane %v204, %v208
      %v235 = vunpack.c.l.b16 %v180
      %v236 = vunpack.c.l.b16 %v181
      %v237 = vunpack.c.l.b16 %v182
      %v238 = vunpack.c.l.b16 %v183
      %v239 = vunpack.c.l.b16 %v184
      %v240 = vunpack.c.l.b16 %v185
      %v241 = vunpack.c.l.b16 %v186
      %v242 = vunpack.c.l.b16 %v187
      %v243 = vunpack.c.l.b16 %v188
      %v244 = vunpack.c.l.b16 %v189
      %v245 = vunpack.c.l.b16 %v190
      %v246 = vunpack.c.l.b16 %v191
      %v247 = vunpack.c.l.b16 %v192
      %v248 = vunpack.c.l.b16 %v193
      %v249 = vunpack.c.l.b16 %v194
      %v250 = vunpack.c.l.b16 %v195
      %v251 = vunpack.c.l.b16 %v196
      %v252 = vunpack.c.l.b16 %v197
      %v253 = vunpack.c.l.b16 %v198
      %v254 = vunpack.c.l.b16 %v199
      %v255 = vunpack.c.l.b16 %v200
      %v256 = vunpack.c.l.b16 %v201
      %v257 = vunpack.c.l.b16 %v202
      %v258 = vunpack.c.l.b16 %v203
      %v259 = vpack.c.b16 %v236, %v235
      %v260 = vpack.c.b16 %v238, %v237
      %v261 = vpack.c.b16 %v240, %v239
      %v262 = vpack.c.b16 %v242, %v241
      %v263 = vpack.c.b16 %v244, %v243
      %v264 = vpack.c.b16 %v246, %v245
      %v265 = vpack.c.b16 %v248, %v247
      %v266 = vpack.c.b16 %v250, %v249
      %v267 = vpack.c.b16 %v252, %v251
      %v268 = vpack.c.b16 %v254, %v253
      %v269 = vpack.c.b16 %v256, %v255
      %v270 = vpack.c.b16 %v258, %v257
      %v284 = vsel %vm176, %v179, 0
      %286 = vmatprep.subr.bf16.mxu0 0
      %287 = vmatpush1.bf16.msra.mxu0 %v259
      %288 = vmatprep.subr.bf16.mxu0 0
      %289 = vmatpush1.bf16.msra.mxu0 %v260
      %290 = vmatprep.subr.bf16.mxu0 0
      %291 = vmatpush1.bf16.msra.mxu0 %v261
      %292 = vmatprep.subr.bf16.mxu0 0
      %293 = vmatpush1.bf16.msra.mxu0 %v262
      %294 = vmatprep.subr.bf16.mxu0 0
      %295 = vmatpush1.bf16.msra.mxu0 %v263
      %296 = vmatprep.subr.bf16.mxu0 0
      %297 = vmatpush1.bf16.msra.mxu0 %v264
      %298 = vmatprep.subr.bf16.mxu0 0
      %299 = vmatpush1.bf16.msra.mxu0 %v265
      %300 = vmatprep.subr.bf16.mxu0 0
      %301 = vmatpush1.bf16.msra.mxu0 %v266
      %302 = vmatprep.subr.bf16.mxu0 0
      %303 = vmatpush1.bf16.msra.mxu0 %v267
      %304 = vmatprep.subr.bf16.mxu0 0
      %305 = vmatpush1.bf16.msra.mxu0 %v268
      %306 = vmatprep.subr.bf16.mxu0 0
      %307 = vmatpush1.bf16.msra.mxu0 %v269
      %308 = vmatprep.subr.bf16.mxu0 0
      %309 = vmatpush1.bf16.msra.mxu0 %v270
      %310 = vmatprep.subr.bf16.mxu0 0
      %311 = vmatpush1.bf16.msra.mxu0 0
      %312 = vmatprep.subr.bf16.mxu0 0
      %313 = vmatpush1.bf16.msra.mxu0 0
      %314 = vmatprep.subr.bf16.mxu0 0
      %315 = vmatpush1.bf16.msra.mxu0 0
      %316 = vmatprep.subr.bf16.mxu0 0
      %317 = vmatpush1.bf16.msra.mxu0 0
      %318 = vmatprep.mubr.bf16.mxu0 %v284
      %319 = vmatmul.mubr.bf16.gmra.mrb[0].mxu0 %v178
      %v320 = vpop.f32.mrb[0].mxu0
      %v321 = vadd.f32 %v209, %v320
      %v322 = vpop.f32.mrb[0].mxu0
      %v323 = vpop.f32.mrb[0].mxu0
      %v324 = vpop.f32.mrb[0].mxu0
      %325 = vdwg.mxu0
      %v326 = vmax.f32 %v321, 0.0
      %vm327 = vcmask 519168
      %328 = vst.msk [vmem:[%s165] sm:$0xf] %vm327, %v326
      %p329 = scmp.lt.s32.totalorder %s14, 1
      %s330 = scalar_select %p329, %s14, 1
      %s331 = smul.addr %s330, 4
      %s332 = scalar_lea.vmem %s3, %s331
      // Predicated region
      $region33: #{mmm_dit_forward.37} parent=31 // pred_check
        %p333 = pneg %p100
      $region34: #{mmm_dit_forward.37} parent=31 // pred_check_branch
        %335 = sbr.rel (%p333) target = $region36
      $region35: #{mmm_dit_forward.37} parent=31 // pred_region
        _
      $region36: #{mmm_dit_forward.37} parent=31 // pred_fallthru
        _
    $region32: #{mmm_dit_forward.37} parent=5 // pred_fallthru
      _
    %p336 = scmp.le.s32.totalorder 2, %s9
    // Predicated region
    $region37: #{mmm_dit_forward.37} parent=5 // pred_check
      %p337 = pneg %p336
    $region38: #{mmm_dit_forward.37} parent=5 // pred_check_branch
      %339 = sbr.rel (%p337) target = $region40
    $region39: #{mmm_dit_forward.37} parent=5 // pred_region
      %s340 = ssub.s32 %s9, 2
      // Predicated region
      $region41: #{mmm_dit_forward.37} parent=39 // pred_check
        %p341 = pneg %p106
      $region42: #{mmm_dit_forward.37} parent=39 // pred_check_branch
        %343 = sbr.rel (%p341) target = $region44
      $region43: #{mmm_dit_forward.37} parent=39 // pred_region
        %p344 = scmp.lt.s32.totalorder %s15, 1
        %s345 = scalar_select %p344, %s15, 1
        %s346 = smul.addr %s345, 4
        %s347 = scalar_lea.vmem %s3, %s346
      $region44: #{mmm_dit_forward.37} parent=39 // pred_fallthru
        _
    $region40: #{mmm_dit_forward.37} parent=5 // pred_fallthru
      _
  $region6: #{mmm_dit_forward.37} parent=0 // loop_footer
    %s13 = sadd.s32 1, %s9
  $region7: #{mmm_dit_forward.37} parent=0 // loop_footer_branch
    %8 = sbr.rel target = $region3
  $region8: #{mmm_dit_forward.37} parent=0 // loop_exit
    _

// kernel: mmm_dit_forward.39
$region0: #{mmm_dit_forward.39}
  #allocation0 [shape = 'u32[]', space=smem, size = 0x4, offset = 0x4, fixed_abs, tag = 'smem constant byte address 0x4 - core index']
  #allocation1 [shape = 'u32[144,128]{1,0:T(1,128)}', space=vmem, size = 0x12000, scoped, tag = 'internal scratch']
  %s0 = inlined_call_operand.vmem [shape: f32[2,6,64], index: 0, kind: input, shape index: {}]
  %s1 = inlined_call_operand.vmem [shape: bf16[192,32], index: 1, kind: input, shape index: {}]
  %s2 = inlined_call_operand.vmem [shape: f32[1,32], index: 2, kind: input, shape index: {}]
  %s3 = inlined_call_operand.vmem [shape: f32[2,4,32], index: 3, kind: output, shape index: {}]
  %s4 = sld [smem:[#allocation0]]
  $region45: #{mmm_dit_forward.39} parent=0
    _
  %s6 = ssub.s32 1, %s4
  %s7 = scalar_select 0, %s6, %s4
  loop: start=0, step=1, limit=4
  $region2: #{mmm_dit_forward.39} parent=0 // loop_pre_header
    _
  $region3: #{mmm_dit_forward.39} parent=0 // loop_header
    %s9 = sphi 0, %s13
    %p10 = scmp.ge.s32.totalorder %s9, 4
    %s19 = sphi 0, %s21
    %s22 = sphi 0, %s19
    %s23 = sphi 0, %s22
    %s39 = sphi 0, %s23
    %s43 = sphi 0, %s43
    %s45 = sphi 0, %s43
    %s46 = sphi 0, %s45
    %s60 = sphi 0, %s46
    %s64 = sphi 0, %s64
    %s66 = sphi 0, %s64
    %s67 = sphi 0, %s66
    %s81 = sphi 0, %s67
    %s87 = sphi 0, %s89
    %s90 = sphi 0, %s87
    %s91 = sphi 0, %s90
    %s107 = sphi 0, %s91
  $region4: #{mmm_dit_forward.39} parent=0 // loop_header_branch
    %12 = sbr.rel (%p10) target = $region8
  $region5: #{mmm_dit_forward.39} parent=0 // loop_body
    %s14 = ssub.s32 %s9, 1
    %s15 = ssub.s32 %s9, 2
    %s16 = sadd.s32 %s9, 1
    %s17 = ssub.s32 %s9, %s16
    %p18 = scmp.eq.s32.totalorder %s17, 0
    %s20 = sadd.s32 %s19, 1
    %s21 = scalar_select %p18, %s19, %s20
    %p24 = pneg %p18
    %p25 = scmp.eq.s32.totalorder %s9, 1
    %p26 = por %p24, %p25
    %p27 = scmp.ne.s32.totalorder %s19, %s22
    %p28 = scmp.eq.s32.totalorder %s9, 0
    %p29 = por %p27, %p28
    %p30 = scmp.ne.s32.totalorder %s19, %s22
    %p31 = scmp.eq.s32.totalorder %s14, 1
    %p32 = por %p30, %p31
    %p33 = scmp.ne.s32.totalorder %s22, %s23
    %p34 = scmp.eq.s32.totalorder %s14, 0
    %p35 = por %p33, %p34
    %p36 = scmp.ne.s32.totalorder %s22, %s23
    %p37 = scmp.eq.s32.totalorder %s15, 1
    %p38 = por %p36, %p37
    %p40 = scmp.ne.s32.totalorder %s23, %s39
    %p41 = scmp.eq.s32.totalorder %s15, 0
    %p42 = por %p40, %p41
    %s44 = sadd.s32 %s43, 1
    %p47 = scmp.eq.s32.totalorder %s9, 1
    %p48 = scmp.ne.s32.totalorder %s43, %s45
    %p49 = scmp.eq.s32.totalorder %s9, 0
    %p50 = por %p48, %p49
    %p51 = scmp.ne.s32.totalorder %s43, %s45
    %p52 = scmp.eq.s32.totalorder %s14, 1
    %p53 = por %p51, %p52
    %p54 = scmp.ne.s32.totalorder %s45, %s46
    %p55 = scmp.eq.s32.totalorder %s14, 0
    %p56 = por %p54, %p55
    %p57 = scmp.ne.s32.totalorder %s45, %s46
    %p58 = scmp.eq.s32.totalorder %s15, 1
    %p59 = por %p57, %p58
    %p61 = scmp.ne.s32.totalorder %s46, %s60
    %p62 = scmp.eq.s32.totalorder %s15, 0
    %p63 = por %p61, %p62
    %s65 = sadd.s32 %s64, 1
    %p68 = scmp.eq.s32.totalorder %s9, 1
    %p69 = scmp.ne.s32.totalorder %s64, %s66
    %p70 = scmp.eq.s32.totalorder %s9, 0
    %p71 = por %p69, %p70
    %p72 = scmp.ne.s32.totalorder %s64, %s66
    %p73 = scmp.eq.s32.totalorder %s14, 1
    %p74 = por %p72, %p73
    %p75 = scmp.ne.s32.totalorder %s66, %s67
    %p76 = scmp.eq.s32.totalorder %s14, 0
    %p77 = por %p75, %p76
    %p78 = scmp.ne.s32.totalorder %s66, %s67
    %p79 = scmp.eq.s32.totalorder %s15, 1
    %p80 = por %p78, %p79
    %p82 = scmp.ne.s32.totalorder %s67, %s81
    %p83 = scmp.eq.s32.totalorder %s15, 0
    %p84 = por %p82, %p83
    %s85 = ssub.s32 %s9, %s16
    %p86 = scmp.eq.s32.totalorder %s85, 0
    %s88 = sadd.s32 %s87, 1
    %s89 = scalar_select %p86, %s87, %s88
    %p92 = pneg %p86
    %p93 = scmp.eq.s32.totalorder %s9, 1
    %p94 = por %p92, %p93
    %p95 = scmp.ne.s32.totalorder %s87, %s90
    %p96 = scmp.eq.s32.totalorder %s9, 0
    %p97 = por %p95, %p96
    %p98 = scmp.ne.s32.totalorder %s87, %s90
    %p99 = scmp.eq.s32.totalorder %s14, 1
    %p100 = por %p98, %p99
    %p101 = scmp.ne.s32.totalorder %s90, %s91
    %p102 = scmp.eq.s32.totalorder %s14, 0
    %p103 = por %p101, %p102
    %p104 = scmp.ne.s32.totalorder %s90, %s91
    %p105 = scmp.eq.s32.totalorder %s15, 1
    %p106 = por %p104, %p105
    %p108 = scmp.ne.s32.totalorder %s91, %s107
    %p109 = scmp.eq.s32.totalorder %s15, 0
    %p110 = por %p108, %p109
    %p111 = scmp.le.s32.totalorder 1, %s9
    %p112 = scmp.lt.s32.totalorder %s9, 3
    %p113 = pnand %p111, %p112
    %p114 = pneg %p113
    // Predicated region
    $region9: #{mmm_dit_forward.39} parent=5 // pred_check
      _
    $region10: #{mmm_dit_forward.39} parent=5 // pred_check_branch
      %116 = sbr.rel (%p113) target = $region12
    $region11: #{mmm_dit_forward.39} parent=5 // pred_region
      %s117 = ssub.s32 %s9, 1
      // Predicated region
      $region13: #{mmm_dit_forward.39} parent=11 // pred_check
        %p118 = pneg %p56
      $region14: #{mmm_dit_forward.39} parent=11 // pred_check_branch
        %120 = sbr.rel (%p118) target = $region16
      $region15: #{mmm_dit_forward.39} parent=11 // pred_region
        _
      $region16: #{mmm_dit_forward.39} parent=11 // pred_fallthru
        _
      // Predicated region
      $region17: #{mmm_dit_forward.39} parent=11 // pred_check
        %p121 = pneg %p77
      $region18: #{mmm_dit_forward.39} parent=11 // pred_check_branch
        %123 = sbr.rel (%p121) target = $region20
      $region19: #{mmm_dit_forward.39} parent=11 // pred_region
        _
      $region20: #{mmm_dit_forward.39} parent=11 // pred_fallthru
        _
    $region12: #{mmm_dit_forward.39} parent=5 // pred_fallthru
      _
    %p124 = scmp.lt.s32.totalorder %s9, 2
    // Predicated region
    $region21: #{mmm_dit_forward.39} parent=5 // pred_check
      %p125 = pneg %p124
    $region22: #{mmm_dit_forward.39} parent=5 // pred_check_branch
      %127 = sbr.rel (%p125) target = $region24
    $region23: #{mmm_dit_forward.39} parent=5 // pred_region
      // Predicated region
      $region25: #{mmm_dit_forward.39} parent=23 // pred_check
        %p128 = pneg %p29
      $region26: #{mmm_dit_forward.39} parent=23 // pred_check_branch
        %130 = sbr.rel (%p128) target = $region28
      $region27: #{mmm_dit_forward.39} parent=23 // pred_region
        %p131 = scmp.lt.s32.totalorder %s9, 1
        %s132 = scalar_select %p131, %s9, 1
        %s133 = smul.addr %s132, 8
        %s134 = scalar_lea.vmem %s0, %s133
      $region28: #{mmm_dit_forward.39} parent=23 // pred_fallthru
        _
    $region24: #{mmm_dit_forward.39} parent=5 // pred_fallthru
      _
    %p135 = scmp.le.s32.totalorder 1, %s9
    %p136 = scmp.lt.s32.totalorder %s9, 3
    %p137 = pnand %p135, %p136
    %p138 = pneg %p137
    // Predicated region
    $region29: #{mmm_dit_forward.39} parent=5 // pred_check
      _
    $region30: #{mmm_dit_forward.39} parent=5 // pred_check_branch
      %140 = sbr.rel (%p137) target = $region32
    $region31: #{mmm_dit_forward.39} parent=5 // pred_region
      %s141 = ssub.s32 %s9, 1
      %p142 = scmp.lt.s32.totalorder %s14, 1
      %s143 = scalar_select %p142, %s14, 1
      %s144 = smul.addr %s143, 8
      %s145 = scalar_lea.vmem %s0, %s144
      %p146 = pneg %p35
      %p147 = pneg %p32
      %p148 = pneg %p56
      %p149 = pneg %p53
      %p150 = pneg %p77
      %p151 = pneg %p74
      %p152 = pneg %p103
      %p153 = pneg %p100
      %p154 = scmp.lt.s32.totalorder %s14, 1
      %s155 = scalar_select %p154, %s14, 1
      %s156 = smul.addr %s155, 4
      %s157 = scalar_lea.vmem %s3, %s156
      %p158 = scmp.lt.s32.totalorder %s14, 1
      %s159 = scalar_select %p158, %s14, 1
      %s160 = smul.addr %s159, 8
      %s161 = scalar_lea.vmem %s0, %s160
      %p162 = scmp.lt.s32.totalorder %s14, 1
      %s163 = scalar_select %p162, %s14, 1
      %s164 = smul.addr %s163, 4
      %s165 = scalar_lea.vmem %s3, %s164
      %v167 = vld [vmem:[%s161] sm:$0x3f]
      %v169 = vrot.slane %v167, 1
      %170 = vrot.lane.b32.xlu0 %v169, 64
      %v171 = vpop.permute.xlu0 %170
      %v173 = vrot.slane %v167, 2
      %vm175 = vcmask 523264
      %v176 = vsel %vm175, %v167, %v171
      %v177 = vpack.c.bf16 %v176, %v176
      %v178 = vpack.c.bf16 %v173, %v173
      %v179 = vld [vmem:[%s1] sm:$0xf]
      %v180 = vld [vmem:[%s1 + $0x4] sm:$0xf]
      %v181 = vld [vmem:[%s1 + $0x8] sm:$0xf]
      %v182 = vld [vmem:[%s1 + $0xc] sm:$0xf]
      %v183 = vld [vmem:[%s1 + $0x10] sm:$0xf]
      %v184 = vld [vmem:[%s1 + $0x14] sm:$0xf]
      %v185 = vld [vmem:[%s1 + $0x18] sm:$0xf]
      %v186 = vld [vmem:[%s1 + $0x1c] sm:$0xf]
      %v187 = vld [vmem:[%s1 + $0x20] sm:$0xf]
      %v188 = vld [vmem:[%s1 + $0x24] sm:$0xf]
      %v189 = vld [vmem:[%s1 + $0x28] sm:$0xf]
      %v190 = vld [vmem:[%s1 + $0x2c] sm:$0xf]
      %v191 = vld [vmem:[%s1 + $0x30] sm:$0xf]
      %v192 = vld [vmem:[%s1 + $0x34] sm:$0xf]
      %v193 = vld [vmem:[%s1 + $0x38] sm:$0xf]
      %v194 = vld [vmem:[%s1 + $0x3c] sm:$0xf]
      %v195 = vld [vmem:[%s1 + $0x40] sm:$0xf]
      %v196 = vld [vmem:[%s1 + $0x44] sm:$0xf]
      %v197 = vld [vmem:[%s1 + $0x48] sm:$0xf]
      %v198 = vld [vmem:[%s1 + $0x4c] sm:$0xf]
      %v199 = vld [vmem:[%s1 + $0x50] sm:$0xf]
      %v200 = vld [vmem:[%s1 + $0x54] sm:$0xf]
      %v201 = vld [vmem:[%s1 + $0x58] sm:$0xf]
      %v202 = vld [vmem:[%s1 + $0x5c] sm:$0xf]
      %v203 = vld [vmem:[%s2] sm:$0x1]
      %v205 = vlaneseq
      %v206 = vshrl.u32 %v205, 7
      %v207 = vsub.s32 0, %v206
      %v208 = vrot.slane %v203, %v207
      %v234 = vunpack.c.l.b16 %v179
      %v235 = vunpack.c.l.b16 %v180
      %v236 = vunpack.c.l.b16 %v181
      %v237 = vunpack.c.l.b16 %v182
      %v238 = vunpack.c.l.b16 %v183
      %v239 = vunpack.c.l.b16 %v184
      %v240 = vunpack.c.l.b16 %v185
      %v241 = vunpack.c.l.b16 %v186
      %v242 = vunpack.c.l.b16 %v187
      %v243 = vunpack.c.l.b16 %v188
      %v244 = vunpack.c.l.b16 %v189
      %v245 = vunpack.c.l.b16 %v190
      %v246 = vunpack.c.l.b16 %v191
      %v247 = vunpack.c.l.b16 %v192
      %v248 = vunpack.c.l.b16 %v193
      %v249 = vunpack.c.l.b16 %v194
      %v250 = vunpack.c.l.b16 %v195
      %v251 = vunpack.c.l.b16 %v196
      %v252 = vunpack.c.l.b16 %v197
      %v253 = vunpack.c.l.b16 %v198
      %v254 = vunpack.c.l.b16 %v199
      %v255 = vunpack.c.l.b16 %v200
      %v256 = vunpack.c.l.b16 %v201
      %v257 = vunpack.c.l.b16 %v202
      %v258 = vpack.c.b16 %v235, %v234
      %v259 = vpack.c.b16 %v237, %v236
      %v260 = vpack.c.b16 %v239, %v238
      %v261 = vpack.c.b16 %v241, %v240
      %v262 = vpack.c.b16 %v243, %v242
      %v263 = vpack.c.b16 %v245, %v244
      %v264 = vpack.c.b16 %v247, %v246
      %v265 = vpack.c.b16 %v249, %v248
      %v266 = vpack.c.b16 %v251, %v250
      %v267 = vpack.c.b16 %v253, %v252
      %v268 = vpack.c.b16 %v255, %v254
      %v269 = vpack.c.b16 %v257, %v256
      %v283 = vsel %vm175, %v178, 0
      %285 = vmatprep.subr.bf16.mxu0 0
      %286 = vmatpush1.bf16.msra.mxu0 %v258
      %287 = vmatprep.subr.bf16.mxu0 0
      %288 = vmatpush1.bf16.msra.mxu0 %v259
      %289 = vmatprep.subr.bf16.mxu0 0
      %290 = vmatpush1.bf16.msra.mxu0 %v260
      %291 = vmatprep.subr.bf16.mxu0 0
      %292 = vmatpush1.bf16.msra.mxu0 %v261
      %293 = vmatprep.subr.bf16.mxu0 0
      %294 = vmatpush1.bf16.msra.mxu0 %v262
      %295 = vmatprep.subr.bf16.mxu0 0
      %296 = vmatpush1.bf16.msra.mxu0 %v263
      %297 = vmatprep.subr.bf16.mxu0 0
      %298 = vmatpush1.bf16.msra.mxu0 %v264
      %299 = vmatprep.subr.bf16.mxu0 0
      %300 = vmatpush1.bf16.msra.mxu0 %v265
      %301 = vmatprep.subr.bf16.mxu0 0
      %302 = vmatpush1.bf16.msra.mxu0 %v266
      %303 = vmatprep.subr.bf16.mxu0 0
      %304 = vmatpush1.bf16.msra.mxu0 %v267
      %305 = vmatprep.subr.bf16.mxu0 0
      %306 = vmatpush1.bf16.msra.mxu0 %v268
      %307 = vmatprep.subr.bf16.mxu0 0
      %308 = vmatpush1.bf16.msra.mxu0 %v269
      %309 = vmatprep.subr.bf16.mxu0 0
      %310 = vmatpush1.bf16.msra.mxu0 0
      %311 = vmatprep.subr.bf16.mxu0 0
      %312 = vmatpush1.bf16.msra.mxu0 0
      %313 = vmatprep.subr.bf16.mxu0 0
      %314 = vmatpush1.bf16.msra.mxu0 0
      %315 = vmatprep.subr.bf16.mxu0 0
      %316 = vmatpush1.bf16.msra.mxu0 0
      %317 = vmatprep.mubr.bf16.mxu0 %v283
      %318 = vmatmul.mubr.bf16.gmra.mrb[0].mxu0 %v177
      %v319 = vpop.f32.mrb[0].mxu0
      %v320 = vadd.f32 %v208, %v319
      %v321 = vpop.f32.mrb[0].mxu0
      %v322 = vpop.f32.mrb[0].mxu0
      %v323 = vpop.f32.mrb[0].mxu0
      %324 = vdwg.mxu0
      %vm325 = vcmask 257024
      %326 = vst.msk [vmem:[%s165] sm:$0xf] %vm325, %v320
      %p327 = scmp.lt.s32.totalorder %s14, 1
      %s328 = scalar_select %p327, %s14, 1
      %s329 = smul.addr %s328, 4
      %s330 = scalar_lea.vmem %s3, %s329
      // Predicated region
      $region33: #{mmm_dit_forward.39} parent=31 // pred_check
        %p331 = pneg %p100
      $region34: #{mmm_dit_forward.39} parent=31 // pred_check_branch
        %333 = sbr.rel (%p331) target = $region36
      $region35: #{mmm_dit_forward.39} parent=31 // pred_region
        _
      $region36: #{mmm_dit_forward.39} parent=31 // pred_fallthru
        _
    $region32: #{mmm_dit_forward.39} parent=5 // pred_fallthru
      _
    %p334 = scmp.le.s32.totalorder 2, %s9
    // Predicated region
    $region37: #{mmm_dit_forward.39} parent=5 // pred_check
      %p335 = pneg %p334
    $region38: #{mmm_dit_forward.39} parent=5 // pred_check_branch
      %337 = sbr.rel (%p335) target = $region40
    $region39: #{mmm_dit_forward.39} parent=5 // pred_region
      %s338 = ssub.s32 %s9, 2
      // Predicated region
      $region41: #{mmm_dit_forward.39} parent=39 // pred_check
        %p339 = pneg %p106
      $region42: #{mmm_dit_forward.39} parent=39 // pred_check_branch
        %341 = sbr.rel (%p339) target = $region44
      $region43: #{mmm_dit_forward.39} parent=39 // pred_region
        %p342 = scmp.lt.s32.totalorder %s15, 1
        %s343 = scalar_select %p342, %s15, 1
        %s344 = smul.addr %s343, 4
        %s345 = scalar_lea.vmem %s3, %s344
      $region44: #{mmm_dit_forward.39} parent=39 // pred_fallthru
        _
    $region40: #{mmm_dit_forward.39} parent=5 // pred_fallthru
      _
  $region6: #{mmm_dit_forward.39} parent=0 // loop_footer
    %s13 = sadd.s32 1, %s9
  $region7: #{mmm_dit_forward.39} parent=0 // loop_footer_branch
    %8 = sbr.rel target = $region3
  $region8: #{mmm_dit_forward.39} parent=0 // loop_exit
    _

// kernel: mmm_dit_forward.41
$region0: #{mmm_dit_forward.41}
  #allocation0 [shape = 'u32[]', space=smem, size = 0x4, offset = 0x4, fixed_abs, tag = 'smem constant byte address 0x4 - core index']
  #allocation1 [shape = 'u32[144,128]{1,0:T(1,128)}', space=vmem, size = 0x12000, scoped, tag = 'internal scratch']
  %s0 = inlined_call_operand.vmem [shape: f32[2,6,32], index: 0, kind: input, shape index: {}]
  %s1 = inlined_call_operand.vmem [shape: bf16[96,64], index: 1, kind: input, shape index: {}]
  %s2 = inlined_call_operand.vmem [shape: f32[1,64], index: 2, kind: input, shape index: {}]
  %s3 = inlined_call_operand.vmem [shape: f32[2,4,64], index: 3, kind: output, shape index: {}]
  %s4 = sld [smem:[#allocation0]]
  $region45: #{mmm_dit_forward.41} parent=0
    _
  %s6 = ssub.s32 1, %s4
  %s7 = scalar_select 0, %s6, %s4
  loop: start=0, step=1, limit=4
  $region2: #{mmm_dit_forward.41} parent=0 // loop_pre_header
    _
  $region3: #{mmm_dit_forward.41} parent=0 // loop_header
    %s9 = sphi 0, %s13
    %p10 = scmp.ge.s32.totalorder %s9, 4
    %s19 = sphi 0, %s21
    %s22 = sphi 0, %s19
    %s23 = sphi 0, %s22
    %s39 = sphi 0, %s23
    %s43 = sphi 0, %s43
    %s45 = sphi 0, %s43
    %s46 = sphi 0, %s45
    %s60 = sphi 0, %s46
    %s64 = sphi 0, %s64
    %s66 = sphi 0, %s64
    %s67 = sphi 0, %s66
    %s81 = sphi 0, %s67
    %s87 = sphi 0, %s89
    %s90 = sphi 0, %s87
    %s91 = sphi 0, %s90
    %s107 = sphi 0, %s91
  $region4: #{mmm_dit_forward.41} parent=0 // loop_header_branch
    %12 = sbr.rel (%p10) target = $region8
  $region5: #{mmm_dit_forward.41} parent=0 // loop_body
    %s14 = ssub.s32 %s9, 1
    %s15 = ssub.s32 %s9, 2
    %s16 = sadd.s32 %s9, 1
    %s17 = ssub.s32 %s9, %s16
    %p18 = scmp.eq.s32.totalorder %s17, 0
    %s20 = sadd.s32 %s19, 1
    %s21 = scalar_select %p18, %s19, %s20
    %p24 = pneg %p18
    %p25 = scmp.eq.s32.totalorder %s9, 1
    %p26 = por %p24, %p25
    %p27 = scmp.ne.s32.totalorder %s19, %s22
    %p28 = scmp.eq.s32.totalorder %s9, 0
    %p29 = por %p27, %p28
    %p30 = scmp.ne.s32.totalorder %s19, %s22
    %p31 = scmp.eq.s32.totalorder %s14, 1
    %p32 = por %p30, %p31
    %p33 = scmp.ne.s32.totalorder %s22, %s23
    %p34 = scmp.eq.s32.totalorder %s14, 0
    %p35 = por %p33, %p34
    %p36 = scmp.ne.s32.totalorder %s22, %s23
    %p37 = scmp.eq.s32.totalorder %s15, 1
    %p38 = por %p36, %p37
    %p40 = scmp.ne.s32.totalorder %s23, %s39
    %p41 = scmp.eq.s32.totalorder %s15, 0
    %p42 = por %p40, %p41
    %s44 = sadd.s32 %s43, 1
    %p47 = scmp.eq.s32.totalorder %s9, 1
    %p48 = scmp.ne.s32.totalorder %s43, %s45
    %p49 = scmp.eq.s32.totalorder %s9, 0
    %p50 = por %p48, %p49
    %p51 = scmp.ne.s32.totalorder %s43, %s45
    %p52 = scmp.eq.s32.totalorder %s14, 1
    %p53 = por %p51, %p52
    %p54 = scmp.ne.s32.totalorder %s45, %s46
    %p55 = scmp.eq.s32.totalorder %s14, 0
    %p56 = por %p54, %p55
    %p57 = scmp.ne.s32.totalorder %s45, %s46
    %p58 = scmp.eq.s32.totalorder %s15, 1
    %p59 = por %p57, %p58
    %p61 = scmp.ne.s32.totalorder %s46, %s60
    %p62 = scmp.eq.s32.totalorder %s15, 0
    %p63 = por %p61, %p62
    %s65 = sadd.s32 %s64, 1
    %p68 = scmp.eq.s32.totalorder %s9, 1
    %p69 = scmp.ne.s32.totalorder %s64, %s66
    %p70 = scmp.eq.s32.totalorder %s9, 0
    %p71 = por %p69, %p70
    %p72 = scmp.ne.s32.totalorder %s64, %s66
    %p73 = scmp.eq.s32.totalorder %s14, 1
    %p74 = por %p72, %p73
    %p75 = scmp.ne.s32.totalorder %s66, %s67
    %p76 = scmp.eq.s32.totalorder %s14, 0
    %p77 = por %p75, %p76
    %p78 = scmp.ne.s32.totalorder %s66, %s67
    %p79 = scmp.eq.s32.totalorder %s15, 1
    %p80 = por %p78, %p79
    %p82 = scmp.ne.s32.totalorder %s67, %s81
    %p83 = scmp.eq.s32.totalorder %s15, 0
    %p84 = por %p82, %p83
    %s85 = ssub.s32 %s9, %s16
    %p86 = scmp.eq.s32.totalorder %s85, 0
    %s88 = sadd.s32 %s87, 1
    %s89 = scalar_select %p86, %s87, %s88
    %p92 = pneg %p86
    %p93 = scmp.eq.s32.totalorder %s9, 1
    %p94 = por %p92, %p93
    %p95 = scmp.ne.s32.totalorder %s87, %s90
    %p96 = scmp.eq.s32.totalorder %s9, 0
    %p97 = por %p95, %p96
    %p98 = scmp.ne.s32.totalorder %s87, %s90
    %p99 = scmp.eq.s32.totalorder %s14, 1
    %p100 = por %p98, %p99
    %p101 = scmp.ne.s32.totalorder %s90, %s91
    %p102 = scmp.eq.s32.totalorder %s14, 0
    %p103 = por %p101, %p102
    %p104 = scmp.ne.s32.totalorder %s90, %s91
    %p105 = scmp.eq.s32.totalorder %s15, 1
    %p106 = por %p104, %p105
    %p108 = scmp.ne.s32.totalorder %s91, %s107
    %p109 = scmp.eq.s32.totalorder %s15, 0
    %p110 = por %p108, %p109
    %p111 = scmp.le.s32.totalorder 1, %s9
    %p112 = scmp.lt.s32.totalorder %s9, 3
    %p113 = pnand %p111, %p112
    %p114 = pneg %p113
    // Predicated region
    $region9: #{mmm_dit_forward.41} parent=5 // pred_check
      _
    $region10: #{mmm_dit_forward.41} parent=5 // pred_check_branch
      %116 = sbr.rel (%p113) target = $region12
    $region11: #{mmm_dit_forward.41} parent=5 // pred_region
      %s117 = ssub.s32 %s9, 1
      // Predicated region
      $region13: #{mmm_dit_forward.41} parent=11 // pred_check
        %p118 = pneg %p56
      $region14: #{mmm_dit_forward.41} parent=11 // pred_check_branch
        %120 = sbr.rel (%p118) target = $region16
      $region15: #{mmm_dit_forward.41} parent=11 // pred_region
        _
      $region16: #{mmm_dit_forward.41} parent=11 // pred_fallthru
        _
      // Predicated region
      $region17: #{mmm_dit_forward.41} parent=11 // pred_check
        %p121 = pneg %p77
      $region18: #{mmm_dit_forward.41} parent=11 // pred_check_branch
        %123 = sbr.rel (%p121) target = $region20
      $region19: #{mmm_dit_forward.41} parent=11 // pred_region
        _
      $region20: #{mmm_dit_forward.41} parent=11 // pred_fallthru
        _
    $region12: #{mmm_dit_forward.41} parent=5 // pred_fallthru
      _
    %p124 = scmp.lt.s32.totalorder %s9, 2
    // Predicated region
    $region21: #{mmm_dit_forward.41} parent=5 // pred_check
      %p125 = pneg %p124
    $region22: #{mmm_dit_forward.41} parent=5 // pred_check_branch
      %127 = sbr.rel (%p125) target = $region24
    $region23: #{mmm_dit_forward.41} parent=5 // pred_region
      // Predicated region
      $region25: #{mmm_dit_forward.41} parent=23 // pred_check
        %p128 = pneg %p29
      $region26: #{mmm_dit_forward.41} parent=23 // pred_check_branch
        %130 = sbr.rel (%p128) target = $region28
      $region27: #{mmm_dit_forward.41} parent=23 // pred_region
        %p131 = scmp.lt.s32.totalorder %s9, 1
        %s132 = scalar_select %p131, %s9, 1
        %s133 = smul.addr %s132, 8
        %s134 = scalar_lea.vmem %s0, %s133
      $region28: #{mmm_dit_forward.41} parent=23 // pred_fallthru
        _
    $region24: #{mmm_dit_forward.41} parent=5 // pred_fallthru
      _
    %p135 = scmp.le.s32.totalorder 1, %s9
    %p136 = scmp.lt.s32.totalorder %s9, 3
    %p137 = pnand %p135, %p136
    %p138 = pneg %p137
    // Predicated region
    $region29: #{mmm_dit_forward.41} parent=5 // pred_check
      _
    $region30: #{mmm_dit_forward.41} parent=5 // pred_check_branch
      %140 = sbr.rel (%p137) target = $region32
    $region31: #{mmm_dit_forward.41} parent=5 // pred_region
      %s141 = ssub.s32 %s9, 1
      %p142 = scmp.lt.s32.totalorder %s14, 1
      %s143 = scalar_select %p142, %s14, 1
      %s144 = smul.addr %s143, 8
      %s145 = scalar_lea.vmem %s0, %s144
      %p146 = pneg %p35
      %p147 = pneg %p32
      %p148 = pneg %p56
      %p149 = pneg %p53
      %p150 = pneg %p77
      %p151 = pneg %p74
      %p152 = pneg %p103
      %p153 = pneg %p100
      %p154 = scmp.lt.s32.totalorder %s14, 1
      %s155 = scalar_select %p154, %s14, 1
      %s156 = smul.addr %s155, 4
      %s157 = scalar_lea.vmem %s3, %s156
      %p158 = scmp.lt.s32.totalorder %s14, 1
      %s159 = scalar_select %p158, %s14, 1
      %s160 = smul.addr %s159, 8
      %s161 = scalar_lea.vmem %s0, %s160
      %p162 = scmp.lt.s32.totalorder %s14, 1
      %s163 = scalar_select %p162, %s14, 1
      %s164 = smul.addr %s163, 4
      %s165 = scalar_lea.vmem %s3, %s164
      %v167 = vld [vmem:[%s161] sm:$0x3f]
      %v169 = vrot.slane %v167, 1
      %170 = vrot.lane.b32.xlu0 %v169, 32
      %v171 = vpop.permute.xlu0 %170
      %v173 = vrot.slane %v167, 2
      %174 = vrot.lane.b32.xlu0 %v173, 64
      %v175 = vpop.permute.xlu0 %174
      %vm177 = vcmask 261120
      %v178 = vsel %vm177, %v167, %v171
      %vm179 = vcmask 523264
      %v180 = vsel %vm179, %v178, %v175
      %v181 = vpack.c.bf16 %v180, %v180
      %v182 = vld [vmem:[%s1] sm:$0xf]
      %v183 = vld [vmem:[%s1 + $0x4] sm:$0xf]
      %v184 = vld [vmem:[%s1 + $0x8] sm:$0xf]
      %v185 = vld [vmem:[%s1 + $0xc] sm:$0xf]
      %v186 = vld [vmem:[%s1 + $0x10] sm:$0xf]
      %v187 = vld [vmem:[%s1 + $0x14] sm:$0xf]
      %v188 = vld [vmem:[%s1 + $0x18] sm:$0xf]
      %v189 = vld [vmem:[%s1 + $0x1c] sm:$0xf]
      %v190 = vld [vmem:[%s1 + $0x20] sm:$0xf]
      %v191 = vld [vmem:[%s1 + $0x24] sm:$0xf]
      %v192 = vld [vmem:[%s1 + $0x28] sm:$0xf]
      %v193 = vld [vmem:[%s1 + $0x2c] sm:$0xf]
      %v194 = vld [vmem:[%s2] sm:$0x1]
      %v196 = vlaneseq
      %v197 = vshrl.u32 %v196, 7
      %v198 = vsub.s32 0, %v197
      %v199 = vrot.slane %v194, %v198
      %v213 = vunpack.c.l.b16 %v182
      %v214 = vunpack.c.l.b16 %v183
      %v215 = vunpack.c.l.b16 %v184
      %v216 = vunpack.c.l.b16 %v185
      %v217 = vunpack.c.l.b16 %v186
      %v218 = vunpack.c.l.b16 %v187
      %v219 = vunpack.c.l.b16 %v188
      %v220 = vunpack.c.l.b16 %v189
      %v221 = vunpack.c.l.b16 %v190
      %v222 = vunpack.c.l.b16 %v191
      %v223 = vunpack.c.l.b16 %v192
      %v224 = vunpack.c.l.b16 %v193
      %v225 = vpack.c.b16 %v214, %v213
      %v226 = vpack.c.b16 %v216, %v215
      %v227 = vpack.c.b16 %v218, %v217
      %v228 = vpack.c.b16 %v220, %v219
      %v229 = vpack.c.b16 %v222, %v221
      %v230 = vpack.c.b16 %v224, %v223
      %vm237 = vcmask 785408
      %v239 = vsel %vm237, %v181, 0
      %241 = vmatprep.subr.bf16.mxu0 0
      %242 = vmatpush1.bf16.msra.mxu0 %v225
      %243 = vmatprep.subr.bf16.mxu0 0
      %244 = vmatpush1.bf16.msra.mxu0 %v226
      %245 = vmatprep.subr.bf16.mxu0 0
      %246 = vmatpush1.bf16.msra.mxu0 %v227
      %247 = vmatprep.subr.bf16.mxu0 0
      %248 = vmatpush1.bf16.msra.mxu0 %v228
      %249 = vmatprep.subr.bf16.mxu0 0
      %250 = vmatpush1.bf16.msra.mxu0 %v229
      %251 = vmatprep.subr.bf16.mxu0 0
      %252 = vmatpush1.bf16.msra.mxu0 %v230
      %253 = vmatprep.subr.bf16.mxu0 0
      %254 = vmatpush1.bf16.msra.mxu0 0
      %255 = vmatprep.subr.bf16.mxu0 0
      %256 = vmatpush1.bf16.msra.mxu0 0
      %257 = vmatprep.subr.bf16.mxu0 0
      %258 = vmatpush1.bf16.msra.mxu0 0
      %259 = vmatprep.subr.bf16.mxu0 0
      %260 = vmatpush1.bf16.msra.mxu0 0
      %261 = vmatprep.subr.bf16.mxu0 0
      %262 = vmatpush1.bf16.msra.mxu0 0
      %263 = vmatprep.subr.bf16.mxu0 0
      %264 = vmatpush1.bf16.msra.mxu0 0
      %265 = vmatprep.subr.bf16.mxu0 0
      %266 = vmatpush1.bf16.msra.mxu0 0
      %267 = vmatprep.subr.bf16.mxu0 0
      %268 = vmatpush1.bf16.msra.mxu0 0
      %269 = vmatprep.subr.bf16.mxu0 0
      %270 = vmatpush1.bf16.msra.mxu0 0
      %271 = vmatprep.subr.bf16.mxu0 0
      %272 = vmatpush1.bf16.msra.mxu0 0
      %273 = vmatprep.mubr.bf16.mxu0 0
      %274 = vmatmul.mubr.bf16.gmra.mrb[0].mxu0 %v239
      %v275 = vpop.f32.mrb[0].mxu0
      %v276 = vadd.f32 %v199, %v275
      %v277 = vpop.f32.mrb[0].mxu0
      %v278 = vpop.f32.mrb[0].mxu0
      %v279 = vpop.f32.mrb[0].mxu0
      %280 = vdwg.mxu0
      %v281 = vmax.f32 %v276, 0.0
      %vm282 = vcmask 519168
      %283 = vst.msk [vmem:[%s165] sm:$0xf] %vm282, %v281
      %p284 = scmp.lt.s32.totalorder %s14, 1
      %s285 = scalar_select %p284, %s14, 1
      %s286 = smul.addr %s285, 4
      %s287 = scalar_lea.vmem %s3, %s286
      // Predicated region
      $region33: #{mmm_dit_forward.41} parent=31 // pred_check
        %p288 = pneg %p100
      $region34: #{mmm_dit_forward.41} parent=31 // pred_check_branch
        %290 = sbr.rel (%p288) target = $region36
      $region35: #{mmm_dit_forward.41} parent=31 // pred_region
        _
      $region36: #{mmm_dit_forward.41} parent=31 // pred_fallthru
        _
    $region32: #{mmm_dit_forward.41} parent=5 // pred_fallthru
      _
    %p291 = scmp.le.s32.totalorder 2, %s9
    // Predicated region
    $region37: #{mmm_dit_forward.41} parent=5 // pred_check
      %p292 = pneg %p291
    $region38: #{mmm_dit_forward.41} parent=5 // pred_check_branch
      %294 = sbr.rel (%p292) target = $region40
    $region39: #{mmm_dit_forward.41} parent=5 // pred_region
      %s295 = ssub.s32 %s9, 2
      // Predicated region
      $region41: #{mmm_dit_forward.41} parent=39 // pred_check
        %p296 = pneg %p106
      $region42: #{mmm_dit_forward.41} parent=39 // pred_check_branch
        %298 = sbr.rel (%p296) target = $region44
      $region43: #{mmm_dit_forward.41} parent=39 // pred_region
        %p299 = scmp.lt.s32.totalorder %s15, 1
        %s300 = scalar_select %p299, %s15, 1
        %s301 = smul.addr %s300, 4
        %s302 = scalar_lea.vmem %s3, %s301
      $region44: #{mmm_dit_forward.41} parent=39 // pred_fallthru
        _
    $region40: #{mmm_dit_forward.41} parent=5 // pred_fallthru
      _
  $region6: #{mmm_dit_forward.41} parent=0 // loop_footer
    %s13 = sadd.s32 1, %s9
  $region7: #{mmm_dit_forward.41} parent=0 // loop_footer_branch
    %8 = sbr.rel target = $region3
  $region8: #{mmm_dit_forward.41} parent=0 // loop_exit
    _

// kernel: mmm_dit_forward.46
$region0: #{mmm_dit_forward.46}
  #allocation0 [shape = 'u32[]', space=smem, size = 0x4, offset = 0x4, fixed_abs, tag = 'smem constant byte address 0x4 - core index']
  #allocation1 [shape = 'u32[144,128]{1,0:T(1,128)}', space=vmem, size = 0x12000, scoped, tag = 'internal scratch']
  %s0 = inlined_call_operand.vmem [shape: f32[2,10,64], index: 0, kind: input, shape index: {}]
  %s1 = inlined_call_operand.vmem [shape: bf16[192,64], index: 1, kind: input, shape index: {}]
  %s2 = inlined_call_operand.vmem [shape: f32[1,64], index: 2, kind: input, shape index: {}]
  %s3 = inlined_call_operand.vmem [shape: f32[2,8,64], index: 3, kind: output, shape index: {}]
  %s4 = sld [smem:[#allocation0]]
  $region45: #{mmm_dit_forward.46} parent=0
    _
  %s6 = ssub.s32 1, %s4
  %s7 = scalar_select 0, %s6, %s4
  loop: start=0, step=1, limit=4
  $region2: #{mmm_dit_forward.46} parent=0 // loop_pre_header
    _
  $region3: #{mmm_dit_forward.46} parent=0 // loop_header
    %s9 = sphi 0, %s13
    %p10 = scmp.ge.s32.totalorder %s9, 4
    %s19 = sphi 0, %s21
    %s22 = sphi 0, %s19
    %s23 = sphi 0, %s22
    %s39 = sphi 0, %s23
    %s43 = sphi 0, %s43
    %s45 = sphi 0, %s43
    %s46 = sphi 0, %s45
    %s60 = sphi 0, %s46
    %s64 = sphi 0, %s64
    %s66 = sphi 0, %s64
    %s67 = sphi 0, %s66
    %s81 = sphi 0, %s67
    %s87 = sphi 0, %s89
    %s90 = sphi 0, %s87
    %s91 = sphi 0, %s90
    %s107 = sphi 0, %s91
  $region4: #{mmm_dit_forward.46} parent=0 // loop_header_branch
    %12 = sbr.rel (%p10) target = $region8
  $region5: #{mmm_dit_forward.46} parent=0 // loop_body
    %s14 = ssub.s32 %s9, 1
    %s15 = ssub.s32 %s9, 2
    %s16 = sadd.s32 %s9, 1
    %s17 = ssub.s32 %s9, %s16
    %p18 = scmp.eq.s32.totalorder %s17, 0
    %s20 = sadd.s32 %s19, 1
    %s21 = scalar_select %p18, %s19, %s20
    %p24 = pneg %p18
    %p25 = scmp.eq.s32.totalorder %s9, 1
    %p26 = por %p24, %p25
    %p27 = scmp.ne.s32.totalorder %s19, %s22
    %p28 = scmp.eq.s32.totalorder %s9, 0
    %p29 = por %p27, %p28
    %p30 = scmp.ne.s32.totalorder %s19, %s22
    %p31 = scmp.eq.s32.totalorder %s14, 1
    %p32 = por %p30, %p31
    %p33 = scmp.ne.s32.totalorder %s22, %s23
    %p34 = scmp.eq.s32.totalorder %s14, 0
    %p35 = por %p33, %p34
    %p36 = scmp.ne.s32.totalorder %s22, %s23
    %p37 = scmp.eq.s32.totalorder %s15, 1
    %p38 = por %p36, %p37
    %p40 = scmp.ne.s32.totalorder %s23, %s39
    %p41 = scmp.eq.s32.totalorder %s15, 0
    %p42 = por %p40, %p41
    %s44 = sadd.s32 %s43, 1
    %p47 = scmp.eq.s32.totalorder %s9, 1
    %p48 = scmp.ne.s32.totalorder %s43, %s45
    %p49 = scmp.eq.s32.totalorder %s9, 0
    %p50 = por %p48, %p49
    %p51 = scmp.ne.s32.totalorder %s43, %s45
    %p52 = scmp.eq.s32.totalorder %s14, 1
    %p53 = por %p51, %p52
    %p54 = scmp.ne.s32.totalorder %s45, %s46
    %p55 = scmp.eq.s32.totalorder %s14, 0
    %p56 = por %p54, %p55
    %p57 = scmp.ne.s32.totalorder %s45, %s46
    %p58 = scmp.eq.s32.totalorder %s15, 1
    %p59 = por %p57, %p58
    %p61 = scmp.ne.s32.totalorder %s46, %s60
    %p62 = scmp.eq.s32.totalorder %s15, 0
    %p63 = por %p61, %p62
    %s65 = sadd.s32 %s64, 1
    %p68 = scmp.eq.s32.totalorder %s9, 1
    %p69 = scmp.ne.s32.totalorder %s64, %s66
    %p70 = scmp.eq.s32.totalorder %s9, 0
    %p71 = por %p69, %p70
    %p72 = scmp.ne.s32.totalorder %s64, %s66
    %p73 = scmp.eq.s32.totalorder %s14, 1
    %p74 = por %p72, %p73
    %p75 = scmp.ne.s32.totalorder %s66, %s67
    %p76 = scmp.eq.s32.totalorder %s14, 0
    %p77 = por %p75, %p76
    %p78 = scmp.ne.s32.totalorder %s66, %s67
    %p79 = scmp.eq.s32.totalorder %s15, 1
    %p80 = por %p78, %p79
    %p82 = scmp.ne.s32.totalorder %s67, %s81
    %p83 = scmp.eq.s32.totalorder %s15, 0
    %p84 = por %p82, %p83
    %s85 = ssub.s32 %s9, %s16
    %p86 = scmp.eq.s32.totalorder %s85, 0
    %s88 = sadd.s32 %s87, 1
    %s89 = scalar_select %p86, %s87, %s88
    %p92 = pneg %p86
    %p93 = scmp.eq.s32.totalorder %s9, 1
    %p94 = por %p92, %p93
    %p95 = scmp.ne.s32.totalorder %s87, %s90
    %p96 = scmp.eq.s32.totalorder %s9, 0
    %p97 = por %p95, %p96
    %p98 = scmp.ne.s32.totalorder %s87, %s90
    %p99 = scmp.eq.s32.totalorder %s14, 1
    %p100 = por %p98, %p99
    %p101 = scmp.ne.s32.totalorder %s90, %s91
    %p102 = scmp.eq.s32.totalorder %s14, 0
    %p103 = por %p101, %p102
    %p104 = scmp.ne.s32.totalorder %s90, %s91
    %p105 = scmp.eq.s32.totalorder %s15, 1
    %p106 = por %p104, %p105
    %p108 = scmp.ne.s32.totalorder %s91, %s107
    %p109 = scmp.eq.s32.totalorder %s15, 0
    %p110 = por %p108, %p109
    %p111 = scmp.le.s32.totalorder 1, %s9
    %p112 = scmp.lt.s32.totalorder %s9, 3
    %p113 = pnand %p111, %p112
    %p114 = pneg %p113
    // Predicated region
    $region9: #{mmm_dit_forward.46} parent=5 // pred_check
      _
    $region10: #{mmm_dit_forward.46} parent=5 // pred_check_branch
      %116 = sbr.rel (%p113) target = $region12
    $region11: #{mmm_dit_forward.46} parent=5 // pred_region
      %s117 = ssub.s32 %s9, 1
      // Predicated region
      $region13: #{mmm_dit_forward.46} parent=11 // pred_check
        %p118 = pneg %p56
      $region14: #{mmm_dit_forward.46} parent=11 // pred_check_branch
        %120 = sbr.rel (%p118) target = $region16
      $region15: #{mmm_dit_forward.46} parent=11 // pred_region
        _
      $region16: #{mmm_dit_forward.46} parent=11 // pred_fallthru
        _
      // Predicated region
      $region17: #{mmm_dit_forward.46} parent=11 // pred_check
        %p121 = pneg %p77
      $region18: #{mmm_dit_forward.46} parent=11 // pred_check_branch
        %123 = sbr.rel (%p121) target = $region20
      $region19: #{mmm_dit_forward.46} parent=11 // pred_region
        _
      $region20: #{mmm_dit_forward.46} parent=11 // pred_fallthru
        _
    $region12: #{mmm_dit_forward.46} parent=5 // pred_fallthru
      _
    %p124 = scmp.lt.s32.totalorder %s9, 2
    // Predicated region
    $region21: #{mmm_dit_forward.46} parent=5 // pred_check
      %p125 = pneg %p124
    $region22: #{mmm_dit_forward.46} parent=5 // pred_check_branch
      %127 = sbr.rel (%p125) target = $region24
    $region23: #{mmm_dit_forward.46} parent=5 // pred_region
      // Predicated region
      $region25: #{mmm_dit_forward.46} parent=23 // pred_check
        %p128 = pneg %p29
      $region26: #{mmm_dit_forward.46} parent=23 // pred_check_branch
        %130 = sbr.rel (%p128) target = $region28
      $region27: #{mmm_dit_forward.46} parent=23 // pred_region
        %p131 = scmp.lt.s32.totalorder %s9, 1
        %s132 = scalar_select %p131, %s9, 1
        %s133 = smul.addr %s132, 2
        %s134 = smul.addr %s133, 8
        %s135 = scalar_lea.vmem %s0, %s134
      $region28: #{mmm_dit_forward.46} parent=23 // pred_fallthru
        _
    $region24: #{mmm_dit_forward.46} parent=5 // pred_fallthru
      _
    %p136 = scmp.le.s32.totalorder 1, %s9
    %p137 = scmp.lt.s32.totalorder %s9, 3
    %p138 = pnand %p136, %p137
    %p139 = pneg %p138
    // Predicated region
    $region29: #{mmm_dit_forward.46} parent=5 // pred_check
      _
    $region30: #{mmm_dit_forward.46} parent=5 // pred_check_branch
      %141 = sbr.rel (%p138) target = $region32
    $region31: #{mmm_dit_forward.46} parent=5 // pred_region
      %s142 = ssub.s32 %s9, 1
      %p143 = scmp.lt.s32.totalorder %s14, 1
      %s144 = scalar_select %p143, %s14, 1
      %s145 = smul.addr %s144, 2
      %s146 = smul.addr %s145, 8
      %s147 = scalar_lea.vmem %s0, %s146
      %p148 = pneg %p35
      %p149 = pneg %p32
      %p150 = pneg %p56
      %p151 = pneg %p53
      %p152 = pneg %p77
      %p153 = pneg %p74
      %p154 = pneg %p103
      %p155 = pneg %p100
      %p156 = scmp.lt.s32.totalorder %s14, 1
      %s157 = scalar_select %p156, %s14, 1
      %s158 = smul.addr %s157, 8
      %s159 = scalar_lea.vmem %s3, %s158
      %p160 = scmp.lt.s32.totalorder %s14, 1
      %s161 = scalar_select %p160, %s14, 1
      %s162 = smul.addr %s161, 2
      %s163 = smul.addr %s162, 8
      %s164 = scalar_lea.vmem %s0, %s163
      %p165 = scmp.lt.s32.totalorder %s14, 1
      %s166 = scalar_select %p165, %s14, 1
      %s167 = smul.addr %s166, 8
      %s168 = scalar_lea.vmem %s3, %s167
      %v170 = vld [vmem:[%s164] sm:$0xff]
      %v171 = vld [vmem:[%s164 + $0x8] sm:$0x3]
      %vm174 = vcmask 1046528
      %v175 = vrot.slane %v170, 1
      %v176 = vrot.slane %v171, 1
      %v177 = vsel %vm174, %v175, %v176
      %178 = vrot.lane.b32.xlu0 %v177, 64
      %v179 = vpop.permute.xlu0 %178
      %vm181 = vcmask 1045504
      %v182 = vrot.slane %v170, 2
      %v183 = vrot.slane %v171, 2
      %v184 = vsel %vm181, %v182, %v183
      %vm186 = vcmask 523264
      %v187 = vsel %vm186, %v170, %v179
      %v188 = vpack.c.bf16 %v187, %v187
      %v189 = vpack.c.bf16 %v184, %v184
      %v190 = vld [vmem:[%s1] sm:$0xf]
      %v191 = vld [vmem:[%s1 + $0x4] sm:$0xf]
      %v192 = vld [vmem:[%s1 + $0x8] sm:$0xf]
      %v193 = vld [vmem:[%s1 + $0xc] sm:$0xf]
      %v194 = vld [vmem:[%s1 + $0x10] sm:$0xf]
      %v195 = vld [vmem:[%s1 + $0x14] sm:$0xf]
      %v196 = vld [vmem:[%s1 + $0x18] sm:$0xf]
      %v197 = vld [vmem:[%s1 + $0x1c] sm:$0xf]
      %v198 = vld [vmem:[%s1 + $0x20] sm:$0xf]
      %v199 = vld [vmem:[%s1 + $0x24] sm:$0xf]
      %v200 = vld [vmem:[%s1 + $0x28] sm:$0xf]
      %v201 = vld [vmem:[%s1 + $0x2c] sm:$0xf]
      %v202 = vld [vmem:[%s1 + $0x30] sm:$0xf]
      %v203 = vld [vmem:[%s1 + $0x34] sm:$0xf]
      %v204 = vld [vmem:[%s1 + $0x38] sm:$0xf]
      %v205 = vld [vmem:[%s1 + $0x3c] sm:$0xf]
      %v206 = vld [vmem:[%s1 + $0x40] sm:$0xf]
      %v207 = vld [vmem:[%s1 + $0x44] sm:$0xf]
      %v208 = vld [vmem:[%s1 + $0x48] sm:$0xf]
      %v209 = vld [vmem:[%s1 + $0x4c] sm:$0xf]
      %v210 = vld [vmem:[%s1 + $0x50] sm:$0xf]
      %v211 = vld [vmem:[%s1 + $0x54] sm:$0xf]
      %v212 = vld [vmem:[%s1 + $0x58] sm:$0xf]
      %v213 = vld [vmem:[%s1 + $0x5c] sm:$0xf]
      %v214 = vld [vmem:[%s2] sm:$0x1]
      %v216 = vlaneseq
      %v217 = vshrl.u32 %v216, 7
      %v218 = vsub.s32 0, %v217
      %v219 = vrot.slane %v214, %v218
      %v245 = vunpack.c.l.b16 %v190
      %v246 = vunpack.c.l.b16 %v191
      %v247 = vunpack.c.l.b16 %v192
      %v248 = vunpack.c.l.b16 %v193
      %v249 = vunpack.c.l.b16 %v194
      %v250 = vunpack.c.l.b16 %v195
      %v251 = vunpack.c.l.b16 %v196
      %v252 = vunpack.c.l.b16 %v197
      %v253 = vunpack.c.l.b16 %v198
      %v254 = vunpack.c.l.b16 %v199
      %v255 = vunpack.c.l.b16 %v200
      %v256 = vunpack.c.l.b16 %v201
      %v257 = vunpack.c.l.b16 %v202
      %v258 = vunpack.c.l.b16 %v203
      %v259 = vunpack.c.l.b16 %v204
      %v260 = vunpack.c.l.b16 %v205
      %v261 = vunpack.c.l.b16 %v206
      %v262 = vunpack.c.l.b16 %v207
      %v263 = vunpack.c.l.b16 %v208
      %v264 = vunpack.c.l.b16 %v209
      %v265 = vunpack.c.l.b16 %v210
      %v266 = vunpack.c.l.b16 %v211
      %v267 = vunpack.c.l.b16 %v212
      %v268 = vunpack.c.l.b16 %v213
      %v269 = vpack.c.b16 %v246, %v245
      %v270 = vpack.c.b16 %v248, %v247
      %v271 = vpack.c.b16 %v250, %v249
      %v272 = vpack.c.b16 %v252, %v251
      %v273 = vpack.c.b16 %v254, %v253
      %v274 = vpack.c.b16 %v256, %v255
      %v275 = vpack.c.b16 %v258, %v257
      %v276 = vpack.c.b16 %v260, %v259
      %v277 = vpack.c.b16 %v262, %v261
      %v278 = vpack.c.b16 %v264, %v263
      %v279 = vpack.c.b16 %v266, %v265
      %v280 = vpack.c.b16 %v268, %v267
      %v294 = vsel %vm186, %v189, 0
      %296 = vmatprep.subr.bf16.mxu0 0
      %297 = vmatpush1.bf16.msra.mxu0 %v269
      %298 = vmatprep.subr.bf16.mxu0 0
      %299 = vmatpush1.bf16.msra.mxu0 %v270
      %300 = vmatprep.subr.bf16.mxu0 0
      %301 = vmatpush1.bf16.msra.mxu0 %v271
      %302 = vmatprep.subr.bf16.mxu0 0
      %303 = vmatpush1.bf16.msra.mxu0 %v272
      %304 = vmatprep.subr.bf16.mxu0 0
      %305 = vmatpush1.bf16.msra.mxu0 %v273
      %306 = vmatprep.subr.bf16.mxu0 0
      %307 = vmatpush1.bf16.msra.mxu0 %v274
      %308 = vmatprep.subr.bf16.mxu0 0
      %309 = vmatpush1.bf16.msra.mxu0 %v275
      %310 = vmatprep.subr.bf16.mxu0 0
      %311 = vmatpush1.bf16.msra.mxu0 %v276
      %312 = vmatprep.subr.bf16.mxu0 0
      %313 = vmatpush1.bf16.msra.mxu0 %v277
      %314 = vmatprep.subr.bf16.mxu0 0
      %315 = vmatpush1.bf16.msra.mxu0 %v278
      %316 = vmatprep.subr.bf16.mxu0 0
      %317 = vmatpush1.bf16.msra.mxu0 %v279
      %318 = vmatprep.subr.bf16.mxu0 0
      %319 = vmatpush1.bf16.msra.mxu0 %v280
      %320 = vmatprep.subr.bf16.mxu0 0
      %321 = vmatpush1.bf16.msra.mxu0 0
      %322 = vmatprep.subr.bf16.mxu0 0
      %323 = vmatpush1.bf16.msra.mxu0 0
      %324 = vmatprep.subr.bf16.mxu0 0
      %325 = vmatpush1.bf16.msra.mxu0 0
      %326 = vmatprep.subr.bf16.mxu0 0
      %327 = vmatpush1.bf16.msra.mxu0 0
      %328 = vmatprep.mubr.bf16.mxu0 %v294
      %329 = vmatmul.mubr.bf16.gmra.mrb[0].mxu0 %v188
      %v330 = vpop.f32.mrb[0].mxu0
      %v331 = vadd.f32 %v219, %v330
      %v332 = vpop.f32.mrb[0].mxu0
      %v333 = vpop.f32.mrb[0].mxu0
      %v334 = vpop.f32.mrb[0].mxu0
      %335 = vdwg.mxu0
      %336 = vst.msk [vmem:[%s168] sm:$0xff] %vm186, %v331
      %p337 = scmp.lt.s32.totalorder %s14, 1
      %s338 = scalar_select %p337, %s14, 1
      %s339 = smul.addr %s338, 8
      %s340 = scalar_lea.vmem %s3, %s339
      // Predicated region
      $region33: #{mmm_dit_forward.46} parent=31 // pred_check
        %p341 = pneg %p100
      $region34: #{mmm_dit_forward.46} parent=31 // pred_check_branch
        %343 = sbr.rel (%p341) target = $region36
      $region35: #{mmm_dit_forward.46} parent=31 // pred_region
        _
      $region36: #{mmm_dit_forward.46} parent=31 // pred_fallthru
        _
    $region32: #{mmm_dit_forward.46} parent=5 // pred_fallthru
      _
    %p344 = scmp.le.s32.totalorder 2, %s9
    // Predicated region
    $region37: #{mmm_dit_forward.46} parent=5 // pred_check
      %p345 = pneg %p344
    $region38: #{mmm_dit_forward.46} parent=5 // pred_check_branch
      %347 = sbr.rel (%p345) target = $region40
    $region39: #{mmm_dit_forward.46} parent=5 // pred_region
      %s348 = ssub.s32 %s9, 2
      // Predicated region
      $region41: #{mmm_dit_forward.46} parent=39 // pred_check
        %p349 = pneg %p106
      $region42: #{mmm_dit_forward.46} parent=39 // pred_check_branch
        %351 = sbr.rel (%p349) target = $region44
      $region43: #{mmm_dit_forward.46} parent=39 // pred_region
        %p352 = scmp.lt.s32.totalorder %s15, 1
        %s353 = scalar_select %p352, %s15, 1
        %s354 = smul.addr %s353, 8
        %s355 = scalar_lea.vmem %s3, %s354
      $region44: #{mmm_dit_forward.46} parent=39 // pred_fallthru
        _
    $region40: #{mmm_dit_forward.46} parent=5 // pred_fallthru
      _
  $region6: #{mmm_dit_forward.46} parent=0 // loop_footer
    %s13 = sadd.s32 1, %s9
  $region7: #{mmm_dit_forward.46} parent=0 // loop_footer_branch
    %8 = sbr.rel target = $region3
  $region8: #{mmm_dit_forward.46} parent=0 // loop_exit
    _

// kernel: mmm_dit_forward.40
$region0: #{mmm_dit_forward.40}
  #allocation0 [shape = 'u32[]', space=smem, size = 0x4, offset = 0x4, fixed_abs, tag = 'smem constant byte address 0x4 - core index']
  #allocation1 [shape = 'u32[144,128]{1,0:T(1,128)}', space=vmem, size = 0x12000, scoped, tag = 'internal scratch']
  #allocation2 [shape = 'f32[1,256]{1,0:T(1,128)}', space=vmem, size = 0x400, scoped, tag = 'scratch operand']
  #allocation3 [shape = 'f32[1,1]{1,0:T(1,128)}', space=vmem, size = 0x200, scoped, tag = 'scratch operand']
  %s0 = inlined_call_operand.vmem [shape: f32[8,32], index: 0, kind: input, shape index: {}]
  %s1 = inlined_call_operand.vmem [shape: f32[256,32], index: 1, kind: input, shape index: {}]
  %s2 = inlined_call_operand.vmem [shape: f32[1,256], index: 2, kind: input, shape index: {}]
  %s3 = inlined_call_operand.vmem [shape: f32[8,32], index: 3, kind: output, shape index: {0}]
  %s4 = inlined_call_operand.hbm [shape: f32[1,1], index: 4, kind: output, shape index: {1}]
  %s5 = inlined_call_operand.hbm [shape: f32[1,1], index: 5, kind: output, shape index: {2}]
  %6 = xla_tuple %s3, %s4, %s5
  %s7 = sld [smem:[#allocation0]]
  $region46: #{mmm_dit_forward.40} parent=0
    _
  %s9 = ssub.s32 1, %s7
  %s10 = scalar_select 0, %s9, %s7
  $region1: #{mmm_dit_forward.40} parent=0
    #allocation4 [shape = 'u8[512]{0}', space=vmem, size = 0x400, scoped, tag = 'output window, operand 1, single buffered']
    #allocation5 [shape = 's32[1]{0}', space=sflag, size = 0x4, scoped, tag = 'scoped memory for mmm_dit_forward.40']
    #allocation6 [shape = 'u8[512]{0}', space=vmem, size = 0x400, scoped, tag = 'output window, operand 2, single buffered']
    #allocation7 [shape = 's32[1]{0}', space=sflag, size = 0x4, scoped, tag = 'scoped memory for mmm_dit_forward.40']
    %11 = vsyncpa [#allocation5], 0
    %12 = vsyncpa [#allocation7], 0
    // Predicated region
    $region2: #{mmm_dit_forward.40} parent=1 // pred_check
      _
    $region3: #{mmm_dit_forward.40} parent=1 // pred_check_branch
      %14 = sbr.rel (0) target = $region5
    $region4: #{mmm_dit_forward.40} parent=1 // pred_region
      _
    $region5: #{mmm_dit_forward.40} parent=1 // pred_fallthru
      _
    // Predicated region
    $region6: #{mmm_dit_forward.40} parent=1 // pred_check
      _
    $region7: #{mmm_dit_forward.40} parent=1 // pred_check_branch
      %16 = sbr.rel (0) target = $region9
    $region8: #{mmm_dit_forward.40} parent=1 // pred_region
      _
    $region9: #{mmm_dit_forward.40} parent=1 // pred_fallthru
      _
    // Predicated region
    $region10: #{mmm_dit_forward.40} parent=1 // pred_check
      _
    $region11: #{mmm_dit_forward.40} parent=1 // pred_check_branch
      %18 = sbr.rel (0) target = $region13
    $region12: #{mmm_dit_forward.40} parent=1 // pred_region
      _
    $region13: #{mmm_dit_forward.40} parent=1 // pred_fallthru
      _
    %p20 = scmp.eq.s32.totalorder 0, 0
    // Predicated region
    $region14: #{mmm_dit_forward.40} parent=1 // pred_check
      %p21 = pneg %p20
    $region15: #{mmm_dit_forward.40} parent=1 // pred_check_branch
      %23 = sbr.rel (%p21) target = $region17
    $region16: #{mmm_dit_forward.40} parent=1 // pred_region
      %v24 = vlaneseq
      %vm25 = vcmp.ge.s32.totalorder %v24, 0
      %vm26 = vcmp.lt.s32.totalorder %v24, 256
      %vm27 = vmand %vm25, %vm26
      %28 = vst.msk [vmem:[#allocation2] sm:$0x3] %vm27, 0.0
      %vm29 = vcmask 0
      %30 = vst.msk [vmem:[#allocation3] sm:$0x1] %vm29, 0.0
    $region17: #{mmm_dit_forward.40} parent=1 // pred_fallthru
      _
    %v31 = vld [vmem:[%s0] sm:$0xff]
    %v32 = vld [vmem:[%s1] sm:$0xff]
    %v33 = vld [vmem:[%s1 + $0x8] sm:$0xff]
    %v34 = vld [vmem:[%s1 + $0x10] sm:$0xff]
    %v35 = vld [vmem:[%s1 + $0x18] sm:$0xff]
    %v36 = vld [vmem:[%s1 + $0x20] sm:$0xff]
    %v37 = vld [vmem:[%s1 + $0x28] sm:$0xff]
    %v38 = vld [vmem:[%s1 + $0x30] sm:$0xff]
    %v39 = vld [vmem:[%s1 + $0x38] sm:$0xff]
    %v40 = vld [vmem:[%s1 + $0x40] sm:$0xff]
    %v41 = vld [vmem:[%s1 + $0x48] sm:$0xff]
    %v42 = vld [vmem:[%s1 + $0x50] sm:$0xff]
    %v43 = vld [vmem:[%s1 + $0x58] sm:$0xff]
    %v44 = vld [vmem:[%s1 + $0x60] sm:$0xff]
    %v45 = vld [vmem:[%s1 + $0x68] sm:$0xff]
    %v46 = vld [vmem:[%s1 + $0x70] sm:$0xff]
    %v47 = vld [vmem:[%s1 + $0x78] sm:$0xff]
    %v48 = vld [vmem:[%s1 + $0x80] sm:$0xff]
    %v49 = vld [vmem:[%s1 + $0x88] sm:$0xff]
    %v50 = vld [vmem:[%s1 + $0x90] sm:$0xff]
    %v51 = vld [vmem:[%s1 + $0x98] sm:$0xff]
    %v52 = vld [vmem:[%s1 + $0xa0] sm:$0xff]
    %v53 = vld [vmem:[%s1 + $0xa8] sm:$0xff]
    %v54 = vld [vmem:[%s1 + $0xb0] sm:$0xff]
    %v55 = vld [vmem:[%s1 + $0xb8] sm:$0xff]
    %v56 = vld [vmem:[%s1 + $0xc0] sm:$0xff]
    %v57 = vld [vmem:[%s1 + $0xc8] sm:$0xff]
    %v58 = vld [vmem:[%s1 + $0xd0] sm:$0xff]
    %v59 = vld [vmem:[%s1 + $0xd8] sm:$0xff]
    %v60 = vld [vmem:[%s1 + $0xe0] sm:$0xff]
    %v61 = vld [vmem:[%s1 + $0xe8] sm:$0xff]
    %v62 = vld [vmem:[%s1 + $0xf0] sm:$0xff]
    %v63 = vld [vmem:[%s1 + $0xf8] sm:$0xff]
    %v64 = vpack.c.bf16 %v31, %v31
    %v65 = vpack.c.bf16 %v33, %v32
    %v66 = vpack.c.bf16 %v35, %v34
    %v67 = vpack.c.bf16 %v37, %v36
    %v68 = vpack.c.bf16 %v39, %v38
    %v69 = vpack.c.bf16 %v41, %v40
    %v70 = vpack.c.bf16 %v43, %v42
    %v71 = vpack.c.bf16 %v45, %v44
    %v72 = vpack.c.bf16 %v47, %v46
    %v73 = vpack.c.bf16 %v49, %v48
    %v74 = vpack.c.bf16 %v51, %v50
    %v75 = vpack.c.bf16 %v53, %v52
    %v76 = vpack.c.bf16 %v55, %v54
    %v77 = vpack.c.bf16 %v57, %v56
    %v78 = vpack.c.bf16 %v59, %v58
    %v79 = vpack.c.bf16 %v61, %v60
    %v80 = vpack.c.bf16 %v63, %v62
    %vm81 = vcmask 261120
    %v83 = vsel %vm81, %v64, 0
    %v86 = vsel %vm81, %v65, 0
    %v89 = vsel %vm81, %v66, 0
    %v92 = vsel %vm81, %v67, 0
    %v95 = vsel %vm81, %v68, 0
    %v98 = vsel %vm81, %v69, 0
    %v101 = vsel %vm81, %v70, 0
    %v104 = vsel %vm81, %v71, 0
    %v107 = vsel %vm81, %v72, 0
    %v110 = vsel %vm81, %v73, 0
    %v113 = vsel %vm81, %v74, 0
    %v116 = vsel %vm81, %v75, 0
    %v119 = vsel %vm81, %v76, 0
    %v122 = vsel %vm81, %v77, 0
    %v125 = vsel %vm81, %v78, 0
    %v128 = vsel %vm81, %v79, 0
    %v131 = vsel %vm81, %v80, 0
    %133 = vmatprep.subr.bf16.mxu0 0
    %134 = vmatpush1.bf16.xpose.msra.mxu0 %v86
    %135 = vmatprep.subr.bf16.mxu0 0
    %136 = vmatpush1.bf16.xpose.msra.mxu0 %v89
    %137 = vmatprep.subr.bf16.mxu0 0
    %138 = vmatpush1.bf16.xpose.msra.mxu0 %v92
    %139 = vmatprep.subr.bf16.mxu0 0
    %140 = vmatpush1.bf16.xpose.msra.mxu0 %v95
    %141 = vmatprep.subr.bf16.mxu0 0
    %142 = vmatpush1.bf16.xpose.msra.mxu0 %v98
    %143 = vmatprep.subr.bf16.mxu0 0
    %144 = vmatpush1.bf16.xpose.msra.mxu0 %v101
    %145 = vmatprep.subr.bf16.mxu0 0
    %146 = vmatpush1.bf16.xpose.msra.mxu0 %v104
    %147 = vmatprep.subr.bf16.mxu0 0
    %148 = vmatpush1.bf16.xpose.msra.mxu0 %v107
    %149 = vmatprep.subr.bf16.mxu0 0
    %150 = vmatpush1.bf16.xpose.msra.mxu0 %v110
    %151 = vmatprep.subr.bf16.mxu0 0
    %152 = vmatpush1.bf16.xpose.msra.mxu0 %v113
    %153 = vmatprep.subr.bf16.mxu0 0
    %154 = vmatpush1.bf16.xpose.msra.mxu0 %v116
    %155 = vmatprep.subr.bf16.mxu0 0
    %156 = vmatpush1.bf16.xpose.msra.mxu0 %v119
    %157 = vmatprep.subr.bf16.mxu0 0
    %158 = vmatpush1.bf16.xpose.msra.mxu0 %v122
    %159 = vmatprep.subr.bf16.mxu0 0
    %160 = vmatpush1.bf16.xpose.msra.mxu0 %v125
    %161 = vmatprep.subr.bf16.mxu0 0
    %162 = vmatpush1.bf16.xpose.msra.mxu0 %v128
    %163 = vmatprep.subr.bf16.mxu0 0
    %164 = vmatpush1.bf16.xpose.msra.mxu0 %v131
    %165 = vmatprep.mubr.bf16.mxu0 0
    %166 = vmatmul.mubr.bf16.gmra.mrb[0].mxu0 %v83
    %v167 = vpop.f32.mrb[0].mxu0
    %v168 = vadd.f32 0.0, %v167
    %v169 = vpop.f32.mrb[0].mxu0
    %v170 = vadd.f32 0.0, %v169
    %v171 = vpop.f32.mrb[0].mxu0
    %v172 = vpop.f32.mrb[0].mxu0
    %173 = vdwg.mxu0
    %v174 = vld [vmem:[%s2] sm:$0x3]
    %v175 = vmul.f32 %v168, 2.0
    %v176 = vmul.f32 %v170, 2.0
    %v178 = vlaneseq
    %v179 = vshrl.u32 %v178, 7
    %v180 = vsub.s32 0, %v179
    %v181 = vrot.slane %v174, %v180
    %v182 = vlaneseq
    %v183 = vshrl.u32 %v182, 7
    %v184 = vsub.s32 1, %v183
    %v185 = vrot.slane %v174, %v184
    %v188 = vsub.f32 %v181, %v175
    %v189 = vsub.f32 %v185, %v176
    %v190 = vmin.f32 %v188, %v189
    %191 = vmin.xlane.f32.xlu0 %v190
    %v192 = vpop.xlane.xlu0 %191
    %v193 = vlaneseq
    %v194 = vand.u32 %v193, 127
    %v195 = vadd.s32 %v194, 128
    %vm196 = vcmp.le.f32.partialorder %v188, %v192
    %vm197 = vcmp.le.f32.partialorder %v189, %v192
    %v198 = vsel %vm196, %v194, 256
    %v199 = vsel %vm197, %v195, 256
    %vm200 = vcmp.lt.s32.totalorder %v198, %v199
    %v201 = vsel %vm200, %v198, %v199
    %v202 = vand.u32 %v201, 65535
    %v203 = vshra.s32 %v201, 16
    %v204 = vcvt.s32.f32 %v202
    %v205 = vcvt.s32.f32 %v203
    %206 = vmin.xlane.f32.xlu0 %v205
    %v207 = vpop.xlane.xlu0 %206
    %vm208 = vcmp.eq.f32.partialorder %v205, %v207
    %v209 = vsel %vm208, %v204, inf
    %210 = vmin.xlane.f32.xlu0 %v209
    %v211 = vpop.xlane.xlu0 %210
    %v212 = vcvt.f32.s32 %v211
    %v213 = vcvt.f32.s32 %v207
    %v214 = vshll.u32 %v213, 16
    %v215 = vadd.s32 %v214, %v212
    %vm216 = vcmp.eq.s32.totalorder %v194, %v215
    %vm217 = vcmp.eq.s32.totalorder %v195, %v215
    %v218 = vsel %vm216, 1, 0
    %v219 = vsel %vm217, 1, 0
    %v220 = vcvt.s32.f32 %v218
    %v221 = vcvt.s32.f32 %v219
    %222 = vmatprep.subr.mxu0 0.0
    %223 = vmatpush1.msra.mxu0 %v32
    %224 = vmatprep.subr.mxu0 0.0
    %225 = vmatpush1.msra.mxu0 %v33
    %226 = vmatprep.subr.mxu0 0.0
    %227 = vmatpush1.msra.mxu0 %v34
    %228 = vmatprep.subr.mxu0 0.0
    %229 = vmatpush1.msra.mxu0 %v35
    %230 = vmatprep.subr.mxu0 0.0
    %231 = vmatpush1.msra.mxu0 %v36
    %232 = vmatprep.subr.mxu0 0.0
    %233 = vmatpush1.msra.mxu0 %v37
    %234 = vmatprep.subr.mxu0 0.0
    %235 = vmatpush1.msra.mxu0 %v38
    %236 = vmatprep.subr.mxu0 0.0
    %237 = vmatpush1.msra.mxu0 %v39
    %238 = vmatprep.subr.mxu0 0.0
    %239 = vmatpush1.msra.mxu0 %v40
    %240 = vmatprep.subr.mxu0 0.0
    %241 = vmatpush1.msra.mxu0 %v41
    %242 = vmatprep.subr.mxu0 0.0
    %243 = vmatpush1.msra.mxu0 %v42
    %244 = vmatprep.subr.mxu0 0.0
    %245 = vmatpush1.msra.mxu0 %v43
    %246 = vmatprep.subr.mxu0 0.0
    %247 = vmatpush1.msra.mxu0 %v44
    %248 = vmatprep.subr.mxu0 0.0
    %249 = vmatpush1.msra.mxu0 %v45
    %250 = vmatprep.subr.mxu0 0.0
    %251 = vmatpush1.msra.mxu0 %v46
    %252 = vmatprep.subr.mxu0 0.0
    %253 = vmatpush1.msra.mxu0 %v47
    %254 = vmatprep.subr.mxu0 0.0
    %255 = vmatpush1.msra.mxu0 %v48
    %256 = vmatprep.subr.mxu0 0.0
    %257 = vmatpush1.msra.mxu0 %v49
    %258 = vmatprep.subr.mxu0 0.0
    %259 = vmatpush1.msra.mxu0 %v50
    %260 = vmatprep.subr.mxu0 0.0
    %261 = vmatpush1.msra.mxu0 %v51
    %262 = vmatprep.subr.mxu0 0.0
    %263 = vmatpush1.msra.mxu0 %v52
    %264 = vmatprep.subr.mxu0 0.0
    %265 = vmatpush1.msra.mxu0 %v53
    %266 = vmatprep.subr.mxu0 0.0
    %267 = vmatpush1.msra.mxu0 %v54
    %268 = vmatprep.subr.mxu0 0.0
    %269 = vmatpush1.msra.mxu0 %v55
    %270 = vmatprep.subr.mxu0 0.0
    %271 = vmatpush1.msra.mxu0 %v56
    %272 = vmatprep.subr.mxu0 0.0
    %273 = vmatpush1.msra.mxu0 %v57
    %274 = vmatprep.subr.mxu0 0.0
    %275 = vmatpush1.msra.mxu0 %v58
    %276 = vmatprep.subr.mxu0 0.0
    %277 = vmatpush1.msra.mxu0 %v59
    %278 = vmatprep.subr.mxu0 0.0
    %279 = vmatpush1.msra.mxu0 %v60
    %280 = vmatprep.subr.mxu0 0.0
    %281 = vmatpush1.msra.mxu0 %v61
    %282 = vmatprep.subr.mxu0 0.0
    %283 = vmatpush1.msra.mxu0 %v62
    %284 = vmatprep.subr.mxu0 0.0
    %285 = vmatpush1.msra.mxu0 %v63
    %286 = vmatprep.mubr.f32.mxu0 %v221
    %287 = vmatmul.mubr.f32.gmra.mrb[0].mxu0 %v220
    %v288 = vpop.f32.mrb[0].mxu0
    %v289 = vadd.f32 0.0, %v288
    %v290 = vpop.f32.mrb[0].mxu0
    %291 = vdwg.mxu0
    %292 = vst.msk [vmem:[%s3] sm:$0xff] %vm81, %v289
    %v293 = vsub.f32 %v31, %v289
    %v294 = vmul.f32 %v293, %v293
    %v295 = vsel %vm81, %v294, 0.0
    %296 = vadd.xlane.f32.xlu0 %v295
    %v297 = vpop.xlane.xlu0 %296
    %v298 = vld [vmem:[#allocation3] sm:$0x1]
    %v299 = vrot.slane %v297, 4
    %v300 = vadd.f32 %v297, %v299
    %v301 = vrot.slane %v300, 2
    %v302 = vadd.f32 %v300, %v301
    %v303 = vrot.slane %v302, 1
    %v304 = vadd.f32 %v302, %v303
    %v305 = vadd.f32 %v298, %v304
    %vm306 = vcmask 0
    %307 = vst.msk [vmem:[#allocation3] sm:$0x1] %vm306, %v305
    %v308 = vld [vmem:[#allocation2] sm:$0x3]
    %v309 = vrot.slane %v220, 4
    %v310 = vadd.f32 %v220, %v309
    %v311 = vrot.slane %v310, 2
    %v312 = vadd.f32 %v310, %v311
    %v313 = vrot.slane %v312, 1
    %v314 = vadd.f32 %v312, %v313
    %v315 = vrot.slane %v221, 4
    %v316 = vadd.f32 %v221, %v315
    %v317 = vrot.slane %v316, 2
    %v318 = vadd.f32 %v316, %v317
    %v319 = vrot.slane %v318, 1
    %v320 = vadd.f32 %v318, %v319
    %v323 = vcombine.low %v314, %v320
    %v325 = vunpack.c.l.s4 1966171168
    %v326 = vunpack.c.0.s8 %v325
    %v327 = vlaneseq
    %v328 = vshrl.u32 %v327, 7
    %v329 = vsub.s32 %v326, %v328
    %v330 = vrot.slane %v323, %v329
    %v332 = vunpack.c.l.s4 1966171168
    %v333 = vunpack.c.0.s8 %v332
    %v334 = vlaneseq
    %v335 = vshrl.u32 %v334, 7
    %v336 = vsub.s32 %v333, %v335
    %v337 = vrot.slane %v330, %v336
    %v339 = vadd.f32 %v308, %v337
    %v340 = vlaneseq
    %vm341 = vcmp.ge.s32.totalorder %v340, 0
    %vm342 = vcmp.lt.s32.totalorder %v340, 256
    %vm343 = vmand %vm341, %vm342
    %344 = vst.msk [vmem:[#allocation2] sm:$0x3] %vm343, %v339
    // Predicated region
    $region18: #{mmm_dit_forward.40} parent=1 // pred_check
      %p345 = pneg %p20
    $region19: #{mmm_dit_forward.40} parent=1 // pred_check_branch
      %347 = sbr.rel (%p345) target = $region21
    $region20: #{mmm_dit_forward.40} parent=1 // pred_region
      %v348 = vld [vmem:[#allocation3] sm:$0x1]
      %v349 = vmul.f32 %v348, 0.00390625
      %350 = vst.msk [vmem:[#allocation4] sm:$0x1] %vm306, %v349
      %v351 = vld [vmem:[#allocation2] sm:$0x3]
      %v353 = vlaneseq
      %v354 = vshrl.u32 %v353, 7
      %v355 = vsub.s32 0, %v354
      %v356 = vrot.slane %v351, %v355
      %v357 = vlaneseq
      %v358 = vshrl.u32 %v357, 7
      %v359 = vsub.s32 1, %v358
      %v360 = vrot.slane %v351, %v359
      %vm363 = vcmask 1040384
      %v364 = vsel %vm363, %v356, 0.0
      %v365 = vsel %vm363, %v360, 0.0
      %v366 = vadd.f32 %v364, %v365
      %367 = vadd.xlane.f32.xlu0 %v366
      %v368 = vpop.xlane.xlu0 %367
      %v370 = vlaneseq
      %v371 = vshrl.u32 %v370, 7
      %v372 = vsub.s32 0, %v371
      %v373 = vrot.slane %v368, %v372
      %v375 = vrcp.pop %v373
      %v376 = vmul.f32 %v351, %v375
      %v377 = vadd.f32 %v376, 1e-07
      %v378 = vlog2.pop %v377
      %v379 = vmul.f32 %v378, 0.6931472
      %v380 = vmul.f32 %v376, %v379
      %v382 = vlaneseq
      %v383 = vshrl.u32 %v382, 7
      %v384 = vsub.s32 0, %v383
      %v385 = vrot.slane %v380, %v384
      %v386 = vlaneseq
      %v387 = vshrl.u32 %v386, 7
      %v388 = vsub.s32 1, %v387
      %v389 = vrot.slane %v380, %v388
      %v392 = vsel %vm363, %v385, 0.0
      %v393 = vsel %vm363, %v389, 0.0
      %v394 = vadd.f32 %v392, %v393
      %395 = vadd.xlane.f32.xlu0 %v394
      %v396 = vpop.xlane.xlu0 %395
      %v397 = vsub.f32 0.0, %v396
      %v398 = vmul.f32 %v397, 1.442695
      %v399 = vpow.pop %v398
      %400 = vst.msk [vmem:[#allocation6] sm:$0x1] %vm306, %v399
    $region21: #{mmm_dit_forward.40} parent=1 // pred_fallthru
      _
    // Predicated region
    $region22: #{mmm_dit_forward.40} parent=1 // pred_check
      _
    $region23: #{mmm_dit_forward.40} parent=1 // pred_check_branch
      %402 = sbr.rel (0) target = $region25
    $region24: #{mmm_dit_forward.40} parent=1 // pred_region
      _
    $region25: #{mmm_dit_forward.40} parent=1 // pred_fallthru
      _
    // Predicated region
    $region26: #{mmm_dit_forward.40} parent=1 // pred_check
      _
    $region27: #{mmm_dit_forward.40} parent=1 // pred_check_branch
      %404 = sbr.rel (0) target = $region29
    $region28: #{mmm_dit_forward.40} parent=1 // pred_region
      %s406 = ssub.s32 16, 16
      %407 = vsyncadd [#allocation5], %s406
      %s409 = sshll.u32 [#allocation4], 4
      %s410 = int_to_ptr.vmem [resolvable:$true] %s409
      %412 = dma.vmem_to_hbm [thread:$0]  %s410, 16, %s4, [#allocation5]
    $region29: #{mmm_dit_forward.40} parent=1 // pred_fallthru
      _
    // Predicated region
    $region30: #{mmm_dit_forward.40} parent=1 // pred_check
      _
    $region31: #{mmm_dit_forward.40} parent=1 // pred_check_branch
      %414 = sbr.rel (0) target = $region33
    $region32: #{mmm_dit_forward.40} parent=1 // pred_region
      %s416 = ssub.s32 16, 16
      %417 = vsyncadd [#allocation7], %s416
      %s419 = sshll.u32 [#allocation6], 4
      %s420 = int_to_ptr.vmem [resolvable:$true] %s419
      %422 = dma.vmem_to_hbm [thread:$0]  %s420, 16, %s5, [#allocation7]
    $region33: #{mmm_dit_forward.40} parent=1 // pred_fallthru
      _
    // Predicated region
    $region34: #{mmm_dit_forward.40} parent=1 // pred_check
      _
    $region35: #{mmm_dit_forward.40} parent=1 // pred_check_branch
      %424 = sbr.rel (0) target = $region37
    $region36: #{mmm_dit_forward.40} parent=1 // pred_region
      _
    $region37: #{mmm_dit_forward.40} parent=1 // pred_fallthru
      _
    // Predicated region
    $region38: #{mmm_dit_forward.40} parent=1 // pred_check
      _
    $region39: #{mmm_dit_forward.40} parent=1 // pred_check_branch
      %426 = sbr.rel (0) target = $region41
    $region40: #{mmm_dit_forward.40} parent=1 // pred_region
      %427 = dma.done [#allocation5], 16
    $region41: #{mmm_dit_forward.40} parent=1 // pred_fallthru
      _
    // Predicated region
    $region42: #{mmm_dit_forward.40} parent=1 // pred_check
      _
    $region43: #{mmm_dit_forward.40} parent=1 // pred_check_branch
      %429 = sbr.rel (0) target = $region45
    $region44: #{mmm_dit_forward.40} parent=1 // pred_region
      %430 = dma.done [#allocation7], 16
    $region45: #{mmm_dit_forward.40} parent=1 // pred_fallthru
      _
    %431 = vsyncpa [#allocation5], 1
    %432 = vsyncpa [#allocation7], 1

// kernel: mmm_dit_forward.51
$region0: #{mmm_dit_forward.51}
  #allocation0 [shape = 'u32[]', space=smem, size = 0x4, offset = 0x4, fixed_abs, tag = 'smem constant byte address 0x4 - core index']
  #allocation1 [shape = 'u32[144,128]{1,0:T(1,128)}', space=vmem, size = 0x12000, scoped, tag = 'internal scratch']
  %s0 = inlined_call_operand.vmem [shape: f32[2,18,64], index: 0, kind: input, shape index: {}]
  %s1 = inlined_call_operand.vmem [shape: bf16[192,64], index: 1, kind: input, shape index: {}]
  %s2 = inlined_call_operand.vmem [shape: f32[1,64], index: 2, kind: input, shape index: {}]
  %s3 = inlined_call_operand.vmem [shape: f32[2,16,64], index: 3, kind: output, shape index: {}]
  %s4 = sld [smem:[#allocation0]]
  $region45: #{mmm_dit_forward.51} parent=0
    _
  %s6 = ssub.s32 1, %s4
  %s7 = scalar_select 0, %s6, %s4
  loop: start=0, step=1, limit=4
  $region2: #{mmm_dit_forward.51} parent=0 // loop_pre_header
    _
  $region3: #{mmm_dit_forward.51} parent=0 // loop_header
    %s9 = sphi 0, %s13
    %p10 = scmp.ge.s32.totalorder %s9, 4
    %s19 = sphi 0, %s21
    %s22 = sphi 0, %s19
    %s23 = sphi 0, %s22
    %s39 = sphi 0, %s23
    %s43 = sphi 0, %s43
    %s45 = sphi 0, %s43
    %s46 = sphi 0, %s45
    %s60 = sphi 0, %s46
    %s64 = sphi 0, %s64
    %s66 = sphi 0, %s64
    %s67 = sphi 0, %s66
    %s81 = sphi 0, %s67
    %s87 = sphi 0, %s89
    %s90 = sphi 0, %s87
    %s91 = sphi 0, %s90
    %s107 = sphi 0, %s91
  $region4: #{mmm_dit_forward.51} parent=0 // loop_header_branch
    %12 = sbr.rel (%p10) target = $region8
  $region5: #{mmm_dit_forward.51} parent=0 // loop_body
    %s14 = ssub.s32 %s9, 1
    %s15 = ssub.s32 %s9, 2
    %s16 = sadd.s32 %s9, 1
    %s17 = ssub.s32 %s9, %s16
    %p18 = scmp.eq.s32.totalorder %s17, 0
    %s20 = sadd.s32 %s19, 1
    %s21 = scalar_select %p18, %s19, %s20
    %p24 = pneg %p18
    %p25 = scmp.eq.s32.totalorder %s9, 1
    %p26 = por %p24, %p25
    %p27 = scmp.ne.s32.totalorder %s19, %s22
    %p28 = scmp.eq.s32.totalorder %s9, 0
    %p29 = por %p27, %p28
    %p30 = scmp.ne.s32.totalorder %s19, %s22
    %p31 = scmp.eq.s32.totalorder %s14, 1
    %p32 = por %p30, %p31
    %p33 = scmp.ne.s32.totalorder %s22, %s23
    %p34 = scmp.eq.s32.totalorder %s14, 0
    %p35 = por %p33, %p34
    %p36 = scmp.ne.s32.totalorder %s22, %s23
    %p37 = scmp.eq.s32.totalorder %s15, 1
    %p38 = por %p36, %p37
    %p40 = scmp.ne.s32.totalorder %s23, %s39
    %p41 = scmp.eq.s32.totalorder %s15, 0
    %p42 = por %p40, %p41
    %s44 = sadd.s32 %s43, 1
    %p47 = scmp.eq.s32.totalorder %s9, 1
    %p48 = scmp.ne.s32.totalorder %s43, %s45
    %p49 = scmp.eq.s32.totalorder %s9, 0
    %p50 = por %p48, %p49
    %p51 = scmp.ne.s32.totalorder %s43, %s45
    %p52 = scmp.eq.s32.totalorder %s14, 1
    %p53 = por %p51, %p52
    %p54 = scmp.ne.s32.totalorder %s45, %s46
    %p55 = scmp.eq.s32.totalorder %s14, 0
    %p56 = por %p54, %p55
    %p57 = scmp.ne.s32.totalorder %s45, %s46
    %p58 = scmp.eq.s32.totalorder %s15, 1
    %p59 = por %p57, %p58
    %p61 = scmp.ne.s32.totalorder %s46, %s60
    %p62 = scmp.eq.s32.totalorder %s15, 0
    %p63 = por %p61, %p62
    %s65 = sadd.s32 %s64, 1
    %p68 = scmp.eq.s32.totalorder %s9, 1
    %p69 = scmp.ne.s32.totalorder %s64, %s66
    %p70 = scmp.eq.s32.totalorder %s9, 0
    %p71 = por %p69, %p70
    %p72 = scmp.ne.s32.totalorder %s64, %s66
    %p73 = scmp.eq.s32.totalorder %s14, 1
    %p74 = por %p72, %p73
    %p75 = scmp.ne.s32.totalorder %s66, %s67
    %p76 = scmp.eq.s32.totalorder %s14, 0
    %p77 = por %p75, %p76
    %p78 = scmp.ne.s32.totalorder %s66, %s67
    %p79 = scmp.eq.s32.totalorder %s15, 1
    %p80 = por %p78, %p79
    %p82 = scmp.ne.s32.totalorder %s67, %s81
    %p83 = scmp.eq.s32.totalorder %s15, 0
    %p84 = por %p82, %p83
    %s85 = ssub.s32 %s9, %s16
    %p86 = scmp.eq.s32.totalorder %s85, 0
    %s88 = sadd.s32 %s87, 1
    %s89 = scalar_select %p86, %s87, %s88
    %p92 = pneg %p86
    %p93 = scmp.eq.s32.totalorder %s9, 1
    %p94 = por %p92, %p93
    %p95 = scmp.ne.s32.totalorder %s87, %s90
    %p96 = scmp.eq.s32.totalorder %s9, 0
    %p97 = por %p95, %p96
    %p98 = scmp.ne.s32.totalorder %s87, %s90
    %p99 = scmp.eq.s32.totalorder %s14, 1
    %p100 = por %p98, %p99
    %p101 = scmp.ne.s32.totalorder %s90, %s91
    %p102 = scmp.eq.s32.totalorder %s14, 0
    %p103 = por %p101, %p102
    %p104 = scmp.ne.s32.totalorder %s90, %s91
    %p105 = scmp.eq.s32.totalorder %s15, 1
    %p106 = por %p104, %p105
    %p108 = scmp.ne.s32.totalorder %s91, %s107
    %p109 = scmp.eq.s32.totalorder %s15, 0
    %p110 = por %p108, %p109
    %p111 = scmp.le.s32.totalorder 1, %s9
    %p112 = scmp.lt.s32.totalorder %s9, 3
    %p113 = pnand %p111, %p112
    %p114 = pneg %p113
    // Predicated region
    $region9: #{mmm_dit_forward.51} parent=5 // pred_check
      _
    $region10: #{mmm_dit_forward.51} parent=5 // pred_check_branch
      %116 = sbr.rel (%p113) target = $region12
    $region11: #{mmm_dit_forward.51} parent=5 // pred_region
      %s117 = ssub.s32 %s9, 1
      // Predicated region
      $region13: #{mmm_dit_forward.51} parent=11 // pred_check
        %p118 = pneg %p56
      $region14: #{mmm_dit_forward.51} parent=11 // pred_check_branch
        %120 = sbr.rel (%p118) target = $region16
      $region15: #{mmm_dit_forward.51} parent=11 // pred_region
        _
      $region16: #{mmm_dit_forward.51} parent=11 // pred_fallthru
        _
      // Predicated region
      $region17: #{mmm_dit_forward.51} parent=11 // pred_check
        %p121 = pneg %p77
      $region18: #{mmm_dit_forward.51} parent=11 // pred_check_branch
        %123 = sbr.rel (%p121) target = $region20
      $region19: #{mmm_dit_forward.51} parent=11 // pred_region
        _
      $region20: #{mmm_dit_forward.51} parent=11 // pred_fallthru
        _
    $region12: #{mmm_dit_forward.51} parent=5 // pred_fallthru
      _
    %p124 = scmp.lt.s32.totalorder %s9, 2
    // Predicated region
    $region21: #{mmm_dit_forward.51} parent=5 // pred_check
      %p125 = pneg %p124
    $region22: #{mmm_dit_forward.51} parent=5 // pred_check_branch
      %127 = sbr.rel (%p125) target = $region24
    $region23: #{mmm_dit_forward.51} parent=5 // pred_region
      // Predicated region
      $region25: #{mmm_dit_forward.51} parent=23 // pred_check
        %p128 = pneg %p29
      $region26: #{mmm_dit_forward.51} parent=23 // pred_check_branch
        %130 = sbr.rel (%p128) target = $region28
      $region27: #{mmm_dit_forward.51} parent=23 // pred_region
        %p131 = scmp.lt.s32.totalorder %s9, 1
        %s132 = scalar_select %p131, %s9, 1
        %s133 = smul.addr %s132, 3
        %s134 = smul.addr %s133, 8
        %s135 = scalar_lea.vmem %s0, %s134
      $region28: #{mmm_dit_forward.51} parent=23 // pred_fallthru
        _
    $region24: #{mmm_dit_forward.51} parent=5 // pred_fallthru
      _
    %p136 = scmp.le.s32.totalorder 1, %s9
    %p137 = scmp.lt.s32.totalorder %s9, 3
    %p138 = pnand %p136, %p137
    %p139 = pneg %p138
    // Predicated region
    $region29: #{mmm_dit_forward.51} parent=5 // pred_check
      _
    $region30: #{mmm_dit_forward.51} parent=5 // pred_check_branch
      %141 = sbr.rel (%p138) target = $region32
    $region31: #{mmm_dit_forward.51} parent=5 // pred_region
      %s142 = ssub.s32 %s9, 1
      %p143 = scmp.lt.s32.totalorder %s14, 1
      %s144 = scalar_select %p143, %s14, 1
      %s145 = smul.addr %s144, 3
      %s146 = smul.addr %s145, 8
      %s147 = scalar_lea.vmem %s0, %s146
      %p148 = pneg %p35
      %p149 = pneg %p32
      %p150 = pneg %p56
      %p151 = pneg %p53
      %p152 = pneg %p77
      %p153 = pneg %p74
      %p154 = pneg %p103
      %p155 = pneg %p100
      %p156 = scmp.lt.s32.totalorder %s14, 1
      %s157 = scalar_select %p156, %s14, 1
      %s158 = smul.addr %s157, 2
      %s159 = smul.addr %s158, 8
      %s160 = scalar_lea.vmem %s3, %s159
      %p161 = scmp.lt.s32.totalorder %s14, 1
      %s162 = scalar_select %p161, %s14, 1
      %s163 = smul.addr %s162, 3
      %s164 = smul.addr %s163, 8
      %s165 = scalar_lea.vmem %s0, %s164
      %p166 = scmp.lt.s32.totalorder %s14, 1
      %s167 = scalar_select %p166, %s14, 1
      %s168 = smul.addr %s167, 2
      %s169 = smul.addr %s168, 8
      %s170 = scalar_lea.vmem %s3, %s169
      %v172 = vld [vmem:[%s165] sm:$0xff]
      %v173 = vld [vmem:[%s165 + $0x8] sm:$0xff]
      %v174 = vld [vmem:[%s165 + $0x10] sm:$0x3]
      %vm178 = vcmask 1046528
      %v179 = vrot.slane %v172, 1
      %v180 = vrot.slane %v173, 1
      %v181 = vsel %vm178, %v179, %v180
      %v182 = vrot.slane %v174, 1
      %v183 = vsel %vm178, %v180, %v182
      %184 = vrot.lane.b32.xlu0 %v181, 64
      %v185 = vpop.permute.xlu0 %184
      %186 = vrot.lane.b32.xlu0 %v183, 64
      %v187 = vpop.permute.xlu0 %186
      %vm190 = vcmask 1045504
      %v191 = vrot.slane %v172, 2
      %v192 = vrot.slane %v173, 2
      %v193 = vsel %vm190, %v191, %v192
      %v194 = vrot.slane %v174, 2
      %v195 = vsel %vm190, %v192, %v194
      %vm198 = vcmask 523264
      %v199 = vsel %vm198, %v172, %v185
      %v200 = vsel %vm198, %v173, %v187
      %v201 = vpack.c.bf16 %v200, %v199
      %v202 = vpack.c.bf16 %v195, %v193
      %v203 = vld [vmem:[%s1] sm:$0xf]
      %v204 = vld [vmem:[%s1 + $0x4] sm:$0xf]
      %v205 = vld [vmem:[%s1 + $0x8] sm:$0xf]
      %v206 = vld [vmem:[%s1 + $0xc] sm:$0xf]
      %v207 = vld [vmem:[%s1 + $0x10] sm:$0xf]
      %v208 = vld [vmem:[%s1 + $0x14] sm:$0xf]
      %v209 = vld [vmem:[%s1 + $0x18] sm:$0xf]
      %v210 = vld [vmem:[%s1 + $0x1c] sm:$0xf]
      %v211 = vld [vmem:[%s1 + $0x20] sm:$0xf]
      %v212 = vld [vmem:[%s1 + $0x24] sm:$0xf]
      %v213 = vld [vmem:[%s1 + $0x28] sm:$0xf]
      %v214 = vld [vmem:[%s1 + $0x2c] sm:$0xf]
      %v215 = vld [vmem:[%s1 + $0x30] sm:$0xf]
      %v216 = vld [vmem:[%s1 + $0x34] sm:$0xf]
      %v217 = vld [vmem:[%s1 + $0x38] sm:$0xf]
      %v218 = vld [vmem:[%s1 + $0x3c] sm:$0xf]
      %v219 = vld [vmem:[%s1 + $0x40] sm:$0xf]
      %v220 = vld [vmem:[%s1 + $0x44] sm:$0xf]
      %v221 = vld [vmem:[%s1 + $0x48] sm:$0xf]
      %v222 = vld [vmem:[%s1 + $0x4c] sm:$0xf]
      %v223 = vld [vmem:[%s1 + $0x50] sm:$0xf]
      %v224 = vld [vmem:[%s1 + $0x54] sm:$0xf]
      %v225 = vld [vmem:[%s1 + $0x58] sm:$0xf]
      %v226 = vld [vmem:[%s1 + $0x5c] sm:$0xf]
      %v227 = vld [vmem:[%s2] sm:$0x1]
      %v229 = vlaneseq
      %v230 = vshrl.u32 %v229, 7
      %v231 = vsub.s32 0, %v230
      %v232 = vrot.slane %v227, %v231
      %v258 = vunpack.c.l.b16 %v203
      %v259 = vunpack.c.l.b16 %v204
      %v260 = vunpack.c.l.b16 %v205
      %v261 = vunpack.c.l.b16 %v206
      %v262 = vunpack.c.l.b16 %v207
      %v263 = vunpack.c.l.b16 %v208
      %v264 = vunpack.c.l.b16 %v209
      %v265 = vunpack.c.l.b16 %v210
      %v266 = vunpack.c.l.b16 %v211
      %v267 = vunpack.c.l.b16 %v212
      %v268 = vunpack.c.l.b16 %v213
      %v269 = vunpack.c.l.b16 %v214
      %v270 = vunpack.c.l.b16 %v215
      %v271 = vunpack.c.l.b16 %v216
      %v272 = vunpack.c.l.b16 %v217
      %v273 = vunpack.c.l.b16 %v218
      %v274 = vunpack.c.l.b16 %v219
      %v275 = vunpack.c.l.b16 %v220
      %v276 = vunpack.c.l.b16 %v221
      %v277 = vunpack.c.l.b16 %v222
      %v278 = vunpack.c.l.b16 %v223
      %v279 = vunpack.c.l.b16 %v224
      %v280 = vunpack.c.l.b16 %v225
      %v281 = vunpack.c.l.b16 %v226
      %v282 = vpack.c.b16 %v259, %v258
      %v283 = vpack.c.b16 %v261, %v260
      %v284 = vpack.c.b16 %v263, %v262
      %v285 = vpack.c.b16 %v265, %v264
      %v286 = vpack.c.b16 %v267, %v266
      %v287 = vpack.c.b16 %v269, %v268
      %v288 = vpack.c.b16 %v271, %v270
      %v289 = vpack.c.b16 %v273, %v272
      %v290 = vpack.c.b16 %v275, %v274
      %v291 = vpack.c.b16 %v277, %v276
      %v292 = vpack.c.b16 %v279, %v278
      %v293 = vpack.c.b16 %v281, %v280
      %v307 = vsel %vm198, %v202, 0
      %309 = vmatprep.subr.bf16.mxu0 0
      %310 = vmatpush1.bf16.msra.mxu0 %v282
      %311 = vmatprep.subr.bf16.mxu0 0
      %312 = vmatpush1.bf16.msra.mxu0 %v283
      %313 = vmatprep.subr.bf16.mxu0 0
      %314 = vmatpush1.bf16.msra.mxu0 %v284
      %315 = vmatprep.subr.bf16.mxu0 0
      %316 = vmatpush1.bf16.msra.mxu0 %v285
      %317 = vmatprep.subr.bf16.mxu0 0
      %318 = vmatpush1.bf16.msra.mxu0 %v286
      %319 = vmatprep.subr.bf16.mxu0 0
      %320 = vmatpush1.bf16.msra.mxu0 %v287
      %321 = vmatprep.subr.bf16.mxu0 0
      %322 = vmatpush1.bf16.msra.mxu0 %v288
      %323 = vmatprep.subr.bf16.mxu0 0
      %324 = vmatpush1.bf16.msra.mxu0 %v289
      %325 = vmatprep.subr.bf16.mxu0 0
      %326 = vmatpush1.bf16.msra.mxu0 %v290
      %327 = vmatprep.subr.bf16.mxu0 0
      %328 = vmatpush1.bf16.msra.mxu0 %v291
      %329 = vmatprep.subr.bf16.mxu0 0
      %330 = vmatpush1.bf16.msra.mxu0 %v292
      %331 = vmatprep.subr.bf16.mxu0 0
      %332 = vmatpush1.bf16.msra.mxu0 %v293
      %333 = vmatprep.subr.bf16.mxu0 0
      %334 = vmatpush1.bf16.msra.mxu0 0
      %335 = vmatprep.subr.bf16.mxu0 0
      %336 = vmatpush1.bf16.msra.mxu0 0
      %337 = vmatprep.subr.bf16.mxu0 0
      %338 = vmatpush1.bf16.msra.mxu0 0
      %339 = vmatprep.subr.bf16.mxu0 0
      %340 = vmatpush1.bf16.msra.mxu0 0
      %341 = vmatprep.mubr.bf16.mxu0 %v307
      %342 = vmatmul.mubr.bf16.gmra.mrb[0].mxu0 %v201
      %v343 = vpop.f32.mrb[0].mxu0
      %v344 = vadd.f32 %v232, %v343
      %v345 = vpop.f32.mrb[0].mxu0
      %v346 = vpop.f32.mrb[0].mxu0
      %v347 = vadd.f32 %v232, %v346
      %v348 = vpop.f32.mrb[0].mxu0
      %349 = vdwg.mxu0
      %350 = vst.msk [vmem:[%s170] sm:$0xff] %vm198, %v344
      %351 = vst.msk [vmem:[%s170 + $0x8] sm:$0xff] %vm198, %v347
      %p352 = scmp.lt.s32.totalorder %s14, 1
      %s353 = scalar_select %p352, %s14, 1
      %s354 = smul.addr %s353, 2
      %s355 = smul.addr %s354, 8
      %s356 = scalar_lea.vmem %s3, %s355
      // Predicated region
      $region33: #{mmm_dit_forward.51} parent=31 // pred_check
        %p357 = pneg %p100
      $region34: #{mmm_dit_forward.51} parent=31 // pred_check_branch
        %359 = sbr.rel (%p357) target = $region36
      $region35: #{mmm_dit_forward.51} parent=31 // pred_region
        _
      $region36: #{mmm_dit_forward.51} parent=31 // pred_fallthru
        _
    $region32: #{mmm_dit_forward.51} parent=5 // pred_fallthru
      _
    %p360 = scmp.le.s32.totalorder 2, %s9
    // Predicated region
    $region37: #{mmm_dit_forward.51} parent=5 // pred_check
      %p361 = pneg %p360
    $region38: #{mmm_dit_forward.51} parent=5 // pred_check_branch
      %363 = sbr.rel (%p361) target = $region40
    $region39: #{mmm_dit_forward.51} parent=5 // pred_region
      %s364 = ssub.s32 %s9, 2
      // Predicated region
      $region41: #{mmm_dit_forward.51} parent=39 // pred_check
        %p365 = pneg %p106
      $region42: #{mmm_dit_forward.51} parent=39 // pred_check_branch
        %367 = sbr.rel (%p365) target = $region44
      $region43: #{mmm_dit_forward.51} parent=39 // pred_region
        %p368 = scmp.lt.s32.totalorder %s15, 1
        %s369 = scalar_select %p368, %s15, 1
        %s370 = smul.addr %s369, 2
        %s371 = smul.addr %s370, 8
        %s372 = scalar_lea.vmem %s3, %s371
      $region44: #{mmm_dit_forward.51} parent=39 // pred_fallthru
        _
    $region40: #{mmm_dit_forward.51} parent=5 // pred_fallthru
      _
  $region6: #{mmm_dit_forward.51} parent=0 // loop_footer
    %s13 = sadd.s32 1, %s9
  $region7: #{mmm_dit_forward.51} parent=0 // loop_footer_branch
    %8 = sbr.rel target = $region3
  $region8: #{mmm_dit_forward.51} parent=0 // loop_exit
    _

// kernel: mmm_dit_forward.52
$region0: #{mmm_dit_forward.52}
  #allocation0 [shape = 'u32[]', space=smem, size = 0x4, offset = 0x4, fixed_abs, tag = 'smem constant byte address 0x4 - core index']
  #allocation1 [shape = 'u32[144,128]{1,0:T(1,128)}', space=vmem, size = 0x12000, scoped, tag = 'internal scratch']
  %s0 = inlined_call_operand.vmem [shape: f32[2,18,64], index: 0, kind: input, shape index: {}]
  %s1 = inlined_call_operand.vmem [shape: bf16[192,64], index: 1, kind: input, shape index: {}]
  %s2 = inlined_call_operand.vmem [shape: f32[1,64], index: 2, kind: input, shape index: {}]
  %s3 = inlined_call_operand.vmem [shape: f32[2,16,64], index: 3, kind: output, shape index: {}]
  %s4 = sld [smem:[#allocation0]]
  $region45: #{mmm_dit_forward.52} parent=0
    _
  %s6 = ssub.s32 1, %s4
  %s7 = scalar_select 0, %s6, %s4
  loop: start=0, step=1, limit=4
  $region2: #{mmm_dit_forward.52} parent=0 // loop_pre_header
    _
  $region3: #{mmm_dit_forward.52} parent=0 // loop_header
    %s9 = sphi 0, %s13
    %p10 = scmp.ge.s32.totalorder %s9, 4
    %s19 = sphi 0, %s21
    %s22 = sphi 0, %s19
    %s23 = sphi 0, %s22
    %s39 = sphi 0, %s23
    %s43 = sphi 0, %s43
    %s45 = sphi 0, %s43
    %s46 = sphi 0, %s45
    %s60 = sphi 0, %s46
    %s64 = sphi 0, %s64
    %s66 = sphi 0, %s64
    %s67 = sphi 0, %s66
    %s81 = sphi 0, %s67
    %s87 = sphi 0, %s89
    %s90 = sphi 0, %s87
    %s91 = sphi 0, %s90
    %s107 = sphi 0, %s91
  $region4: #{mmm_dit_forward.52} parent=0 // loop_header_branch
    %12 = sbr.rel (%p10) target = $region8
  $region5: #{mmm_dit_forward.52} parent=0 // loop_body
    %s14 = ssub.s32 %s9, 1
    %s15 = ssub.s32 %s9, 2
    %s16 = sadd.s32 %s9, 1
    %s17 = ssub.s32 %s9, %s16
    %p18 = scmp.eq.s32.totalorder %s17, 0
    %s20 = sadd.s32 %s19, 1
    %s21 = scalar_select %p18, %s19, %s20
    %p24 = pneg %p18
    %p25 = scmp.eq.s32.totalorder %s9, 1
    %p26 = por %p24, %p25
    %p27 = scmp.ne.s32.totalorder %s19, %s22
    %p28 = scmp.eq.s32.totalorder %s9, 0
    %p29 = por %p27, %p28
    %p30 = scmp.ne.s32.totalorder %s19, %s22
    %p31 = scmp.eq.s32.totalorder %s14, 1
    %p32 = por %p30, %p31
    %p33 = scmp.ne.s32.totalorder %s22, %s23
    %p34 = scmp.eq.s32.totalorder %s14, 0
    %p35 = por %p33, %p34
    %p36 = scmp.ne.s32.totalorder %s22, %s23
    %p37 = scmp.eq.s32.totalorder %s15, 1
    %p38 = por %p36, %p37
    %p40 = scmp.ne.s32.totalorder %s23, %s39
    %p41 = scmp.eq.s32.totalorder %s15, 0
    %p42 = por %p40, %p41
    %s44 = sadd.s32 %s43, 1
    %p47 = scmp.eq.s32.totalorder %s9, 1
    %p48 = scmp.ne.s32.totalorder %s43, %s45
    %p49 = scmp.eq.s32.totalorder %s9, 0
    %p50 = por %p48, %p49
    %p51 = scmp.ne.s32.totalorder %s43, %s45
    %p52 = scmp.eq.s32.totalorder %s14, 1
    %p53 = por %p51, %p52
    %p54 = scmp.ne.s32.totalorder %s45, %s46
    %p55 = scmp.eq.s32.totalorder %s14, 0
    %p56 = por %p54, %p55
    %p57 = scmp.ne.s32.totalorder %s45, %s46
    %p58 = scmp.eq.s32.totalorder %s15, 1
    %p59 = por %p57, %p58
    %p61 = scmp.ne.s32.totalorder %s46, %s60
    %p62 = scmp.eq.s32.totalorder %s15, 0
    %p63 = por %p61, %p62
    %s65 = sadd.s32 %s64, 1
    %p68 = scmp.eq.s32.totalorder %s9, 1
    %p69 = scmp.ne.s32.totalorder %s64, %s66
    %p70 = scmp.eq.s32.totalorder %s9, 0
    %p71 = por %p69, %p70
    %p72 = scmp.ne.s32.totalorder %s64, %s66
    %p73 = scmp.eq.s32.totalorder %s14, 1
    %p74 = por %p72, %p73
    %p75 = scmp.ne.s32.totalorder %s66, %s67
    %p76 = scmp.eq.s32.totalorder %s14, 0
    %p77 = por %p75, %p76
    %p78 = scmp.ne.s32.totalorder %s66, %s67
    %p79 = scmp.eq.s32.totalorder %s15, 1
    %p80 = por %p78, %p79
    %p82 = scmp.ne.s32.totalorder %s67, %s81
    %p83 = scmp.eq.s32.totalorder %s15, 0
    %p84 = por %p82, %p83
    %s85 = ssub.s32 %s9, %s16
    %p86 = scmp.eq.s32.totalorder %s85, 0
    %s88 = sadd.s32 %s87, 1
    %s89 = scalar_select %p86, %s87, %s88
    %p92 = pneg %p86
    %p93 = scmp.eq.s32.totalorder %s9, 1
    %p94 = por %p92, %p93
    %p95 = scmp.ne.s32.totalorder %s87, %s90
    %p96 = scmp.eq.s32.totalorder %s9, 0
    %p97 = por %p95, %p96
    %p98 = scmp.ne.s32.totalorder %s87, %s90
    %p99 = scmp.eq.s32.totalorder %s14, 1
    %p100 = por %p98, %p99
    %p101 = scmp.ne.s32.totalorder %s90, %s91
    %p102 = scmp.eq.s32.totalorder %s14, 0
    %p103 = por %p101, %p102
    %p104 = scmp.ne.s32.totalorder %s90, %s91
    %p105 = scmp.eq.s32.totalorder %s15, 1
    %p106 = por %p104, %p105
    %p108 = scmp.ne.s32.totalorder %s91, %s107
    %p109 = scmp.eq.s32.totalorder %s15, 0
    %p110 = por %p108, %p109
    %p111 = scmp.le.s32.totalorder 1, %s9
    %p112 = scmp.lt.s32.totalorder %s9, 3
    %p113 = pnand %p111, %p112
    %p114 = pneg %p113
    // Predicated region
    $region9: #{mmm_dit_forward.52} parent=5 // pred_check
      _
    $region10: #{mmm_dit_forward.52} parent=5 // pred_check_branch
      %116 = sbr.rel (%p113) target = $region12
    $region11: #{mmm_dit_forward.52} parent=5 // pred_region
      %s117 = ssub.s32 %s9, 1
      // Predicated region
      $region13: #{mmm_dit_forward.52} parent=11 // pred_check
        %p118 = pneg %p56
      $region14: #{mmm_dit_forward.52} parent=11 // pred_check_branch
        %120 = sbr.rel (%p118) target = $region16
      $region15: #{mmm_dit_forward.52} parent=11 // pred_region
        _
      $region16: #{mmm_dit_forward.52} parent=11 // pred_fallthru
        _
      // Predicated region
      $region17: #{mmm_dit_forward.52} parent=11 // pred_check
        %p121 = pneg %p77
      $region18: #{mmm_dit_forward.52} parent=11 // pred_check_branch
        %123 = sbr.rel (%p121) target = $region20
      $region19: #{mmm_dit_forward.52} parent=11 // pred_region
        _
      $region20: #{mmm_dit_forward.52} parent=11 // pred_fallthru
        _
    $region12: #{mmm_dit_forward.52} parent=5 // pred_fallthru
      _
    %p124 = scmp.lt.s32.totalorder %s9, 2
    // Predicated region
    $region21: #{mmm_dit_forward.52} parent=5 // pred_check
      %p125 = pneg %p124
    $region22: #{mmm_dit_forward.52} parent=5 // pred_check_branch
      %127 = sbr.rel (%p125) target = $region24
    $region23: #{mmm_dit_forward.52} parent=5 // pred_region
      // Predicated region
      $region25: #{mmm_dit_forward.52} parent=23 // pred_check
        %p128 = pneg %p29
      $region26: #{mmm_dit_forward.52} parent=23 // pred_check_branch
        %130 = sbr.rel (%p128) target = $region28
      $region27: #{mmm_dit_forward.52} parent=23 // pred_region
        %p131 = scmp.lt.s32.totalorder %s9, 1
        %s132 = scalar_select %p131, %s9, 1
        %s133 = smul.addr %s132, 3
        %s134 = smul.addr %s133, 8
        %s135 = scalar_lea.vmem %s0, %s134
      $region28: #{mmm_dit_forward.52} parent=23 // pred_fallthru
        _
    $region24: #{mmm_dit_forward.52} parent=5 // pred_fallthru
      _
    %p136 = scmp.le.s32.totalorder 1, %s9
    %p137 = scmp.lt.s32.totalorder %s9, 3
    %p138 = pnand %p136, %p137
    %p139 = pneg %p138
    // Predicated region
    $region29: #{mmm_dit_forward.52} parent=5 // pred_check
      _
    $region30: #{mmm_dit_forward.52} parent=5 // pred_check_branch
      %141 = sbr.rel (%p138) target = $region32
    $region31: #{mmm_dit_forward.52} parent=5 // pred_region
      %s142 = ssub.s32 %s9, 1
      %p143 = scmp.lt.s32.totalorder %s14, 1
      %s144 = scalar_select %p143, %s14, 1
      %s145 = smul.addr %s144, 3
      %s146 = smul.addr %s145, 8
      %s147 = scalar_lea.vmem %s0, %s146
      %p148 = pneg %p35
      %p149 = pneg %p32
      %p150 = pneg %p56
      %p151 = pneg %p53
      %p152 = pneg %p77
      %p153 = pneg %p74
      %p154 = pneg %p103
      %p155 = pneg %p100
      %p156 = scmp.lt.s32.totalorder %s14, 1
      %s157 = scalar_select %p156, %s14, 1
      %s158 = smul.addr %s157, 2
      %s159 = smul.addr %s158, 8
      %s160 = scalar_lea.vmem %s3, %s159
      %p161 = scmp.lt.s32.totalorder %s14, 1
      %s162 = scalar_select %p161, %s14, 1
      %s163 = smul.addr %s162, 3
      %s164 = smul.addr %s163, 8
      %s165 = scalar_lea.vmem %s0, %s164
      %p166 = scmp.lt.s32.totalorder %s14, 1
      %s167 = scalar_select %p166, %s14, 1
      %s168 = smul.addr %s167, 2
      %s169 = smul.addr %s168, 8
      %s170 = scalar_lea.vmem %s3, %s169
      %v172 = vld [vmem:[%s165] sm:$0xff]
      %v173 = vld [vmem:[%s165 + $0x8] sm:$0xff]
      %v174 = vld [vmem:[%s165 + $0x10] sm:$0x3]
      %vm178 = vcmask 1046528
      %v179 = vrot.slane %v172, 1
      %v180 = vrot.slane %v173, 1
      %v181 = vsel %vm178, %v179, %v180
      %v182 = vrot.slane %v174, 1
      %v183 = vsel %vm178, %v180, %v182
      %184 = vrot.lane.b32.xlu0 %v181, 64
      %v185 = vpop.permute.xlu0 %184
      %186 = vrot.lane.b32.xlu0 %v183, 64
      %v187 = vpop.permute.xlu0 %186
      %vm190 = vcmask 1045504
      %v191 = vrot.slane %v172, 2
      %v192 = vrot.slane %v173, 2
      %v193 = vsel %vm190, %v191, %v192
      %v194 = vrot.slane %v174, 2
      %v195 = vsel %vm190, %v192, %v194
      %vm198 = vcmask 523264
      %v199 = vsel %vm198, %v172, %v185
      %v200 = vsel %vm198, %v173, %v187
      %v201 = vpack.c.bf16 %v200, %v199
      %v202 = vpack.c.bf16 %v195, %v193
      %v203 = vld [vmem:[%s1] sm:$0xf]
      %v204 = vld [vmem:[%s1 + $0x4] sm:$0xf]
      %v205 = vld [vmem:[%s1 + $0x8] sm:$0xf]
      %v206 = vld [vmem:[%s1 + $0xc] sm:$0xf]
      %v207 = vld [vmem:[%s1 + $0x10] sm:$0xf]
      %v208 = vld [vmem:[%s1 + $0x14] sm:$0xf]
      %v209 = vld [vmem:[%s1 + $0x18] sm:$0xf]
      %v210 = vld [vmem:[%s1 + $0x1c] sm:$0xf]
      %v211 = vld [vmem:[%s1 + $0x20] sm:$0xf]
      %v212 = vld [vmem:[%s1 + $0x24] sm:$0xf]
      %v213 = vld [vmem:[%s1 + $0x28] sm:$0xf]
      %v214 = vld [vmem:[%s1 + $0x2c] sm:$0xf]
      %v215 = vld [vmem:[%s1 + $0x30] sm:$0xf]
      %v216 = vld [vmem:[%s1 + $0x34] sm:$0xf]
      %v217 = vld [vmem:[%s1 + $0x38] sm:$0xf]
      %v218 = vld [vmem:[%s1 + $0x3c] sm:$0xf]
      %v219 = vld [vmem:[%s1 + $0x40] sm:$0xf]
      %v220 = vld [vmem:[%s1 + $0x44] sm:$0xf]
      %v221 = vld [vmem:[%s1 + $0x48] sm:$0xf]
      %v222 = vld [vmem:[%s1 + $0x4c] sm:$0xf]
      %v223 = vld [vmem:[%s1 + $0x50] sm:$0xf]
      %v224 = vld [vmem:[%s1 + $0x54] sm:$0xf]
      %v225 = vld [vmem:[%s1 + $0x58] sm:$0xf]
      %v226 = vld [vmem:[%s1 + $0x5c] sm:$0xf]
      %v227 = vld [vmem:[%s2] sm:$0x1]
      %v229 = vlaneseq
      %v230 = vshrl.u32 %v229, 7
      %v231 = vsub.s32 0, %v230
      %v232 = vrot.slane %v227, %v231
      %v258 = vunpack.c.l.b16 %v203
      %v259 = vunpack.c.l.b16 %v204
      %v260 = vunpack.c.l.b16 %v205
      %v261 = vunpack.c.l.b16 %v206
      %v262 = vunpack.c.l.b16 %v207
      %v263 = vunpack.c.l.b16 %v208
      %v264 = vunpack.c.l.b16 %v209
      %v265 = vunpack.c.l.b16 %v210
      %v266 = vunpack.c.l.b16 %v211
      %v267 = vunpack.c.l.b16 %v212
      %v268 = vunpack.c.l.b16 %v213
      %v269 = vunpack.c.l.b16 %v214
      %v270 = vunpack.c.l.b16 %v215
      %v271 = vunpack.c.l.b16 %v216
      %v272 = vunpack.c.l.b16 %v217
      %v273 = vunpack.c.l.b16 %v218
      %v274 = vunpack.c.l.b16 %v219
      %v275 = vunpack.c.l.b16 %v220
      %v276 = vunpack.c.l.b16 %v221
      %v277 = vunpack.c.l.b16 %v222
      %v278 = vunpack.c.l.b16 %v223
      %v279 = vunpack.c.l.b16 %v224
      %v280 = vunpack.c.l.b16 %v225
      %v281 = vunpack.c.l.b16 %v226
      %v282 = vpack.c.b16 %v259, %v258
      %v283 = vpack.c.b16 %v261, %v260
      %v284 = vpack.c.b16 %v263, %v262
      %v285 = vpack.c.b16 %v265, %v264
      %v286 = vpack.c.b16 %v267, %v266
      %v287 = vpack.c.b16 %v269, %v268
      %v288 = vpack.c.b16 %v271, %v270
      %v289 = vpack.c.b16 %v273, %v272
      %v290 = vpack.c.b16 %v275, %v274
      %v291 = vpack.c.b16 %v277, %v276
      %v292 = vpack.c.b16 %v279, %v278
      %v293 = vpack.c.b16 %v281, %v280
      %v307 = vsel %vm198, %v202, 0
      %309 = vmatprep.subr.bf16.mxu0 0
      %310 = vmatpush1.bf16.msra.mxu0 %v282
      %311 = vmatprep.subr.bf16.mxu0 0
      %312 = vmatpush1.bf16.msra.mxu0 %v283
      %313 = vmatprep.subr.bf16.mxu0 0
      %314 = vmatpush1.bf16.msra.mxu0 %v284
      %315 = vmatprep.subr.bf16.mxu0 0
      %316 = vmatpush1.bf16.msra.mxu0 %v285
      %317 = vmatprep.subr.bf16.mxu0 0
      %318 = vmatpush1.bf16.msra.mxu0 %v286
      %319 = vmatprep.subr.bf16.mxu0 0
      %320 = vmatpush1.bf16.msra.mxu0 %v287
      %321 = vmatprep.subr.bf16.mxu0 0
      %322 = vmatpush1.bf16.msra.mxu0 %v288
      %323 = vmatprep.subr.bf16.mxu0 0
      %324 = vmatpush1.bf16.msra.mxu0 %v289
      %325 = vmatprep.subr.bf16.mxu0 0
      %326 = vmatpush1.bf16.msra.mxu0 %v290
      %327 = vmatprep.subr.bf16.mxu0 0
      %328 = vmatpush1.bf16.msra.mxu0 %v291
      %329 = vmatprep.subr.bf16.mxu0 0
      %330 = vmatpush1.bf16.msra.mxu0 %v292
      %331 = vmatprep.subr.bf16.mxu0 0
      %332 = vmatpush1.bf16.msra.mxu0 %v293
      %333 = vmatprep.subr.bf16.mxu0 0
      %334 = vmatpush1.bf16.msra.mxu0 0
      %335 = vmatprep.subr.bf16.mxu0 0
      %336 = vmatpush1.bf16.msra.mxu0 0
      %337 = vmatprep.subr.bf16.mxu0 0
      %338 = vmatpush1.bf16.msra.mxu0 0
      %339 = vmatprep.subr.bf16.mxu0 0
      %340 = vmatpush1.bf16.msra.mxu0 0
      %341 = vmatprep.mubr.bf16.mxu0 %v307
      %342 = vmatmul.mubr.bf16.gmra.mrb[0].mxu0 %v201
      %v343 = vpop.f32.mrb[0].mxu0
      %v344 = vadd.f32 %v232, %v343
      %v345 = vpop.f32.mrb[0].mxu0
      %v346 = vpop.f32.mrb[0].mxu0
      %v347 = vadd.f32 %v232, %v346
      %v348 = vpop.f32.mrb[0].mxu0
      %349 = vdwg.mxu0
      %v350 = vmax.f32 %v344, 0.0
      %v351 = vmax.f32 %v347, 0.0
      %352 = vst.msk [vmem:[%s170] sm:$0xff] %vm198, %v350
      %353 = vst.msk [vmem:[%s170 + $0x8] sm:$0xff] %vm198, %v351
      %p354 = scmp.lt.s32.totalorder %s14, 1
      %s355 = scalar_select %p354, %s14, 1
      %s356 = smul.addr %s355, 2
      %s357 = smul.addr %s356, 8
      %s358 = scalar_lea.vmem %s3, %s357
      // Predicated region
      $region33: #{mmm_dit_forward.52} parent=31 // pred_check
        %p359 = pneg %p100
      $region34: #{mmm_dit_forward.52} parent=31 // pred_check_branch
        %361 = sbr.rel (%p359) target = $region36
      $region35: #{mmm_dit_forward.52} parent=31 // pred_region
        _
      $region36: #{mmm_dit_forward.52} parent=31 // pred_fallthru
        _
    $region32: #{mmm_dit_forward.52} parent=5 // pred_fallthru
      _
    %p362 = scmp.le.s32.totalorder 2, %s9
    // Predicated region
    $region37: #{mmm_dit_forward.52} parent=5 // pred_check
      %p363 = pneg %p362
    $region38: #{mmm_dit_forward.52} parent=5 // pred_check_branch
      %365 = sbr.rel (%p363) target = $region40
    $region39: #{mmm_dit_forward.52} parent=5 // pred_region
      %s366 = ssub.s32 %s9, 2
      // Predicated region
      $region41: #{mmm_dit_forward.52} parent=39 // pred_check
        %p367 = pneg %p106
      $region42: #{mmm_dit_forward.52} parent=39 // pred_check_branch
        %369 = sbr.rel (%p367) target = $region44
      $region43: #{mmm_dit_forward.52} parent=39 // pred_region
        %p370 = scmp.lt.s32.totalorder %s15, 1
        %s371 = scalar_select %p370, %s15, 1
        %s372 = smul.addr %s371, 2
        %s373 = smul.addr %s372, 8
        %s374 = scalar_lea.vmem %s3, %s373
      $region44: #{mmm_dit_forward.52} parent=39 // pred_fallthru
        _
    $region40: #{mmm_dit_forward.52} parent=5 // pred_fallthru
      _
  $region6: #{mmm_dit_forward.52} parent=0 // loop_footer
    %s13 = sadd.s32 1, %s9
  $region7: #{mmm_dit_forward.52} parent=0 // loop_footer_branch
    %8 = sbr.rel target = $region3
  $region8: #{mmm_dit_forward.52} parent=0 // loop_exit
    _

// kernel: mmm_dit_forward.53
$region0: #{mmm_dit_forward.53}
  #allocation0 [shape = 'u32[]', space=smem, size = 0x4, offset = 0x4, fixed_abs, tag = 'smem constant byte address 0x4 - core index']
  #allocation1 [shape = 'u32[144,128]{1,0:T(1,128)}', space=vmem, size = 0x12000, scoped, tag = 'internal scratch']
  %s0 = inlined_call_operand.vmem [shape: f32[2,18,64], index: 0, kind: input, shape index: {}]
  %s1 = inlined_call_operand.vmem [shape: bf16[192,32], index: 1, kind: input, shape index: {}]
  %s2 = inlined_call_operand.vmem [shape: f32[1,32], index: 2, kind: input, shape index: {}]
  %s3 = inlined_call_operand.vmem [shape: f32[2,16,32], index: 3, kind: output, shape index: {}]
  %s4 = sld [smem:[#allocation0]]
  $region45: #{mmm_dit_forward.53} parent=0
    _
  %s6 = ssub.s32 1, %s4
  %s7 = scalar_select 0, %s6, %s4
  loop: start=0, step=1, limit=4
  $region2: #{mmm_dit_forward.53} parent=0 // loop_pre_header
    _
  $region3: #{mmm_dit_forward.53} parent=0 // loop_header
    %s9 = sphi 0, %s13
    %p10 = scmp.ge.s32.totalorder %s9, 4
    %s19 = sphi 0, %s21
    %s22 = sphi 0, %s19
    %s23 = sphi 0, %s22
    %s39 = sphi 0, %s23
    %s43 = sphi 0, %s43
    %s45 = sphi 0, %s43
    %s46 = sphi 0, %s45
    %s60 = sphi 0, %s46
    %s64 = sphi 0, %s64
    %s66 = sphi 0, %s64
    %s67 = sphi 0, %s66
    %s81 = sphi 0, %s67
    %s87 = sphi 0, %s89
    %s90 = sphi 0, %s87
    %s91 = sphi 0, %s90
    %s107 = sphi 0, %s91
  $region4: #{mmm_dit_forward.53} parent=0 // loop_header_branch
    %12 = sbr.rel (%p10) target = $region8
  $region5: #{mmm_dit_forward.53} parent=0 // loop_body
    %s14 = ssub.s32 %s9, 1
    %s15 = ssub.s32 %s9, 2
    %s16 = sadd.s32 %s9, 1
    %s17 = ssub.s32 %s9, %s16
    %p18 = scmp.eq.s32.totalorder %s17, 0
    %s20 = sadd.s32 %s19, 1
    %s21 = scalar_select %p18, %s19, %s20
    %p24 = pneg %p18
    %p25 = scmp.eq.s32.totalorder %s9, 1
    %p26 = por %p24, %p25
    %p27 = scmp.ne.s32.totalorder %s19, %s22
    %p28 = scmp.eq.s32.totalorder %s9, 0
    %p29 = por %p27, %p28
    %p30 = scmp.ne.s32.totalorder %s19, %s22
    %p31 = scmp.eq.s32.totalorder %s14, 1
    %p32 = por %p30, %p31
    %p33 = scmp.ne.s32.totalorder %s22, %s23
    %p34 = scmp.eq.s32.totalorder %s14, 0
    %p35 = por %p33, %p34
    %p36 = scmp.ne.s32.totalorder %s22, %s23
    %p37 = scmp.eq.s32.totalorder %s15, 1
    %p38 = por %p36, %p37
    %p40 = scmp.ne.s32.totalorder %s23, %s39
    %p41 = scmp.eq.s32.totalorder %s15, 0
    %p42 = por %p40, %p41
    %s44 = sadd.s32 %s43, 1
    %p47 = scmp.eq.s32.totalorder %s9, 1
    %p48 = scmp.ne.s32.totalorder %s43, %s45
    %p49 = scmp.eq.s32.totalorder %s9, 0
    %p50 = por %p48, %p49
    %p51 = scmp.ne.s32.totalorder %s43, %s45
    %p52 = scmp.eq.s32.totalorder %s14, 1
    %p53 = por %p51, %p52
    %p54 = scmp.ne.s32.totalorder %s45, %s46
    %p55 = scmp.eq.s32.totalorder %s14, 0
    %p56 = por %p54, %p55
    %p57 = scmp.ne.s32.totalorder %s45, %s46
    %p58 = scmp.eq.s32.totalorder %s15, 1
    %p59 = por %p57, %p58
    %p61 = scmp.ne.s32.totalorder %s46, %s60
    %p62 = scmp.eq.s32.totalorder %s15, 0
    %p63 = por %p61, %p62
    %s65 = sadd.s32 %s64, 1
    %p68 = scmp.eq.s32.totalorder %s9, 1
    %p69 = scmp.ne.s32.totalorder %s64, %s66
    %p70 = scmp.eq.s32.totalorder %s9, 0
    %p71 = por %p69, %p70
    %p72 = scmp.ne.s32.totalorder %s64, %s66
    %p73 = scmp.eq.s32.totalorder %s14, 1
    %p74 = por %p72, %p73
    %p75 = scmp.ne.s32.totalorder %s66, %s67
    %p76 = scmp.eq.s32.totalorder %s14, 0
    %p77 = por %p75, %p76
    %p78 = scmp.ne.s32.totalorder %s66, %s67
    %p79 = scmp.eq.s32.totalorder %s15, 1
    %p80 = por %p78, %p79
    %p82 = scmp.ne.s32.totalorder %s67, %s81
    %p83 = scmp.eq.s32.totalorder %s15, 0
    %p84 = por %p82, %p83
    %s85 = ssub.s32 %s9, %s16
    %p86 = scmp.eq.s32.totalorder %s85, 0
    %s88 = sadd.s32 %s87, 1
    %s89 = scalar_select %p86, %s87, %s88
    %p92 = pneg %p86
    %p93 = scmp.eq.s32.totalorder %s9, 1
    %p94 = por %p92, %p93
    %p95 = scmp.ne.s32.totalorder %s87, %s90
    %p96 = scmp.eq.s32.totalorder %s9, 0
    %p97 = por %p95, %p96
    %p98 = scmp.ne.s32.totalorder %s87, %s90
    %p99 = scmp.eq.s32.totalorder %s14, 1
    %p100 = por %p98, %p99
    %p101 = scmp.ne.s32.totalorder %s90, %s91
    %p102 = scmp.eq.s32.totalorder %s14, 0
    %p103 = por %p101, %p102
    %p104 = scmp.ne.s32.totalorder %s90, %s91
    %p105 = scmp.eq.s32.totalorder %s15, 1
    %p106 = por %p104, %p105
    %p108 = scmp.ne.s32.totalorder %s91, %s107
    %p109 = scmp.eq.s32.totalorder %s15, 0
    %p110 = por %p108, %p109
    %p111 = scmp.le.s32.totalorder 1, %s9
    %p112 = scmp.lt.s32.totalorder %s9, 3
    %p113 = pnand %p111, %p112
    %p114 = pneg %p113
    // Predicated region
    $region9: #{mmm_dit_forward.53} parent=5 // pred_check
      _
    $region10: #{mmm_dit_forward.53} parent=5 // pred_check_branch
      %116 = sbr.rel (%p113) target = $region12
    $region11: #{mmm_dit_forward.53} parent=5 // pred_region
      %s117 = ssub.s32 %s9, 1
      // Predicated region
      $region13: #{mmm_dit_forward.53} parent=11 // pred_check
        %p118 = pneg %p56
      $region14: #{mmm_dit_forward.53} parent=11 // pred_check_branch
        %120 = sbr.rel (%p118) target = $region16
      $region15: #{mmm_dit_forward.53} parent=11 // pred_region
        _
      $region16: #{mmm_dit_forward.53} parent=11 // pred_fallthru
        _
      // Predicated region
      $region17: #{mmm_dit_forward.53} parent=11 // pred_check
        %p121 = pneg %p77
      $region18: #{mmm_dit_forward.53} parent=11 // pred_check_branch
        %123 = sbr.rel (%p121) target = $region20
      $region19: #{mmm_dit_forward.53} parent=11 // pred_region
        _
      $region20: #{mmm_dit_forward.53} parent=11 // pred_fallthru
        _
    $region12: #{mmm_dit_forward.53} parent=5 // pred_fallthru
      _
    %p124 = scmp.lt.s32.totalorder %s9, 2
    // Predicated region
    $region21: #{mmm_dit_forward.53} parent=5 // pred_check
      %p125 = pneg %p124
    $region22: #{mmm_dit_forward.53} parent=5 // pred_check_branch
      %127 = sbr.rel (%p125) target = $region24
    $region23: #{mmm_dit_forward.53} parent=5 // pred_region
      // Predicated region
      $region25: #{mmm_dit_forward.53} parent=23 // pred_check
        %p128 = pneg %p29
      $region26: #{mmm_dit_forward.53} parent=23 // pred_check_branch
        %130 = sbr.rel (%p128) target = $region28
      $region27: #{mmm_dit_forward.53} parent=23 // pred_region
        %p131 = scmp.lt.s32.totalorder %s9, 1
        %s132 = scalar_select %p131, %s9, 1
        %s133 = smul.addr %s132, 3
        %s134 = smul.addr %s133, 8
        %s135 = scalar_lea.vmem %s0, %s134
      $region28: #{mmm_dit_forward.53} parent=23 // pred_fallthru
        _
    $region24: #{mmm_dit_forward.53} parent=5 // pred_fallthru
      _
    %p136 = scmp.le.s32.totalorder 1, %s9
    %p137 = scmp.lt.s32.totalorder %s9, 3
    %p138 = pnand %p136, %p137
    %p139 = pneg %p138
    // Predicated region
    $region29: #{mmm_dit_forward.53} parent=5 // pred_check
      _
    $region30: #{mmm_dit_forward.53} parent=5 // pred_check_branch
      %141 = sbr.rel (%p138) target = $region32
    $region31: #{mmm_dit_forward.53} parent=5 // pred_region
      %s142 = ssub.s32 %s9, 1
      %p143 = scmp.lt.s32.totalorder %s14, 1
      %s144 = scalar_select %p143, %s14, 1
      %s145 = smul.addr %s144, 3
      %s146 = smul.addr %s145, 8
      %s147 = scalar_lea.vmem %s0, %s146
      %p148 = pneg %p35
      %p149 = pneg %p32
      %p150 = pneg %p56
      %p151 = pneg %p53
      %p152 = pneg %p77
      %p153 = pneg %p74
      %p154 = pneg %p103
      %p155 = pneg %p100
      %p156 = scmp.lt.s32.totalorder %s14, 1
      %s157 = scalar_select %p156, %s14, 1
      %s158 = smul.addr %s157, 2
      %s159 = smul.addr %s158, 8
      %s160 = scalar_lea.vmem %s3, %s159
      %p161 = scmp.lt.s32.totalorder %s14, 1
      %s162 = scalar_select %p161, %s14, 1
      %s163 = smul.addr %s162, 3
      %s164 = smul.addr %s163, 8
      %s165 = scalar_lea.vmem %s0, %s164
      %p166 = scmp.lt.s32.totalorder %s14, 1
      %s167 = scalar_select %p166, %s14, 1
      %s168 = smul.addr %s167, 2
      %s169 = smul.addr %s168, 8
      %s170 = scalar_lea.vmem %s3, %s169
      %v172 = vld [vmem:[%s165] sm:$0xff]
      %v173 = vld [vmem:[%s165 + $0x8] sm:$0xff]
      %v174 = vld [vmem:[%s165 + $0x10] sm:$0x3]
      %vm178 = vcmask 1046528
      %v179 = vrot.slane %v172, 1
      %v180 = vrot.slane %v173, 1
      %v181 = vsel %vm178, %v179, %v180
      %v182 = vrot.slane %v174, 1
      %v183 = vsel %vm178, %v180, %v182
      %184 = vrot.lane.b32.xlu0 %v181, 64
      %v185 = vpop.permute.xlu0 %184
      %186 = vrot.lane.b32.xlu0 %v183, 64
      %v187 = vpop.permute.xlu0 %186
      %vm190 = vcmask 1045504
      %v191 = vrot.slane %v172, 2
      %v192 = vrot.slane %v173, 2
      %v193 = vsel %vm190, %v191, %v192
      %v194 = vrot.slane %v174, 2
      %v195 = vsel %vm190, %v192, %v194
      %vm198 = vcmask 523264
      %v199 = vsel %vm198, %v172, %v185
      %v200 = vsel %vm198, %v173, %v187
      %v201 = vpack.c.bf16 %v200, %v199
      %v202 = vpack.c.bf16 %v195, %v193
      %v203 = vld [vmem:[%s1] sm:$0xf]
      %v204 = vld [vmem:[%s1 + $0x4] sm:$0xf]
      %v205 = vld [vmem:[%s1 + $0x8] sm:$0xf]
      %v206 = vld [vmem:[%s1 + $0xc] sm:$0xf]
      %v207 = vld [vmem:[%s1 + $0x10] sm:$0xf]
      %v208 = vld [vmem:[%s1 + $0x14] sm:$0xf]
      %v209 = vld [vmem:[%s1 + $0x18] sm:$0xf]
      %v210 = vld [vmem:[%s1 + $0x1c] sm:$0xf]
      %v211 = vld [vmem:[%s1 + $0x20] sm:$0xf]
      %v212 = vld [vmem:[%s1 + $0x24] sm:$0xf]
      %v213 = vld [vmem:[%s1 + $0x28] sm:$0xf]
      %v214 = vld [vmem:[%s1 + $0x2c] sm:$0xf]
      %v215 = vld [vmem:[%s1 + $0x30] sm:$0xf]
      %v216 = vld [vmem:[%s1 + $0x34] sm:$0xf]
      %v217 = vld [vmem:[%s1 + $0x38] sm:$0xf]
      %v218 = vld [vmem:[%s1 + $0x3c] sm:$0xf]
      %v219 = vld [vmem:[%s1 + $0x40] sm:$0xf]
      %v220 = vld [vmem:[%s1 + $0x44] sm:$0xf]
      %v221 = vld [vmem:[%s1 + $0x48] sm:$0xf]
      %v222 = vld [vmem:[%s1 + $0x4c] sm:$0xf]
      %v223 = vld [vmem:[%s1 + $0x50] sm:$0xf]
      %v224 = vld [vmem:[%s1 + $0x54] sm:$0xf]
      %v225 = vld [vmem:[%s1 + $0x58] sm:$0xf]
      %v226 = vld [vmem:[%s1 + $0x5c] sm:$0xf]
      %v227 = vld [vmem:[%s2] sm:$0x1]
      %v229 = vlaneseq
      %v230 = vshrl.u32 %v229, 7
      %v231 = vsub.s32 0, %v230
      %v232 = vrot.slane %v227, %v231
      %v258 = vunpack.c.l.b16 %v203
      %v259 = vunpack.c.l.b16 %v204
      %v260 = vunpack.c.l.b16 %v205
      %v261 = vunpack.c.l.b16 %v206
      %v262 = vunpack.c.l.b16 %v207
      %v263 = vunpack.c.l.b16 %v208
      %v264 = vunpack.c.l.b16 %v209
      %v265 = vunpack.c.l.b16 %v210
      %v266 = vunpack.c.l.b16 %v211
      %v267 = vunpack.c.l.b16 %v212
      %v268 = vunpack.c.l.b16 %v213
      %v269 = vunpack.c.l.b16 %v214
      %v270 = vunpack.c.l.b16 %v215
      %v271 = vunpack.c.l.b16 %v216
      %v272 = vunpack.c.l.b16 %v217
      %v273 = vunpack.c.l.b16 %v218
      %v274 = vunpack.c.l.b16 %v219
      %v275 = vunpack.c.l.b16 %v220
      %v276 = vunpack.c.l.b16 %v221
      %v277 = vunpack.c.l.b16 %v222
      %v278 = vunpack.c.l.b16 %v223
      %v279 = vunpack.c.l.b16 %v224
      %v280 = vunpack.c.l.b16 %v225
      %v281 = vunpack.c.l.b16 %v226
      %v282 = vpack.c.b16 %v259, %v258
      %v283 = vpack.c.b16 %v261, %v260
      %v284 = vpack.c.b16 %v263, %v262
      %v285 = vpack.c.b16 %v265, %v264
      %v286 = vpack.c.b16 %v267, %v266
      %v287 = vpack.c.b16 %v269, %v268
      %v288 = vpack.c.b16 %v271, %v270
      %v289 = vpack.c.b16 %v273, %v272
      %v290 = vpack.c.b16 %v275, %v274
      %v291 = vpack.c.b16 %v277, %v276
      %v292 = vpack.c.b16 %v279, %v278
      %v293 = vpack.c.b16 %v281, %v280
      %v307 = vsel %vm198, %v202, 0
      %309 = vmatprep.subr.bf16.mxu0 0
      %310 = vmatpush1.bf16.msra.mxu0 %v282
      %311 = vmatprep.subr.bf16.mxu0 0
      %312 = vmatpush1.bf16.msra.mxu0 %v283
      %313 = vmatprep.subr.bf16.mxu0 0
      %314 = vmatpush1.bf16.msra.mxu0 %v284
      %315 = vmatprep.subr.bf16.mxu0 0
      %316 = vmatpush1.bf16.msra.mxu0 %v285
      %317 = vmatprep.subr.bf16.mxu0 0
      %318 = vmatpush1.bf16.msra.mxu0 %v286
      %319 = vmatprep.subr.bf16.mxu0 0
      %320 = vmatpush1.bf16.msra.mxu0 %v287
      %321 = vmatprep.subr.bf16.mxu0 0
      %322 = vmatpush1.bf16.msra.mxu0 %v288
      %323 = vmatprep.subr.bf16.mxu0 0
      %324 = vmatpush1.bf16.msra.mxu0 %v289
      %325 = vmatprep.subr.bf16.mxu0 0
      %326 = vmatpush1.bf16.msra.mxu0 %v290
      %327 = vmatprep.subr.bf16.mxu0 0
      %328 = vmatpush1.bf16.msra.mxu0 %v291
      %329 = vmatprep.subr.bf16.mxu0 0
      %330 = vmatpush1.bf16.msra.mxu0 %v292
      %331 = vmatprep.subr.bf16.mxu0 0
      %332 = vmatpush1.bf16.msra.mxu0 %v293
      %333 = vmatprep.subr.bf16.mxu0 0
      %334 = vmatpush1.bf16.msra.mxu0 0
      %335 = vmatprep.subr.bf16.mxu0 0
      %336 = vmatpush1.bf16.msra.mxu0 0
      %337 = vmatprep.subr.bf16.mxu0 0
      %338 = vmatpush1.bf16.msra.mxu0 0
      %339 = vmatprep.subr.bf16.mxu0 0
      %340 = vmatpush1.bf16.msra.mxu0 0
      %341 = vmatprep.mubr.bf16.mxu0 %v307
      %342 = vmatmul.mubr.bf16.gmra.mrb[0].mxu0 %v201
      %v343 = vpop.f32.mrb[0].mxu0
      %v344 = vadd.f32 %v232, %v343
      %v345 = vpop.f32.mrb[0].mxu0
      %v346 = vpop.f32.mrb[0].mxu0
      %v347 = vadd.f32 %v232, %v346
      %v348 = vpop.f32.mrb[0].mxu0
      %349 = vdwg.mxu0
      %vm350 = vcmask 261120
      %351 = vst.msk [vmem:[%s170] sm:$0xff] %vm350, %v344
      %352 = vst.msk [vmem:[%s170 + $0x8] sm:$0xff] %vm350, %v347
      %p353 = scmp.lt.s32.totalorder %s14, 1
      %s354 = scalar_select %p353, %s14, 1
      %s355 = smul.addr %s354, 2
      %s356 = smul.addr %s355, 8
      %s357 = scalar_lea.vmem %s3, %s356
      // Predicated region
      $region33: #{mmm_dit_forward.53} parent=31 // pred_check
        %p358 = pneg %p100
      $region34: #{mmm_dit_forward.53} parent=31 // pred_check_branch
        %360 = sbr.rel (%p358) target = $region36
      $region35: #{mmm_dit_forward.53} parent=31 // pred_region
        _
      $region36: #{mmm_dit_forward.53} parent=31 // pred_fallthru
        _
    $region32: #{mmm_dit_forward.53} parent=5 // pred_fallthru
      _
    %p361 = scmp.le.s32.totalorder 2, %s9
    // Predicated region
    $region37: #{mmm_dit_forward.53} parent=5 // pred_check
      %p362 = pneg %p361
    $region38: #{mmm_dit_forward.53} parent=5 // pred_check_branch
      %364 = sbr.rel (%p362) target = $region40
    $region39: #{mmm_dit_forward.53} parent=5 // pred_region
      %s365 = ssub.s32 %s9, 2
      // Predicated region
      $region41: #{mmm_dit_forward.53} parent=39 // pred_check
        %p366 = pneg %p106
      $region42: #{mmm_dit_forward.53} parent=39 // pred_check_branch
        %368 = sbr.rel (%p366) target = $region44
      $region43: #{mmm_dit_forward.53} parent=39 // pred_region
        %p369 = scmp.lt.s32.totalorder %s15, 1
        %s370 = scalar_select %p369, %s15, 1
        %s371 = smul.addr %s370, 2
        %s372 = smul.addr %s371, 8
        %s373 = scalar_lea.vmem %s3, %s372
      $region44: #{mmm_dit_forward.53} parent=39 // pred_fallthru
        _
    $region40: #{mmm_dit_forward.53} parent=5 // pred_fallthru
      _
  $region6: #{mmm_dit_forward.53} parent=0 // loop_footer
    %s13 = sadd.s32 1, %s9
  $region7: #{mmm_dit_forward.53} parent=0 // loop_footer_branch
    %8 = sbr.rel target = $region3
  $region8: #{mmm_dit_forward.53} parent=0 // loop_exit
    _

// kernel: mmm_dit_forward.54
$region0: #{mmm_dit_forward.54}
  #allocation0 [shape = 'u32[]', space=smem, size = 0x4, offset = 0x4, fixed_abs, tag = 'smem constant byte address 0x4 - core index']
  #allocation1 [shape = 'u32[144,128]{1,0:T(1,128)}', space=vmem, size = 0x12000, scoped, tag = 'internal scratch']
  %s0 = inlined_call_operand.vmem [shape: f32[2,64], index: 0, kind: input, shape index: {}]
  %s1 = inlined_call_operand.vmem [shape: bf16[64,64], index: 1, kind: input, shape index: {}]
  %s2 = inlined_call_operand.vmem [shape: f32[1,64], index: 2, kind: input, shape index: {}]
  %s3 = inlined_call_operand.vmem [shape: bf16[64,64], index: 3, kind: input, shape index: {}]
  %s4 = inlined_call_operand.vmem [shape: f32[1,64], index: 4, kind: input, shape index: {}]
  %s5 = inlined_call_operand.vmem [shape: bf16[64,896], index: 5, kind: input, shape index: {}]
  %s6 = inlined_call_operand.vmem [shape: f32[1,896], index: 6, kind: input, shape index: {}]
  %s7 = inlined_call_operand.vmem [shape: f32[2,896], index: 7, kind: output, shape index: {}]
  %s8 = sld [smem:[#allocation0]]
  $region38: #{mmm_dit_forward.54} parent=0
    _
  %s10 = ssub.s32 1, %s8
  %s11 = scalar_select 0, %s10, %s8
  // Predicated region
  $region2: #{mmm_dit_forward.54} parent=0 // pred_check
    _
  $region3: #{mmm_dit_forward.54} parent=0 // pred_check_branch
    %13 = sbr.rel (0) target = $region5
  $region4: #{mmm_dit_forward.54} parent=0 // pred_region
    _
  $region5: #{mmm_dit_forward.54} parent=0 // pred_fallthru
    _
  // Predicated region
  $region6: #{mmm_dit_forward.54} parent=0 // pred_check
    _
  $region7: #{mmm_dit_forward.54} parent=0 // pred_check_branch
    %15 = sbr.rel (0) target = $region9
  $region8: #{mmm_dit_forward.54} parent=0 // pred_region
    _
  $region9: #{mmm_dit_forward.54} parent=0 // pred_fallthru
    _
  // Predicated region
  $region10: #{mmm_dit_forward.54} parent=0 // pred_check
    _
  $region11: #{mmm_dit_forward.54} parent=0 // pred_check_branch
    %17 = sbr.rel (0) target = $region13
  $region12: #{mmm_dit_forward.54} parent=0 // pred_region
    _
  $region13: #{mmm_dit_forward.54} parent=0 // pred_fallthru
    _
  // Predicated region
  $region14: #{mmm_dit_forward.54} parent=0 // pred_check
    _
  $region15: #{mmm_dit_forward.54} parent=0 // pred_check_branch
    %19 = sbr.rel (0) target = $region17
  $region16: #{mmm_dit_forward.54} parent=0 // pred_region
    _
  $region17: #{mmm_dit_forward.54} parent=0 // pred_fallthru
    _
  // Predicated region
  $region18: #{mmm_dit_forward.54} parent=0 // pred_check
    _
  $region19: #{mmm_dit_forward.54} parent=0 // pred_check_branch
    %21 = sbr.rel (0) target = $region21
  $region20: #{mmm_dit_forward.54} parent=0 // pred_region
    _
  $region21: #{mmm_dit_forward.54} parent=0 // pred_fallthru
    _
  // Predicated region
  $region22: #{mmm_dit_forward.54} parent=0 // pred_check
    _
  $region23: #{mmm_dit_forward.54} parent=0 // pred_check_branch
    %23 = sbr.rel (0) target = $region25
  $region24: #{mmm_dit_forward.54} parent=0 // pred_region
    _
  $region25: #{mmm_dit_forward.54} parent=0 // pred_fallthru
    _
  // Predicated region
  $region26: #{mmm_dit_forward.54} parent=0 // pred_check
    _
  $region27: #{mmm_dit_forward.54} parent=0 // pred_check_branch
    %25 = sbr.rel (0) target = $region29
  $region28: #{mmm_dit_forward.54} parent=0 // pred_region
    _
  $region29: #{mmm_dit_forward.54} parent=0 // pred_fallthru
    _
  %v27 = vld [vmem:[%s0] sm:$0x3]
  %v28 = vpack.c.bf16 %v27, %v27
  %v29 = vld [vmem:[%s1] sm:$0xf]
  %v30 = vld [vmem:[%s1 + $0x4] sm:$0xf]
  %v31 = vld [vmem:[%s1 + $0x8] sm:$0xf]
  %v32 = vld [vmem:[%s1 + $0xc] sm:$0xf]
  %v33 = vld [vmem:[%s1 + $0x10] sm:$0xf]
  %v34 = vld [vmem:[%s1 + $0x14] sm:$0xf]
  %v35 = vld [vmem:[%s1 + $0x18] sm:$0xf]
  %v36 = vld [vmem:[%s1 + $0x1c] sm:$0xf]
  %v37 = vld [vmem:[%s2] sm:$0x1]
  %v39 = vlaneseq
  %v40 = vshrl.u32 %v39, 7
  %v41 = vsub.s32 0, %v40
  %v42 = vrot.slane %v37, %v41
  %v52 = vunpack.c.l.b16 %v29
  %v53 = vunpack.c.l.b16 %v30
  %v54 = vunpack.c.l.b16 %v31
  %v55 = vunpack.c.l.b16 %v32
  %v56 = vunpack.c.l.b16 %v33
  %v57 = vunpack.c.l.b16 %v34
  %v58 = vunpack.c.l.b16 %v35
  %v59 = vunpack.c.l.b16 %v36
  %v60 = vpack.c.b16 %v53, %v52
  %v61 = vpack.c.b16 %v55, %v54
  %v62 = vpack.c.b16 %v57, %v56
  %v63 = vpack.c.b16 %v59, %v58
  %vm68 = vcmask 523264
  %v70 = vsel %vm68, %v28, 0
  %72 = vmatprep.subr.bf16.mxu0 0
  %73 = vmatpush1.bf16.msra.mxu0 %v60
  %74 = vmatprep.subr.bf16.mxu0 0
  %75 = vmatpush1.bf16.msra.mxu0 %v61
  %76 = vmatprep.subr.bf16.mxu0 0
  %77 = vmatpush1.bf16.msra.mxu0 %v62
  %78 = vmatprep.subr.bf16.mxu0 0
  %79 = vmatpush1.bf16.msra.mxu0 %v63
  %80 = vmatprep.subr.bf16.mxu0 0
  %81 = vmatpush1.bf16.msra.mxu0 0
  %82 = vmatprep.subr.bf16.mxu0 0
  %83 = vmatpush1.bf16.msra.mxu0 0
  %84 = vmatprep.subr.bf16.mxu0 0
  %85 = vmatpush1.bf16.msra.mxu0 0
  %86 = vmatprep.subr.bf16.mxu0 0
  %87 = vmatpush1.bf16.msra.mxu0 0
  %88 = vmatprep.subr.bf16.mxu0 0
  %89 = vmatpush1.bf16.msra.mxu0 0
  %90 = vmatprep.subr.bf16.mxu0 0
  %91 = vmatpush1.bf16.msra.mxu0 0
  %92 = vmatprep.subr.bf16.mxu0 0
  %93 = vmatpush1.bf16.msra.mxu0 0
  %94 = vmatprep.subr.bf16.mxu0 0
  %95 = vmatpush1.bf16.msra.mxu0 0
  %96 = vmatprep.subr.bf16.mxu0 0
  %97 = vmatpush1.bf16.msra.mxu0 0
  %98 = vmatprep.subr.bf16.mxu0 0
  %99 = vmatpush1.bf16.msra.mxu0 0
  %100 = vmatprep.subr.bf16.mxu0 0
  %101 = vmatpush1.bf16.msra.mxu0 0
  %102 = vmatprep.subr.bf16.mxu0 0
  %103 = vmatpush1.bf16.msra.mxu0 0
  %104 = vmatprep.mubr.bf16.mxu0 0
  %105 = vmatmul.mubr.bf16.gmra.mrb[0].mxu0 %v70
  %v106 = vpop.f32.mrb[0].mxu0
  %v107 = vadd.f32 %v42, %v106
  %v108 = vpop.f32.mrb[0].mxu0
  %v109 = vpop.f32.mrb[0].mxu0
  %v110 = vpop.f32.mrb[0].mxu0
  %111 = vdwg.mxu0
  %v112 = vxor.u32 %v107, 2147483648
  %v113 = vmul.f32 %v112, 1.442695
  %v114 = vpow.pop %v113
  %v115 = vadd.f32 %v114, 1.0
  %v116 = vrcp.pop %v115
  %v117 = vmul.f32 1.0, %v116
  %v118 = vmul.f32 %v107, %v117
  %v119 = vpack.c.bf16 %v118, %v118
  %v120 = vld [vmem:[%s3] sm:$0xf]
  %v121 = vld [vmem:[%s3 + $0x4] sm:$0xf]
  %v122 = vld [vmem:[%s3 + $0x8] sm:$0xf]
  %v123 = vld [vmem:[%s3 + $0xc] sm:$0xf]
  %v124 = vld [vmem:[%s3 + $0x10] sm:$0xf]
  %v125 = vld [vmem:[%s3 + $0x14] sm:$0xf]
  %v126 = vld [vmem:[%s3 + $0x18] sm:$0xf]
  %v127 = vld [vmem:[%s3 + $0x1c] sm:$0xf]
  %v128 = vld [vmem:[%s4] sm:$0x1]
  %v130 = vlaneseq
  %v131 = vshrl.u32 %v130, 7
  %v132 = vsub.s32 0, %v131
  %v133 = vrot.slane %v128, %v132
  %v143 = vunpack.c.l.b16 %v120
  %v144 = vunpack.c.l.b16 %v121
  %v145 = vunpack.c.l.b16 %v122
  %v146 = vunpack.c.l.b16 %v123
  %v147 = vunpack.c.l.b16 %v124
  %v148 = vunpack.c.l.b16 %v125
  %v149 = vunpack.c.l.b16 %v126
  %v150 = vunpack.c.l.b16 %v127
  %v151 = vpack.c.b16 %v144, %v143
  %v152 = vpack.c.b16 %v146, %v145
  %v153 = vpack.c.b16 %v148, %v147
  %v154 = vpack.c.b16 %v150, %v149
  %v160 = vsel %vm68, %v119, 0
  %162 = vmatprep.subr.bf16.mxu0 0
  %163 = vmatpush1.bf16.msra.mxu0 %v151
  %164 = vmatprep.subr.bf16.mxu0 0
  %165 = vmatpush1.bf16.msra.mxu0 %v152
  %166 = vmatprep.subr.bf16.mxu0 0
  %167 = vmatpush1.bf16.msra.mxu0 %v153
  %168 = vmatprep.subr.bf16.mxu0 0
  %169 = vmatpush1.bf16.msra.mxu0 %v154
  %170 = vmatprep.subr.bf16.mxu0 0
  %171 = vmatpush1.bf16.msra.mxu0 0
  %172 = vmatprep.subr.bf16.mxu0 0
  %173 = vmatpush1.bf16.msra.mxu0 0
  %174 = vmatprep.subr.bf16.mxu0 0
  %175 = vmatpush1.bf16.msra.mxu0 0
  %176 = vmatprep.subr.bf16.mxu0 0
  %177 = vmatpush1.bf16.msra.mxu0 0
  %178 = vmatprep.subr.bf16.mxu0 0
  %179 = vmatpush1.bf16.msra.mxu0 0
  %180 = vmatprep.subr.bf16.mxu0 0
  %181 = vmatpush1.bf16.msra.mxu0 0
  %182 = vmatprep.subr.bf16.mxu0 0
  %183 = vmatpush1.bf16.msra.mxu0 0
  %184 = vmatprep.subr.bf16.mxu0 0
  %185 = vmatpush1.bf16.msra.mxu0 0
  %186 = vmatprep.subr.bf16.mxu0 0
  %187 = vmatpush1.bf16.msra.mxu0 0
  %188 = vmatprep.subr.bf16.mxu0 0
  %189 = vmatpush1.bf16.msra.mxu0 0
  %190 = vmatprep.subr.bf16.mxu0 0
  %191 = vmatpush1.bf16.msra.mxu0 0
  %192 = vmatprep.subr.bf16.mxu0 0
  %193 = vmatpush1.bf16.msra.mxu0 0
  %194 = vmatprep.mubr.bf16.mxu0 0
  %195 = vmatmul.mubr.bf16.gmra.mrb[0].mxu0 %v160
  %v196 = vpop.f32.mrb[0].mxu0
  %v197 = vadd.f32 %v133, %v196
  %v198 = vpop.f32.mrb[0].mxu0
  %v199 = vpop.f32.mrb[0].mxu0
  %v200 = vpop.f32.mrb[0].mxu0
  %201 = vdwg.mxu0
  %v202 = vxor.u32 %v197, 2147483648
  %v203 = vmul.f32 %v202, 1.442695
  %v204 = vpow.pop %v203
  %v205 = vadd.f32 %v204, 1.0
  %v206 = vrcp.pop %v205
  %v207 = vmul.f32 1.0, %v206
  %v208 = vmul.f32 %v197, %v207
  %v209 = vpack.c.bf16 %v208, %v208
  %v210 = vld [vmem:[%s5] sm:$0xff]
  %v211 = vld [vmem:[%s5 + $0x8] sm:$0xff]
  %v212 = vld [vmem:[%s5 + $0x10] sm:$0xff]
  %v213 = vld [vmem:[%s5 + $0x18] sm:$0xf]
  %v214 = vld [vmem:[%s5 + $0x1c] sm:$0xff]
  %v215 = vld [vmem:[%s5 + $0x24] sm:$0xff]
  %v216 = vld [vmem:[%s5 + $0x2c] sm:$0xff]
  %v217 = vld [vmem:[%s5 + $0x34] sm:$0xf]
  %v218 = vld [vmem:[%s5 + $0x38] sm:$0xff]
  %v219 = vld [vmem:[%s5 + $0x40] sm:$0xff]
  %v220 = vld [vmem:[%s5 + $0x48] sm:$0xff]
  %v221 = vld [vmem:[%s5 + $0x50] sm:$0xf]
  %v222 = vld [vmem:[%s5 + $0x54] sm:$0xff]
  %v223 = vld [vmem:[%s5 + $0x5c] sm:$0xff]
  %v224 = vld [vmem:[%s5 + $0x64] sm:$0xff]
  %v225 = vld [vmem:[%s5 + $0x6c] sm:$0xf]
  %v226 = vld [vmem:[%s5 + $0x70] sm:$0xff]
  %v227 = vld [vmem:[%s5 + $0x78] sm:$0xff]
  %v228 = vld [vmem:[%s5 + $0x80] sm:$0xff]
  %v229 = vld [vmem:[%s5 + $0x88] sm:$0xf]
  %v230 = vld [vmem:[%s5 + $0x8c] sm:$0xff]
  %v231 = vld [vmem:[%s5 + $0x94] sm:$0xff]
  %v232 = vld [vmem:[%s5 + $0x9c] sm:$0xff]
  %v233 = vld [vmem:[%s5 + $0xa4] sm:$0xf]
  %v234 = vld [vmem:[%s5 + $0xa8] sm:$0xff]
  %v235 = vld [vmem:[%s5 + $0xb0] sm:$0xff]
  %v236 = vld [vmem:[%s5 + $0xb8] sm:$0xff]
  %v237 = vld [vmem:[%s5 + $0xc0] sm:$0xf]
  %v238 = vld [vmem:[%s5 + $0xc4] sm:$0xff]
  %v239 = vld [vmem:[%s5 + $0xcc] sm:$0xff]
  %v240 = vld [vmem:[%s5 + $0xd4] sm:$0xff]
  %v241 = vld [vmem:[%s5 + $0xdc] sm:$0xf]
  %v242 = vld [vmem:[%s6] sm:$0xff]
  %v244 = vlaneseq
  %v245 = vshrl.u32 %v244, 7
  %v246 = vsub.s32 0, %v245
  %v247 = vrot.slane %v242, %v246
  %v248 = vlaneseq
  %v249 = vshrl.u32 %v248, 7
  %v250 = vsub.s32 1, %v249
  %v251 = vrot.slane %v242, %v250
  %v252 = vlaneseq
  %v253 = vshrl.u32 %v252, 7
  %v254 = vsub.s32 2, %v253
  %v255 = vrot.slane %v242, %v254
  %v256 = vlaneseq
  %v257 = vshrl.u32 %v256, 7
  %v258 = vsub.s32 3, %v257
  %v259 = vrot.slane %v242, %v258
  %v260 = vlaneseq
  %v261 = vshrl.u32 %v260, 7
  %v262 = vsub.s32 4, %v261
  %v263 = vrot.slane %v242, %v262
  %v264 = vlaneseq
  %v265 = vshrl.u32 %v264, 7
  %v266 = vsub.s32 5, %v265
  %v267 = vrot.slane %v242, %v266
  %v268 = vlaneseq
  %v269 = vshrl.u32 %v268, 7
  %v270 = vsub.s32 6, %v269
  %v271 = vrot.slane %v242, %v270
  %v311 = vunpack.c.l.b16 %v210
  %v312 = vunpack.c.h.b16 %v210
  %v313 = vunpack.c.l.b16 %v211
  %v314 = vunpack.c.h.b16 %v211
  %v315 = vunpack.c.l.b16 %v212
  %v316 = vunpack.c.h.b16 %v212
  %v317 = vunpack.c.l.b16 %v213
  %v318 = vunpack.c.l.b16 %v214
  %v319 = vunpack.c.h.b16 %v214
  %v320 = vunpack.c.l.b16 %v215
  %v321 = vunpack.c.h.b16 %v215
  %v322 = vunpack.c.l.b16 %v216
  %v323 = vunpack.c.h.b16 %v216
  %v324 = vunpack.c.l.b16 %v217
  %v325 = vunpack.c.l.b16 %v218
  %v326 = vunpack.c.h.b16 %v218
  %v327 = vunpack.c.l.b16 %v219
  %v328 = vunpack.c.h.b16 %v219
  %v329 = vunpack.c.l.b16 %v220
  %v330 = vunpack.c.h.b16 %v220
  %v331 = vunpack.c.l.b16 %v221
  %v332 = vunpack.c.l.b16 %v222
  %v333 = vunpack.c.h.b16 %v222
  %v334 = vunpack.c.l.b16 %v223
  %v335 = vunpack.c.h.b16 %v223
  %v336 = vunpack.c.l.b16 %v224
  %v337 = vunpack.c.h.b16 %v224
  %v338 = vunpack.c.l.b16 %v225
  %v339 = vunpack.c.l.b16 %v226
  %v340 = vunpack.c.h.b16 %v226
  %v341 = vunpack.c.l.b16 %v227
  %v342 = vunpack.c.h.b16 %v227
  %v343 = vunpack.c.l.b16 %v228
  %v344 = vunpack.c.h.b16 %v228
  %v345 = vunpack.c.l.b16 %v229
  %v346 = vunpack.c.l.b16 %v230
  %v347 = vunpack.c.h.b16 %v230
  %v348 = vunpack.c.l.b16 %v231
  %v349 = vunpack.c.h.b16 %v231
  %v350 = vunpack.c.l.b16 %v232
  %v351 = vunpack.c.h.b16 %v232
  %v352 = vunpack.c.l.b16 %v233
  %v353 = vunpack.c.l.b16 %v234
  %v354 = vunpack.c.h.b16 %v234
  %v355 = vunpack.c.l.b16 %v235
  %v356 = vunpack.c.h.b16 %v235
  %v357 = vunpack.c.l.b16 %v236
  %v358 = vunpack.c.h.b16 %v236
  %v359 = vunpack.c.l.b16 %v237
  %v360 = vunpack.c.l.b16 %v238
  %v361 = vunpack.c.h.b16 %v238
  %v362 = vunpack.c.l.b16 %v239
  %v363 = vunpack.c.h.b16 %v239
  %v364 = vunpack.c.l.b16 %v240
  %v365 = vunpack.c.h.b16 %v240
  %v366 = vunpack.c.l.b16 %v241
  %v367 = vpack.c.b16 %v318, %v311
  %v368 = vpack.c.b16 %v319, %v312
  %v369 = vpack.c.b16 %v320, %v313
  %v370 = vpack.c.b16 %v321, %v314
  %v371 = vpack.c.b16 %v322, %v315
  %v372 = vpack.c.b16 %v323, %v316
  %v373 = vpack.c.b16 %v324, %v317
  %v374 = vpack.c.b16 %v332, %v325
  %v375 = vpack.c.b16 %v333, %v326
  %v376 = vpack.c.b16 %v334, %v327
  %v377 = vpack.c.b16 %v335, %v328
  %v378 = vpack.c.b16 %v336, %v329
  %v379 = vpack.c.b16 %v337, %v330
  %v380 = vpack.c.b16 %v338, %v331
  %v381 = vpack.c.b16 %v346, %v339
  %v382 = vpack.c.b16 %v347, %v340
  %v383 = vpack.c.b16 %v348, %v341
  %v384 = vpack.c.b16 %v349, %v342
  %v385 = vpack.c.b16 %v350, %v343
  %v386 = vpack.c.b16 %v351, %v344
  %v387 = vpack.c.b16 %v352, %v345
  %v388 = vpack.c.b16 %v360, %v353
  %v389 = vpack.c.b16 %v361, %v354
  %v390 = vpack.c.b16 %v362, %v355
  %v391 = vpack.c.b16 %v363, %v356
  %v392 = vpack.c.b16 %v364, %v357
  %v393 = vpack.c.b16 %v365, %v358
  %v394 = vpack.c.b16 %v366, %v359
  %v424 = vsel %vm68, %v209, 0
  %426 = vmatprep.subr.bf16.mxu0 %v368
  %427 = vmatpush1.bf16.msra.mxu0 %v367
  %428 = vmatprep.subr.bf16.mxu0 %v375
  %429 = vmatpush1.bf16.msra.mxu0 %v374
  %430 = vmatprep.subr.bf16.mxu0 %v382
  %431 = vmatpush1.bf16.msra.mxu0 %v381
  %432 = vmatprep.subr.bf16.mxu0 %v389
  %433 = vmatpush1.bf16.msra.mxu0 %v388
  %434 = vmatprep.subr.bf16.mxu0 0
  %435 = vmatpush1.bf16.msra.mxu0 0
  %436 = vmatprep.subr.bf16.mxu0 0
  %437 = vmatpush1.bf16.msra.mxu0 0
  %438 = vmatprep.subr.bf16.mxu0 0
  %439 = vmatpush1.bf16.msra.mxu0 0
  %440 = vmatprep.subr.bf16.mxu0 0
  %441 = vmatpush1.bf16.msra.mxu0 0
  %442 = vmatprep.subr.bf16.mxu0 0
  %443 = vmatpush1.bf16.msra.mxu0 0
  %444 = vmatprep.subr.bf16.mxu0 0
  %445 = vmatpush1.bf16.msra.mxu0 0
  %446 = vmatprep.subr.bf16.mxu0 0
  %447 = vmatpush1.bf16.msra.mxu0 0
  %448 = vmatprep.subr.bf16.mxu0 0
  %449 = vmatpush1.bf16.msra.mxu0 0
  %450 = vmatprep.subr.bf16.mxu0 0
  %451 = vmatpush1.bf16.msra.mxu0 0
  %452 = vmatprep.subr.bf16.mxu0 0
  %453 = vmatpush1.bf16.msra.mxu0 0
  %454 = vmatprep.subr.bf16.mxu0 0
  %455 = vmatpush1.bf16.msra.mxu0 0
  %456 = vmatprep.subr.bf16.mxu0 0
  %457 = vmatpush1.bf16.msra.mxu0 0
  %458 = vmatprep.mubr.bf16.mxu0 0
  %459 = vmatmul.mubr.bf16.gmra.mrb[0].mxu0 %v424
  %v460 = vpop.f32.mrb[0].mxu0
  %v461 = vadd.f32 %v247, %v460
  %v462 = vpop.f32.mrb[0].mxu0
  %v463 = vadd.f32 %v251, %v462
  %v464 = vpop.f32.mrb[0].mxu0
  %v465 = vpop.f32.mrb[0].mxu0
  %466 = vdwg.mxu0
  %467 = vmatprep.subr.bf16.mxu0 %v370
  %468 = vmatpush1.bf16.msra.mxu0 %v369
  %469 = vmatprep.subr.bf16.mxu0 %v377
  %470 = vmatpush1.bf16.msra.mxu0 %v376
  %471 = vmatprep.subr.bf16.mxu0 %v384
  %472 = vmatpush1.bf16.msra.mxu0 %v383
  %473 = vmatprep.subr.bf16.mxu0 %v391
  %474 = vmatpush1.bf16.msra.mxu0 %v390
  %475 = vmatprep.subr.bf16.mxu0 0
  %476 = vmatpush1.bf16.msra.mxu0 0
  %477 = vmatprep.subr.bf16.mxu0 0
  %478 = vmatpush1.bf16.msra.mxu0 0
  %479 = vmatprep.subr.bf16.mxu0 0
  %480 = vmatpush1.bf16.msra.mxu0 0
  %481 = vmatprep.subr.bf16.mxu0 0
  %482 = vmatpush1.bf16.msra.mxu0 0
  %483 = vmatprep.subr.bf16.mxu0 0
  %484 = vmatpush1.bf16.msra.mxu0 0
  %485 = vmatprep.subr.bf16.mxu0 0
  %486 = vmatpush1.bf16.msra.mxu0 0
  %487 = vmatprep.subr.bf16.mxu0 0
  %488 = vmatpush1.bf16.msra.mxu0 0
  %489 = vmatprep.subr.bf16.mxu0 0
  %490 = vmatpush1.bf16.msra.mxu0 0
  %491 = vmatprep.subr.bf16.mxu0 0
  %492 = vmatpush1.bf16.msra.mxu0 0
  %493 = vmatprep.subr.bf16.mxu0 0
  %494 = vmatpush1.bf16.msra.mxu0 0
  %495 = vmatprep.subr.bf16.mxu0 0
  %496 = vmatpush1.bf16.msra.mxu0 0
  %497 = vmatprep.subr.bf16.mxu0 0
  %498 = vmatpush1.bf16.msra.mxu0 0
  %499 = vmatprep.mubr.bf16.mxu0 0
  %500 = vmatmul.mubr.bf16.gmra.mrb[0].mxu0 %v424
  %v501 = vpop.f32.mrb[0].mxu0
  %v502 = vadd.f32 %v255, %v501
  %v503 = vpop.f32.mrb[0].mxu0
  %v504 = vadd.f32 %v259, %v503
  %v505 = vpop.f32.mrb[0].mxu0
  %v506 = vpop.f32.mrb[0].mxu0
  %507 = vdwg.mxu0
  %508 = vmatprep.subr.bf16.mxu0 %v372
  %509 = vmatpush1.bf16.msra.mxu0 %v371
  %510 = vmatprep.subr.bf16.mxu0 %v379
  %511 = vmatpush1.bf16.msra.mxu0 %v378
  %512 = vmatprep.subr.bf16.mxu0 %v386
  %513 = vmatpush1.bf16.msra.mxu0 %v385
  %514 = vmatprep.subr.bf16.mxu0 %v393
  %515 = vmatpush1.bf16.msra.mxu0 %v392
  %516 = vmatprep.subr.bf16.mxu0 0
  %517 = vmatpush1.bf16.msra.mxu0 0
  %518 = vmatprep.subr.bf16.mxu0 0
  %519 = vmatpush1.bf16.msra.mxu0 0
  %520 = vmatprep.subr.bf16.mxu0 0
  %521 = vmatpush1.bf16.msra.mxu0 0
  %522 = vmatprep.subr.bf16.mxu0 0
  %523 = vmatpush1.bf16.msra.mxu0 0
  %524 = vmatprep.subr.bf16.mxu0 0
  %525 = vmatpush1.bf16.msra.mxu0 0
  %526 = vmatprep.subr.bf16.mxu0 0
  %527 = vmatpush1.bf16.msra.mxu0 0
  %528 = vmatprep.subr.bf16.mxu0 0
  %529 = vmatpush1.bf16.msra.mxu0 0
  %530 = vmatprep.subr.bf16.mxu0 0
  %531 = vmatpush1.bf16.msra.mxu0 0
  %532 = vmatprep.subr.bf16.mxu0 0
  %533 = vmatpush1.bf16.msra.mxu0 0
  %534 = vmatprep.subr.bf16.mxu0 0
  %535 = vmatpush1.bf16.msra.mxu0 0
  %536 = vmatprep.subr.bf16.mxu0 0
  %537 = vmatpush1.bf16.msra.mxu0 0
  %538 = vmatprep.subr.bf16.mxu0 0
  %539 = vmatpush1.bf16.msra.mxu0 0
  %540 = vmatprep.mubr.bf16.mxu0 0
  %541 = vmatmul.mubr.bf16.gmra.mrb[0].mxu0 %v424
  %v542 = vpop.f32.mrb[0].mxu0
  %v543 = vadd.f32 %v263, %v542
  %v544 = vpop.f32.mrb[0].mxu0
  %v545 = vadd.f32 %v267, %v544
  %v546 = vpop.f32.mrb[0].mxu0
  %v547 = vpop.f32.mrb[0].mxu0
  %548 = vdwg.mxu0
  %549 = vmatprep.subr.bf16.mxu0 0
  %550 = vmatpush1.bf16.msra.mxu0 %v373
  %551 = vmatprep.subr.bf16.mxu0 0
  %552 = vmatpush1.bf16.msra.mxu0 %v380
  %553 = vmatprep.subr.bf16.mxu0 0
  %554 = vmatpush1.bf16.msra.mxu0 %v387
  %555 = vmatprep.subr.bf16.mxu0 0
  %556 = vmatpush1.bf16.msra.mxu0 %v394
  %557 = vmatprep.subr.bf16.mxu0 0
  %558 = vmatpush1.bf16.msra.mxu0 0
  %559 = vmatprep.subr.bf16.mxu0 0
  %560 = vmatpush1.bf16.msra.mxu0 0
  %561 = vmatprep.subr.bf16.mxu0 0
  %562 = vmatpush1.bf16.msra.mxu0 0
  %563 = vmatprep.subr.bf16.mxu0 0
  %564 = vmatpush1.bf16.msra.mxu0 0
  %565 = vmatprep.subr.bf16.mxu0 0
  %566 = vmatpush1.bf16.msra.mxu0 0
  %567 = vmatprep.subr.bf16.mxu0 0
  %568 = vmatpush1.bf16.msra.mxu0 0
  %569 = vmatprep.subr.bf16.mxu0 0
  %570 = vmatpush1.bf16.msra.mxu0 0
  %571 = vmatprep.subr.bf16.mxu0 0
  %572 = vmatpush1.bf16.msra.mxu0 0
  %573 = vmatprep.subr.bf16.mxu0 0
  %574 = vmatpush1.bf16.msra.mxu0 0
  %575 = vmatprep.subr.bf16.mxu0 0
  %576 = vmatpush1.bf16.msra.mxu0 0
  %577 = vmatprep.subr.bf16.mxu0 0
  %578 = vmatpush1.bf16.msra.mxu0 0
  %579 = vmatprep.subr.bf16.mxu0 0
  %580 = vmatpush1.bf16.msra.mxu0 0
  %581 = vmatprep.mubr.bf16.mxu0 0
  %582 = vmatmul.mubr.bf16.gmra.mrb[0].mxu0 %v424
  %v583 = vpop.f32.mrb[0].mxu0
  %v584 = vadd.f32 %v271, %v583
  %v585 = vpop.f32.mrb[0].mxu0
  %v586 = vpop.f32.mrb[0].mxu0
  %v587 = vpop.f32.mrb[0].mxu0
  %588 = vdwg.mxu0
  %v596 = vcombine.low %v461, %v463
  %v597 = vcombine.low %v502, %v504
  %v599 = vunpack.c.l.s4 1983009808
  %v600 = vunpack.c.0.s8 %v599
  %v601 = vlaneseq
  %v602 = vshrl.u32 %v601, 7
  %v603 = vsub.s32 %v600, %v602
  %v604 = vrot.slane %v596, %v603
  %v606 = vunpack.c.l.s4 1983009808
  %v607 = vunpack.c.0.s8 %v606
  %v608 = vlaneseq
  %v609 = vshrl.u32 %v608, 7
  %v610 = vsub.s32 %v607, %v609
  %v611 = vrot.slane %v597, %v610
  %v612 = vcombine.low %v604, %v611
  %v613 = vcombine.low %v543, %v545
  %v615 = vunpack.c.l.s4 1983009808
  %v616 = vunpack.c.0.s8 %v615
  %v617 = vlaneseq
  %v618 = vshrl.u32 %v617, 7
  %v619 = vsub.s32 %v616, %v618
  %v620 = vrot.slane %v613, %v619
  %v622 = vunpack.c.l.s4 1983009808
  %v623 = vunpack.c.0.s8 %v622
  %v624 = vlaneseq
  %v625 = vshrl.u32 %v624, 7
  %v626 = vsub.s32 %v623, %v625
  %v627 = vrot.slane %v584, %v626
  %v628 = vcombine.low %v620, %v627
  %631 = vst [vmem:[%s7] sm:$0xff] %v612
  %632 = vst [vmem:[%s7 + $0x8] sm:$0x3f] %v628
  // Predicated region
  $region30: #{mmm_dit_forward.54} parent=0 // pred_check
    _
  $region31: #{mmm_dit_forward.54} parent=0 // pred_check_branch
    %634 = sbr.rel (0) target = $region33
  $region32: #{mmm_dit_forward.54} parent=0 // pred_region
    _
  $region33: #{mmm_dit_forward.54} parent=0 // pred_fallthru
    _
  // Predicated region
  $region34: #{mmm_dit_forward.54} parent=0 // pred_check
    _
  $region35: #{mmm_dit_forward.54} parent=0 // pred_check_branch
    %636 = sbr.rel (0) target = $region37
  $region36: #{mmm_dit_forward.54} parent=0 // pred_region
    _
  $region37: #{mmm_dit_forward.54} parent=0 // pred_fallthru
    _

// kernel: mmm_dit_forward.55
$region0: #{mmm_dit_forward.55}
  #allocation0 [shape = 'u32[]', space=smem, size = 0x4, offset = 0x4, fixed_abs, tag = 'smem constant byte address 0x4 - core index']
  #allocation1 [shape = 'u32[144,128]{1,0:T(1,128)}', space=vmem, size = 0x12000, scoped, tag = 'internal scratch']
  #allocation2 [shape = 'f32[16,64]{1,0:T(8,128)}', space=vmem, size = 0x2000, scoped, tag = 'scratch operand']
  %s0 = inlined_call_operand.vmem [shape: f32[2,16,32], index: 0, kind: input, shape index: {}]
  %s1 = inlined_call_operand.vmem [shape: f32[2,16,32], index: 1, kind: input, shape index: {}]
  %s2 = inlined_call_operand.vmem [shape: f32[2,2,6,64], index: 2, kind: input, shape index: {}]
  %s3 = inlined_call_operand.vmem [shape: f32[2,2,64], index: 3, kind: input, shape index: {}]
  %s4 = inlined_call_operand.vmem [shape: bf16[32,64], index: 4, kind: input, shape index: {}]
  %s5 = inlined_call_operand.vmem [shape: bf16[32,64], index: 5, kind: input, shape index: {}]
  %s6 = inlined_call_operand.vmem [shape: f32[1,64], index: 6, kind: input, shape index: {}]
  %s7 = inlined_call_operand.vmem [shape: bf16[2,64,192], index: 7, kind: input, shape index: {}]
  %s8 = inlined_call_operand.vmem [shape: f32[2,1,192], index: 8, kind: input, shape index: {}]
  %s9 = inlined_call_operand.vmem [shape: bf16[2,64,64], index: 9, kind: input, shape index: {}]
  %s10 = inlined_call_operand.vmem [shape: f32[2,1,64], index: 10, kind: input, shape index: {}]
  %s11 = inlined_call_operand.vmem [shape: bf16[2,64,256], index: 11, kind: input, shape index: {}]
  %s12 = inlined_call_operand.vmem [shape: f32[2,1,256], index: 12, kind: input, shape index: {}]
  %s13 = inlined_call_operand.vmem [shape: bf16[2,256,64], index: 13, kind: input, shape index: {}]
  %s14 = inlined_call_operand.vmem [shape: f32[2,1,64], index: 14, kind: input, shape index: {}]
  %s15 = inlined_call_operand.vmem [shape: bf16[64,32], index: 15, kind: input, shape index: {}]
  %s16 = inlined_call_operand.vmem [shape: f32[1,32], index: 16, kind: input, shape index: {}]
  %s17 = inlined_call_operand.hbm [shape: f32[2,16,32], index: 17, kind: output, shape index: {}]
  %s18 = sld [smem:[#allocation0]]
  $region109: #{mmm_dit_forward.55} parent=0
    _
  %s20 = ssub.s32 1, %s18
  %s21 = scalar_select 0, %s20, %s18
  $region1: #{mmm_dit_forward.55} parent=0
    #allocation3 [shape = 'u8[16384]{0}', space=vmem, size = 0x4000, scoped, tag = 'output window, operand 0']
    #allocation4 [shape = 's32[2]{0}', space=sflag, size = 0x8, scoped, tag = 'scoped memory for mmm_dit_forward.55']
    %22 = vsyncpa [#allocation4], 0
    %s23 = scalar_lea.sflag [#allocation4], 1
    %24 = vsyncpa %s23, 0
    loop: start=0, step=1, limit=6
    $region2: #{mmm_dit_forward.55} parent=1 // loop_pre_header
      _
    $region3: #{mmm_dit_forward.55} parent=1 // loop_header
      %s26 = sphi 0, %s30
      %p27 = scmp.ge.s32.totalorder %s26, 6
      %s33 = sphi 0, %s45
      %s34 = sphi 0, %s41
      %s35 = sphi 0, %s33
      %s36 = sphi 0, %s34
      %s37 = sphi 0, %s35
      %s38 = sphi 0, %s36
      %s48 = sphi 0, %s50
      %s51 = sphi 0, %s48
      %s52 = sphi 0, %s51
      %s68 = sphi 0, %s52
      %s74 = sphi 0, %s76
      %s77 = sphi 0, %s74
      %s78 = sphi 0, %s77
      %s94 = sphi 0, %s78
      %s102 = sphi 0, %s104
      %s105 = sphi 0, %s102
      %s106 = sphi 0, %s105
      %s122 = sphi 0, %s106
      %s128 = sphi 0, %s130
      %s131 = sphi 0, %s128
      %s132 = sphi 0, %s131
      %s148 = sphi 0, %s132
      %s152 = sphi 0, %s152
      %s154 = sphi 0, %s152
      %s155 = sphi 0, %s154
      %s169 = sphi 0, %s155
      %s173 = sphi 0, %s173
      %s175 = sphi 0, %s173
      %s176 = sphi 0, %s175
      %s190 = sphi 0, %s176
      %s194 = sphi 0, %s194
      %s196 = sphi 0, %s194
      %s197 = sphi 0, %s196
      %s211 = sphi 0, %s197
      %s217 = sphi 0, %s219
      %s220 = sphi 0, %s217
      %s221 = sphi 0, %s220
      %s237 = sphi 0, %s221
      %s243 = sphi 0, %s245
      %s246 = sphi 0, %s243
      %s247 = sphi 0, %s246
      %s263 = sphi 0, %s247
      %s269 = sphi 0, %s271
      %s272 = sphi 0, %s269
      %s273 = sphi 0, %s272
      %s289 = sphi 0, %s273
      %s295 = sphi 0, %s297
      %s298 = sphi 0, %s295
      %s299 = sphi 0, %s298
      %s315 = sphi 0, %s299
      %s321 = sphi 0, %s323
      %s324 = sphi 0, %s321
      %s325 = sphi 0, %s324
      %s341 = sphi 0, %s325
      %s347 = sphi 0, %s349
      %s350 = sphi 0, %s347
      %s351 = sphi 0, %s350
      %s367 = sphi 0, %s351
      %s373 = sphi 0, %s375
      %s376 = sphi 0, %s373
      %s377 = sphi 0, %s376
      %s393 = sphi 0, %s377
      %s399 = sphi 0, %s401
      %s402 = sphi 0, %s399
      %s403 = sphi 0, %s402
      %s419 = sphi 0, %s403
      %s423 = sphi 0, %s423
      %s425 = sphi 0, %s423
      %s426 = sphi 0, %s425
      %s440 = sphi 0, %s426
      %s444 = sphi 0, %s444
      %s446 = sphi 0, %s444
      %s447 = sphi 0, %s446
      %s461 = sphi 0, %s447
      %s467 = sphi 0, %s469
      %s470 = sphi 0, %s467
      %s471 = sphi 0, %s470
      %s487 = sphi 0, %s471
    $region4: #{mmm_dit_forward.55} parent=1 // loop_header_branch
      %29 = sbr.rel (%p27) target = $region8
    $region5: #{mmm_dit_forward.55} parent=1 // loop_body
      %s31 = ssub.s32 %s26, 1
      %s32 = ssub.s32 %s26, 2
      %s39 = sadd.s32 1, %s34
      %p40 = scmp.ge.s32.totalorder %s39, 2
      %s41 = scalar_select %p40, 0, %s39
      %s42 = sadd.s32 1, %s33
      %s43 = scalar_select %p40, %s42, %s33
      %p44 = scmp.ge.s32.totalorder %s43, 2
      %s45 = scalar_select %p44, 0, %s43
      %s46 = ssub.s32 %s33, %s45
      %p47 = scmp.eq.s32.totalorder %s46, 0
      %s49 = sadd.s32 %s48, 1
      %s50 = scalar_select %p47, %s48, %s49
      %p53 = pneg %p47
      %p54 = scmp.eq.s32.totalorder %s26, 3
      %p55 = por %p53, %p54
      %p56 = scmp.ne.s32.totalorder %s48, %s51
      %p57 = scmp.eq.s32.totalorder %s26, 0
      %p58 = por %p56, %p57
      %p59 = scmp.ne.s32.totalorder %s48, %s51
      %p60 = scmp.eq.s32.totalorder %s31, 3
      %p61 = por %p59, %p60
      %p62 = scmp.ne.s32.totalorder %s51, %s52
      %p63 = scmp.eq.s32.totalorder %s31, 0
      %p64 = por %p62, %p63
      %p65 = scmp.ne.s32.totalorder %s51, %s52
      %p66 = scmp.eq.s32.totalorder %s32, 3
      %p67 = por %p65, %p66
      %p69 = scmp.ne.s32.totalorder %s52, %s68
      %p70 = scmp.eq.s32.totalorder %s32, 0
      %p71 = por %p69, %p70
      %s72 = ssub.s32 %s33, %s45
      %p73 = scmp.eq.s32.totalorder %s72, 0
      %s75 = sadd.s32 %s74, 1
      %s76 = scalar_select %p73, %s74, %s75
      %p79 = pneg %p73
      %p80 = scmp.eq.s32.totalorder %s26, 3
      %p81 = por %p79, %p80
      %p82 = scmp.ne.s32.totalorder %s74, %s77
      %p83 = scmp.eq.s32.totalorder %s26, 0
      %p84 = por %p82, %p83
      %p85 = scmp.ne.s32.totalorder %s74, %s77
      %p86 = scmp.eq.s32.totalorder %s31, 3
      %p87 = por %p85, %p86
      %p88 = scmp.ne.s32.totalorder %s77, %s78
      %p89 = scmp.eq.s32.totalorder %s31, 0
      %p90 = por %p88, %p89
      %p91 = scmp.ne.s32.totalorder %s77, %s78
      %p92 = scmp.eq.s32.totalorder %s32, 3
      %p93 = por %p91, %p92
      %p95 = scmp.ne.s32.totalorder %s78, %s94
      %p96 = scmp.eq.s32.totalorder %s32, 0
      %p97 = por %p95, %p96
      %s98 = ssub.s32 %s33, %s45
      %s99 = ssub.s32 %s34, %s41
      %s100 = sor.u32 %s98, %s99
      %p101 = scmp.eq.s32.totalorder %s100, 0
      %s103 = sadd.s32 %s102, 1
      %s104 = scalar_select %p101, %s102, %s103
      %p107 = pneg %p101
      %p108 = scmp.eq.s32.totalorder %s26, 3
      %p109 = por %p107, %p108
      %p110 = scmp.ne.s32.totalorder %s102, %s105
      %p111 = scmp.eq.s32.totalorder %s26, 0
      %p112 = por %p110, %p111
      %p113 = scmp.ne.s32.totalorder %s102, %s105
      %p114 = scmp.eq.s32.totalorder %s31, 3
      %p115 = por %p113, %p114
      %p116 = scmp.ne.s32.totalorder %s105, %s106
      %p117 = scmp.eq.s32.totalorder %s31, 0
      %p118 = por %p116, %p117
      %p119 = scmp.ne.s32.totalorder %s105, %s106
      %p120 = scmp.eq.s32.totalorder %s32, 3
      %p121 = por %p119, %p120
      %p123 = scmp.ne.s32.totalorder %s106, %s122
      %p124 = scmp.eq.s32.totalorder %s32, 0
      %p125 = por %p123, %p124
      %s126 = ssub.s32 %s33, %s45
      %p127 = scmp.eq.s32.totalorder %s126, 0
      %s129 = sadd.s32 %s128, 1
      %s130 = scalar_select %p127, %s128, %s129
      %p133 = pneg %p127
      %p134 = scmp.eq.s32.totalorder %s26, 3
      %p135 = por %p133, %p134
      %p136 = scmp.ne.s32.totalorder %s128, %s131
      %p137 = scmp.eq.s32.totalorder %s26, 0
      %p138 = por %p136, %p137
      %p139 = scmp.ne.s32.totalorder %s128, %s131
      %p140 = scmp.eq.s32.totalorder %s31, 3
      %p141 = por %p139, %p140
      %p142 = scmp.ne.s32.totalorder %s131, %s132
      %p143 = scmp.eq.s32.totalorder %s31, 0
      %p144 = por %p142, %p143
      %p145 = scmp.ne.s32.totalorder %s131, %s132
      %p146 = scmp.eq.s32.totalorder %s32, 3
      %p147 = por %p145, %p146
      %p149 = scmp.ne.s32.totalorder %s132, %s148
      %p150 = scmp.eq.s32.totalorder %s32, 0
      %p151 = por %p149, %p150
      %s153 = sadd.s32 %s152, 1
      %p156 = scmp.eq.s32.totalorder %s26, 3
      %p157 = scmp.ne.s32.totalorder %s152, %s154
      %p158 = scmp.eq.s32.totalorder %s26, 0
      %p159 = por %p157, %p158
      %p160 = scmp.ne.s32.totalorder %s152, %s154
      %p161 = scmp.eq.s32.totalorder %s31, 3
      %p162 = por %p160, %p161
      %p163 = scmp.ne.s32.totalorder %s154, %s155
      %p164 = scmp.eq.s32.totalorder %s31, 0
      %p165 = por %p163, %p164
      %p166 = scmp.ne.s32.totalorder %s154, %s155
      %p167 = scmp.eq.s32.totalorder %s32, 3
      %p168 = por %p166, %p167
      %p170 = scmp.ne.s32.totalorder %s155, %s169
      %p171 = scmp.eq.s32.totalorder %s32, 0
      %p172 = por %p170, %p171
      %s174 = sadd.s32 %s173, 1
      %p177 = scmp.eq.s32.totalorder %s26, 3
      %p178 = scmp.ne.s32.totalorder %s173, %s175
      %p179 = scmp.eq.s32.totalorder %s26, 0
      %p180 = por %p178, %p179
      %p181 = scmp.ne.s32.totalorder %s173, %s175
      %p182 = scmp.eq.s32.totalorder %s31, 3
      %p183 = por %p181, %p182
      %p184 = scmp.ne.s32.totalorder %s175, %s176
      %p185 = scmp.eq.s32.totalorder %s31, 0
      %p186 = por %p184, %p185
      %p187 = scmp.ne.s32.totalorder %s175, %s176
      %p188 = scmp.eq.s32.totalorder %s32, 3
      %p189 = por %p187, %p188
      %p191 = scmp.ne.s32.totalorder %s176, %s190
      %p192 = scmp.eq.s32.totalorder %s32, 0
      %p193 = por %p191, %p192
      %s195 = sadd.s32 %s194, 1
      %p198 = scmp.eq.s32.totalorder %s26, 3
      %p199 = scmp.ne.s32.totalorder %s194, %s196
      %p200 = scmp.eq.s32.totalorder %s26, 0
      %p201 = por %p199, %p200
      %p202 = scmp.ne.s32.totalorder %s194, %s196
      %p203 = scmp.eq.s32.totalorder %s31, 3
      %p204 = por %p202, %p203
      %p205 = scmp.ne.s32.totalorder %s196, %s197
      %p206 = scmp.eq.s32.totalorder %s31, 0
      %p207 = por %p205, %p206
      %p208 = scmp.ne.s32.totalorder %s196, %s197
      %p209 = scmp.eq.s32.totalorder %s32, 3
      %p210 = por %p208, %p209
      %p212 = scmp.ne.s32.totalorder %s197, %s211
      %p213 = scmp.eq.s32.totalorder %s32, 0
      %p214 = por %p212, %p213
      %s215 = ssub.s32 %s34, %s41
      %p216 = scmp.eq.s32.totalorder %s215, 0
      %s218 = sadd.s32 %s217, 1
      %s219 = scalar_select %p216, %s217, %s218
      %p222 = pneg %p216
      %p223 = scmp.eq.s32.totalorder %s26, 3
      %p224 = por %p222, %p223
      %p225 = scmp.ne.s32.totalorder %s217, %s220
      %p226 = scmp.eq.s32.totalorder %s26, 0
      %p227 = por %p225, %p226
      %p228 = scmp.ne.s32.totalorder %s217, %s220
      %p229 = scmp.eq.s32.totalorder %s31, 3
      %p230 = por %p228, %p229
      %p231 = scmp.ne.s32.totalorder %s220, %s221
      %p232 = scmp.eq.s32.totalorder %s31, 0
      %p233 = por %p231, %p232
      %p234 = scmp.ne.s32.totalorder %s220, %s221
      %p235 = scmp.eq.s32.totalorder %s32, 3
      %p236 = por %p234, %p235
      %p238 = scmp.ne.s32.totalorder %s221, %s237
      %p239 = scmp.eq.s32.totalorder %s32, 0
      %p240 = por %p238, %p239
      %s241 = ssub.s32 %s34, %s41
      %p242 = scmp.eq.s32.totalorder %s241, 0
      %s244 = sadd.s32 %s243, 1
      %s245 = scalar_select %p242, %s243, %s244
      %p248 = pneg %p242
      %p249 = scmp.eq.s32.totalorder %s26, 3
      %p250 = por %p248, %p249
      %p251 = scmp.ne.s32.totalorder %s243, %s246
      %p252 = scmp.eq.s32.totalorder %s26, 0
      %p253 = por %p251, %p252
      %p254 = scmp.ne.s32.totalorder %s243, %s246
      %p255 = scmp.eq.s32.totalorder %s31, 3
      %p256 = por %p254, %p255
      %p257 = scmp.ne.s32.totalorder %s246, %s247
      %p258 = scmp.eq.s32.totalorder %s31, 0
      %p259 = por %p257, %p258
      %p260 = scmp.ne.s32.totalorder %s246, %s247
      %p261 = scmp.eq.s32.totalorder %s32, 3
      %p262 = por %p260, %p261
      %p264 = scmp.ne.s32.totalorder %s247, %s263
      %p265 = scmp.eq.s32.totalorder %s32, 0
      %p266 = por %p264, %p265
      %s267 = ssub.s32 %s34, %s41
      %p268 = scmp.eq.s32.totalorder %s267, 0
      %s270 = sadd.s32 %s269, 1
      %s271 = scalar_select %p268, %s269, %s270
      %p274 = pneg %p268
      %p275 = scmp.eq.s32.totalorder %s26, 3
      %p276 = por %p274, %p275
      %p277 = scmp.ne.s32.totalorder %s269, %s272
      %p278 = scmp.eq.s32.totalorder %s26, 0
      %p279 = por %p277, %p278
      %p280 = scmp.ne.s32.totalorder %s269, %s272
      %p281 = scmp.eq.s32.totalorder %s31, 3
      %p282 = por %p280, %p281
      %p283 = scmp.ne.s32.totalorder %s272, %s273
      %p284 = scmp.eq.s32.totalorder %s31, 0
      %p285 = por %p283, %p284
      %p286 = scmp.ne.s32.totalorder %s272, %s273
      %p287 = scmp.eq.s32.totalorder %s32, 3
      %p288 = por %p286, %p287
      %p290 = scmp.ne.s32.totalorder %s273, %s289
      %p291 = scmp.eq.s32.totalorder %s32, 0
      %p292 = por %p290, %p291
      %s293 = ssub.s32 %s34, %s41
      %p294 = scmp.eq.s32.totalorder %s293, 0
      %s296 = sadd.s32 %s295, 1
      %s297 = scalar_select %p294, %s295, %s296
      %p300 = pneg %p294
      %p301 = scmp.eq.s32.totalorder %s26, 3
      %p302 = por %p300, %p301
      %p303 = scmp.ne.s32.totalorder %s295, %s298
      %p304 = scmp.eq.s32.totalorder %s26, 0
      %p305 = por %p303, %p304
      %p306 = scmp.ne.s32.totalorder %s295, %s298
      %p307 = scmp.eq.s32.totalorder %s31, 3
      %p308 = por %p306, %p307
      %p309 = scmp.ne.s32.totalorder %s298, %s299
      %p310 = scmp.eq.s32.totalorder %s31, 0
      %p311 = por %p309, %p310
      %p312 = scmp.ne.s32.totalorder %s298, %s299
      %p313 = scmp.eq.s32.totalorder %s32, 3
      %p314 = por %p312, %p313
      %p316 = scmp.ne.s32.totalorder %s299, %s315
      %p317 = scmp.eq.s32.totalorder %s32, 0
      %p318 = por %p316, %p317
      %s319 = ssub.s32 %s34, %s41
      %p320 = scmp.eq.s32.totalorder %s319, 0
      %s322 = sadd.s32 %s321, 1
      %s323 = scalar_select %p320, %s321, %s322
      %p326 = pneg %p320
      %p327 = scmp.eq.s32.totalorder %s26, 3
      %p328 = por %p326, %p327
      %p329 = scmp.ne.s32.totalorder %s321, %s324
      %p330 = scmp.eq.s32.totalorder %s26, 0
      %p331 = por %p329, %p330
      %p332 = scmp.ne.s32.totalorder %s321, %s324
      %p333 = scmp.eq.s32.totalorder %s31, 3
      %p334 = por %p332, %p333
      %p335 = scmp.ne.s32.totalorder %s324, %s325
      %p336 = scmp.eq.s32.totalorder %s31, 0
      %p337 = por %p335, %p336
      %p338 = scmp.ne.s32.totalorder %s324, %s325
      %p339 = scmp.eq.s32.totalorder %s32, 3
      %p340 = por %p338, %p339
      %p342 = scmp.ne.s32.totalorder %s325, %s341
      %p343 = scmp.eq.s32.totalorder %s32, 0
      %p344 = por %p342, %p343
      %s345 = ssub.s32 %s34, %s41
      %p346 = scmp.eq.s32.totalorder %s345, 0
      %s348 = sadd.s32 %s347, 1
      %s349 = scalar_select %p346, %s347, %s348
      %p352 = pneg %p346
      %p353 = scmp.eq.s32.totalorder %s26, 3
      %p354 = por %p352, %p353
      %p355 = scmp.ne.s32.totalorder %s347, %s350
      %p356 = scmp.eq.s32.totalorder %s26, 0
      %p357 = por %p355, %p356
      %p358 = scmp.ne.s32.totalorder %s347, %s350
      %p359 = scmp.eq.s32.totalorder %s31, 3
      %p360 = por %p358, %p359
      %p361 = scmp.ne.s32.totalorder %s350, %s351
      %p362 = scmp.eq.s32.totalorder %s31, 0
      %p363 = por %p361, %p362
      %p364 = scmp.ne.s32.totalorder %s350, %s351
      %p365 = scmp.eq.s32.totalorder %s32, 3
      %p366 = por %p364, %p365
      %p368 = scmp.ne.s32.totalorder %s351, %s367
      %p369 = scmp.eq.s32.totalorder %s32, 0
      %p370 = por %p368, %p369
      %s371 = ssub.s32 %s34, %s41
      %p372 = scmp.eq.s32.totalorder %s371, 0
      %s374 = sadd.s32 %s373, 1
      %s375 = scalar_select %p372, %s373, %s374
      %p378 = pneg %p372
      %p379 = scmp.eq.s32.totalorder %s26, 3
      %p380 = por %p378, %p379
      %p381 = scmp.ne.s32.totalorder %s373, %s376
      %p382 = scmp.eq.s32.totalorder %s26, 0
      %p383 = por %p381, %p382
      %p384 = scmp.ne.s32.totalorder %s373, %s376
      %p385 = scmp.eq.s32.totalorder %s31, 3
      %p386 = por %p384, %p385
      %p387 = scmp.ne.s32.totalorder %s376, %s377
      %p388 = scmp.eq.s32.totalorder %s31, 0
      %p389 = por %p387, %p388
      %p390 = scmp.ne.s32.totalorder %s376, %s377
      %p391 = scmp.eq.s32.totalorder %s32, 3
      %p392 = por %p390, %p391
      %p394 = scmp.ne.s32.totalorder %s377, %s393
      %p395 = scmp.eq.s32.totalorder %s32, 0
      %p396 = por %p394, %p395
      %s397 = ssub.s32 %s34, %s41
      %p398 = scmp.eq.s32.totalorder %s397, 0
      %s400 = sadd.s32 %s399, 1
      %s401 = scalar_select %p398, %s399, %s400
      %p404 = pneg %p398
      %p405 = scmp.eq.s32.totalorder %s26, 3
      %p406 = por %p404, %p405
      %p407 = scmp.ne.s32.totalorder %s399, %s402
      %p408 = scmp.eq.s32.totalorder %s26, 0
      %p409 = por %p407, %p408
      %p410 = scmp.ne.s32.totalorder %s399, %s402
      %p411 = scmp.eq.s32.totalorder %s31, 3
      %p412 = por %p410, %p411
      %p413 = scmp.ne.s32.totalorder %s402, %s403
      %p414 = scmp.eq.s32.totalorder %s31, 0
      %p415 = por %p413, %p414
      %p416 = scmp.ne.s32.totalorder %s402, %s403
      %p417 = scmp.eq.s32.totalorder %s32, 3
      %p418 = por %p416, %p417
      %p420 = scmp.ne.s32.totalorder %s403, %s419
      %p421 = scmp.eq.s32.totalorder %s32, 0
      %p422 = por %p420, %p421
      %s424 = sadd.s32 %s423, 1
      %p427 = scmp.eq.s32.totalorder %s26, 3
      %p428 = scmp.ne.s32.totalorder %s423, %s425
      %p429 = scmp.eq.s32.totalorder %s26, 0
      %p430 = por %p428, %p429
      %p431 = scmp.ne.s32.totalorder %s423, %s425
      %p432 = scmp.eq.s32.totalorder %s31, 3
      %p433 = por %p431, %p432
      %p434 = scmp.ne.s32.totalorder %s425, %s426
      %p435 = scmp.eq.s32.totalorder %s31, 0
      %p436 = por %p434, %p435
      %p437 = scmp.ne.s32.totalorder %s425, %s426
      %p438 = scmp.eq.s32.totalorder %s32, 3
      %p439 = por %p437, %p438
      %p441 = scmp.ne.s32.totalorder %s426, %s440
      %p442 = scmp.eq.s32.totalorder %s32, 0
      %p443 = por %p441, %p442
      %s445 = sadd.s32 %s444, 1
      %p448 = scmp.eq.s32.totalorder %s26, 3
      %p449 = scmp.ne.s32.totalorder %s444, %s446
      %p450 = scmp.eq.s32.totalorder %s26, 0
      %p451 = por %p449, %p450
      %p452 = scmp.ne.s32.totalorder %s444, %s446
      %p453 = scmp.eq.s32.totalorder %s31, 3
      %p454 = por %p452, %p453
      %p455 = scmp.ne.s32.totalorder %s446, %s447
      %p456 = scmp.eq.s32.totalorder %s31, 0
      %p457 = por %p455, %p456
      %p458 = scmp.ne.s32.totalorder %s446, %s447
      %p459 = scmp.eq.s32.totalorder %s32, 3
      %p460 = por %p458, %p459
      %p462 = scmp.ne.s32.totalorder %s447, %s461
      %p463 = scmp.eq.s32.totalorder %s32, 0
      %p464 = por %p462, %p463
      %s465 = ssub.s32 %s33, %s45
      %p466 = scmp.eq.s32.totalorder %s465, 0
      %s468 = sadd.s32 %s467, 1
      %s469 = scalar_select %p466, %s467, %s468
      %p472 = pneg %p466
      %p473 = scmp.eq.s32.totalorder %s26, 3
      %p474 = por %p472, %p473
      %p475 = scmp.ne.s32.totalorder %s467, %s470
      %p476 = scmp.eq.s32.totalorder %s26, 0
      %p477 = por %p475, %p476
      %p478 = scmp.ne.s32.totalorder %s467, %s470
      %p479 = scmp.eq.s32.totalorder %s31, 3
      %p480 = por %p478, %p479
      %p481 = scmp.ne.s32.totalorder %s470, %s471
      %p482 = scmp.eq.s32.totalorder %s31, 0
      %p483 = por %p481, %p482
      %p484 = scmp.ne.s32.totalorder %s470, %s471
      %p485 = scmp.eq.s32.totalorder %s32, 3
      %p486 = por %p484, %p485
      %p488 = scmp.ne.s32.totalorder %s471, %s487
      %p489 = scmp.eq.s32.totalorder %s32, 0
      %p490 = por %p488, %p489
      %p491 = scmp.le.s32.totalorder 1, %s26
      %p492 = scmp.lt.s32.totalorder %s26, 5
      %p493 = pnand %p491, %p492
      %p494 = pneg %p493
      // Predicated region
      $region9: #{mmm_dit_forward.55} parent=5 // pred_check
        _
      $region10: #{mmm_dit_forward.55} parent=5 // pred_check_branch
        %496 = sbr.rel (%p493) target = $region12
      $region11: #{mmm_dit_forward.55} parent=5 // pred_region
        %s497 = ssub.s32 %s26, 1
        // Predicated region
        $region13: #{mmm_dit_forward.55} parent=11 // pred_check
          %p498 = pneg %p165
        $region14: #{mmm_dit_forward.55} parent=11 // pred_check_branch
          %500 = sbr.rel (%p498) target = $region16
        $region15: #{mmm_dit_forward.55} parent=11 // pred_region
          _
        $region16: #{mmm_dit_forward.55} parent=11 // pred_fallthru
          _
        // Predicated region
        $region17: #{mmm_dit_forward.55} parent=11 // pred_check
          %p501 = pneg %p186
        $region18: #{mmm_dit_forward.55} parent=11 // pred_check_branch
          %503 = sbr.rel (%p501) target = $region20
        $region19: #{mmm_dit_forward.55} parent=11 // pred_region
          _
        $region20: #{mmm_dit_forward.55} parent=11 // pred_fallthru
          _
        // Predicated region
        $region21: #{mmm_dit_forward.55} parent=11 // pred_check
          %p504 = pneg %p207
        $region22: #{mmm_dit_forward.55} parent=11 // pred_check_branch
          %506 = sbr.rel (%p504) target = $region24
        $region23: #{mmm_dit_forward.55} parent=11 // pred_region
          _
        $region24: #{mmm_dit_forward.55} parent=11 // pred_fallthru
          _
        // Predicated region
        $region25: #{mmm_dit_forward.55} parent=11 // pred_check
          %p507 = pneg %p436
        $region26: #{mmm_dit_forward.55} parent=11 // pred_check_branch
          %509 = sbr.rel (%p507) target = $region28
        $region27: #{mmm_dit_forward.55} parent=11 // pred_region
          _
        $region28: #{mmm_dit_forward.55} parent=11 // pred_fallthru
          _
        // Predicated region
        $region29: #{mmm_dit_forward.55} parent=11 // pred_check
          %p510 = pneg %p457
        $region30: #{mmm_dit_forward.55} parent=11 // pred_check_branch
          %512 = sbr.rel (%p510) target = $region32
        $region31: #{mmm_dit_forward.55} parent=11 // pred_region
          _
        $region32: #{mmm_dit_forward.55} parent=11 // pred_fallthru
          _
      $region12: #{mmm_dit_forward.55} parent=5 // pred_fallthru
        _
      %p513 = scmp.lt.s32.totalorder %s26, 4
      // Predicated region
      $region33: #{mmm_dit_forward.55} parent=5 // pred_check
        %p514 = pneg %p513
      $region34: #{mmm_dit_forward.55} parent=5 // pred_check_branch
        %516 = sbr.rel (%p514) target = $region36
      $region35: #{mmm_dit_forward.55} parent=5 // pred_region
        // Predicated region
        $region37: #{mmm_dit_forward.55} parent=35 // pred_check
          %p517 = pneg %p58
        $region38: #{mmm_dit_forward.55} parent=35 // pred_check_branch
          %519 = sbr.rel (%p517) target = $region40
        $region39: #{mmm_dit_forward.55} parent=35 // pred_region
          %p520 = scmp.lt.s32.totalorder %s33, 1
          %s521 = scalar_select %p520, %s33, 1
          %s522 = smul.addr %s521, 2
          %s523 = smul.addr %s522, 8
          %s524 = scalar_lea.vmem %s0, %s523
        $region40: #{mmm_dit_forward.55} parent=35 // pred_fallthru
          _
        // Predicated region
        $region41: #{mmm_dit_forward.55} parent=35 // pred_check
          %p525 = pneg %p84
        $region42: #{mmm_dit_forward.55} parent=35 // pred_check_branch
          %527 = sbr.rel (%p525) target = $region44
        $region43: #{mmm_dit_forward.55} parent=35 // pred_region
          %p528 = scmp.lt.s32.totalorder %s33, 1
          %s529 = scalar_select %p528, %s33, 1
          %s530 = smul.addr %s529, 2
          %s531 = smul.addr %s530, 8
          %s532 = scalar_lea.vmem %s1, %s531
        $region44: #{mmm_dit_forward.55} parent=35 // pred_fallthru
          _
        // Predicated region
        $region45: #{mmm_dit_forward.55} parent=35 // pred_check
          %p533 = pneg %p112
        $region46: #{mmm_dit_forward.55} parent=35 // pred_check_branch
          %535 = sbr.rel (%p533) target = $region48
        $region47: #{mmm_dit_forward.55} parent=35 // pred_region
          %p536 = scmp.lt.s32.totalorder %s33, 1
          %s537 = scalar_select %p536, %s33, 1
          %p538 = scmp.lt.s32.totalorder %s34, 1
          %s539 = scalar_select %p538, %s34, 1
          %s540 = smul.addr %s537, 2
          %s541 = sadd.s32 %s539, %s540
          %s542 = smul.addr %s541, 8
          %s543 = scalar_lea.vmem %s2, %s542
        $region48: #{mmm_dit_forward.55} parent=35 // pred_fallthru
          _
        // Predicated region
        $region49: #{mmm_dit_forward.55} parent=35 // pred_check
          %p544 = pneg %p138
        $region50: #{mmm_dit_forward.55} parent=35 // pred_check_branch
          %546 = sbr.rel (%p544) target = $region52
        $region51: #{mmm_dit_forward.55} parent=35 // pred_region
          %p547 = scmp.lt.s32.totalorder %s33, 1
          %s548 = scalar_select %p547, %s33, 1
          %s549 = smul.addr %s548, 2
          %s550 = scalar_lea.vmem %s3, %s549
        $region52: #{mmm_dit_forward.55} parent=35 // pred_fallthru
          _
        // Predicated region
        $region53: #{mmm_dit_forward.55} parent=35 // pred_check
          %p551 = pneg %p227
        $region54: #{mmm_dit_forward.55} parent=35 // pred_check_branch
          %553 = sbr.rel (%p551) target = $region56
        $region55: #{mmm_dit_forward.55} parent=35 // pred_region
          %p554 = scmp.lt.s32.totalorder %s34, 1
          %s555 = scalar_select %p554, %s34, 1
          %s556 = smul.addr %s555, 16
          %s557 = smul.addr %s556, 4
          %s558 = scalar_lea.vmem %s7, %s557
        $region56: #{mmm_dit_forward.55} parent=35 // pred_fallthru
          _
        // Predicated region
        $region57: #{mmm_dit_forward.55} parent=35 // pred_check
          %p559 = pneg %p253
        $region58: #{mmm_dit_forward.55} parent=35 // pred_check_branch
          %561 = sbr.rel (%p559) target = $region60
        $region59: #{mmm_dit_forward.55} parent=35 // pred_region
          %p562 = scmp.lt.s32.totalorder %s34, 1
          %s563 = scalar_select %p562, %s34, 1
          %s564 = smul.addr %s563, 2
          %s565 = scalar_lea.vmem %s8, %s564
        $region60: #{mmm_dit_forward.55} parent=35 // pred_fallthru
          _
        // Predicated region
        $region61: #{mmm_dit_forward.55} parent=35 // pred_check
          %p566 = pneg %p279
        $region62: #{mmm_dit_forward.55} parent=35 // pred_check_branch
          %568 = sbr.rel (%p566) target = $region64
        $region63: #{mmm_dit_forward.55} parent=35 // pred_region
          %p569 = scmp.lt.s32.totalorder %s34, 1
          %s570 = scalar_select %p569, %s34, 1
          %s571 = smul.addr %s570, 8
          %s572 = smul.addr %s571, 4
          %s573 = scalar_lea.vmem %s9, %s572
        $region64: #{mmm_dit_forward.55} parent=35 // pred_fallthru
          _
        // Predicated region
        $region65: #{mmm_dit_forward.55} parent=35 // pred_check
          %p574 = pneg %p305
        $region66: #{mmm_dit_forward.55} parent=35 // pred_check_branch
          %576 = sbr.rel (%p574) target = $region68
        $region67: #{mmm_dit_forward.55} parent=35 // pred_region
          %p577 = scmp.lt.s32.totalorder %s34, 1
          %s578 = scalar_select %p577, %s34, 1
          %s579 = scalar_lea.vmem %s10, %s578
        $region68: #{mmm_dit_forward.55} parent=35 // pred_fallthru
          _
        // Predicated region
        $region69: #{mmm_dit_forward.55} parent=35 // pred_check
          %p580 = pneg %p331
        $region70: #{mmm_dit_forward.55} parent=35 // pred_check_branch
          %582 = sbr.rel (%p580) target = $region72
        $region71: #{mmm_dit_forward.55} parent=35 // pred_region
          %p583 = scmp.lt.s32.totalorder %s34, 1
          %s584 = scalar_select %p583, %s34, 1
          %s585 = smul.addr %s584, 16
          %s586 = smul.addr %s585, 4
          %s587 = scalar_lea.vmem %s11, %s586
        $region72: #{mmm_dit_forward.55} parent=35 // pred_fallthru
          _
        // Predicated region
        $region73: #{mmm_dit_forward.55} parent=35 // pred_check
          %p588 = pneg %p357
        $region74: #{mmm_dit_forward.55} parent=35 // pred_check_branch
          %590 = sbr.rel (%p588) target = $region76
        $region75: #{mmm_dit_forward.55} parent=35 // pred_region
          %p591 = scmp.lt.s32.totalorder %s34, 1
          %s592 = scalar_select %p591, %s34, 1
          %s593 = smul.addr %s592, 2
          %s594 = scalar_lea.vmem %s12, %s593
        $region76: #{mmm_dit_forward.55} parent=35 // pred_fallthru
          _
        // Predicated region
        $region77: #{mmm_dit_forward.55} parent=35 // pred_check
          %p595 = pneg %p383
        $region78: #{mmm_dit_forward.55} parent=35 // pred_check_branch
          %597 = sbr.rel (%p595) target = $region80
        $region79: #{mmm_dit_forward.55} parent=35 // pred_region
          %p598 = scmp.lt.s32.totalorder %s34, 1
          %s599 = scalar_select %p598, %s34, 1
          %s600 = smul.addr %s599, 32
          %s601 = smul.addr %s600, 4
          %s602 = scalar_lea.vmem %s13, %s601
        $region80: #{mmm_dit_forward.55} parent=35 // pred_fallthru
          _
        // Predicated region
        $region81: #{mmm_dit_forward.55} parent=35 // pred_check
          %p603 = pneg %p409
        $region82: #{mmm_dit_forward.55} parent=35 // pred_check_branch
          %605 = sbr.rel (%p603) target = $region84
        $region83: #{mmm_dit_forward.55} parent=35 // pred_region
          %p606 = scmp.lt.s32.totalorder %s34, 1
          %s607 = scalar_select %p606, %s34, 1
          %s608 = scalar_lea.vmem %s14, %s607
        $region84: #{mmm_dit_forward.55} parent=35 // pred_fallthru
          _
      $region36: #{mmm_dit_forward.55} parent=5 // pred_fallthru
        _
      %p609 = scmp.le.s32.totalorder 1, %s26
      %p610 = scmp.lt.s32.totalorder %s26, 5
      %p611 = pnand %p609, %p610
      %p612 = pneg %p611
      // Predicated region
      $region85: #{mmm_dit_forward.55} parent=5 // pred_check
        _
      $region86: #{mmm_dit_forward.55} parent=5 // pred_check_branch
        %614 = sbr.rel (%p611) target = $region88
      $region87: #{mmm_dit_forward.55} parent=5 // pred_region
        %s615 = ssub.s32 %s26, 1
        %p616 = scmp.lt.s32.totalorder %s35, 1
        %s617 = scalar_select %p616, %s35, 1
        %s618 = smul.addr %s617, 2
        %s619 = smul.addr %s618, 8
        %s620 = scalar_lea.vmem %s0, %s619
        %p621 = pneg %p64
        %p622 = pneg %p61
        %p623 = scmp.lt.s32.totalorder %s35, 1
        %s624 = scalar_select %p623, %s35, 1
        %s625 = smul.addr %s624, 2
        %s626 = smul.addr %s625, 8
        %s627 = scalar_lea.vmem %s1, %s626
        %p628 = pneg %p90
        %p629 = pneg %p87
        %p630 = scmp.lt.s32.totalorder %s35, 1
        %s631 = scalar_select %p630, %s35, 1
        %p632 = scmp.lt.s32.totalorder %s36, 1
        %s633 = scalar_select %p632, %s36, 1
        %s634 = smul.addr %s631, 2
        %s635 = sadd.s32 %s633, %s634
        %s636 = smul.addr %s635, 8
        %s637 = scalar_lea.vmem %s2, %s636
        %p638 = pneg %p118
        %p639 = pneg %p115
        %p640 = scmp.lt.s32.totalorder %s35, 1
        %s641 = scalar_select %p640, %s35, 1
        %s642 = smul.addr %s641, 2
        %s643 = scalar_lea.vmem %s3, %s642
        %p644 = pneg %p144
        %p645 = pneg %p141
        %p646 = pneg %p165
        %p647 = pneg %p162
        %p648 = pneg %p186
        %p649 = pneg %p183
        %p650 = pneg %p207
        %p651 = pneg %p204
        %p652 = scmp.lt.s32.totalorder %s36, 1
        %s653 = scalar_select %p652, %s36, 1
        %s654 = smul.addr %s653, 16
        %s655 = smul.addr %s654, 4
        %s656 = scalar_lea.vmem %s7, %s655
        %p657 = pneg %p233
        %p658 = pneg %p230
        %p659 = scmp.lt.s32.totalorder %s36, 1
        %s660 = scalar_select %p659, %s36, 1
        %s661 = smul.addr %s660, 2
        %s662 = scalar_lea.vmem %s8, %s661
        %p663 = pneg %p259
        %p664 = pneg %p256
        %p665 = scmp.lt.s32.totalorder %s36, 1
        %s666 = scalar_select %p665, %s36, 1
        %s667 = smul.addr %s666, 8
        %s668 = smul.addr %s667, 4
        %s669 = scalar_lea.vmem %s9, %s668
        %p670 = pneg %p285
        %p671 = pneg %p282
        %p672 = scmp.lt.s32.totalorder %s36, 1
        %s673 = scalar_select %p672, %s36, 1
        %s674 = scalar_lea.vmem %s10, %s673
        %p675 = pneg %p311
        %p676 = pneg %p308
        %p677 = scmp.lt.s32.totalorder %s36, 1
        %s678 = scalar_select %p677, %s36, 1
        %s679 = smul.addr %s678, 16
        %s680 = smul.addr %s679, 4
        %s681 = scalar_lea.vmem %s11, %s680
        %p682 = pneg %p337
        %p683 = pneg %p334
        %p684 = scmp.lt.s32.totalorder %s36, 1
        %s685 = scalar_select %p684, %s36, 1
        %s686 = smul.addr %s685, 2
        %s687 = scalar_lea.vmem %s12, %s686
        %p688 = pneg %p363
        %p689 = pneg %p360
        %p690 = scmp.lt.s32.totalorder %s36, 1
        %s691 = scalar_select %p690, %s36, 1
        %s692 = smul.addr %s691, 32
        %s693 = smul.addr %s692, 4
        %s694 = scalar_lea.vmem %s13, %s693
        %p695 = pneg %p389
        %p696 = pneg %p386
        %p697 = scmp.lt.s32.totalorder %s36, 1
        %s698 = scalar_select %p697, %s36, 1
        %s699 = scalar_lea.vmem %s14, %s698
        %p700 = pneg %p415
        %p701 = pneg %p412
        %p702 = pneg %p436
        %p703 = pneg %p433
        %p704 = pneg %p457
        %p705 = pneg %p454
        %p706 = pneg %p483
        %p707 = pneg %p480
        %s708 = sand.u32 %s470, 1
        %s709 = scalar_lea.sflag [#allocation4], %s708
        %s710 = sand.u32 %s470, 1
        %s711 = smul.addr %s710, 16
        %s712 = scalar_lea.vmem [#allocation3], %s711
        %p713 = scmp.lt.s32.totalorder %s35, 1
        %s714 = scalar_select %p713, %s35, 1
        %s715 = smul.addr %s714, 2
        %s716 = smul.addr %s715, 8
        %s717 = scalar_lea.vmem %s0, %s716
        %p718 = scmp.lt.s32.totalorder %s35, 1
        %s719 = scalar_select %p718, %s35, 1
        %s720 = smul.addr %s719, 2
        %s721 = smul.addr %s720, 8
        %s722 = scalar_lea.vmem %s1, %s721
        %p723 = scmp.lt.s32.totalorder %s35, 1
        %s724 = scalar_select %p723, %s35, 1
        %p725 = scmp.lt.s32.totalorder %s36, 1
        %s726 = scalar_select %p725, %s36, 1
        %s727 = smul.addr %s724, 2
        %s728 = sadd.s32 %s726, %s727
        %s729 = smul.addr %s728, 8
        %s730 = scalar_lea.vmem %s2, %s729
        %p731 = scmp.lt.s32.totalorder %s35, 1
        %s732 = scalar_select %p731, %s35, 1
        %s733 = smul.addr %s732, 2
        %s734 = scalar_lea.vmem %s3, %s733
        %p735 = scmp.lt.s32.totalorder %s36, 1
        %s736 = scalar_select %p735, %s36, 1
        %s737 = smul.addr %s736, 16
        %s738 = smul.addr %s737, 4
        %s739 = scalar_lea.vmem %s7, %s738
        %p740 = scmp.lt.s32.totalorder %s36, 1
        %s741 = scalar_select %p740, %s36, 1
        %s742 = smul.addr %s741, 2
        %s743 = scalar_lea.vmem %s8, %s742
        %p744 = scmp.lt.s32.totalorder %s36, 1
        %s745 = scalar_select %p744, %s36, 1
        %s746 = smul.addr %s745, 8
        %s747 = smul.addr %s746, 4
        %s748 = scalar_lea.vmem %s9, %s747
        %p749 = scmp.lt.s32.totalorder %s36, 1
        %s750 = scalar_select %p749, %s36, 1
        %s751 = scalar_lea.vmem %s10, %s750
        %p752 = scmp.lt.s32.totalorder %s36, 1
        %s753 = scalar_select %p752, %s36, 1
        %s754 = smul.addr %s753, 16
        %s755 = smul.addr %s754, 4
        %s756 = scalar_lea.vmem %s11, %s755
        %p757 = scmp.lt.s32.totalorder %s36, 1
        %s758 = scalar_select %p757, %s36, 1
        %s759 = smul.addr %s758, 2
        %s760 = scalar_lea.vmem %s12, %s759
        %p761 = scmp.lt.s32.totalorder %s36, 1
        %s762 = scalar_select %p761, %s36, 1
        %s763 = smul.addr %s762, 32
        %s764 = smul.addr %s763, 4
        %s765 = scalar_lea.vmem %s13, %s764
        %p766 = scmp.lt.s32.totalorder %s36, 1
        %s767 = scalar_select %p766, %s36, 1
        %s768 = scalar_lea.vmem %s14, %s767
        %p770 = scmp.eq.s32.totalorder %s36, 0
        // Predicated region
        $region89: #{mmm_dit_forward.55} parent=87 // pred_check
          %p771 = pneg %p770
        $region90: #{mmm_dit_forward.55} parent=87 // pred_check_branch
          %773 = sbr.rel (%p771) target = $region92
        $region91: #{mmm_dit_forward.55} parent=87 // pred_region
          %v774 = vld [vmem:[%s717] sm:$0xff]
          %v775 = vld [vmem:[%s717 + $0x8] sm:$0xff]
          %v776 = vpack.c.bf16 %v775, %v774
          %v777 = vld [vmem:[%s4] sm:$0xf]
          %v778 = vld [vmem:[%s4 + $0x4] sm:$0xf]
          %v779 = vld [vmem:[%s4 + $0x8] sm:$0xf]
          %v780 = vld [vmem:[%s4 + $0xc] sm:$0xf]
          %v781 = vld [vmem:[%s722] sm:$0xff]
          %v782 = vld [vmem:[%s722 + $0x8] sm:$0xff]
          %v783 = vpack.c.bf16 %v782, %v781
          %v784 = vld [vmem:[%s5] sm:$0xf]
          %v785 = vld [vmem:[%s5 + $0x4] sm:$0xf]
          %v786 = vld [vmem:[%s5 + $0x8] sm:$0xf]
          %v787 = vld [vmem:[%s5 + $0xc] sm:$0xf]
          %v792 = vunpack.c.l.b16 %v784
          %v793 = vunpack.c.l.b16 %v785
          %v794 = vunpack.c.l.b16 %v786
          %v795 = vunpack.c.l.b16 %v787
          %v796 = vpack.c.b16 %v793, %v792
          %v797 = vpack.c.b16 %v795, %v794
          %vm800 = vcmask 261120
          %v802 = vsel %vm800, %v783, 0
          %804 = vmatprep.subr.bf16.mxu0 0
          %805 = vmatpush1.bf16.msra.mxu0 %v796
          %806 = vmatprep.subr.bf16.mxu0 0
          %807 = vmatpush1.bf16.msra.mxu0 %v797
          %808 = vmatprep.subr.bf16.mxu0 0
          %809 = vmatpush1.bf16.msra.mxu0 0
          %810 = vmatprep.subr.bf16.mxu0 0
          %811 = vmatpush1.bf16.msra.mxu0 0
          %812 = vmatprep.subr.bf16.mxu0 0
          %813 = vmatpush1.bf16.msra.mxu0 0
          %814 = vmatprep.subr.bf16.mxu0 0
          %815 = vmatpush1.bf16.msra.mxu0 0
          %816 = vmatprep.subr.bf16.mxu0 0
          %817 = vmatpush1.bf16.msra.mxu0 0
          %818 = vmatprep.subr.bf16.mxu0 0
          %819 = vmatpush1.bf16.msra.mxu0 0
          %820 = vmatprep.subr.bf16.mxu0 0
          %821 = vmatpush1.bf16.msra.mxu0 0
          %822 = vmatprep.subr.bf16.mxu0 0
          %823 = vmatpush1.bf16.msra.mxu0 0
          %824 = vmatprep.subr.bf16.mxu0 0
          %825 = vmatpush1.bf16.msra.mxu0 0
          %826 = vmatprep.subr.bf16.mxu0 0
          %827 = vmatpush1.bf16.msra.mxu0 0
          %828 = vmatprep.subr.bf16.mxu0 0
          %829 = vmatpush1.bf16.msra.mxu0 0
          %830 = vmatprep.subr.bf16.mxu0 0
          %831 = vmatpush1.bf16.msra.mxu0 0
          %832 = vmatprep.subr.bf16.mxu0 0
          %833 = vmatpush1.bf16.msra.mxu0 0
          %834 = vmatprep.subr.bf16.mxu0 0
          %835 = vmatpush1.bf16.msra.mxu0 0
          %836 = vmatprep.mubr.bf16.mxu0 0
          %837 = vmatmul.mubr.bf16.gmra.mrb[0].mxu0 %v802
          %v838 = vpop.f32.mrb[0].mxu0
          %v839 = vadd.f32 0.0, %v838
          %v840 = vpop.f32.mrb[0].mxu0
          %v841 = vpop.f32.mrb[0].mxu0
          %v842 = vadd.f32 0.0, %v841
          %v843 = vpop.f32.mrb[0].mxu0
          %844 = vdwg.mxu0
          %v849 = vunpack.c.l.b16 %v777
          %v850 = vunpack.c.l.b16 %v778
          %v851 = vunpack.c.l.b16 %v779
          %v852 = vunpack.c.l.b16 %v780
          %v853 = vpack.c.b16 %v850, %v849
          %v854 = vpack.c.b16 %v852, %v851
          %v858 = vsel %vm800, %v776, 0
          %860 = vmatprep.subr.bf16.mxu0 0
          %861 = vmatpush1.bf16.msra.mxu0 %v853
          %862 = vmatprep.subr.bf16.mxu0 0
          %863 = vmatpush1.bf16.msra.mxu0 %v854
          %864 = vmatprep.subr.bf16.mxu0 0
          %865 = vmatpush1.bf16.msra.mxu0 0
          %866 = vmatprep.subr.bf16.mxu0 0
          %867 = vmatpush1.bf16.msra.mxu0 0
          %868 = vmatprep.subr.bf16.mxu0 0
          %869 = vmatpush1.bf16.msra.mxu0 0
          %870 = vmatprep.subr.bf16.mxu0 0
          %871 = vmatpush1.bf16.msra.mxu0 0
          %872 = vmatprep.subr.bf16.mxu0 0
          %873 = vmatpush1.bf16.msra.mxu0 0
          %874 = vmatprep.subr.bf16.mxu0 0
          %875 = vmatpush1.bf16.msra.mxu0 0
          %876 = vmatprep.subr.bf16.mxu0 0
          %877 = vmatpush1.bf16.msra.mxu0 0
          %878 = vmatprep.subr.bf16.mxu0 0
          %879 = vmatpush1.bf16.msra.mxu0 0
          %880 = vmatprep.subr.bf16.mxu0 0
          %881 = vmatpush1.bf16.msra.mxu0 0
          %882 = vmatprep.subr.bf16.mxu0 0
          %883 = vmatpush1.bf16.msra.mxu0 0
          %884 = vmatprep.subr.bf16.mxu0 0
          %885 = vmatpush1.bf16.msra.mxu0 0
          %886 = vmatprep.subr.bf16.mxu0 0
          %887 = vmatpush1.bf16.msra.mxu0 0
          %888 = vmatprep.subr.bf16.mxu0 0
          %889 = vmatpush1.bf16.msra.mxu0 0
          %890 = vmatprep.subr.bf16.mxu0 0
          %891 = vmatpush1.bf16.msra.mxu0 0
          %892 = vmatprep.mubr.bf16.mxu0 0
          %893 = vmatmul.mubr.bf16.gmra.mrb[0].mxu0 %v858
          %v894 = vpop.f32.mrb[0].mxu0
          %v895 = vadd.f32 %v839, %v894
          %v896 = vpop.f32.mrb[0].mxu0
          %v897 = vpop.f32.mrb[0].mxu0
          %v898 = vadd.f32 %v842, %v897
          %v899 = vpop.f32.mrb[0].mxu0
          %900 = vdwg.mxu0
          %v901 = vld [vmem:[%s6] sm:$0x1]
          %v903 = vlaneseq
          %v904 = vshrl.u32 %v903, 7
          %v905 = vsub.s32 0, %v904
          %v906 = vrot.slane %v901, %v905
          %v908 = vadd.f32 %v895, %v906
          %v909 = vadd.f32 %v898, %v906
          %vm910 = vcmask 523264
          %911 = vst.msk [vmem:[#allocation2] sm:$0xff] %vm910, %v908
          %912 = vst.msk [vmem:[#allocation2 + $0x8] sm:$0xff] %vm910, %v909
        $region92: #{mmm_dit_forward.55} parent=87 // pred_fallthru
          _
        %v913 = vld [vmem:[#allocation2] sm:$0xff]
        %v914 = vld [vmem:[#allocation2 + $0x8] sm:$0xff]
        %v915 = vld [vmem:[%s730] sm:$0x3f]
        %vm916 = vcmask 523264
        %v917 = vsel %vm916, %v913, 0.0
        %918 = vadd.xlane.f32.xlu0 %v917
        %v919 = vpop.xlane.xlu0 %918
        %v920 = vsel %vm916, %v914, 0.0
        %921 = vadd.xlane.f32.xlu0 %v920
        %v922 = vpop.xlane.xlu0 %921
        %v923 = vrcp.pop 64.0
        %v924 = vmul.f32 %v919, %v923
        %v925 = vmul.f32 %v922, %v923
        %v926 = vsub.f32 %v913, %v924
        %v927 = vsub.f32 %v914, %v925
        %v928 = vmul.f32 %v926, %v926
        %v929 = vmul.f32 %v927, %v927
        %v930 = vsel %vm916, %v928, 0.0
        %931 = vadd.xlane.f32.xlu0 %v930
        %v932 = vpop.xlane.xlu0 %931
        %v933 = vsel %vm916, %v929, 0.0
        %934 = vadd.xlane.f32.xlu0 %v933
        %v935 = vpop.xlane.xlu0 %934
        %v936 = vmul.f32 %v932, %v923
        %v937 = vmul.f32 %v935, %v923
        %v938 = vadd.f32 %v936, 1e-06
        %v939 = vadd.f32 %v937, 1e-06
        %v940 = vrsqrt.pop %v938
        %v941 = vrsqrt.pop %v939
        %v942 = vmul.f32 %v926, %v940
        %v943 = vmul.f32 %v927, %v941
        %v944 = vadd.f32 %v915, 1.0
        %v945 = vlaneseq
        %v946 = vshrl.u32 %v945, 7
        %v947 = vsub.s32 1, %v946
        %v948 = vrot.slane %v944, %v947
        %v949 = vmul.f32 %v942, %v948
        %v950 = vmul.f32 %v943, %v948
        %v951 = vlaneseq
        %v952 = vshrl.u32 %v951, 7
        %v953 = vsub.s32 0, %v952
        %v954 = vrot.slane %v915, %v953
        %v955 = vadd.f32 %v949, %v954
        %v956 = vadd.f32 %v950, %v954
        %v957 = vpack.c.bf16 %v956, %v955
        %v958 = vld [vmem:[%s739] sm:$0xff]
        %v959 = vld [vmem:[%s739 + $0x8] sm:$0xff]
        %v960 = vld [vmem:[%s739 + $0x10] sm:$0xff]
        %v961 = vld [vmem:[%s739 + $0x18] sm:$0xff]
        %v962 = vld [vmem:[%s739 + $0x20] sm:$0xff]
        %v963 = vld [vmem:[%s739 + $0x28] sm:$0xff]
        %v964 = vld [vmem:[%s739 + $0x30] sm:$0xff]
        %v965 = vld [vmem:[%s739 + $0x38] sm:$0xff]
        %v966 = vld [vmem:[%s743] sm:$0x3]
        %v968 = vlaneseq
        %v969 = vshrl.u32 %v968, 7
        %v970 = vsub.s32 0, %v969
        %v971 = vrot.slane %v966, %v970
        %v972 = vlaneseq
        %v973 = vshrl.u32 %v972, 7
        %v974 = vsub.s32 1, %v973
        %v975 = vrot.slane %v966, %v974
        %v986 = vunpack.c.l.b16 %v958
        %v987 = vunpack.c.h.b16 %v958
        %v988 = vunpack.c.l.b16 %v959
        %v989 = vunpack.c.h.b16 %v959
        %v990 = vunpack.c.l.b16 %v960
        %v991 = vunpack.c.h.b16 %v960
        %v992 = vunpack.c.l.b16 %v961
        %v993 = vunpack.c.h.b16 %v961
        %v994 = vunpack.c.l.b16 %v962
        %v995 = vunpack.c.h.b16 %v962
        %v996 = vunpack.c.l.b16 %v963
        %v997 = vunpack.c.h.b16 %v963
        %v998 = vunpack.c.l.b16 %v964
        %v999 = vunpack.c.h.b16 %v964
        %v1000 = vunpack.c.l.b16 %v965
        %v1001 = vunpack.c.h.b16 %v965
        %v1002 = vpack.c.b16 %v988, %v986
        %v1003 = vpack.c.b16 %v989, %v987
        %v1004 = vpack.c.b16 %v992, %v990
        %v1005 = vpack.c.b16 %v993, %v991
        %v1006 = vpack.c.b16 %v996, %v994
        %v1007 = vpack.c.b16 %v997, %v995
        %v1008 = vpack.c.b16 %v1000, %v998
        %v1009 = vpack.c.b16 %v1001, %v999
        %v1019 = vsel %vm916, %v957, 0
        %1021 = vmatprep.subr.bf16.mxu0 %v1003
        %1022 = vmatpush1.bf16.msra.mxu0 %v1002
        %1023 = vmatprep.subr.bf16.mxu0 %v1005
        %1024 = vmatpush1.bf16.msra.mxu0 %v1004
        %1025 = vmatprep.subr.bf16.mxu0 %v1007
        %1026 = vmatpush1.bf16.msra.mxu0 %v1006
        %1027 = vmatprep.subr.bf16.mxu0 %v1009
        %1028 = vmatpush1.bf16.msra.mxu0 %v1008
        %1029 = vmatprep.subr.bf16.mxu0 0
        %1030 = vmatpush1.bf16.msra.mxu0 0
        %1031 = vmatprep.subr.bf16.mxu0 0
        %1032 = vmatpush1.bf16.msra.mxu0 0
        %1033 = vmatprep.subr.bf16.mxu0 0
        %1034 = vmatpush1.bf16.msra.mxu0 0
        %1035 = vmatprep.subr.bf16.mxu0 0
        %1036 = vmatpush1.bf16.msra.mxu0 0
        %1037 = vmatprep.subr.bf16.mxu0 0
        %1038 = vmatpush1.bf16.msra.mxu0 0
        %1039 = vmatprep.subr.bf16.mxu0 0
        %1040 = vmatpush1.bf16.msra.mxu0 0
        %1041 = vmatprep.subr.bf16.mxu0 0
        %1042 = vmatpush1.bf16.msra.mxu0 0
        %1043 = vmatprep.subr.bf16.mxu0 0
        %1044 = vmatpush1.bf16.msra.mxu0 0
        %1045 = vmatprep.subr.bf16.mxu0 0
        %1046 = vmatpush1.bf16.msra.mxu0 0
        %1047 = vmatprep.subr.bf16.mxu0 0
        %1048 = vmatpush1.bf16.msra.mxu0 0
        %1049 = vmatprep.subr.bf16.mxu0 0
        %1050 = vmatpush1.bf16.msra.mxu0 0
        %1051 = vmatprep.subr.bf16.mxu0 0
        %1052 = vmatpush1.bf16.msra.mxu0 0
        %1053 = vmatprep.mubr.bf16.mxu0 0
        %1054 = vmatmul.mubr.bf16.gmra.mrb[0].mxu0 %v1019
        %v1055 = vpop.f32.mrb[0].mxu0
        %v1056 = vadd.f32 %v971, %v1055
        %v1057 = vpop.f32.mrb[0].mxu0
        %v1058 = vadd.f32 %v975, %v1057
        %v1059 = vpop.f32.mrb[0].mxu0
        %v1060 = vadd.f32 %v971, %v1059
        %v1061 = vpop.f32.mrb[0].mxu0
        %v1062 = vadd.f32 %v975, %v1061
        %1063 = vdwg.mxu0
        %v1064 = vpack.c.bf16 %v1060, %v1056
        %v1065 = vpack.c.bf16 %v1062, %v1058
        %1067 = vrot.lane.b32.xlu0 %v1064, 64
        %v1068 = vpop.permute.xlu0 %1067
        %vm1069 = vcmask 130048
        %v1071 = vsel %vm1069, %v1064, 0
        %v1074 = vsel %vm1069, %v1068, 0
        %1076 = vmatprep.subr.bf16.mxu0 0
        %1077 = vmatpush1.bf16.xpose.msra.mxu0 %v1074
        %1078 = vmatprep.subr.bf16.mxu0 0
        %1079 = vmatpush1.bf16.xpose.msra.mxu0 0
        %1080 = vmatprep.subr.bf16.mxu0 0
        %1081 = vmatpush1.bf16.xpose.msra.mxu0 0
        %1082 = vmatprep.subr.bf16.mxu0 0
        %1083 = vmatpush1.bf16.xpose.msra.mxu0 0
        %1084 = vmatprep.subr.bf16.mxu0 0
        %1085 = vmatpush1.bf16.xpose.msra.mxu0 0
        %1086 = vmatprep.subr.bf16.mxu0 0
        %1087 = vmatpush1.bf16.xpose.msra.mxu0 0
        %1088 = vmatprep.subr.bf16.mxu0 0
        %1089 = vmatpush1.bf16.xpose.msra.mxu0 0
        %1090 = vmatprep.subr.bf16.mxu0 0
        %1091 = vmatpush1.bf16.xpose.msra.mxu0 0
        %1092 = vmatprep.subr.bf16.mxu0 0
        %1093 = vmatpush1.bf16.xpose.msra.mxu0 0
        %1094 = vmatprep.subr.bf16.mxu0 0
        %1095 = vmatpush1.bf16.xpose.msra.mxu0 0
        %1096 = vmatprep.subr.bf16.mxu0 0
        %1097 = vmatpush1.bf16.xpose.msra.mxu0 0
        %1098 = vmatprep.subr.bf16.mxu0 0
        %1099 = vmatpush1.bf16.xpose.msra.mxu0 0
        %1100 = vmatprep.subr.bf16.mxu0 0
        %1101 = vmatpush1.bf16.xpose.msra.mxu0 0
        %1102 = vmatprep.subr.bf16.mxu0 0
        %1103 = vmatpush1.bf16.xpose.msra.mxu0 0
        %1104 = vmatprep.subr.bf16.mxu0 0
        %1105 = vmatpush1.bf16.xpose.msra.mxu0 0
        %1106 = vmatprep.subr.bf16.mxu0 0
        %1107 = vmatpush1.bf16.xpose.msra.mxu0 0
        %1108 = vmatprep.mubr.bf16.mxu0 0
        %1109 = vmatmul.mubr.bf16.gmra.mrb[0].mxu0 %v1071
        %v1110 = vpop.f32.mrb[0].mxu0
        %v1111 = vadd.f32 0.0, %v1110
        %v1112 = vpop.f32.mrb[0].mxu0
        %v1113 = vpop.f32.mrb[0].mxu0
        %v1114 = vadd.f32 0.0, %v1113
        %v1115 = vpop.f32.mrb[0].mxu0
        %1116 = vdwg.mxu0
        %v1117 = vmul.f32 %v1111, 0.25
        %v1118 = vmul.f32 %v1114, 0.25
        %v1119 = vsel %vm1069, %v1117, -inf
        %1120 = vmax.xlane.f32.xlu0 %v1119
        %v1121 = vpop.xlane.xlu0 %1120
        %v1122 = vsel %vm1069, %v1118, -inf
        %1123 = vmax.xlane.f32.xlu0 %v1122
        %v1124 = vpop.xlane.xlu0 %1123
        %v1125 = vsub.f32 %v1117, %v1121
        %v1126 = vsub.f32 %v1118, %v1124
        %v1127 = vmul.f32 %v1125, 1.442695
        %v1128 = vpow.pop %v1127
        %v1129 = vmul.f32 %v1126, 1.442695
        %v1130 = vpow.pop %v1129
        %v1131 = vsel %vm1069, %v1128, 0.0
        %1132 = vadd.xlane.f32.xlu0 %v1131
        %v1133 = vpop.xlane.xlu0 %1132
        %v1134 = vsel %vm1069, %v1130, 0.0
        %1135 = vadd.xlane.f32.xlu0 %v1134
        %v1136 = vpop.xlane.xlu0 %1135
        %v1137 = vrcp.pop %v1133
        %v1138 = vrcp.pop %v1136
        %v1139 = vmul.f32 %v1128, %v1137
        %v1140 = vmul.f32 %v1130, %v1138
        %v1141 = vpack.c.bf16 %v1140, %v1139
        %v1143 = vsel %vm1069, %v1141, 0
        %1145 = vmatprep.subr.bf16.mxu0 0
        %1146 = vmatpush1.bf16.msra.mxu0 %v1065
        %1147 = vmatprep.subr.bf16.mxu0 0
        %1148 = vmatpush1.bf16.msra.mxu0 0
        %1149 = vmatprep.subr.bf16.mxu0 0
        %1150 = vmatpush1.bf16.msra.mxu0 0
        %1151 = vmatprep.subr.bf16.mxu0 0
        %1152 = vmatpush1.bf16.msra.mxu0 0
        %1153 = vmatprep.subr.bf16.mxu0 0
        %1154 = vmatpush1.bf16.msra.mxu0 0
        %1155 = vmatprep.subr.bf16.mxu0 0
        %1156 = vmatpush1.bf16.msra.mxu0 0
        %1157 = vmatprep.subr.bf16.mxu0 0
        %1158 = vmatpush1.bf16.msra.mxu0 0
        %1159 = vmatprep.subr.bf16.mxu0 0
        %1160 = vmatpush1.bf16.msra.mxu0 0
        %1161 = vmatprep.subr.bf16.mxu0 0
        %1162 = vmatpush1.bf16.msra.mxu0 0
        %1163 = vmatprep.subr.bf16.mxu0 0
        %1164 = vmatpush1.bf16.msra.mxu0 0
        %1165 = vmatprep.subr.bf16.mxu0 0
        %1166 = vmatpush1.bf16.msra.mxu0 0
        %1167 = vmatprep.subr.bf16.mxu0 0
        %1168 = vmatpush1.bf16.msra.mxu0 0
        %1169 = vmatprep.subr.bf16.mxu0 0
        %1170 = vmatpush1.bf16.msra.mxu0 0
        %1171 = vmatprep.subr.bf16.mxu0 0
        %1172 = vmatpush1.bf16.msra.mxu0 0
        %1173 = vmatprep.subr.bf16.mxu0 0
        %1174 = vmatpush1.bf16.msra.mxu0 0
        %1175 = vmatprep.subr.bf16.mxu0 0
        %1176 = vmatpush1.bf16.msra.mxu0 0
        %1177 = vmatprep.mubr.bf16.mxu0 0
        %1178 = vmatmul.mubr.bf16.gmra.mrb[0].mxu0 %v1143
        %v1179 = vpop.f32.mrb[0].mxu0
        %v1180 = vadd.f32 0.0, %v1179
        %v1181 = vpop.f32.mrb[0].mxu0
        %v1182 = vpop.f32.mrb[0].mxu0
        %v1183 = vadd.f32 0.0, %v1182
        %v1184 = vpop.f32.mrb[0].mxu0
        %1185 = vdwg.mxu0
        %1186 = vrot.lane.b32.xlu0 %v1064, 112
        %v1187 = vpop.permute.xlu0 %1186
        %1188 = vrot.lane.b32.xlu0 %v1064, 48
        %v1189 = vpop.permute.xlu0 %1188
        %v1191 = vsel %vm1069, %v1187, 0
        %v1194 = vsel %vm1069, %v1189, 0
        %1196 = vmatprep.subr.bf16.mxu0 0
        %1197 = vmatpush1.bf16.xpose.msra.mxu0 %v1194
        %1198 = vmatprep.subr.bf16.mxu0 0
        %1199 = vmatpush1.bf16.xpose.msra.mxu0 0
        %1200 = vmatprep.subr.bf16.mxu0 0
        %1201 = vmatpush1.bf16.xpose.msra.mxu0 0
        %1202 = vmatprep.subr.bf16.mxu0 0
        %1203 = vmatpush1.bf16.xpose.msra.mxu0 0
        %1204 = vmatprep.subr.bf16.mxu0 0
        %1205 = vmatpush1.bf16.xpose.msra.mxu0 0
        %1206 = vmatprep.subr.bf16.mxu0 0
        %1207 = vmatpush1.bf16.xpose.msra.mxu0 0
        %1208 = vmatprep.subr.bf16.mxu0 0
        %1209 = vmatpush1.bf16.xpose.msra.mxu0 0
        %1210 = vmatprep.subr.bf16.mxu0 0
        %1211 = vmatpush1.bf16.xpose.msra.mxu0 0
        %1212 = vmatprep.subr.bf16.mxu0 0
        %1213 = vmatpush1.bf16.xpose.msra.mxu0 0
        %1214 = vmatprep.subr.bf16.mxu0 0
        %1215 = vmatpush1.bf16.xpose.msra.mxu0 0
        %1216 = vmatprep.subr.bf16.mxu0 0
        %1217 = vmatpush1.bf16.xpose.msra.mxu0 0
        %1218 = vmatprep.subr.bf16.mxu0 0
        %1219 = vmatpush1.bf16.xpose.msra.mxu0 0
        %1220 = vmatprep.subr.bf16.mxu0 0
        %1221 = vmatpush1.bf16.xpose.msra.mxu0 0
        %1222 = vmatprep.subr.bf16.mxu0 0
        %1223 = vmatpush1.bf16.xpose.msra.mxu0 0
        %1224 = vmatprep.subr.bf16.mxu0 0
        %1225 = vmatpush1.bf16.xpose.msra.mxu0 0
        %1226 = vmatprep.subr.bf16.mxu0 0
        %1227 = vmatpush1.bf16.xpose.msra.mxu0 0
        %1228 = vmatprep.mubr.bf16.mxu0 0
        %1229 = vmatmul.mubr.bf16.gmra.mrb[0].mxu0 %v1191
        %v1230 = vpop.f32.mrb[0].mxu0
        %v1231 = vadd.f32 0.0, %v1230
        %v1232 = vpop.f32.mrb[0].mxu0
        %v1233 = vpop.f32.mrb[0].mxu0
        %v1234 = vadd.f32 0.0, %v1233
        %v1235 = vpop.f32.mrb[0].mxu0
        %1236 = vdwg.mxu0
        %v1237 = vmul.f32 %v1231, 0.25
        %v1238 = vmul.f32 %v1234, 0.25
        %v1239 = vsel %vm1069, %v1237, -inf
        %1240 = vmax.xlane.f32.xlu0 %v1239
        %v1241 = vpop.xlane.xlu0 %1240
        %v1242 = vsel %vm1069, %v1238, -inf
        %1243 = vmax.xlane.f32.xlu0 %v1242
        %v1244 = vpop.xlane.xlu0 %1243
        %v1245 = vsub.f32 %v1237, %v1241
        %v1246 = vsub.f32 %v1238, %v1244
        %v1247 = vmul.f32 %v1245, 1.442695
        %v1248 = vpow.pop %v1247
        %v1249 = vmul.f32 %v1246, 1.442695
        %v1250 = vpow.pop %v1249
        %v1251 = vsel %vm1069, %v1248, 0.0
        %1252 = vadd.xlane.f32.xlu0 %v1251
        %v1253 = vpop.xlane.xlu0 %1252
        %v1254 = vsel %vm1069, %v1250, 0.0
        %1255 = vadd.xlane.f32.xlu0 %v1254
        %v1256 = vpop.xlane.xlu0 %1255
        %v1257 = vrcp.pop %v1253
        %v1258 = vrcp.pop %v1256
        %v1259 = vmul.f32 %v1248, %v1257
        %v1260 = vmul.f32 %v1250, %v1258
        %v1261 = vpack.c.bf16 %v1260, %v1259
        %1263 = vrot.lane.b32.xlu0 %v1065, 112
        %v1264 = vpop.permute.xlu0 %1263
        %v1267 = vsel %vm1069, %v1261, 0
        %1269 = vmatprep.subr.bf16.mxu0 0
        %1270 = vmatpush1.bf16.msra.mxu0 %v1264
        %1271 = vmatprep.subr.bf16.mxu0 0
        %1272 = vmatpush1.bf16.msra.mxu0 0
        %1273 = vmatprep.subr.bf16.mxu0 0
        %1274 = vmatpush1.bf16.msra.mxu0 0
        %1275 = vmatprep.subr.bf16.mxu0 0
        %1276 = vmatpush1.bf16.msra.mxu0 0
        %1277 = vmatprep.subr.bf16.mxu0 0
        %1278 = vmatpush1.bf16.msra.mxu0 0
        %1279 = vmatprep.subr.bf16.mxu0 0
        %1280 = vmatpush1.bf16.msra.mxu0 0
        %1281 = vmatprep.subr.bf16.mxu0 0
        %1282 = vmatpush1.bf16.msra.mxu0 0
        %1283 = vmatprep.subr.bf16.mxu0 0
        %1284 = vmatpush1.bf16.msra.mxu0 0
        %1285 = vmatprep.subr.bf16.mxu0 0
        %1286 = vmatpush1.bf16.msra.mxu0 0
        %1287 = vmatprep.subr.bf16.mxu0 0
        %1288 = vmatpush1.bf16.msra.mxu0 0
        %1289 = vmatprep.subr.bf16.mxu0 0
        %1290 = vmatpush1.bf16.msra.mxu0 0
        %1291 = vmatprep.subr.bf16.mxu0 0
        %1292 = vmatpush1.bf16.msra.mxu0 0
        %1293 = vmatprep.subr.bf16.mxu0 0
        %1294 = vmatpush1.bf16.msra.mxu0 0
        %1295 = vmatprep.subr.bf16.mxu0 0
        %1296 = vmatpush1.bf16.msra.mxu0 0
        %1297 = vmatprep.subr.bf16.mxu0 0
        %1298 = vmatpush1.bf16.msra.mxu0 0
        %1299 = vmatprep.subr.bf16.mxu0 0
        %1300 = vmatpush1.bf16.msra.mxu0 0
        %1301 = vmatprep.mubr.bf16.mxu0 0
        %1302 = vmatmul.mubr.bf16.gmra.mrb[0].mxu0 %v1267
        %v1303 = vpop.f32.mrb[0].mxu0
        %v1304 = vadd.f32 0.0, %v1303
        %v1305 = vpop.f32.mrb[0].mxu0
        %v1306 = vpop.f32.mrb[0].mxu0
        %v1307 = vadd.f32 0.0, %v1306
        %v1308 = vpop.f32.mrb[0].mxu0
        %1309 = vdwg.mxu0
        %1310 = vrot.lane.b32.xlu0 %v1064, 96
        %v1311 = vpop.permute.xlu0 %1310
        %1312 = vrot.lane.b32.xlu0 %v1064, 32
        %v1313 = vpop.permute.xlu0 %1312
        %v1315 = vsel %vm1069, %v1311, 0
        %v1318 = vsel %vm1069, %v1313, 0
        %1320 = vmatprep.subr.bf16.mxu0 0
        %1321 = vmatpush1.bf16.xpose.msra.mxu0 %v1318
        %1322 = vmatprep.subr.bf16.mxu0 0
        %1323 = vmatpush1.bf16.xpose.msra.mxu0 0
        %1324 = vmatprep.subr.bf16.mxu0 0
        %1325 = vmatpush1.bf16.xpose.msra.mxu0 0
        %1326 = vmatprep.subr.bf16.mxu0 0
        %1327 = vmatpush1.bf16.xpose.msra.mxu0 0
        %1328 = vmatprep.subr.bf16.mxu0 0
        %1329 = vmatpush1.bf16.xpose.msra.mxu0 0
        %1330 = vmatprep.subr.bf16.mxu0 0
        %1331 = vmatpush1.bf16.xpose.msra.mxu0 0
        %1332 = vmatprep.subr.bf16.mxu0 0
        %1333 = vmatpush1.bf16.xpose.msra.mxu0 0
        %1334 = vmatprep.subr.bf16.mxu0 0
        %1335 = vmatpush1.bf16.xpose.msra.mxu0 0
        %1336 = vmatprep.subr.bf16.mxu0 0
        %1337 = vmatpush1.bf16.xpose.msra.mxu0 0
        %1338 = vmatprep.subr.bf16.mxu0 0
        %1339 = vmatpush1.bf16.xpose.msra.mxu0 0
        %1340 = vmatprep.subr.bf16.mxu0 0
        %1341 = vmatpush1.bf16.xpose.msra.mxu0 0
        %1342 = vmatprep.subr.bf16.mxu0 0
        %1343 = vmatpush1.bf16.xpose.msra.mxu0 0
        %1344 = vmatprep.subr.bf16.mxu0 0
        %1345 = vmatpush1.bf16.xpose.msra.mxu0 0
        %1346 = vmatprep.subr.bf16.mxu0 0
        %1347 = vmatpush1.bf16.xpose.msra.mxu0 0
        %1348 = vmatprep.subr.bf16.mxu0 0
        %1349 = vmatpush1.bf16.xpose.msra.mxu0 0
        %1350 = vmatprep.subr.bf16.mxu0 0
        %1351 = vmatpush1.bf16.xpose.msra.mxu0 0
        %1352 = vmatprep.mubr.bf16.mxu0 0
        %1353 = vmatmul.mubr.bf16.gmra.mrb[0].mxu0 %v1315
        %v1354 = vpop.f32.mrb[0].mxu0
        %v1355 = vadd.f32 0.0, %v1354
        %v1356 = vpop.f32.mrb[0].mxu0
        %v1357 = vpop.f32.mrb[0].mxu0
        %v1358 = vadd.f32 0.0, %v1357
        %v1359 = vpop.f32.mrb[0].mxu0
        %1360 = vdwg.mxu0
        %v1361 = vmul.f32 %v1355, 0.25
        %v1362 = vmul.f32 %v1358, 0.25
        %v1363 = vsel %vm1069, %v1361, -inf
        %1364 = vmax.xlane.f32.xlu0 %v1363
        %v1365 = vpop.xlane.xlu0 %1364
        %v1366 = vsel %vm1069, %v1362, -inf
        %1367 = vmax.xlane.f32.xlu0 %v1366
        %v1368 = vpop.xlane.xlu0 %1367
        %v1369 = vsub.f32 %v1361, %v1365
        %v1370 = vsub.f32 %v1362, %v1368
        %v1371 = vmul.f32 %v1369, 1.442695
        %v1372 = vpow.pop %v1371
        %v1373 = vmul.f32 %v1370, 1.442695
        %v1374 = vpow.pop %v1373
        %v1375 = vsel %vm1069, %v1372, 0.0
        %1376 = vadd.xlane.f32.xlu0 %v1375
        %v1377 = vpop.xlane.xlu0 %1376
        %v1378 = vsel %vm1069, %v1374, 0.0
        %1379 = vadd.xlane.f32.xlu0 %v1378
        %v1380 = vpop.xlane.xlu0 %1379
        %v1381 = vrcp.pop %v1377
        %v1382 = vrcp.pop %v1380
        %v1383 = vmul.f32 %v1372, %v1381
        %v1384 = vmul.f32 %v1374, %v1382
        %v1385 = vpack.c.bf16 %v1384, %v1383
        %1386 = vrot.lane.b32.xlu0 %v1065, 96
        %v1387 = vpop.permute.xlu0 %1386
        %v1390 = vsel %vm1069, %v1385, 0
        %1392 = vmatprep.subr.bf16.mxu0 0
        %1393 = vmatpush1.bf16.msra.mxu0 %v1387
        %1394 = vmatprep.subr.bf16.mxu0 0
        %1395 = vmatpush1.bf16.msra.mxu0 0
        %1396 = vmatprep.subr.bf16.mxu0 0
        %1397 = vmatpush1.bf16.msra.mxu0 0
        %1398 = vmatprep.subr.bf16.mxu0 0
        %1399 = vmatpush1.bf16.msra.mxu0 0
        %1400 = vmatprep.subr.bf16.mxu0 0
        %1401 = vmatpush1.bf16.msra.mxu0 0
        %1402 = vmatprep.subr.bf16.mxu0 0
        %1403 = vmatpush1.bf16.msra.mxu0 0
        %1404 = vmatprep.subr.bf16.mxu0 0
        %1405 = vmatpush1.bf16.msra.mxu0 0
        %1406 = vmatprep.subr.bf16.mxu0 0
        %1407 = vmatpush1.bf16.msra.mxu0 0
        %1408 = vmatprep.subr.bf16.mxu0 0
        %1409 = vmatpush1.bf16.msra.mxu0 0
        %1410 = vmatprep.subr.bf16.mxu0 0
        %1411 = vmatpush1.bf16.msra.mxu0 0
        %1412 = vmatprep.subr.bf16.mxu0 0
        %1413 = vmatpush1.bf16.msra.mxu0 0
        %1414 = vmatprep.subr.bf16.mxu0 0
        %1415 = vmatpush1.bf16.msra.mxu0 0
        %1416 = vmatprep.subr.bf16.mxu0 0
        %1417 = vmatpush1.bf16.msra.mxu0 0
        %1418 = vmatprep.subr.bf16.mxu0 0
        %1419 = vmatpush1.bf16.msra.mxu0 0
        %1420 = vmatprep.subr.bf16.mxu0 0
        %1421 = vmatpush1.bf16.msra.mxu0 0
        %1422 = vmatprep.subr.bf16.mxu0 0
        %1423 = vmatpush1.bf16.msra.mxu0 0
        %1424 = vmatprep.mubr.bf16.mxu0 0
        %1425 = vmatmul.mubr.bf16.gmra.mrb[0].mxu0 %v1390
        %v1426 = vpop.f32.mrb[0].mxu0
        %v1427 = vadd.f32 0.0, %v1426
        %v1428 = vpop.f32.mrb[0].mxu0
        %v1429 = vpop.f32.mrb[0].mxu0
        %v1430 = vadd.f32 0.0, %v1429
        %v1431 = vpop.f32.mrb[0].mxu0
        %1432 = vdwg.mxu0
        %1433 = vrot.lane.b32.xlu0 %v1064, 80
        %v1434 = vpop.permute.xlu0 %1433
        %1435 = vrot.lane.b32.xlu0 %v1064, 16
        %v1436 = vpop.permute.xlu0 %1435
        %v1438 = vsel %vm1069, %v1434, 0
        %v1441 = vsel %vm1069, %v1436, 0
        %1443 = vmatprep.subr.bf16.mxu0 0
        %1444 = vmatpush1.bf16.xpose.msra.mxu0 %v1441
        %1445 = vmatprep.subr.bf16.mxu0 0
        %1446 = vmatpush1.bf16.xpose.msra.mxu0 0
        %1447 = vmatprep.subr.bf16.mxu0 0
        %1448 = vmatpush1.bf16.xpose.msra.mxu0 0
        %1449 = vmatprep.subr.bf16.mxu0 0
        %1450 = vmatpush1.bf16.xpose.msra.mxu0 0
        %1451 = vmatprep.subr.bf16.mxu0 0
        %1452 = vmatpush1.bf16.xpose.msra.mxu0 0
        %1453 = vmatprep.subr.bf16.mxu0 0
        %1454 = vmatpush1.bf16.xpose.msra.mxu0 0
        %1455 = vmatprep.subr.bf16.mxu0 0
        %1456 = vmatpush1.bf16.xpose.msra.mxu0 0
        %1457 = vmatprep.subr.bf16.mxu0 0
        %1458 = vmatpush1.bf16.xpose.msra.mxu0 0
        %1459 = vmatprep.subr.bf16.mxu0 0
        %1460 = vmatpush1.bf16.xpose.msra.mxu0 0
        %1461 = vmatprep.subr.bf16.mxu0 0
        %1462 = vmatpush1.bf16.xpose.msra.mxu0 0
        %1463 = vmatprep.subr.bf16.mxu0 0
        %1464 = vmatpush1.bf16.xpose.msra.mxu0 0
        %1465 = vmatprep.subr.bf16.mxu0 0
        %1466 = vmatpush1.bf16.xpose.msra.mxu0 0
        %1467 = vmatprep.subr.bf16.mxu0 0
        %1468 = vmatpush1.bf16.xpose.msra.mxu0 0
        %1469 = vmatprep.subr.bf16.mxu0 0
        %1470 = vmatpush1.bf16.xpose.msra.mxu0 0
        %1471 = vmatprep.subr.bf16.mxu0 0
        %1472 = vmatpush1.bf16.xpose.msra.mxu0 0
        %1473 = vmatprep.subr.bf16.mxu0 0
        %1474 = vmatpush1.bf16.xpose.msra.mxu0 0
        %1475 = vmatprep.mubr.bf16.mxu0 0
        %1476 = vmatmul.mubr.bf16.gmra.mrb[0].mxu0 %v1438
        %v1477 = vpop.f32.mrb[0].mxu0
        %v1478 = vadd.f32 0.0, %v1477
        %v1479 = vpop.f32.mrb[0].mxu0
        %v1480 = vpop.f32.mrb[0].mxu0
        %v1481 = vadd.f32 0.0, %v1480
        %v1482 = vpop.f32.mrb[0].mxu0
        %1483 = vdwg.mxu0
        %v1484 = vmul.f32 %v1478, 0.25
        %v1485 = vmul.f32 %v1481, 0.25
        %v1486 = vsel %vm1069, %v1484, -inf
        %1487 = vmax.xlane.f32.xlu0 %v1486
        %v1488 = vpop.xlane.xlu0 %1487
        %v1489 = vsel %vm1069, %v1485, -inf
        %1490 = vmax.xlane.f32.xlu0 %v1489
        %v1491 = vpop.xlane.xlu0 %1490
        %v1492 = vsub.f32 %v1484, %v1488
        %v1493 = vsub.f32 %v1485, %v1491
        %v1494 = vmul.f32 %v1492, 1.442695
        %v1495 = vpow.pop %v1494
        %v1496 = vmul.f32 %v1493, 1.442695
        %v1497 = vpow.pop %v1496
        %v1498 = vsel %vm1069, %v1495, 0.0
        %1499 = vadd.xlane.f32.xlu0 %v1498
        %v1500 = vpop.xlane.xlu0 %1499
        %v1501 = vsel %vm1069, %v1497, 0.0
        %1502 = vadd.xlane.f32.xlu0 %v1501
        %v1503 = vpop.xlane.xlu0 %1502
        %v1504 = vrcp.pop %v1500
        %v1505 = vrcp.pop %v1503
        %v1506 = vmul.f32 %v1495, %v1504
        %v1507 = vmul.f32 %v1497, %v1505
        %v1508 = vpack.c.bf16 %v1507, %v1506
        %1509 = vrot.lane.b32.xlu0 %v1065, 80
        %v1510 = vpop.permute.xlu0 %1509
        %v1513 = vsel %vm1069, %v1508, 0
        %1515 = vmatprep.subr.bf16.mxu0 0
        %1516 = vmatpush1.bf16.msra.mxu0 %v1510
        %1517 = vmatprep.subr.bf16.mxu0 0
        %1518 = vmatpush1.bf16.msra.mxu0 0
        %1519 = vmatprep.subr.bf16.mxu0 0
        %1520 = vmatpush1.bf16.msra.mxu0 0
        %1521 = vmatprep.subr.bf16.mxu0 0
        %1522 = vmatpush1.bf16.msra.mxu0 0
        %1523 = vmatprep.subr.bf16.mxu0 0
        %1524 = vmatpush1.bf16.msra.mxu0 0
        %1525 = vmatprep.subr.bf16.mxu0 0
        %1526 = vmatpush1.bf16.msra.mxu0 0
        %1527 = vmatprep.subr.bf16.mxu0 0
        %1528 = vmatpush1.bf16.msra.mxu0 0
        %1529 = vmatprep.subr.bf16.mxu0 0
        %1530 = vmatpush1.bf16.msra.mxu0 0
        %1531 = vmatprep.subr.bf16.mxu0 0
        %1532 = vmatpush1.bf16.msra.mxu0 0
        %1533 = vmatprep.subr.bf16.mxu0 0
        %1534 = vmatpush1.bf16.msra.mxu0 0
        %1535 = vmatprep.subr.bf16.mxu0 0
        %1536 = vmatpush1.bf16.msra.mxu0 0
        %1537 = vmatprep.subr.bf16.mxu0 0
        %1538 = vmatpush1.bf16.msra.mxu0 0
        %1539 = vmatprep.subr.bf16.mxu0 0
        %1540 = vmatpush1.bf16.msra.mxu0 0
        %1541 = vmatprep.subr.bf16.mxu0 0
        %1542 = vmatpush1.bf16.msra.mxu0 0
        %1543 = vmatprep.subr.bf16.mxu0 0
        %1544 = vmatpush1.bf16.msra.mxu0 0
        %1545 = vmatprep.subr.bf16.mxu0 0
        %1546 = vmatpush1.bf16.msra.mxu0 0
        %1547 = vmatprep.mubr.bf16.mxu0 0
        %1548 = vmatmul.mubr.bf16.gmra.mrb[0].mxu0 %v1513
        %v1549 = vpop.f32.mrb[0].mxu0
        %v1550 = vadd.f32 0.0, %v1549
        %v1551 = vpop.f32.mrb[0].mxu0
        %v1552 = vpop.f32.mrb[0].mxu0
        %v1553 = vadd.f32 0.0, %v1552
        %v1554 = vpop.f32.mrb[0].mxu0
        %1555 = vdwg.mxu0
        %1558 = vrot.lane.b32.xlu0 %v1304, 16
        %v1559 = vpop.permute.xlu0 %1558
        %1560 = vrot.lane.b32.xlu0 %v1307, 16
        %v1561 = vpop.permute.xlu0 %1560
        %1566 = vrot.lane.b32.xlu0 %v1427, 32
        %v1567 = vpop.permute.xlu0 %1566
        %1568 = vrot.lane.b32.xlu0 %v1430, 32
        %v1569 = vpop.permute.xlu0 %1568
        %1574 = vrot.lane.b32.xlu0 %v1550, 48
        %v1575 = vpop.permute.xlu0 %1574
        %1576 = vrot.lane.b32.xlu0 %v1553, 48
        %v1577 = vpop.permute.xlu0 %1576
        %v1580 = vsel %vm1069, %v1180, %v1559
        %v1581 = vsel %vm1069, %v1183, %v1561
        %vm1582 = vcmask 261120
        %v1583 = vsel %vm1582, %v1580, %v1567
        %v1584 = vsel %vm1582, %v1581, %v1569
        %vm1585 = vcmask 392192
        %v1586 = vsel %vm1585, %v1583, %v1575
        %v1587 = vsel %vm1585, %v1584, %v1577
        %v1588 = vpack.c.bf16 %v1587, %v1586
        %v1589 = vld [vmem:[%s748] sm:$0xf]
        %v1590 = vld [vmem:[%s748 + $0x4] sm:$0xf]
        %v1591 = vld [vmem:[%s748 + $0x8] sm:$0xf]
        %v1592 = vld [vmem:[%s748 + $0xc] sm:$0xf]
        %v1593 = vld [vmem:[%s748 + $0x10] sm:$0xf]
        %v1594 = vld [vmem:[%s748 + $0x14] sm:$0xf]
        %v1595 = vld [vmem:[%s748 + $0x18] sm:$0xf]
        %v1596 = vld [vmem:[%s748 + $0x1c] sm:$0xf]
        %v1597 = vld [vmem:[%s751] sm:$0x1]
        %v1599 = vlaneseq
        %v1600 = vshrl.u32 %v1599, 7
        %v1601 = vsub.s32 0, %v1600
        %v1602 = vrot.slane %v1597, %v1601
        %v1612 = vunpack.c.l.b16 %v1589
        %v1613 = vunpack.c.l.b16 %v1590
        %v1614 = vunpack.c.l.b16 %v1591
        %v1615 = vunpack.c.l.b16 %v1592
        %v1616 = vunpack.c.l.b16 %v1593
        %v1617 = vunpack.c.l.b16 %v1594
        %v1618 = vunpack.c.l.b16 %v1595
        %v1619 = vunpack.c.l.b16 %v1596
        %v1620 = vpack.c.b16 %v1613, %v1612
        %v1621 = vpack.c.b16 %v1615, %v1614
        %v1622 = vpack.c.b16 %v1617, %v1616
        %v1623 = vpack.c.b16 %v1619, %v1618
        %v1629 = vsel %vm916, %v1588, 0
        %1631 = vmatprep.subr.bf16.mxu0 0
        %1632 = vmatpush1.bf16.msra.mxu0 %v1620
        %1633 = vmatprep.subr.bf16.mxu0 0
        %1634 = vmatpush1.bf16.msra.mxu0 %v1621
        %1635 = vmatprep.subr.bf16.mxu0 0
        %1636 = vmatpush1.bf16.msra.mxu0 %v1622
        %1637 = vmatprep.subr.bf16.mxu0 0
        %1638 = vmatpush1.bf16.msra.mxu0 %v1623
        %1639 = vmatprep.subr.bf16.mxu0 0
        %1640 = vmatpush1.bf16.msra.mxu0 0
        %1641 = vmatprep.subr.bf16.mxu0 0
        %1642 = vmatpush1.bf16.msra.mxu0 0
        %1643 = vmatprep.subr.bf16.mxu0 0
        %1644 = vmatpush1.bf16.msra.mxu0 0
        %1645 = vmatprep.subr.bf16.mxu0 0
        %1646 = vmatpush1.bf16.msra.mxu0 0
        %1647 = vmatprep.subr.bf16.mxu0 0
        %1648 = vmatpush1.bf16.msra.mxu0 0
        %1649 = vmatprep.subr.bf16.mxu0 0
        %1650 = vmatpush1.bf16.msra.mxu0 0
        %1651 = vmatprep.subr.bf16.mxu0 0
        %1652 = vmatpush1.bf16.msra.mxu0 0
        %1653 = vmatprep.subr.bf16.mxu0 0
        %1654 = vmatpush1.bf16.msra.mxu0 0
        %1655 = vmatprep.subr.bf16.mxu0 0
        %1656 = vmatpush1.bf16.msra.mxu0 0
        %1657 = vmatprep.subr.bf16.mxu0 0
        %1658 = vmatpush1.bf16.msra.mxu0 0
        %1659 = vmatprep.subr.bf16.mxu0 0
        %1660 = vmatpush1.bf16.msra.mxu0 0
        %1661 = vmatprep.subr.bf16.mxu0 0
        %1662 = vmatpush1.bf16.msra.mxu0 0
        %1663 = vmatprep.mubr.bf16.mxu0 0
        %1664 = vmatmul.mubr.bf16.gmra.mrb[0].mxu0 %v1629
        %v1665 = vpop.f32.mrb[0].mxu0
        %v1666 = vadd.f32 %v1602, %v1665
        %v1667 = vpop.f32.mrb[0].mxu0
        %v1668 = vpop.f32.mrb[0].mxu0
        %v1669 = vadd.f32 %v1602, %v1668
        %v1670 = vpop.f32.mrb[0].mxu0
        %1671 = vdwg.mxu0
        %v1672 = vlaneseq
        %v1673 = vshrl.u32 %v1672, 7
        %v1674 = vsub.s32 2, %v1673
        %v1675 = vrot.slane %v915, %v1674
        %v1676 = vmul.f32 %v1675, %v1666
        %v1677 = vmul.f32 %v1675, %v1669
        %v1678 = vadd.f32 %v913, %v1676
        %v1679 = vadd.f32 %v914, %v1677
        %v1680 = vsel %vm916, %v1678, 0.0
        %1681 = vadd.xlane.f32.xlu0 %v1680
        %v1682 = vpop.xlane.xlu0 %1681
        %v1683 = vsel %vm916, %v1679, 0.0
        %1684 = vadd.xlane.f32.xlu0 %v1683
        %v1685 = vpop.xlane.xlu0 %1684
        %v1686 = vmul.f32 %v1682, %v923
        %v1687 = vmul.f32 %v1685, %v923
        %v1688 = vsub.f32 %v1678, %v1686
        %v1689 = vsub.f32 %v1679, %v1687
        %v1690 = vmul.f32 %v1688, %v1688
        %v1691 = vmul.f32 %v1689, %v1689
        %v1692 = vsel %vm916, %v1690, 0.0
        %1693 = vadd.xlane.f32.xlu0 %v1692
        %v1694 = vpop.xlane.xlu0 %1693
        %v1695 = vsel %vm916, %v1691, 0.0
        %1696 = vadd.xlane.f32.xlu0 %v1695
        %v1697 = vpop.xlane.xlu0 %1696
        %v1698 = vmul.f32 %v1694, %v923
        %v1699 = vmul.f32 %v1697, %v923
        %v1700 = vadd.f32 %v1698, 1e-06
        %v1701 = vadd.f32 %v1699, 1e-06
        %v1702 = vrsqrt.pop %v1700
        %v1703 = vrsqrt.pop %v1701
        %v1704 = vmul.f32 %v1688, %v1702
        %v1705 = vmul.f32 %v1689, %v1703
        %v1706 = vlaneseq
        %v1707 = vshrl.u32 %v1706, 7
        %v1708 = vsub.s32 4, %v1707
        %v1709 = vrot.slane %v944, %v1708
        %v1710 = vmul.f32 %v1704, %v1709
        %v1711 = vmul.f32 %v1705, %v1709
        %v1712 = vlaneseq
        %v1713 = vshrl.u32 %v1712, 7
        %v1714 = vsub.s32 3, %v1713
        %v1715 = vrot.slane %v915, %v1714
        %v1716 = vadd.f32 %v1710, %v1715
        %v1717 = vadd.f32 %v1711, %v1715
        %v1718 = vpack.c.bf16 %v1717, %v1716
        %v1719 = vld [vmem:[%s756] sm:$0xff]
        %v1720 = vld [vmem:[%s756 + $0x8] sm:$0xff]
        %v1721 = vld [vmem:[%s756 + $0x10] sm:$0xff]
        %v1722 = vld [vmem:[%s756 + $0x18] sm:$0xff]
        %v1723 = vld [vmem:[%s756 + $0x20] sm:$0xff]
        %v1724 = vld [vmem:[%s756 + $0x28] sm:$0xff]
        %v1725 = vld [vmem:[%s756 + $0x30] sm:$0xff]
        %v1726 = vld [vmem:[%s756 + $0x38] sm:$0xff]
        %v1727 = vld [vmem:[%s760] sm:$0x3]
        %v1729 = vlaneseq
        %v1730 = vshrl.u32 %v1729, 7
        %v1731 = vsub.s32 0, %v1730
        %v1732 = vrot.slane %v1727, %v1731
        %v1733 = vlaneseq
        %v1734 = vshrl.u32 %v1733, 7
        %v1735 = vsub.s32 1, %v1734
        %v1736 = vrot.slane %v1727, %v1735
        %v1747 = vunpack.c.l.b16 %v1719
        %v1748 = vunpack.c.h.b16 %v1719
        %v1749 = vunpack.c.l.b16 %v1720
        %v1750 = vunpack.c.h.b16 %v1720
        %v1751 = vunpack.c.l.b16 %v1721
        %v1752 = vunpack.c.h.b16 %v1721
        %v1753 = vunpack.c.l.b16 %v1722
        %v1754 = vunpack.c.h.b16 %v1722
        %v1755 = vunpack.c.l.b16 %v1723
        %v1756 = vunpack.c.h.b16 %v1723
        %v1757 = vunpack.c.l.b16 %v1724
        %v1758 = vunpack.c.h.b16 %v1724
        %v1759 = vunpack.c.l.b16 %v1725
        %v1760 = vunpack.c.h.b16 %v1725
        %v1761 = vunpack.c.l.b16 %v1726
        %v1762 = vunpack.c.h.b16 %v1726
        %v1763 = vpack.c.b16 %v1749, %v1747
        %v1764 = vpack.c.b16 %v1750, %v1748
        %v1765 = vpack.c.b16 %v1753, %v1751
        %v1766 = vpack.c.b16 %v1754, %v1752
        %v1767 = vpack.c.b16 %v1757, %v1755
        %v1768 = vpack.c.b16 %v1758, %v1756
        %v1769 = vpack.c.b16 %v1761, %v1759
        %v1770 = vpack.c.b16 %v1762, %v1760
        %v1780 = vsel %vm916, %v1718, 0
        %1782 = vmatprep.subr.bf16.mxu0 %v1764
        %1783 = vmatpush1.bf16.msra.mxu0 %v1763
        %1784 = vmatprep.subr.bf16.mxu0 %v1766
        %1785 = vmatpush1.bf16.msra.mxu0 %v1765
        %1786 = vmatprep.subr.bf16.mxu0 %v1768
        %1787 = vmatpush1.bf16.msra.mxu0 %v1767
        %1788 = vmatprep.subr.bf16.mxu0 %v1770
        %1789 = vmatpush1.bf16.msra.mxu0 %v1769
        %1790 = vmatprep.subr.bf16.mxu0 0
        %1791 = vmatpush1.bf16.msra.mxu0 0
        %1792 = vmatprep.subr.bf16.mxu0 0
        %1793 = vmatpush1.bf16.msra.mxu0 0
        %1794 = vmatprep.subr.bf16.mxu0 0
        %1795 = vmatpush1.bf16.msra.mxu0 0
        %1796 = vmatprep.subr.bf16.mxu0 0
        %1797 = vmatpush1.bf16.msra.mxu0 0
        %1798 = vmatprep.subr.bf16.mxu0 0
        %1799 = vmatpush1.bf16.msra.mxu0 0
        %1800 = vmatprep.subr.bf16.mxu0 0
        %1801 = vmatpush1.bf16.msra.mxu0 0
        %1802 = vmatprep.subr.bf16.mxu0 0
        %1803 = vmatpush1.bf16.msra.mxu0 0
        %1804 = vmatprep.subr.bf16.mxu0 0
        %1805 = vmatpush1.bf16.msra.mxu0 0
        %1806 = vmatprep.subr.bf16.mxu0 0
        %1807 = vmatpush1.bf16.msra.mxu0 0
        %1808 = vmatprep.subr.bf16.mxu0 0
        %1809 = vmatpush1.bf16.msra.mxu0 0
        %1810 = vmatprep.subr.bf16.mxu0 0
        %1811 = vmatpush1.bf16.msra.mxu0 0
        %1812 = vmatprep.subr.bf16.mxu0 0
        %1813 = vmatpush1.bf16.msra.mxu0 0
        %1814 = vmatprep.mubr.bf16.mxu0 0
        %1815 = vmatmul.mubr.bf16.gmra.mrb[0].mxu0 %v1780
        %v1816 = vpop.f32.mrb[0].mxu0
        %v1817 = vadd.f32 %v1732, %v1816
        %v1818 = vpop.f32.mrb[0].mxu0
        %v1819 = vadd.f32 %v1736, %v1818
        %v1820 = vpop.f32.mrb[0].mxu0
        %v1821 = vadd.f32 %v1732, %v1820
        %v1822 = vpop.f32.mrb[0].mxu0
        %v1823 = vadd.f32 %v1736, %v1822
        %1824 = vdwg.mxu0
        %v1825 = vmul.f32 %v1817, %v1817
        %v1826 = vmul.f32 %v1819, %v1819
        %v1827 = vmul.f32 %v1821, %v1821
        %v1828 = vmul.f32 %v1823, %v1823
        %v1829 = vmul.f32 %v1817, %v1825
        %v1830 = vmul.f32 %v1819, %v1826
        %v1831 = vmul.f32 %v1821, %v1827
        %v1832 = vmul.f32 %v1823, %v1828
        %v1833 = vmul.f32 %v1829, 0.044715
        %v1834 = vmul.f32 %v1830, 0.044715
        %v1835 = vmul.f32 %v1831, 0.044715
        %v1836 = vmul.f32 %v1832, 0.044715
        %v1837 = vadd.f32 %v1817, %v1833
        %v1838 = vadd.f32 %v1819, %v1834
        %v1839 = vadd.f32 %v1821, %v1835
        %v1840 = vadd.f32 %v1823, %v1836
        %v1841 = vmul.f32 %v1837, 0.7978846
        %v1842 = vmul.f32 %v1838, 0.7978846
        %v1843 = vmul.f32 %v1839, 0.7978846
        %v1844 = vmul.f32 %v1840, 0.7978846
        %v1845 = vtanh.pop %v1841
        %v1846 = vtanh.pop %v1842
        %v1847 = vtanh.pop %v1843
        %v1848 = vtanh.pop %v1844
        %v1849 = vadd.f32 %v1845, 1.0
        %v1850 = vadd.f32 %v1846, 1.0
        %v1851 = vadd.f32 %v1847, 1.0
        %v1852 = vadd.f32 %v1848, 1.0
        %v1853 = vmul.f32 %v1849, 0.5
        %v1854 = vmul.f32 %v1850, 0.5
        %v1855 = vmul.f32 %v1851, 0.5
        %v1856 = vmul.f32 %v1852, 0.5
        %v1857 = vmul.f32 %v1817, %v1853
        %v1858 = vmul.f32 %v1819, %v1854
        %v1859 = vmul.f32 %v1821, %v1855
        %v1860 = vmul.f32 %v1823, %v1856
        %v1861 = vpack.c.bf16 %v1859, %v1857
        %v1862 = vpack.c.bf16 %v1860, %v1858
        %v1863 = vld [vmem:[%s765] sm:$0xf]
        %v1864 = vld [vmem:[%s765 + $0x4] sm:$0xf]
        %v1865 = vld [vmem:[%s765 + $0x8] sm:$0xf]
        %v1866 = vld [vmem:[%s765 + $0xc] sm:$0xf]
        %v1867 = vld [vmem:[%s765 + $0x10] sm:$0xf]
        %v1868 = vld [vmem:[%s765 + $0x14] sm:$0xf]
        %v1869 = vld [vmem:[%s765 + $0x18] sm:$0xf]
        %v1870 = vld [vmem:[%s765 + $0x1c] sm:$0xf]
        %v1871 = vld [vmem:[%s765 + $0x20] sm:$0xf]
        %v1872 = vld [vmem:[%s765 + $0x24] sm:$0xf]
        %v1873 = vld [vmem:[%s765 + $0x28] sm:$0xf]
        %v1874 = vld [vmem:[%s765 + $0x2c] sm:$0xf]
        %v1875 = vld [vmem:[%s765 + $0x30] sm:$0xf]
        %v1876 = vld [vmem:[%s765 + $0x34] sm:$0xf]
        %v1877 = vld [vmem:[%s765 + $0x38] sm:$0xf]
        %v1878 = vld [vmem:[%s765 + $0x3c] sm:$0xf]
        %v1879 = vld [vmem:[%s765 + $0x40] sm:$0xf]
        %v1880 = vld [vmem:[%s765 + $0x44] sm:$0xf]
        %v1881 = vld [vmem:[%s765 + $0x48] sm:$0xf]
        %v1882 = vld [vmem:[%s765 + $0x4c] sm:$0xf]
        %v1883 = vld [vmem:[%s765 + $0x50] sm:$0xf]
        %v1884 = vld [vmem:[%s765 + $0x54] sm:$0xf]
        %v1885 = vld [vmem:[%s765 + $0x58] sm:$0xf]
        %v1886 = vld [vmem:[%s765 + $0x5c] sm:$0xf]
        %v1887 = vld [vmem:[%s765 + $0x60] sm:$0xf]
        %v1888 = vld [vmem:[%s765 + $0x64] sm:$0xf]
        %v1889 = vld [vmem:[%s765 + $0x68] sm:$0xf]
        %v1890 = vld [vmem:[%s765 + $0x6c] sm:$0xf]
        %v1891 = vld [vmem:[%s765 + $0x70] sm:$0xf]
        %v1892 = vld [vmem:[%s765 + $0x74] sm:$0xf]
        %v1893 = vld [vmem:[%s765 + $0x78] sm:$0xf]
        %v1894 = vld [vmem:[%s765 + $0x7c] sm:$0xf]
        %v1895 = vld [vmem:[%s768] sm:$0x1]
        %v1897 = vlaneseq
        %v1898 = vshrl.u32 %v1897, 7
        %v1899 = vsub.s32 0, %v1898
        %v1900 = vrot.slane %v1895, %v1899
        %v1934 = vunpack.c.l.b16 %v1863
        %v1935 = vunpack.c.l.b16 %v1864
        %v1936 = vunpack.c.l.b16 %v1865
        %v1937 = vunpack.c.l.b16 %v1866
        %v1938 = vunpack.c.l.b16 %v1867
        %v1939 = vunpack.c.l.b16 %v1868
        %v1940 = vunpack.c.l.b16 %v1869
        %v1941 = vunpack.c.l.b16 %v1870
        %v1942 = vunpack.c.l.b16 %v1871
        %v1943 = vunpack.c.l.b16 %v1872
        %v1944 = vunpack.c.l.b16 %v1873
        %v1945 = vunpack.c.l.b16 %v1874
        %v1946 = vunpack.c.l.b16 %v1875
        %v1947 = vunpack.c.l.b16 %v1876
        %v1948 = vunpack.c.l.b16 %v1877
        %v1949 = vunpack.c.l.b16 %v1878
        %v1950 = vunpack.c.l.b16 %v1879
        %v1951 = vunpack.c.l.b16 %v1880
        %v1952 = vunpack.c.l.b16 %v1881
        %v1953 = vunpack.c.l.b16 %v1882
        %v1954 = vunpack.c.l.b16 %v1883
        %v1955 = vunpack.c.l.b16 %v1884
        %v1956 = vunpack.c.l.b16 %v1885
        %v1957 = vunpack.c.l.b16 %v1886
        %v1958 = vunpack.c.l.b16 %v1887
        %v1959 = vunpack.c.l.b16 %v1888
        %v1960 = vunpack.c.l.b16 %v1889
        %v1961 = vunpack.c.l.b16 %v1890
        %v1962 = vunpack.c.l.b16 %v1891
        %v1963 = vunpack.c.l.b16 %v1892
        %v1964 = vunpack.c.l.b16 %v1893
        %v1965 = vunpack.c.l.b16 %v1894
        %v1966 = vpack.c.b16 %v1935, %v1934
        %v1967 = vpack.c.b16 %v1937, %v1936
        %v1968 = vpack.c.b16 %v1939, %v1938
        %v1969 = vpack.c.b16 %v1941, %v1940
        %v1970 = vpack.c.b16 %v1943, %v1942
        %v1971 = vpack.c.b16 %v1945, %v1944
        %v1972 = vpack.c.b16 %v1947, %v1946
        %v1973 = vpack.c.b16 %v1949, %v1948
        %v1974 = vpack.c.b16 %v1951, %v1950
        %v1975 = vpack.c.b16 %v1953, %v1952
        %v1976 = vpack.c.b16 %v1955, %v1954
        %v1977 = vpack.c.b16 %v1957, %v1956
        %v1978 = vpack.c.b16 %v1959, %v1958
        %v1979 = vpack.c.b16 %v1961, %v1960
        %v1980 = vpack.c.b16 %v1963, %v1962
        %v1981 = vpack.c.b16 %v1965, %v1964
        %1998 = vmatprep.subr.bf16.mxu0 0
        %1999 = vmatpush1.bf16.msra.mxu0 %v1966
        %2000 = vmatprep.subr.bf16.mxu0 0
        %2001 = vmatpush1.bf16.msra.mxu0 %v1967
        %2002 = vmatprep.subr.bf16.mxu0 0
        %2003 = vmatpush1.bf16.msra.mxu0 %v1968
        %2004 = vmatprep.subr.bf16.mxu0 0
        %2005 = vmatpush1.bf16.msra.mxu0 %v1969
        %2006 = vmatprep.subr.bf16.mxu0 0
        %2007 = vmatpush1.bf16.msra.mxu0 %v1970
        %2008 = vmatprep.subr.bf16.mxu0 0
        %2009 = vmatpush1.bf16.msra.mxu0 %v1971
        %2010 = vmatprep.subr.bf16.mxu0 0
        %2011 = vmatpush1.bf16.msra.mxu0 %v1972
        %2012 = vmatprep.subr.bf16.mxu0 0
        %2013 = vmatpush1.bf16.msra.mxu0 %v1973
        %2014 = vmatprep.subr.bf16.mxu0 0
        %2015 = vmatpush1.bf16.msra.mxu0 %v1974
        %2016 = vmatprep.subr.bf16.mxu0 0
        %2017 = vmatpush1.bf16.msra.mxu0 %v1975
        %2018 = vmatprep.subr.bf16.mxu0 0
        %2019 = vmatpush1.bf16.msra.mxu0 %v1976
        %2020 = vmatprep.subr.bf16.mxu0 0
        %2021 = vmatpush1.bf16.msra.mxu0 %v1977
        %2022 = vmatprep.subr.bf16.mxu0 0
        %2023 = vmatpush1.bf16.msra.mxu0 %v1978
        %2024 = vmatprep.subr.bf16.mxu0 0
        %2025 = vmatpush1.bf16.msra.mxu0 %v1979
        %2026 = vmatprep.subr.bf16.mxu0 0
        %2027 = vmatpush1.bf16.msra.mxu0 %v1980
        %2028 = vmatprep.subr.bf16.mxu0 0
        %2029 = vmatpush1.bf16.msra.mxu0 %v1981
        %2030 = vmatprep.mubr.bf16.mxu0 %v1862
        %2031 = vmatmul.mubr.bf16.gmra.mrb[0].mxu0 %v1861
        %v2032 = vpop.f32.mrb[0].mxu0
        %v2033 = vadd.f32 %v1900, %v2032
        %v2034 = vpop.f32.mrb[0].mxu0
        %v2035 = vpop.f32.mrb[0].mxu0
        %v2036 = vadd.f32 %v1900, %v2035
        %v2037 = vpop.f32.mrb[0].mxu0
        %2038 = vdwg.mxu0
        %v2039 = vlaneseq
        %v2040 = vshrl.u32 %v2039, 7
        %v2041 = vsub.s32 5, %v2040
        %v2042 = vrot.slane %v915, %v2041
        %v2043 = vmul.f32 %v2042, %v2033
        %v2044 = vmul.f32 %v2042, %v2036
        %v2045 = vadd.f32 %v1678, %v2043
        %v2046 = vadd.f32 %v1679, %v2044
        %2047 = vst.msk [vmem:[#allocation2] sm:$0xff] %vm916, %v2045
        %2048 = vst.msk [vmem:[#allocation2 + $0x8] sm:$0xff] %vm916, %v2046
        %p2049 = scmp.eq.s32.totalorder %s36, 1
        // Predicated region
        $region93: #{mmm_dit_forward.55} parent=87 // pred_check
          %p2050 = pneg %p2049
        $region94: #{mmm_dit_forward.55} parent=87 // pred_check_branch
          %2052 = sbr.rel (%p2050) target = $region96
        $region95: #{mmm_dit_forward.55} parent=87 // pred_region
          %v2053 = vld [vmem:[%s734] sm:$0x3]
          %v2054 = vsel %vm916, %v2045, 0.0
          %2055 = vadd.xlane.f32.xlu0 %v2054
          %v2056 = vpop.xlane.xlu0 %2055
          %v2057 = vsel %vm916, %v2046, 0.0
          %2058 = vadd.xlane.f32.xlu0 %v2057
          %v2059 = vpop.xlane.xlu0 %2058
          %v2060 = vmul.f32 %v2056, %v923
          %v2061 = vmul.f32 %v2059, %v923
          %v2062 = vsub.f32 %v2045, %v2060
          %v2063 = vsub.f32 %v2046, %v2061
          %v2064 = vmul.f32 %v2062, %v2062
          %v2065 = vmul.f32 %v2063, %v2063
          %v2066 = vsel %vm916, %v2064, 0.0
          %2067 = vadd.xlane.f32.xlu0 %v2066
          %v2068 = vpop.xlane.xlu0 %2067
          %v2069 = vsel %vm916, %v2065, 0.0
          %2070 = vadd.xlane.f32.xlu0 %v2069
          %v2071 = vpop.xlane.xlu0 %2070
          %v2072 = vmul.f32 %v2068, %v923
          %v2073 = vmul.f32 %v2071, %v923
          %v2074 = vadd.f32 %v2072, 1e-06
          %v2075 = vadd.f32 %v2073, 1e-06
          %v2076 = vrsqrt.pop %v2074
          %v2077 = vrsqrt.pop %v2075
          %v2078 = vmul.f32 %v2062, %v2076
          %v2079 = vmul.f32 %v2063, %v2077
          %v2080 = vadd.f32 %v2053, 1.0
          %v2081 = vlaneseq
          %v2082 = vshrl.u32 %v2081, 7
          %v2083 = vsub.s32 1, %v2082
          %v2084 = vrot.slane %v2080, %v2083
          %v2085 = vmul.f32 %v2078, %v2084
          %v2086 = vmul.f32 %v2079, %v2084
          %v2087 = vlaneseq
          %v2088 = vshrl.u32 %v2087, 7
          %v2089 = vsub.s32 0, %v2088
          %v2090 = vrot.slane %v2053, %v2089
          %v2091 = vadd.f32 %v2085, %v2090
          %v2092 = vadd.f32 %v2086, %v2090
          %v2093 = vpack.c.bf16 %v2092, %v2091
          %v2094 = vld [vmem:[%s15] sm:$0xf]
          %v2095 = vld [vmem:[%s15 + $0x4] sm:$0xf]
          %v2096 = vld [vmem:[%s15 + $0x8] sm:$0xf]
          %v2097 = vld [vmem:[%s15 + $0xc] sm:$0xf]
          %v2098 = vld [vmem:[%s15 + $0x10] sm:$0xf]
          %v2099 = vld [vmem:[%s15 + $0x14] sm:$0xf]
          %v2100 = vld [vmem:[%s15 + $0x18] sm:$0xf]
          %v2101 = vld [vmem:[%s15 + $0x1c] sm:$0xf]
          %v2102 = vld [vmem:[%s16] sm:$0x1]
          %v2104 = vlaneseq
          %v2105 = vshrl.u32 %v2104, 7
          %v2106 = vsub.s32 0, %v2105
          %v2107 = vrot.slane %v2102, %v2106
          %v2117 = vunpack.c.l.b16 %v2094
          %v2118 = vunpack.c.l.b16 %v2095
          %v2119 = vunpack.c.l.b16 %v2096
          %v2120 = vunpack.c.l.b16 %v2097
          %v2121 = vunpack.c.l.b16 %v2098
          %v2122 = vunpack.c.l.b16 %v2099
          %v2123 = vunpack.c.l.b16 %v2100
          %v2124 = vunpack.c.l.b16 %v2101
          %v2125 = vpack.c.b16 %v2118, %v2117
          %v2126 = vpack.c.b16 %v2120, %v2119
          %v2127 = vpack.c.b16 %v2122, %v2121
          %v2128 = vpack.c.b16 %v2124, %v2123
          %v2134 = vsel %vm916, %v2093, 0
          %2136 = vmatprep.subr.bf16.mxu0 0
          %2137 = vmatpush1.bf16.msra.mxu0 %v2125
          %2138 = vmatprep.subr.bf16.mxu0 0
          %2139 = vmatpush1.bf16.msra.mxu0 %v2126
          %2140 = vmatprep.subr.bf16.mxu0 0
          %2141 = vmatpush1.bf16.msra.mxu0 %v2127
          %2142 = vmatprep.subr.bf16.mxu0 0
          %2143 = vmatpush1.bf16.msra.mxu0 %v2128
          %2144 = vmatprep.subr.bf16.mxu0 0
          %2145 = vmatpush1.bf16.msra.mxu0 0
          %2146 = vmatprep.subr.bf16.mxu0 0
          %2147 = vmatpush1.bf16.msra.mxu0 0
          %2148 = vmatprep.subr.bf16.mxu0 0
          %2149 = vmatpush1.bf16.msra.mxu0 0
          %2150 = vmatprep.subr.bf16.mxu0 0
          %2151 = vmatpush1.bf16.msra.mxu0 0
          %2152 = vmatprep.subr.bf16.mxu0 0
          %2153 = vmatpush1.bf16.msra.mxu0 0
          %2154 = vmatprep.subr.bf16.mxu0 0
          %2155 = vmatpush1.bf16.msra.mxu0 0
          %2156 = vmatprep.subr.bf16.mxu0 0
          %2157 = vmatpush1.bf16.msra.mxu0 0
          %2158 = vmatprep.subr.bf16.mxu0 0
          %2159 = vmatpush1.bf16.msra.mxu0 0
          %2160 = vmatprep.subr.bf16.mxu0 0
          %2161 = vmatpush1.bf16.msra.mxu0 0
          %2162 = vmatprep.subr.bf16.mxu0 0
          %2163 = vmatpush1.bf16.msra.mxu0 0
          %2164 = vmatprep.subr.bf16.mxu0 0
          %2165 = vmatpush1.bf16.msra.mxu0 0
          %2166 = vmatprep.subr.bf16.mxu0 0
          %2167 = vmatpush1.bf16.msra.mxu0 0
          %2168 = vmatprep.mubr.bf16.mxu0 0
          %2169 = vmatmul.mubr.bf16.gmra.mrb[0].mxu0 %v2134
          %v2170 = vpop.f32.mrb[0].mxu0
          %v2171 = vadd.f32 %v2107, %v2170
          %v2172 = vpop.f32.mrb[0].mxu0
          %v2173 = vpop.f32.mrb[0].mxu0
          %v2174 = vadd.f32 %v2107, %v2173
          %v2175 = vpop.f32.mrb[0].mxu0
          %2176 = vdwg.mxu0
          %2177 = vst.msk [vmem:[%s712] sm:$0xff] %vm1582, %v2171
          %2178 = vst.msk [vmem:[%s712 + $0x8] sm:$0xff] %vm1582, %v2174
        $region96: #{mmm_dit_forward.55} parent=87 // pred_fallthru
          _
        %s2179 = sand.u32 %s470, 1
        %s2180 = scalar_lea.sflag [#allocation4], %s2179
        %s2181 = sand.u32 %s470, 1
        %s2182 = smul.addr %s2181, 16
        %s2183 = scalar_lea.vmem [#allocation3], %s2182
        // Predicated region
        $region97: #{mmm_dit_forward.55} parent=87 // pred_check
          %p2184 = pneg %p480
        $region98: #{mmm_dit_forward.55} parent=87 // pred_check_branch
          %2186 = sbr.rel (%p2184) target = $region100
        $region99: #{mmm_dit_forward.55} parent=87 // pred_region
          %s2188 = ssub.s32 256, 256
          %2189 = vsyncadd %s2180, %s2188
          %s2190 = smul.addr %s35, 2
          %s2191 = smul.addr %s2190, 128
          %s2192 = scalar_lea.hbm %s17, %s2191
          %s2193 = sshll.u32 %s2183, 4
          %s2194 = int_to_ptr.vmem [resolvable:$true] %s2193
          %2199 = dma.vmem_to_hbm [thread:$0]  %s2194, 256, %s2192, %s2180, 128, 128, 8
        $region100: #{mmm_dit_forward.55} parent=87 // pred_fallthru
          _
      $region88: #{mmm_dit_forward.55} parent=5 // pred_fallthru
        _
      %p2200 = scmp.le.s32.totalorder 2, %s26
      // Predicated region
      $region101: #{mmm_dit_forward.55} parent=5 // pred_check
        %p2201 = pneg %p2200
      $region102: #{mmm_dit_forward.55} parent=5 // pred_check_branch
        %2203 = sbr.rel (%p2201) target = $region104
      $region103: #{mmm_dit_forward.55} parent=5 // pred_region
        %s2204 = ssub.s32 %s26, 2
        // Predicated region
        $region105: #{mmm_dit_forward.55} parent=103 // pred_check
          %p2205 = pneg %p486
        $region106: #{mmm_dit_forward.55} parent=103 // pred_check_branch
          %2207 = sbr.rel (%p2205) target = $region108
        $region107: #{mmm_dit_forward.55} parent=103 // pred_region
          %s2208 = sand.u32 %s471, 1
          %s2209 = scalar_lea.sflag [#allocation4], %s2208
          %s2210 = sand.u32 %s471, 1
          %s2211 = smul.addr %s2210, 16
          %s2212 = scalar_lea.vmem [#allocation3], %s2211
          %2213 = dma.done %s2209, 256
        $region108: #{mmm_dit_forward.55} parent=103 // pred_fallthru
          _
      $region104: #{mmm_dit_forward.55} parent=5 // pred_fallthru
        _
    $region6: #{mmm_dit_forward.55} parent=1 // loop_footer
      %s30 = sadd.s32 1, %s26
    $region7: #{mmm_dit_forward.55} parent=1 // loop_footer_branch
      %25 = sbr.rel target = $region3
    $region8: #{mmm_dit_forward.55} parent=1 // loop_exit
      _
    %2214 = vsyncpa [#allocation4], 1
    %s2215 = scalar_lea.sflag [#allocation4], 1
    %2216 = vsyncpa %s2215, 1

</llo_original>
